<compile_context>
chip_gen: v7x
topology: tpu7x:2x2x1
jax: 0.10.0
libtpu: 0.0.40
codegen_flags: <defaults>
</compile_context>

<pallas_src>
import functools

import jax
import jax.numpy as jnp
from jax.experimental import pallas as pl
from jax.experimental.pallas import tpu as pltpu

HIGHEST = jax.lax.Precision.HIGHEST


# ----------------------------------------------------------------------------
# Fused kernel: whole Audio_Sequential stack for one batch element.
# ----------------------------------------------------------------------------
def make_stack_kernel(dilations, kernel_size, out_channels, eps=1e-5):
    dilations = tuple(int(d) for d in dilations)

    def kernel(x_ref, w1s_ref, cvecs_ref, wbs_ref, bbs_ref, alphas_ref, out_ref):
        cur = x_ref[0]                              # [Cin, T], float32
        T = cur.shape[1]
        inv_n = 1.0 / float(out_channels * T)

        def gln(h, w, b):
            # single-pass stats: var = E[h^2] - mean^2 ; rsqrt on the EUP
            s1 = jnp.sum(h, axis=1, keepdims=True)          # [Cout, 1]
            s2 = jnp.sum(h * h, axis=1, keepdims=True)      # [Cout, 1]
            mean = jnp.sum(s1, axis=0, keepdims=True) * inv_n   # [1, 1]
            msq = jnp.sum(s2, axis=0, keepdims=True) * inv_n    # [1, 1]
            var = msq - mean * mean
            return w * ((h - mean) * jax.lax.rsqrt(var + eps)) + b

        # Statically unrolled over all blocks; activation stays in VMEM.
        for blk, dil in enumerate(dilations):
            pad = dil * (kernel_size - 1) // 2      # non-causal "same" padding

            w1 = w1s_ref[blk]                       # [Cout, Cin]
            wb = wbs_ref[blk]                       # [Cin, Cout]
            cv = cvecs_ref[blk]                     # [Cout, 6+K]
            b1, g1w, g1b = cv[:, 0:1], cv[:, 1:2], cv[:, 2:3]
            db, g2w, g2b = cv[:, 3:4], cv[:, 4:5], cv[:, 5:6]
            bb = bbs_ref[blk]                       # [Cin, 1]
            a1 = alphas_ref[blk, 0]                 # SMEM scalars
            a2 = alphas_ref[blk, 1]

            # conv1x1 (pointwise) + bias
            h = jnp.dot(w1, cur, precision=HIGHEST,
                        preferred_element_type=jnp.float32) + b1      # [Cout, T]
            # PReLU #1 (single shared alpha)
            h = jnp.where(h > 0, h, a1 * h)
            # gLN #1
            h = gln(h, g1w, g1b)

            # depthwise dilated conv ("same" padding) via static zero-padded
            # lane shifts -- no masks, no negative-shift roll.
            acc = jnp.zeros_like(h)
            for k in range(kernel_size):
                off = k * dil - pad
                wk = cv[:, 6 + k:7 + k]             # [Cout, 1] tap weight
                if off == 0:
                    sh = h
                elif off > 0:                       # sh[t] = h[t+off], zero tail
                    sh = jnp.concatenate(
                        [h[:, off:], jnp.zeros((out_channels, off), h.dtype)],
                        axis=1)
                else:                               # sh[t] = h[t+off], zero head
                    sh = jnp.concatenate(
                        [jnp.zeros((out_channels, -off), h.dtype), h[:, :off]],
                        axis=1)
                acc = acc + wk * sh
            h = acc + db

            # gLN #2 then PReLU #2
            h = gln(h, g2w, g2b)
            h = jnp.where(h > 0, h, a2 * h)

            # B_conv (pointwise back to Cin) + residual
            cur = jnp.dot(wb, h, precision=HIGHEST,
                          preferred_element_type=jnp.float32) + bb + cur

        out_ref[0] = cur.astype(out_ref.dtype)

    return kernel


# ----------------------------------------------------------------------------
# Parameter packing + wrapper.
# ----------------------------------------------------------------------------
def pack_params(params_list):
    w1s = jnp.stack([p["w1"] for p in params_list])            # [nb, Cout, Cin]
    wbs = jnp.stack([p["wb"] for p in params_list])            # [nb, Cin, Cout]
    bbs = jnp.stack([p["bb"] for p in params_list])            # [nb, Cin, 1]
    cvecs = jnp.stack([
        jnp.concatenate([p["b1"], p["g1w"], p["g1b"],
                         p["db"], p["g2w"], p["g2b"], p["dw"]], axis=1)
        for p in params_list])                                  # [nb, Cout, 6+K]
    alphas = jnp.stack([jnp.stack([p["a1"][0, 0], p["a2"][0, 0]])
                        for p in params_list])                  # [nb, 2]
    return w1s, cvecs, wbs, bbs, alphas


def audio_sequential(x, params_list, *, dilations, kernel_size, eps=1e-5):
    """x: [B, N, T] -> [B, N, T]  (skip_con=False path of Audio_Sequential)."""
    B, N, T = x.shape
    Cout = params_list[0]["w1"].shape[0]
    b_conv = params_list[0]["wb"].shape[0]
    assert b_conv == N, "residual path requires b_conv == in_channels"

    w1s, cvecs, wbs, bbs, alphas = pack_params(params_list)
    kernel = make_stack_kernel(dilations, kernel_size, Cout, eps)

    def full_spec(arr):
        nd = arr.ndim
        return pl.BlockSpec(arr.shape, lambda b, _nd=nd: (0,) * _nd)

    return pl.pallas_call(
        kernel,
        out_shape=jax.ShapeDtypeStruct((B, N, T), x.dtype),
        grid=(B,),
        in_specs=[
            pl.BlockSpec((1, N, T), lambda b: (b, 0, 0)),              # x
            full_spec(w1s),                                            # w1s
            full_spec(cvecs),                                          # packed per-channel vecs
            full_spec(wbs),                                            # B_conv weights
            full_spec(bbs),                                            # B_conv bias
            pl.BlockSpec(memory_space=pltpu.MemorySpace.SMEM),         # PReLU alphas
        ],
        out_specs=pl.BlockSpec((1, N, T), lambda b: (b, 0, 0)),
        compiler_params=pltpu.CompilerParams(
            dimension_semantics=("parallel",)),
    )(x, w1s, cvecs, wbs, bbs, alphas)


# ----------------------------------------------------------------------------
# Parameter init (deterministic; PyTorch-style defaults where they matter:
# gLN weight=1/bias=0, PReLU alpha=0.25; conv weights small random).
# Sc_conv omitted: skip_con=False means it is never used in forward.
# ----------------------------------------------------------------------------
def init_block_params(key, in_channels, out_channels, b_conv, kernel_size):
    ks = jax.random.split(key, 6)
    f32 = jnp.float32
    return {
        "w1": 0.1 * jax.random.normal(ks[0], (out_channels, in_channels), f32),
        "b1": 0.1 * jax.random.normal(ks[1], (out_channels, 1), f32),
        "a1": jnp.full((1, 1), 0.25, f32),
        "g1w": jnp.ones((out_channels, 1), f32),
        "g1b": jnp.zeros((out_channels, 1), f32),
        "dw": 0.1 * jax.random.normal(ks[2], (out_channels, kernel_size), f32),
        "db": 0.1 * jax.random.normal(ks[3], (out_channels, 1), f32),
        "g2w": jnp.ones((out_channels, 1), f32),
        "g2b": jnp.zeros((out_channels, 1), f32),
        "a2": jnp.full((1, 1), 0.25, f32),
        "wb": 0.1 * jax.random.normal(ks[4], (b_conv, out_channels), f32),
        "bb": 0.1 * jax.random.normal(ks[5], (b_conv, 1), f32),
    }


# ----------------------------------------------------------------------------
# Pure-JAX reference of the same math (PyTorch-faithful: two-pass gLN stats).
# ----------------------------------------------------------------------------
def ref_block(x, p, dilation, kernel_size, eps=1e-5):
    pad = dilation * (kernel_size - 1) // 2
    B, N, T = x.shape

    def gln(h, w, b):
        mean = jnp.mean(h, axis=(1, 2), keepdims=True)
        var = jnp.mean((h - mean) ** 2, axis=(1, 2), keepdims=True)
        return w[None] * (h - mean) / jnp.sqrt(var + eps) + b[None]

    def prelu(h, a):
        return jnp.where(h > 0, h, a[0, 0] * h)

    h = jnp.einsum("oi,bit->bot", p["w1"], x, precision=HIGHEST) + p["b1"][None]
    h = prelu(h, p["a1"])
    h = gln(h, p["g1w"], p["g1b"])
    hp = jnp.pad(h, ((0, 0), (0, 0), (pad, pad)))
    acc = jnp.zeros_like(h)
    for k in range(kernel_size):
        acc = acc + p["dw"][:, k][None, :, None] * hp[:, :, k * dilation:k * dilation + T]
    h = acc + p["db"][None]
    h = prelu(gln(h, p["g2w"], p["g2b"]), p["a2"])
    return jnp.einsum("oi,bit->bot", p["wb"], h, precision=HIGHEST) + p["bb"][None] + x


def ref_sequential(x, params_list, dilations, kernel_size):
    for p, d in zip(params_list, dilations):
        x = ref_block(x, p, d, kernel_size)
    return x


# ----------------------------------------------------------------------------
if __name__ == "__main__":
    # Audio_Sequential(repeats=2, blocks=2, in_channels=16, out_channels=32,
    #                  b_conv=16, kernel_size=3, norm='gln', causal=False,
    #                  skip_con=False)
    repeats, blocks = 2, 2
    in_channels, out_channels, b_conv, kernel_size = 16, 32, 16, 3
    B, T = 2, 128

    dilations = [2 ** b for _ in range(repeats) for b in range(blocks)]  # [1,2,1,2]

    key = jax.random.PRNGKey(0)
    key, xkey = jax.random.split(key)
    x = jax.random.normal(xkey, (B, in_channels, T), jnp.float32)  # [B, N, T]

    params_list = []
    for _ in range(repeats * blocks):
        key, pkey = jax.random.split(key)
        params_list.append(
            init_block_params(pkey, in_channels, out_channels, b_conv, kernel_size))

    run = jax.jit(functools.partial(audio_sequential,
                                    dilations=tuple(dilations),
                                    kernel_size=kernel_size))
    out = jax.block_until_ready(run(x, params_list))

    ref = ref_sequential(x, params_list, dilations, kernel_size)
    assert out.shape == (B, in_channels, T)
    assert jnp.allclose(out, ref, atol=1e-3, rtol=1e-3), "mismatch vs reference"

    # TODO(synk): skip_con=True path (Sc_conv + accumulated skip output) not
    # implemented; module default skip_con=False is what is reproduced here.
    print("KERNEL_OK")
</pallas_src>

<mosaic_0001>
module attributes {stable_mosaic.version = 11 : i64} {
  func.func @kernel(%arg0: i32, %arg1: memref<1x16x128xf32, #tpu.memory_space<vmem>>, %arg2: memref<4x32x16xf32, #tpu.memory_space<vmem>>, %arg3: memref<4x32x9xf32, #tpu.memory_space<vmem>>, %arg4: memref<4x16x32xf32, #tpu.memory_space<vmem>>, %arg5: memref<4x16x1xf32, #tpu.memory_space<vmem>>, %arg6: memref<4x2xf32, #tpu.memory_space<smem>>, %arg7: memref<1x16x128xf32, #tpu.memory_space<vmem>>) attributes {dimension_semantics = [#tpu.dimension_semantics<parallel>], iteration_bounds = array<i64: 2>, scalar_prefetch = 0 : i64, scratch_operands = 0 : i64, tpu.core_type = #tpu.core_type<tc>, window_params = [{transform_indices = @transform_0, window_bounds = array<i64: 1, 16, 128>}, {pipeline_mode = #tpu.pipeline_mode<synchronous>, transform_indices = @transform_1, window_bounds = array<i64: 4, 32, 16>}, {pipeline_mode = #tpu.pipeline_mode<synchronous>, transform_indices = @transform_2, window_bounds = array<i64: 4, 32, 9>}, {pipeline_mode = #tpu.pipeline_mode<synchronous>, transform_indices = @transform_3, window_bounds = array<i64: 4, 16, 32>}, {pipeline_mode = #tpu.pipeline_mode<synchronous>, transform_indices = @transform_4, window_bounds = array<i64: 4, 16, 1>}, {transform_indices = @transform_5, window_bounds = array<i64: 4, 2>}, {transform_indices = @transform_6, window_bounds = array<i64: 1, 16, 128>}]} {
    %c0 = arith.constant 0 : index
    %c0_0 = arith.constant 0 : index
    %c0_1 = arith.constant 0 : index
    %0 = vector.load %arg1[%c0, %c0_0, %c0_1] : memref<1x16x128xf32, #tpu.memory_space<vmem>>, vector<1x16x128xf32>
    %1 = vector.shape_cast %0 : vector<1x16x128xf32> to vector<16x128xf32>
    %c0_2 = arith.constant 0 : index
    %c0_3 = arith.constant 0 : index
    %c0_4 = arith.constant 0 : index
    %2 = vector.load %arg2[%c0_2, %c0_3, %c0_4] : memref<4x32x16xf32, #tpu.memory_space<vmem>>, vector<1x32x16xf32>
    %3 = vector.shape_cast %2 : vector<1x32x16xf32> to vector<32x16xf32>
    %c0_5 = arith.constant 0 : index
    %c0_6 = arith.constant 0 : index
    %c0_7 = arith.constant 0 : index
    %4 = vector.load %arg4[%c0_5, %c0_6, %c0_7] : memref<4x16x32xf32, #tpu.memory_space<vmem>>, vector<1x16x32xf32>
    %5 = vector.shape_cast %4 : vector<1x16x32xf32> to vector<16x32xf32>
    %c0_8 = arith.constant 0 : index
    %c0_9 = arith.constant 0 : index
    %c0_10 = arith.constant 0 : index
    %6 = vector.load %arg3[%c0_8, %c0_9, %c0_10] : memref<4x32x9xf32, #tpu.memory_space<vmem>>, vector<1x32x9xf32>
    %7 = vector.shape_cast %6 : vector<1x32x9xf32> to vector<32x9xf32>
    %8 = vector.extract_strided_slice %7 {offsets = [0, 0], sizes = [32, 1], strides = [1, 1]} : vector<32x9xf32> to vector<32x1xf32>
    %9 = vector.extract_strided_slice %7 {offsets = [0, 1], sizes = [32, 1], strides = [1, 1]} : vector<32x9xf32> to vector<32x1xf32>
    %10 = vector.extract_strided_slice %7 {offsets = [0, 2], sizes = [32, 1], strides = [1, 1]} : vector<32x9xf32> to vector<32x1xf32>
    %11 = vector.extract_strided_slice %7 {offsets = [0, 3], sizes = [32, 1], strides = [1, 1]} : vector<32x9xf32> to vector<32x1xf32>
    %12 = vector.extract_strided_slice %7 {offsets = [0, 4], sizes = [32, 1], strides = [1, 1]} : vector<32x9xf32> to vector<32x1xf32>
    %13 = vector.extract_strided_slice %7 {offsets = [0, 5], sizes = [32, 1], strides = [1, 1]} : vector<32x9xf32> to vector<32x1xf32>
    %c0_11 = arith.constant 0 : index
    %c0_12 = arith.constant 0 : index
    %c0_13 = arith.constant 0 : index
    %14 = vector.load %arg5[%c0_11, %c0_12, %c0_13] : memref<4x16x1xf32, #tpu.memory_space<vmem>>, vector<1x16x1xf32>
    %15 = vector.shape_cast %14 : vector<1x16x1xf32> to vector<16x1xf32>
    %c0_14 = arith.constant 0 : index
    %c0_15 = arith.constant 0 : index
    %16 = memref.load %arg6[%c0_14, %c0_15] : memref<4x2xf32, #tpu.memory_space<smem>>
    %c0_16 = arith.constant 0 : index
    %c1 = arith.constant 1 : index
    %17 = memref.load %arg6[%c0_16, %c1] : memref<4x2xf32, #tpu.memory_space<smem>>
    %cst = arith.constant dense<0.000000e+00> : vector<32x128xf32>
    %18 = tpu.matmul %3, %1, %cst {dimension_numbers = #tpu.dot_dimension_numbers<[1], [0], [0], [1], [0, 0, 1, 1], [], []>, precision = #tpu.contract_precision<fp32>} : vector<32x16xf32>, vector<16x128xf32>, vector<32x128xf32> -> vector<32x128xf32>
    %19 = vector.broadcast %8 : vector<32x1xf32> to vector<32x128xf32>
    %20 = arith.addf %18, %19 : vector<32x128xf32>
    %cst_17 = arith.constant 0.000000e+00 : f32
    %21 = vector.broadcast %cst_17 : f32 to vector<32x128xf32>
    %22 = arith.cmpf ogt, %20, %21 : vector<32x128xf32>
    %23 = vector.broadcast %16 : f32 to vector<32x128xf32>
    %24 = arith.mulf %23, %20 : vector<32x128xf32>
    %25 = arith.select %22, %20, %24 : vector<32x128xi1>, vector<32x128xf32>
    %cst_18 = arith.constant dense<0.000000e+00> : vector<32xf32>
    %26 = vector.multi_reduction <add>, %25, %cst_18 [1] : vector<32x128xf32> to vector<32xf32>
    %27 = vector.shape_cast %26 : vector<32xf32> to vector<32x1xf32>
    %28 = arith.mulf %25, %25 : vector<32x128xf32>
    %cst_19 = arith.constant dense<0.000000e+00> : vector<32xf32>
    %29 = vector.multi_reduction <add>, %28, %cst_19 [1] : vector<32x128xf32> to vector<32xf32>
    %30 = vector.shape_cast %29 : vector<32xf32> to vector<32x1xf32>
    %cst_20 = arith.constant dense<0.000000e+00> : vector<1xf32>
    %31 = vector.multi_reduction <add>, %27, %cst_20 [0] : vector<32x1xf32> to vector<1xf32>
    %32 = vector.shape_cast %31 : vector<1xf32> to vector<1x1xf32>
    %cst_21 = arith.constant 2.44140625E-4 : f32
    %33 = vector.broadcast %cst_21 : f32 to vector<1x1xf32>
    %34 = arith.mulf %32, %33 : vector<1x1xf32>
    %cst_22 = arith.constant dense<0.000000e+00> : vector<1xf32>
    %35 = vector.multi_reduction <add>, %30, %cst_22 [0] : vector<32x1xf32> to vector<1xf32>
    %36 = vector.shape_cast %35 : vector<1xf32> to vector<1x1xf32>
    %cst_23 = arith.constant 2.44140625E-4 : f32
    %37 = vector.broadcast %cst_23 : f32 to vector<1x1xf32>
    %38 = arith.mulf %36, %37 : vector<1x1xf32>
    %39 = arith.mulf %34, %34 : vector<1x1xf32>
    %40 = arith.subf %38, %39 : vector<1x1xf32>
    %41 = vector.broadcast %34 : vector<1x1xf32> to vector<32x128xf32>
    %42 = arith.subf %25, %41 : vector<32x128xf32>
    %cst_24 = arith.constant 9.99999974E-6 : f32
    %43 = vector.broadcast %cst_24 : f32 to vector<1x1xf32>
    %44 = arith.addf %40, %43 : vector<1x1xf32>
    %45 = math.rsqrt %44 : vector<1x1xf32>
    %46 = vector.broadcast %45 : vector<1x1xf32> to vector<32x128xf32>
    %47 = arith.mulf %42, %46 : vector<32x128xf32>
    %48 = vector.broadcast %9 : vector<32x1xf32> to vector<32x128xf32>
    %49 = arith.mulf %48, %47 : vector<32x128xf32>
    %50 = vector.broadcast %10 : vector<32x1xf32> to vector<32x128xf32>
    %51 = arith.addf %49, %50 : vector<32x128xf32>
    %cst_25 = arith.constant 0.000000e+00 : f32
    %52 = vector.broadcast %cst_25 : f32 to vector<32x128xf32>
    %53 = vector.extract_strided_slice %7 {offsets = [0, 6], sizes = [32, 1], strides = [1, 1]} : vector<32x9xf32> to vector<32x1xf32>
    %cst_26 = arith.constant 0.000000e+00 : f32
    %54 = vector.broadcast %cst_26 : f32 to vector<32x1xf32>
    %55 = vector.extract_strided_slice %51 {offsets = [0, 0], sizes = [32, 127], strides = [1, 1]} : vector<32x128xf32> to vector<32x127xf32>
    %56 = tpu.concatenate %54, %55 in 1 : vector<32x1xf32>, vector<32x127xf32> -> vector<32x128xf32>
    %57 = vector.broadcast %53 : vector<32x1xf32> to vector<32x128xf32>
    %58 = arith.mulf %57, %56 : vector<32x128xf32>
    %59 = arith.addf %52, %58 : vector<32x128xf32>
    %60 = vector.extract_strided_slice %7 {offsets = [0, 7], sizes = [32, 1], strides = [1, 1]} : vector<32x9xf32> to vector<32x1xf32>
    %61 = vector.broadcast %60 : vector<32x1xf32> to vector<32x128xf32>
    %62 = arith.mulf %61, %51 : vector<32x128xf32>
    %63 = arith.addf %59, %62 : vector<32x128xf32>
    %64 = vector.extract_strided_slice %7 {offsets = [0, 8], sizes = [32, 1], strides = [1, 1]} : vector<32x9xf32> to vector<32x1xf32>
    %65 = vector.extract_strided_slice %51 {offsets = [0, 1], sizes = [32, 127], strides = [1, 1]} : vector<32x128xf32> to vector<32x127xf32>
    %cst_27 = arith.constant 0.000000e+00 : f32
    %66 = vector.broadcast %cst_27 : f32 to vector<32x1xf32>
    %67 = tpu.concatenate %65, %66 in 1 : vector<32x127xf32>, vector<32x1xf32> -> vector<32x128xf32>
    %68 = vector.broadcast %64 : vector<32x1xf32> to vector<32x128xf32>
    %69 = arith.mulf %68, %67 : vector<32x128xf32>
    %70 = arith.addf %63, %69 : vector<32x128xf32>
    %71 = vector.broadcast %11 : vector<32x1xf32> to vector<32x128xf32>
    %72 = arith.addf %70, %71 : vector<32x128xf32>
    %cst_28 = arith.constant dense<0.000000e+00> : vector<32xf32>
    %73 = vector.multi_reduction <add>, %72, %cst_28 [1] : vector<32x128xf32> to vector<32xf32>
    %74 = vector.shape_cast %73 : vector<32xf32> to vector<32x1xf32>
    %75 = arith.mulf %72, %72 : vector<32x128xf32>
    %cst_29 = arith.constant dense<0.000000e+00> : vector<32xf32>
    %76 = vector.multi_reduction <add>, %75, %cst_29 [1] : vector<32x128xf32> to vector<32xf32>
    %77 = vector.shape_cast %76 : vector<32xf32> to vector<32x1xf32>
    %cst_30 = arith.constant dense<0.000000e+00> : vector<1xf32>
    %78 = vector.multi_reduction <add>, %74, %cst_30 [0] : vector<32x1xf32> to vector<1xf32>
    %79 = vector.shape_cast %78 : vector<1xf32> to vector<1x1xf32>
    %cst_31 = arith.constant 2.44140625E-4 : f32
    %80 = vector.broadcast %cst_31 : f32 to vector<1x1xf32>
    %81 = arith.mulf %79, %80 : vector<1x1xf32>
    %cst_32 = arith.constant dense<0.000000e+00> : vector<1xf32>
    %82 = vector.multi_reduction <add>, %77, %cst_32 [0] : vector<32x1xf32> to vector<1xf32>
    %83 = vector.shape_cast %82 : vector<1xf32> to vector<1x1xf32>
    %cst_33 = arith.constant 2.44140625E-4 : f32
    %84 = vector.broadcast %cst_33 : f32 to vector<1x1xf32>
    %85 = arith.mulf %83, %84 : vector<1x1xf32>
    %86 = arith.mulf %81, %81 : vector<1x1xf32>
    %87 = arith.subf %85, %86 : vector<1x1xf32>
    %88 = vector.broadcast %81 : vector<1x1xf32> to vector<32x128xf32>
    %89 = arith.subf %72, %88 : vector<32x128xf32>
    %cst_34 = arith.constant 9.99999974E-6 : f32
    %90 = vector.broadcast %cst_34 : f32 to vector<1x1xf32>
    %91 = arith.addf %87, %90 : vector<1x1xf32>
    %92 = math.rsqrt %91 : vector<1x1xf32>
    %93 = vector.broadcast %92 : vector<1x1xf32> to vector<32x128xf32>
    %94 = arith.mulf %89, %93 : vector<32x128xf32>
    %95 = vector.broadcast %12 : vector<32x1xf32> to vector<32x128xf32>
    %96 = arith.mulf %95, %94 : vector<32x128xf32>
    %97 = vector.broadcast %13 : vector<32x1xf32> to vector<32x128xf32>
    %98 = arith.addf %96, %97 : vector<32x128xf32>
    %cst_35 = arith.constant 0.000000e+00 : f32
    %99 = vector.broadcast %cst_35 : f32 to vector<32x128xf32>
    %100 = arith.cmpf ogt, %98, %99 : vector<32x128xf32>
    %101 = vector.broadcast %17 : f32 to vector<32x128xf32>
    %102 = arith.mulf %101, %98 : vector<32x128xf32>
    %103 = arith.select %100, %98, %102 : vector<32x128xi1>, vector<32x128xf32>
    %cst_36 = arith.constant dense<0.000000e+00> : vector<16x128xf32>
    %104 = tpu.matmul %5, %103, %cst_36 {dimension_numbers = #tpu.dot_dimension_numbers<[1], [0], [0], [1], [0, 0, 1, 1], [], []>, precision = #tpu.contract_precision<fp32>} : vector<16x32xf32>, vector<32x128xf32>, vector<16x128xf32> -> vector<16x128xf32>
    %105 = vector.broadcast %15 : vector<16x1xf32> to vector<16x128xf32>
    %106 = arith.addf %104, %105 : vector<16x128xf32>
    %107 = arith.addf %106, %1 : vector<16x128xf32>
    %c1_37 = arith.constant 1 : index
    %c0_38 = arith.constant 0 : index
    %c0_39 = arith.constant 0 : index
    %108 = vector.load %arg2[%c1_37, %c0_38, %c0_39] : memref<4x32x16xf32, #tpu.memory_space<vmem>>, vector<1x32x16xf32>
    %109 = vector.shape_cast %108 : vector<1x32x16xf32> to vector<32x16xf32>
    %c1_40 = arith.constant 1 : index
    %c0_41 = arith.constant 0 : index
    %c0_42 = arith.constant 0 : index
    %110 = vector.load %arg4[%c1_40, %c0_41, %c0_42] : memref<4x16x32xf32, #tpu.memory_space<vmem>>, vector<1x16x32xf32>
    %111 = vector.shape_cast %110 : vector<1x16x32xf32> to vector<16x32xf32>
    %c1_43 = arith.constant 1 : index
    %c0_44 = arith.constant 0 : index
    %c0_45 = arith.constant 0 : index
    %112 = vector.load %arg3[%c1_43, %c0_44, %c0_45] : memref<4x32x9xf32, #tpu.memory_space<vmem>>, vector<1x32x9xf32>
    %113 = vector.shape_cast %112 : vector<1x32x9xf32> to vector<32x9xf32>
    %114 = vector.extract_strided_slice %113 {offsets = [0, 0], sizes = [32, 1], strides = [1, 1]} : vector<32x9xf32> to vector<32x1xf32>
    %115 = vector.extract_strided_slice %113 {offsets = [0, 1], sizes = [32, 1], strides = [1, 1]} : vector<32x9xf32> to vector<32x1xf32>
    %116 = vector.extract_strided_slice %113 {offsets = [0, 2], sizes = [32, 1], strides = [1, 1]} : vector<32x9xf32> to vector<32x1xf32>
    %117 = vector.extract_strided_slice %113 {offsets = [0, 3], sizes = [32, 1], strides = [1, 1]} : vector<32x9xf32> to vector<32x1xf32>
    %118 = vector.extract_strided_slice %113 {offsets = [0, 4], sizes = [32, 1], strides = [1, 1]} : vector<32x9xf32> to vector<32x1xf32>
    %119 = vector.extract_strided_slice %113 {offsets = [0, 5], sizes = [32, 1], strides = [1, 1]} : vector<32x9xf32> to vector<32x1xf32>
    %c1_46 = arith.constant 1 : index
    %c0_47 = arith.constant 0 : index
    %c0_48 = arith.constant 0 : index
    %120 = vector.load %arg5[%c1_46, %c0_47, %c0_48] : memref<4x16x1xf32, #tpu.memory_space<vmem>>, vector<1x16x1xf32>
    %121 = vector.shape_cast %120 : vector<1x16x1xf32> to vector<16x1xf32>
    %c1_49 = arith.constant 1 : index
    %c0_50 = arith.constant 0 : index
    %122 = memref.load %arg6[%c1_49, %c0_50] : memref<4x2xf32, #tpu.memory_space<smem>>
    %c1_51 = arith.constant 1 : index
    %c1_52 = arith.constant 1 : index
    %123 = memref.load %arg6[%c1_51, %c1_52] : memref<4x2xf32, #tpu.memory_space<smem>>
    %cst_53 = arith.constant dense<0.000000e+00> : vector<32x128xf32>
    %124 = tpu.matmul %109, %107, %cst_53 {dimension_numbers = #tpu.dot_dimension_numbers<[1], [0], [0], [1], [0, 0, 1, 1], [], []>, precision = #tpu.contract_precision<fp32>} : vector<32x16xf32>, vector<16x128xf32>, vector<32x128xf32> -> vector<32x128xf32>
    %125 = vector.broadcast %114 : vector<32x1xf32> to vector<32x128xf32>
    %126 = arith.addf %124, %125 : vector<32x128xf32>
    %cst_54 = arith.constant 0.000000e+00 : f32
    %127 = vector.broadcast %cst_54 : f32 to vector<32x128xf32>
    %128 = arith.cmpf ogt, %126, %127 : vector<32x128xf32>
    %129 = vector.broadcast %122 : f32 to vector<32x128xf32>
    %130 = arith.mulf %129, %126 : vector<32x128xf32>
    %131 = arith.select %128, %126, %130 : vector<32x128xi1>, vector<32x128xf32>
    %cst_55 = arith.constant dense<0.000000e+00> : vector<32xf32>
    %132 = vector.multi_reduction <add>, %131, %cst_55 [1] : vector<32x128xf32> to vector<32xf32>
    %133 = vector.shape_cast %132 : vector<32xf32> to vector<32x1xf32>
    %134 = arith.mulf %131, %131 : vector<32x128xf32>
    %cst_56 = arith.constant dense<0.000000e+00> : vector<32xf32>
    %135 = vector.multi_reduction <add>, %134, %cst_56 [1] : vector<32x128xf32> to vector<32xf32>
    %136 = vector.shape_cast %135 : vector<32xf32> to vector<32x1xf32>
    %cst_57 = arith.constant dense<0.000000e+00> : vector<1xf32>
    %137 = vector.multi_reduction <add>, %133, %cst_57 [0] : vector<32x1xf32> to vector<1xf32>
    %138 = vector.shape_cast %137 : vector<1xf32> to vector<1x1xf32>
    %cst_58 = arith.constant 2.44140625E-4 : f32
    %139 = vector.broadcast %cst_58 : f32 to vector<1x1xf32>
    %140 = arith.mulf %138, %139 : vector<1x1xf32>
    %cst_59 = arith.constant dense<0.000000e+00> : vector<1xf32>
    %141 = vector.multi_reduction <add>, %136, %cst_59 [0] : vector<32x1xf32> to vector<1xf32>
    %142 = vector.shape_cast %141 : vector<1xf32> to vector<1x1xf32>
    %cst_60 = arith.constant 2.44140625E-4 : f32
    %143 = vector.broadcast %cst_60 : f32 to vector<1x1xf32>
    %144 = arith.mulf %142, %143 : vector<1x1xf32>
    %145 = arith.mulf %140, %140 : vector<1x1xf32>
    %146 = arith.subf %144, %145 : vector<1x1xf32>
    %147 = vector.broadcast %140 : vector<1x1xf32> to vector<32x128xf32>
    %148 = arith.subf %131, %147 : vector<32x128xf32>
    %cst_61 = arith.constant 9.99999974E-6 : f32
    %149 = vector.broadcast %cst_61 : f32 to vector<1x1xf32>
    %150 = arith.addf %146, %149 : vector<1x1xf32>
    %151 = math.rsqrt %150 : vector<1x1xf32>
    %152 = vector.broadcast %151 : vector<1x1xf32> to vector<32x128xf32>
    %153 = arith.mulf %148, %152 : vector<32x128xf32>
    %154 = vector.broadcast %115 : vector<32x1xf32> to vector<32x128xf32>
    %155 = arith.mulf %154, %153 : vector<32x128xf32>
    %156 = vector.broadcast %116 : vector<32x1xf32> to vector<32x128xf32>
    %157 = arith.addf %155, %156 : vector<32x128xf32>
    %cst_62 = arith.constant 0.000000e+00 : f32
    %158 = vector.broadcast %cst_62 : f32 to vector<32x128xf32>
    %159 = vector.extract_strided_slice %113 {offsets = [0, 6], sizes = [32, 1], strides = [1, 1]} : vector<32x9xf32> to vector<32x1xf32>
    %cst_63 = arith.constant 0.000000e+00 : f32
    %160 = vector.broadcast %cst_63 : f32 to vector<32x2xf32>
    %161 = vector.extract_strided_slice %157 {offsets = [0, 0], sizes = [32, 126], strides = [1, 1]} : vector<32x128xf32> to vector<32x126xf32>
    %162 = tpu.concatenate %160, %161 in 1 : vector<32x2xf32>, vector<32x126xf32> -> vector<32x128xf32>
    %163 = vector.broadcast %159 : vector<32x1xf32> to vector<32x128xf32>
    %164 = arith.mulf %163, %162 : vector<32x128xf32>
    %165 = arith.addf %158, %164 : vector<32x128xf32>
    %166 = vector.extract_strided_slice %113 {offsets = [0, 7], sizes = [32, 1], strides = [1, 1]} : vector<32x9xf32> to vector<32x1xf32>
    %167 = vector.broadcast %166 : vector<32x1xf32> to vector<32x128xf32>
    %168 = arith.mulf %167, %157 : vector<32x128xf32>
    %169 = arith.addf %165, %168 : vector<32x128xf32>
    %170 = vector.extract_strided_slice %113 {offsets = [0, 8], sizes = [32, 1], strides = [1, 1]} : vector<32x9xf32> to vector<32x1xf32>
    %171 = vector.extract_strided_slice %157 {offsets = [0, 2], sizes = [32, 126], strides = [1, 1]} : vector<32x128xf32> to vector<32x126xf32>
    %cst_64 = arith.constant 0.000000e+00 : f32
    %172 = vector.broadcast %cst_64 : f32 to vector<32x2xf32>
    %173 = tpu.concatenate %171, %172 in 1 : vector<32x126xf32>, vector<32x2xf32> -> vector<32x128xf32>
    %174 = vector.broadcast %170 : vector<32x1xf32> to vector<32x128xf32>
    %175 = arith.mulf %174, %173 : vector<32x128xf32>
    %176 = arith.addf %169, %175 : vector<32x128xf32>
    %177 = vector.broadcast %117 : vector<32x1xf32> to vector<32x128xf32>
    %178 = arith.addf %176, %177 : vector<32x128xf32>
    %cst_65 = arith.constant dense<0.000000e+00> : vector<32xf32>
    %179 = vector.multi_reduction <add>, %178, %cst_65 [1] : vector<32x128xf32> to vector<32xf32>
    %180 = vector.shape_cast %179 : vector<32xf32> to vector<32x1xf32>
    %181 = arith.mulf %178, %178 : vector<32x128xf32>
    %cst_66 = arith.constant dense<0.000000e+00> : vector<32xf32>
    %182 = vector.multi_reduction <add>, %181, %cst_66 [1] : vector<32x128xf32> to vector<32xf32>
    %183 = vector.shape_cast %182 : vector<32xf32> to vector<32x1xf32>
    %cst_67 = arith.constant dense<0.000000e+00> : vector<1xf32>
    %184 = vector.multi_reduction <add>, %180, %cst_67 [0] : vector<32x1xf32> to vector<1xf32>
    %185 = vector.shape_cast %184 : vector<1xf32> to vector<1x1xf32>
    %cst_68 = arith.constant 2.44140625E-4 : f32
    %186 = vector.broadcast %cst_68 : f32 to vector<1x1xf32>
    %187 = arith.mulf %185, %186 : vector<1x1xf32>
    %cst_69 = arith.constant dense<0.000000e+00> : vector<1xf32>
    %188 = vector.multi_reduction <add>, %183, %cst_69 [0] : vector<32x1xf32> to vector<1xf32>
    %189 = vector.shape_cast %188 : vector<1xf32> to vector<1x1xf32>
    %cst_70 = arith.constant 2.44140625E-4 : f32
    %190 = vector.broadcast %cst_70 : f32 to vector<1x1xf32>
    %191 = arith.mulf %189, %190 : vector<1x1xf32>
    %192 = arith.mulf %187, %187 : vector<1x1xf32>
    %193 = arith.subf %191, %192 : vector<1x1xf32>
    %194 = vector.broadcast %187 : vector<1x1xf32> to vector<32x128xf32>
    %195 = arith.subf %178, %194 : vector<32x128xf32>
    %cst_71 = arith.constant 9.99999974E-6 : f32
    %196 = vector.broadcast %cst_71 : f32 to vector<1x1xf32>
    %197 = arith.addf %193, %196 : vector<1x1xf32>
    %198 = math.rsqrt %197 : vector<1x1xf32>
    %199 = vector.broadcast %198 : vector<1x1xf32> to vector<32x128xf32>
    %200 = arith.mulf %195, %199 : vector<32x128xf32>
    %201 = vector.broadcast %118 : vector<32x1xf32> to vector<32x128xf32>
    %202 = arith.mulf %201, %200 : vector<32x128xf32>
    %203 = vector.broadcast %119 : vector<32x1xf32> to vector<32x128xf32>
    %204 = arith.addf %202, %203 : vector<32x128xf32>
    %cst_72 = arith.constant 0.000000e+00 : f32
    %205 = vector.broadcast %cst_72 : f32 to vector<32x128xf32>
    %206 = arith.cmpf ogt, %204, %205 : vector<32x128xf32>
    %207 = vector.broadcast %123 : f32 to vector<32x128xf32>
    %208 = arith.mulf %207, %204 : vector<32x128xf32>
    %209 = arith.select %206, %204, %208 : vector<32x128xi1>, vector<32x128xf32>
    %cst_73 = arith.constant dense<0.000000e+00> : vector<16x128xf32>
    %210 = tpu.matmul %111, %209, %cst_73 {dimension_numbers = #tpu.dot_dimension_numbers<[1], [0], [0], [1], [0, 0, 1, 1], [], []>, precision = #tpu.contract_precision<fp32>} : vector<16x32xf32>, vector<32x128xf32>, vector<16x128xf32> -> vector<16x128xf32>
    %211 = vector.broadcast %121 : vector<16x1xf32> to vector<16x128xf32>
    %212 = arith.addf %210, %211 : vector<16x128xf32>
    %213 = arith.addf %212, %107 : vector<16x128xf32>
    %c2 = arith.constant 2 : index
    %c0_74 = arith.constant 0 : index
    %c0_75 = arith.constant 0 : index
    %214 = vector.load %arg2[%c2, %c0_74, %c0_75] : memref<4x32x16xf32, #tpu.memory_space<vmem>>, vector<1x32x16xf32>
    %215 = vector.shape_cast %214 : vector<1x32x16xf32> to vector<32x16xf32>
    %c2_76 = arith.constant 2 : index
    %c0_77 = arith.constant 0 : index
    %c0_78 = arith.constant 0 : index
    %216 = vector.load %arg4[%c2_76, %c0_77, %c0_78] : memref<4x16x32xf32, #tpu.memory_space<vmem>>, vector<1x16x32xf32>
    %217 = vector.shape_cast %216 : vector<1x16x32xf32> to vector<16x32xf32>
    %c2_79 = arith.constant 2 : index
    %c0_80 = arith.constant 0 : index
    %c0_81 = arith.constant 0 : index
    %218 = vector.load %arg3[%c2_79, %c0_80, %c0_81] : memref<4x32x9xf32, #tpu.memory_space<vmem>>, vector<1x32x9xf32>
    %219 = vector.shape_cast %218 : vector<1x32x9xf32> to vector<32x9xf32>
    %220 = vector.extract_strided_slice %219 {offsets = [0, 0], sizes = [32, 1], strides = [1, 1]} : vector<32x9xf32> to vector<32x1xf32>
    %221 = vector.extract_strided_slice %219 {offsets = [0, 1], sizes = [32, 1], strides = [1, 1]} : vector<32x9xf32> to vector<32x1xf32>
    %222 = vector.extract_strided_slice %219 {offsets = [0, 2], sizes = [32, 1], strides = [1, 1]} : vector<32x9xf32> to vector<32x1xf32>
    %223 = vector.extract_strided_slice %219 {offsets = [0, 3], sizes = [32, 1], strides = [1, 1]} : vector<32x9xf32> to vector<32x1xf32>
    %224 = vector.extract_strided_slice %219 {offsets = [0, 4], sizes = [32, 1], strides = [1, 1]} : vector<32x9xf32> to vector<32x1xf32>
    %225 = vector.extract_strided_slice %219 {offsets = [0, 5], sizes = [32, 1], strides = [1, 1]} : vector<32x9xf32> to vector<32x1xf32>
    %c2_82 = arith.constant 2 : index
    %c0_83 = arith.constant 0 : index
    %c0_84 = arith.constant 0 : index
    %226 = vector.load %arg5[%c2_82, %c0_83, %c0_84] : memref<4x16x1xf32, #tpu.memory_space<vmem>>, vector<1x16x1xf32>
    %227 = vector.shape_cast %226 : vector<1x16x1xf32> to vector<16x1xf32>
    %c2_85 = arith.constant 2 : index
    %c0_86 = arith.constant 0 : index
    %228 = memref.load %arg6[%c2_85, %c0_86] : memref<4x2xf32, #tpu.memory_space<smem>>
    %c2_87 = arith.constant 2 : index
    %c1_88 = arith.constant 1 : index
    %229 = memref.load %arg6[%c2_87, %c1_88] : memref<4x2xf32, #tpu.memory_space<smem>>
    %cst_89 = arith.constant dense<0.000000e+00> : vector<32x128xf32>
    %230 = tpu.matmul %215, %213, %cst_89 {dimension_numbers = #tpu.dot_dimension_numbers<[1], [0], [0], [1], [0, 0, 1, 1], [], []>, precision = #tpu.contract_precision<fp32>} : vector<32x16xf32>, vector<16x128xf32>, vector<32x128xf32> -> vector<32x128xf32>
    %231 = vector.broadcast %220 : vector<32x1xf32> to vector<32x128xf32>
    %232 = arith.addf %230, %231 : vector<32x128xf32>
    %cst_90 = arith.constant 0.000000e+00 : f32
    %233 = vector.broadcast %cst_90 : f32 to vector<32x128xf32>
    %234 = arith.cmpf ogt, %232, %233 : vector<32x128xf32>
    %235 = vector.broadcast %228 : f32 to vector<32x128xf32>
    %236 = arith.mulf %235, %232 : vector<32x128xf32>
    %237 = arith.select %234, %232, %236 : vector<32x128xi1>, vector<32x128xf32>
    %cst_91 = arith.constant dense<0.000000e+00> : vector<32xf32>
    %238 = vector.multi_reduction <add>, %237, %cst_91 [1] : vector<32x128xf32> to vector<32xf32>
    %239 = vector.shape_cast %238 : vector<32xf32> to vector<32x1xf32>
    %240 = arith.mulf %237, %237 : vector<32x128xf32>
    %cst_92 = arith.constant dense<0.000000e+00> : vector<32xf32>
    %241 = vector.multi_reduction <add>, %240, %cst_92 [1] : vector<32x128xf32> to vector<32xf32>
    %242 = vector.shape_cast %241 : vector<32xf32> to vector<32x1xf32>
    %cst_93 = arith.constant dense<0.000000e+00> : vector<1xf32>
    %243 = vector.multi_reduction <add>, %239, %cst_93 [0] : vector<32x1xf32> to vector<1xf32>
    %244 = vector.shape_cast %243 : vector<1xf32> to vector<1x1xf32>
    %cst_94 = arith.constant 2.44140625E-4 : f32
    %245 = vector.broadcast %cst_94 : f32 to vector<1x1xf32>
    %246 = arith.mulf %244, %245 : vector<1x1xf32>
    %cst_95 = arith.constant dense<0.000000e+00> : vector<1xf32>
    %247 = vector.multi_reduction <add>, %242, %cst_95 [0] : vector<32x1xf32> to vector<1xf32>
    %248 = vector.shape_cast %247 : vector<1xf32> to vector<1x1xf32>
    %cst_96 = arith.constant 2.44140625E-4 : f32
    %249 = vector.broadcast %cst_96 : f32 to vector<1x1xf32>
    %250 = arith.mulf %248, %249 : vector<1x1xf32>
    %251 = arith.mulf %246, %246 : vector<1x1xf32>
    %252 = arith.subf %250, %251 : vector<1x1xf32>
    %253 = vector.broadcast %246 : vector<1x1xf32> to vector<32x128xf32>
    %254 = arith.subf %237, %253 : vector<32x128xf32>
    %cst_97 = arith.constant 9.99999974E-6 : f32
    %255 = vector.broadcast %cst_97 : f32 to vector<1x1xf32>
    %256 = arith.addf %252, %255 : vector<1x1xf32>
    %257 = math.rsqrt %256 : vector<1x1xf32>
    %258 = vector.broadcast %257 : vector<1x1xf32> to vector<32x128xf32>
    %259 = arith.mulf %254, %258 : vector<32x128xf32>
    %260 = vector.broadcast %221 : vector<32x1xf32> to vector<32x128xf32>
    %261 = arith.mulf %260, %259 : vector<32x128xf32>
    %262 = vector.broadcast %222 : vector<32x1xf32> to vector<32x128xf32>
    %263 = arith.addf %261, %262 : vector<32x128xf32>
    %cst_98 = arith.constant 0.000000e+00 : f32
    %264 = vector.broadcast %cst_98 : f32 to vector<32x128xf32>
    %265 = vector.extract_strided_slice %219 {offsets = [0, 6], sizes = [32, 1], strides = [1, 1]} : vector<32x9xf32> to vector<32x1xf32>
    %cst_99 = arith.constant 0.000000e+00 : f32
    %266 = vector.broadcast %cst_99 : f32 to vector<32x1xf32>
    %267 = vector.extract_strided_slice %263 {offsets = [0, 0], sizes = [32, 127], strides = [1, 1]} : vector<32x128xf32> to vector<32x127xf32>
    %268 = tpu.concatenate %266, %267 in 1 : vector<32x1xf32>, vector<32x127xf32> -> vector<32x128xf32>
    %269 = vector.broadcast %265 : vector<32x1xf32> to vector<32x128xf32>
    %270 = arith.mulf %269, %268 : vector<32x128xf32>
    %271 = arith.addf %264, %270 : vector<32x128xf32>
    %272 = vector.extract_strided_slice %219 {offsets = [0, 7], sizes = [32, 1], strides = [1, 1]} : vector<32x9xf32> to vector<32x1xf32>
    %273 = vector.broadcast %272 : vector<32x1xf32> to vector<32x128xf32>
    %274 = arith.mulf %273, %263 : vector<32x128xf32>
    %275 = arith.addf %271, %274 : vector<32x128xf32>
    %276 = vector.extract_strided_slice %219 {offsets = [0, 8], sizes = [32, 1], strides = [1, 1]} : vector<32x9xf32> to vector<32x1xf32>
    %277 = vector.extract_strided_slice %263 {offsets = [0, 1], sizes = [32, 127], strides = [1, 1]} : vector<32x128xf32> to vector<32x127xf32>
    %cst_100 = arith.constant 0.000000e+00 : f32
    %278 = vector.broadcast %cst_100 : f32 to vector<32x1xf32>
    %279 = tpu.concatenate %277, %278 in 1 : vector<32x127xf32>, vector<32x1xf32> -> vector<32x128xf32>
    %280 = vector.broadcast %276 : vector<32x1xf32> to vector<32x128xf32>
    %281 = arith.mulf %280, %279 : vector<32x128xf32>
    %282 = arith.addf %275, %281 : vector<32x128xf32>
    %283 = vector.broadcast %223 : vector<32x1xf32> to vector<32x128xf32>
    %284 = arith.addf %282, %283 : vector<32x128xf32>
    %cst_101 = arith.constant dense<0.000000e+00> : vector<32xf32>
    %285 = vector.multi_reduction <add>, %284, %cst_101 [1] : vector<32x128xf32> to vector<32xf32>
    %286 = vector.shape_cast %285 : vector<32xf32> to vector<32x1xf32>
    %287 = arith.mulf %284, %284 : vector<32x128xf32>
    %cst_102 = arith.constant dense<0.000000e+00> : vector<32xf32>
    %288 = vector.multi_reduction <add>, %287, %cst_102 [1] : vector<32x128xf32> to vector<32xf32>
    %289 = vector.shape_cast %288 : vector<32xf32> to vector<32x1xf32>
    %cst_103 = arith.constant dense<0.000000e+00> : vector<1xf32>
    %290 = vector.multi_reduction <add>, %286, %cst_103 [0] : vector<32x1xf32> to vector<1xf32>
    %291 = vector.shape_cast %290 : vector<1xf32> to vector<1x1xf32>
    %cst_104 = arith.constant 2.44140625E-4 : f32
    %292 = vector.broadcast %cst_104 : f32 to vector<1x1xf32>
    %293 = arith.mulf %291, %292 : vector<1x1xf32>
    %cst_105 = arith.constant dense<0.000000e+00> : vector<1xf32>
    %294 = vector.multi_reduction <add>, %289, %cst_105 [0] : vector<32x1xf32> to vector<1xf32>
    %295 = vector.shape_cast %294 : vector<1xf32> to vector<1x1xf32>
    %cst_106 = arith.constant 2.44140625E-4 : f32
    %296 = vector.broadcast %cst_106 : f32 to vector<1x1xf32>
    %297 = arith.mulf %295, %296 : vector<1x1xf32>
    %298 = arith.mulf %293, %293 : vector<1x1xf32>
    %299 = arith.subf %297, %298 : vector<1x1xf32>
    %300 = vector.broadcast %293 : vector<1x1xf32> to vector<32x128xf32>
    %301 = arith.subf %284, %300 : vector<32x128xf32>
    %cst_107 = arith.constant 9.99999974E-6 : f32
    %302 = vector.broadcast %cst_107 : f32 to vector<1x1xf32>
    %303 = arith.addf %299, %302 : vector<1x1xf32>
    %304 = math.rsqrt %303 : vector<1x1xf32>
    %305 = vector.broadcast %304 : vector<1x1xf32> to vector<32x128xf32>
    %306 = arith.mulf %301, %305 : vector<32x128xf32>
    %307 = vector.broadcast %224 : vector<32x1xf32> to vector<32x128xf32>
    %308 = arith.mulf %307, %306 : vector<32x128xf32>
    %309 = vector.broadcast %225 : vector<32x1xf32> to vector<32x128xf32>
    %310 = arith.addf %308, %309 : vector<32x128xf32>
    %cst_108 = arith.constant 0.000000e+00 : f32
    %311 = vector.broadcast %cst_108 : f32 to vector<32x128xf32>
    %312 = arith.cmpf ogt, %310, %311 : vector<32x128xf32>
    %313 = vector.broadcast %229 : f32 to vector<32x128xf32>
    %314 = arith.mulf %313, %310 : vector<32x128xf32>
    %315 = arith.select %312, %310, %314 : vector<32x128xi1>, vector<32x128xf32>
    %cst_109 = arith.constant dense<0.000000e+00> : vector<16x128xf32>
    %316 = tpu.matmul %217, %315, %cst_109 {dimension_numbers = #tpu.dot_dimension_numbers<[1], [0], [0], [1], [0, 0, 1, 1], [], []>, precision = #tpu.contract_precision<fp32>} : vector<16x32xf32>, vector<32x128xf32>, vector<16x128xf32> -> vector<16x128xf32>
    %317 = vector.broadcast %227 : vector<16x1xf32> to vector<16x128xf32>
    %318 = arith.addf %316, %317 : vector<16x128xf32>
    %319 = arith.addf %318, %213 : vector<16x128xf32>
    %c3 = arith.constant 3 : index
    %c0_110 = arith.constant 0 : index
    %c0_111 = arith.constant 0 : index
    %320 = vector.load %arg2[%c3, %c0_110, %c0_111] : memref<4x32x16xf32, #tpu.memory_space<vmem>>, vector<1x32x16xf32>
    %321 = vector.shape_cast %320 : vector<1x32x16xf32> to vector<32x16xf32>
    %c3_112 = arith.constant 3 : index
    %c0_113 = arith.constant 0 : index
    %c0_114 = arith.constant 0 : index
    %322 = vector.load %arg4[%c3_112, %c0_113, %c0_114] : memref<4x16x32xf32, #tpu.memory_space<vmem>>, vector<1x16x32xf32>
    %323 = vector.shape_cast %322 : vector<1x16x32xf32> to vector<16x32xf32>
    %c3_115 = arith.constant 3 : index
    %c0_116 = arith.constant 0 : index
    %c0_117 = arith.constant 0 : index
    %324 = vector.load %arg3[%c3_115, %c0_116, %c0_117] : memref<4x32x9xf32, #tpu.memory_space<vmem>>, vector<1x32x9xf32>
    %325 = vector.shape_cast %324 : vector<1x32x9xf32> to vector<32x9xf32>
    %326 = vector.extract_strided_slice %325 {offsets = [0, 0], sizes = [32, 1], strides = [1, 1]} : vector<32x9xf32> to vector<32x1xf32>
    %327 = vector.extract_strided_slice %325 {offsets = [0, 1], sizes = [32, 1], strides = [1, 1]} : vector<32x9xf32> to vector<32x1xf32>
    %328 = vector.extract_strided_slice %325 {offsets = [0, 2], sizes = [32, 1], strides = [1, 1]} : vector<32x9xf32> to vector<32x1xf32>
    %329 = vector.extract_strided_slice %325 {offsets = [0, 3], sizes = [32, 1], strides = [1, 1]} : vector<32x9xf32> to vector<32x1xf32>
    %330 = vector.extract_strided_slice %325 {offsets = [0, 4], sizes = [32, 1], strides = [1, 1]} : vector<32x9xf32> to vector<32x1xf32>
    %331 = vector.extract_strided_slice %325 {offsets = [0, 5], sizes = [32, 1], strides = [1, 1]} : vector<32x9xf32> to vector<32x1xf32>
    %c3_118 = arith.constant 3 : index
    %c0_119 = arith.constant 0 : index
    %c0_120 = arith.constant 0 : index
    %332 = vector.load %arg5[%c3_118, %c0_119, %c0_120] : memref<4x16x1xf32, #tpu.memory_space<vmem>>, vector<1x16x1xf32>
    %333 = vector.shape_cast %332 : vector<1x16x1xf32> to vector<16x1xf32>
    %c3_121 = arith.constant 3 : index
    %c0_122 = arith.constant 0 : index
    %334 = memref.load %arg6[%c3_121, %c0_122] : memref<4x2xf32, #tpu.memory_space<smem>>
    %c3_123 = arith.constant 3 : index
    %c1_124 = arith.constant 1 : index
    %335 = memref.load %arg6[%c3_123, %c1_124] : memref<4x2xf32, #tpu.memory_space<smem>>
    %cst_125 = arith.constant dense<0.000000e+00> : vector<32x128xf32>
    %336 = tpu.matmul %321, %319, %cst_125 {dimension_numbers = #tpu.dot_dimension_numbers<[1], [0], [0], [1], [0, 0, 1, 1], [], []>, precision = #tpu.contract_precision<fp32>} : vector<32x16xf32>, vector<16x128xf32>, vector<32x128xf32> -> vector<32x128xf32>
    %337 = vector.broadcast %326 : vector<32x1xf32> to vector<32x128xf32>
    %338 = arith.addf %336, %337 : vector<32x128xf32>
    %cst_126 = arith.constant 0.000000e+00 : f32
    %339 = vector.broadcast %cst_126 : f32 to vector<32x128xf32>
    %340 = arith.cmpf ogt, %338, %339 : vector<32x128xf32>
    %341 = vector.broadcast %334 : f32 to vector<32x128xf32>
    %342 = arith.mulf %341, %338 : vector<32x128xf32>
    %343 = arith.select %340, %338, %342 : vector<32x128xi1>, vector<32x128xf32>
    %cst_127 = arith.constant dense<0.000000e+00> : vector<32xf32>
    %344 = vector.multi_reduction <add>, %343, %cst_127 [1] : vector<32x128xf32> to vector<32xf32>
    %345 = vector.shape_cast %344 : vector<32xf32> to vector<32x1xf32>
    %346 = arith.mulf %343, %343 : vector<32x128xf32>
    %cst_128 = arith.constant dense<0.000000e+00> : vector<32xf32>
    %347 = vector.multi_reduction <add>, %346, %cst_128 [1] : vector<32x128xf32> to vector<32xf32>
    %348 = vector.shape_cast %347 : vector<32xf32> to vector<32x1xf32>
    %cst_129 = arith.constant dense<0.000000e+00> : vector<1xf32>
    %349 = vector.multi_reduction <add>, %345, %cst_129 [0] : vector<32x1xf32> to vector<1xf32>
    %350 = vector.shape_cast %349 : vector<1xf32> to vector<1x1xf32>
    %cst_130 = arith.constant 2.44140625E-4 : f32
    %351 = vector.broadcast %cst_130 : f32 to vector<1x1xf32>
    %352 = arith.mulf %350, %351 : vector<1x1xf32>
    %cst_131 = arith.constant dense<0.000000e+00> : vector<1xf32>
    %353 = vector.multi_reduction <add>, %348, %cst_131 [0] : vector<32x1xf32> to vector<1xf32>
    %354 = vector.shape_cast %353 : vector<1xf32> to vector<1x1xf32>
    %cst_132 = arith.constant 2.44140625E-4 : f32
    %355 = vector.broadcast %cst_132 : f32 to vector<1x1xf32>
    %356 = arith.mulf %354, %355 : vector<1x1xf32>
    %357 = arith.mulf %352, %352 : vector<1x1xf32>
    %358 = arith.subf %356, %357 : vector<1x1xf32>
    %359 = vector.broadcast %352 : vector<1x1xf32> to vector<32x128xf32>
    %360 = arith.subf %343, %359 : vector<32x128xf32>
    %cst_133 = arith.constant 9.99999974E-6 : f32
    %361 = vector.broadcast %cst_133 : f32 to vector<1x1xf32>
    %362 = arith.addf %358, %361 : vector<1x1xf32>
    %363 = math.rsqrt %362 : vector<1x1xf32>
    %364 = vector.broadcast %363 : vector<1x1xf32> to vector<32x128xf32>
    %365 = arith.mulf %360, %364 : vector<32x128xf32>
    %366 = vector.broadcast %327 : vector<32x1xf32> to vector<32x128xf32>
    %367 = arith.mulf %366, %365 : vector<32x128xf32>
    %368 = vector.broadcast %328 : vector<32x1xf32> to vector<32x128xf32>
    %369 = arith.addf %367, %368 : vector<32x128xf32>
    %cst_134 = arith.constant 0.000000e+00 : f32
    %370 = vector.broadcast %cst_134 : f32 to vector<32x128xf32>
    %371 = vector.extract_strided_slice %325 {offsets = [0, 6], sizes = [32, 1], strides = [1, 1]} : vector<32x9xf32> to vector<32x1xf32>
    %cst_135 = arith.constant 0.000000e+00 : f32
    %372 = vector.broadcast %cst_135 : f32 to vector<32x2xf32>
    %373 = vector.extract_strided_slice %369 {offsets = [0, 0], sizes = [32, 126], strides = [1, 1]} : vector<32x128xf32> to vector<32x126xf32>
    %374 = tpu.concatenate %372, %373 in 1 : vector<32x2xf32>, vector<32x126xf32> -> vector<32x128xf32>
    %375 = vector.broadcast %371 : vector<32x1xf32> to vector<32x128xf32>
    %376 = arith.mulf %375, %374 : vector<32x128xf32>
    %377 = arith.addf %370, %376 : vector<32x128xf32>
    %378 = vector.extract_strided_slice %325 {offsets = [0, 7], sizes = [32, 1], strides = [1, 1]} : vector<32x9xf32> to vector<32x1xf32>
    %379 = vector.broadcast %378 : vector<32x1xf32> to vector<32x128xf32>
    %380 = arith.mulf %379, %369 : vector<32x128xf32>
    %381 = arith.addf %377, %380 : vector<32x128xf32>
    %382 = vector.extract_strided_slice %325 {offsets = [0, 8], sizes = [32, 1], strides = [1, 1]} : vector<32x9xf32> to vector<32x1xf32>
    %383 = vector.extract_strided_slice %369 {offsets = [0, 2], sizes = [32, 126], strides = [1, 1]} : vector<32x128xf32> to vector<32x126xf32>
    %cst_136 = arith.constant 0.000000e+00 : f32
    %384 = vector.broadcast %cst_136 : f32 to vector<32x2xf32>
    %385 = tpu.concatenate %383, %384 in 1 : vector<32x126xf32>, vector<32x2xf32> -> vector<32x128xf32>
    %386 = vector.broadcast %382 : vector<32x1xf32> to vector<32x128xf32>
    %387 = arith.mulf %386, %385 : vector<32x128xf32>
    %388 = arith.addf %381, %387 : vector<32x128xf32>
    %389 = vector.broadcast %329 : vector<32x1xf32> to vector<32x128xf32>
    %390 = arith.addf %388, %389 : vector<32x128xf32>
    %cst_137 = arith.constant dense<0.000000e+00> : vector<32xf32>
    %391 = vector.multi_reduction <add>, %390, %cst_137 [1] : vector<32x128xf32> to vector<32xf32>
    %392 = vector.shape_cast %391 : vector<32xf32> to vector<32x1xf32>
    %393 = arith.mulf %390, %390 : vector<32x128xf32>
    %cst_138 = arith.constant dense<0.000000e+00> : vector<32xf32>
    %394 = vector.multi_reduction <add>, %393, %cst_138 [1] : vector<32x128xf32> to vector<32xf32>
    %395 = vector.shape_cast %394 : vector<32xf32> to vector<32x1xf32>
    %cst_139 = arith.constant dense<0.000000e+00> : vector<1xf32>
    %396 = vector.multi_reduction <add>, %392, %cst_139 [0] : vector<32x1xf32> to vector<1xf32>
    %397 = vector.shape_cast %396 : vector<1xf32> to vector<1x1xf32>
    %cst_140 = arith.constant 2.44140625E-4 : f32
    %398 = vector.broadcast %cst_140 : f32 to vector<1x1xf32>
    %399 = arith.mulf %397, %398 : vector<1x1xf32>
    %cst_141 = arith.constant dense<0.000000e+00> : vector<1xf32>
    %400 = vector.multi_reduction <add>, %395, %cst_141 [0] : vector<32x1xf32> to vector<1xf32>
    %401 = vector.shape_cast %400 : vector<1xf32> to vector<1x1xf32>
    %cst_142 = arith.constant 2.44140625E-4 : f32
    %402 = vector.broadcast %cst_142 : f32 to vector<1x1xf32>
    %403 = arith.mulf %401, %402 : vector<1x1xf32>
    %404 = arith.mulf %399, %399 : vector<1x1xf32>
    %405 = arith.subf %403, %404 : vector<1x1xf32>
    %406 = vector.broadcast %399 : vector<1x1xf32> to vector<32x128xf32>
    %407 = arith.subf %390, %406 : vector<32x128xf32>
    %cst_143 = arith.constant 9.99999974E-6 : f32
    %408 = vector.broadcast %cst_143 : f32 to vector<1x1xf32>
    %409 = arith.addf %405, %408 : vector<1x1xf32>
    %410 = math.rsqrt %409 : vector<1x1xf32>
    %411 = vector.broadcast %410 : vector<1x1xf32> to vector<32x128xf32>
    %412 = arith.mulf %407, %411 : vector<32x128xf32>
    %413 = vector.broadcast %330 : vector<32x1xf32> to vector<32x128xf32>
    %414 = arith.mulf %413, %412 : vector<32x128xf32>
    %415 = vector.broadcast %331 : vector<32x1xf32> to vector<32x128xf32>
    %416 = arith.addf %414, %415 : vector<32x128xf32>
    %cst_144 = arith.constant 0.000000e+00 : f32
    %417 = vector.broadcast %cst_144 : f32 to vector<32x128xf32>
    %418 = arith.cmpf ogt, %416, %417 : vector<32x128xf32>
    %419 = vector.broadcast %335 : f32 to vector<32x128xf32>
    %420 = arith.mulf %419, %416 : vector<32x128xf32>
    %421 = arith.select %418, %416, %420 : vector<32x128xi1>, vector<32x128xf32>
    %cst_145 = arith.constant dense<0.000000e+00> : vector<16x128xf32>
    %422 = tpu.matmul %323, %421, %cst_145 {dimension_numbers = #tpu.dot_dimension_numbers<[1], [0], [0], [1], [0, 0, 1, 1], [], []>, precision = #tpu.contract_precision<fp32>} : vector<16x32xf32>, vector<32x128xf32>, vector<16x128xf32> -> vector<16x128xf32>
    %423 = vector.broadcast %333 : vector<16x1xf32> to vector<16x128xf32>
    %424 = arith.addf %422, %423 : vector<16x128xf32>
    %425 = arith.addf %424, %319 : vector<16x128xf32>
    %c0_146 = arith.constant 0 : index
    %c0_147 = arith.constant 0 : index
    %c0_148 = arith.constant 0 : index
    %426 = vector.load %arg7[%c0_146, %c0_147, %c0_148] : memref<1x16x128xf32, #tpu.memory_space<vmem>>, vector<1x16x128xf32>
    %427 = vector.shape_cast %426 : vector<1x16x128xf32> to vector<16x128xf32>
    %428 = vector.shape_cast %425 : vector<16x128xf32> to vector<1x16x128xf32>
    tpu.vector_store %arg7[%c0_146, %c0_147, %c0_148], %428 {strides = array<i32>} : memref<1x16x128xf32, #tpu.memory_space<vmem>>, vector<1x16x128xf32>,
    return
  }
  func.func @transform_0(%arg0: i32) -> (i32, i32, i32) {
    %c0_i32 = arith.constant 0 : i32
    %c0_i32_0 = arith.constant 0 : i32
    %c0_i32_1 = arith.constant 0 : i32
    return %arg0, %c0_i32, %c0_i32_0 : i32, i32, i32
  }
  func.func @transform_1(%arg0: i32) -> (i32, i32, i32) {
    %c0_i32 = arith.constant 0 : i32
    %c0_i32_0 = arith.constant 0 : i32
    %c0_i32_1 = arith.constant 0 : i32
    %c0_i32_2 = arith.constant 0 : i32
    return %c0_i32, %c0_i32_0, %c0_i32_1 : i32, i32, i32
  }
  func.func @transform_2(%arg0: i32) -> (i32, i32, i32) {
    %c0_i32 = arith.constant 0 : i32
    %c0_i32_0 = arith.constant 0 : i32
    %c0_i32_1 = arith.constant 0 : i32
    %c0_i32_2 = arith.constant 0 : i32
    return %c0_i32, %c0_i32_0, %c0_i32_1 : i32, i32, i32
  }
  func.func @transform_3(%arg0: i32) -> (i32, i32, i32) {
    %c0_i32 = arith.constant 0 : i32
    %c0_i32_0 = arith.constant 0 : i32
    %c0_i32_1 = arith.constant 0 : i32
    %c0_i32_2 = arith.constant 0 : i32
    return %c0_i32, %c0_i32_0, %c0_i32_1 : i32, i32, i32
  }
  func.func @transform_4(%arg0: i32) -> (i32, i32, i32) {
    %c0_i32 = arith.constant 0 : i32
    %c0_i32_0 = arith.constant 0 : i32
    %c0_i32_1 = arith.constant 0 : i32
    %c0_i32_2 = arith.constant 0 : i32
    return %c0_i32, %c0_i32_0, %c0_i32_1 : i32, i32, i32
  }
  func.func @transform_5(%arg0: i32) -> (i32, i32) {
    %c0_i32 = arith.constant 0 : i32
    %c0_i32_0 = arith.constant 0 : i32
    %c0_i32_1 = arith.constant 0 : i32
    return %c0_i32, %c0_i32_0 : i32, i32
  }
  func.func @transform_6(%arg0: i32) -> (i32, i32, i32) {
    %c0_i32 = arith.constant 0 : i32
    %c0_i32_0 = arith.constant 0 : i32
    %c0_i32_1 = arith.constant 0 : i32
    return %arg0, %c0_i32, %c0_i32_0 : i32, i32, i32
  }
}

</mosaic_0001>

<llo_original>
// kernel: audio_sequential.1
$region0: #{audio_sequential.1}
  #allocation0 [shape = 'u32[]', space=smem, size = 0x4, offset = 0x4, fixed_abs, tag = 'smem constant byte address 0x4 - core index']
  #allocation1 [shape = 'u32[144,128]{1,0:T(1,128)}', space=vmem, size = 0x12000, scoped, tag = 'internal scratch']
  %s0 = inlined_call_operand.vmem [shape: f32[2,16,128], index: 0, kind: input, shape index: {}]
  %s1 = inlined_call_operand.vmem [shape: f32[4,32,16], index: 1, kind: input, shape index: {}]
  %s2 = inlined_call_operand.vmem [shape: f32[4,32,9], index: 2, kind: input, shape index: {}]
  %s3 = inlined_call_operand.vmem [shape: f32[4,16,32], index: 3, kind: input, shape index: {}]
  %s4 = inlined_call_operand.vmem [shape: f32[4,16,1], index: 4, kind: input, shape index: {}]
  %s5 = inlined_call_operand.vmem [shape: f32[4,2], index: 5, kind: input, shape index: {}]
  %s6 = inlined_call_operand.hbm [shape: f32[2,16,128], index: 6, kind: output, shape index: {}]
  %s7 = sld [smem:[#allocation0]]
  $region61: #{audio_sequential.1} parent=0
    _
  %s9 = ssub.s32 1, %s7
  %s10 = scalar_select 0, %s9, %s7
  $region1: #{audio_sequential.1} parent=0
    #allocation2 [shape = 'u8[2048]{0}', space=smem, size = 0x800, scoped, tag = 'input window, operand 5, single buffered']
    #allocation3 [shape = 's32[2]{0}', space=sflag, size = 0x8, scoped, tag = 'scoped memory for audio_sequential.1']
    #allocation4 [shape = 's32[2]{0}', space=sflag, size = 0x8, scoped, tag = 'scoped memory for audio_sequential.1']
    #allocation5 [shape = 'u8[16384]{0}', space=vmem, size = 0x4000, scoped, tag = 'output window, operand 0']
    %11 = vsyncpa [#allocation4], 0
    %12 = vsyncpa [#allocation3], 0
    %s13 = scalar_lea.sflag [#allocation3], 1
    %14 = vsyncpa %s13, 0
    loop: start=0, step=1, limit=4
    $region2: #{audio_sequential.1} parent=1 // loop_pre_header
      _
    $region3: #{audio_sequential.1} parent=1 // loop_header
      %s16 = sphi 0, %s20
      %p17 = scmp.ge.s32.totalorder %s16, 4
      %s26 = sphi 0, %s28
      %s29 = sphi 0, %s26
      %s30 = sphi 0, %s29
      %s46 = sphi 0, %s30
      %s50 = sphi 0, %s50
      %s52 = sphi 0, %s50
      %s53 = sphi 0, %s52
      %s67 = sphi 0, %s53
      %s71 = sphi 0, %s71
      %s73 = sphi 0, %s71
      %s74 = sphi 0, %s73
      %s88 = sphi 0, %s74
      %s92 = sphi 0, %s92
      %s94 = sphi 0, %s92
      %s95 = sphi 0, %s94
      %s109 = sphi 0, %s95
      %s113 = sphi 0, %s113
      %s115 = sphi 0, %s113
      %s116 = sphi 0, %s115
      %s130 = sphi 0, %s116
      %s134 = sphi 0, %s134
      %s136 = sphi 0, %s134
      %s137 = sphi 0, %s136
      %s151 = sphi 0, %s137
      %s157 = sphi 0, %s159
      %s160 = sphi 0, %s157
      %s161 = sphi 0, %s160
      %s177 = sphi 0, %s161
    $region4: #{audio_sequential.1} parent=1 // loop_header_branch
      %19 = sbr.rel (%p17) target = $region8
    $region5: #{audio_sequential.1} parent=1 // loop_body
      %s21 = ssub.s32 %s16, 1
      %s22 = ssub.s32 %s16, 2
      %s23 = sadd.s32 %s16, 1
      %s24 = ssub.s32 %s16, %s23
      %p25 = scmp.eq.s32.totalorder %s24, 0
      %s27 = sadd.s32 %s26, 1
      %s28 = scalar_select %p25, %s26, %s27
      %p31 = pneg %p25
      %p32 = scmp.eq.s32.totalorder %s16, 1
      %p33 = por %p31, %p32
      %p34 = scmp.ne.s32.totalorder %s26, %s29
      %p35 = scmp.eq.s32.totalorder %s16, 0
      %p36 = por %p34, %p35
      %p37 = scmp.ne.s32.totalorder %s26, %s29
      %p38 = scmp.eq.s32.totalorder %s21, 1
      %p39 = por %p37, %p38
      %p40 = scmp.ne.s32.totalorder %s29, %s30
      %p41 = scmp.eq.s32.totalorder %s21, 0
      %p42 = por %p40, %p41
      %p43 = scmp.ne.s32.totalorder %s29, %s30
      %p44 = scmp.eq.s32.totalorder %s22, 1
      %p45 = por %p43, %p44
      %p47 = scmp.ne.s32.totalorder %s30, %s46
      %p48 = scmp.eq.s32.totalorder %s22, 0
      %p49 = por %p47, %p48
      %s51 = sadd.s32 %s50, 1
      %p54 = scmp.eq.s32.totalorder %s16, 1
      %p55 = scmp.ne.s32.totalorder %s50, %s52
      %p56 = scmp.eq.s32.totalorder %s16, 0
      %p57 = por %p55, %p56
      %p58 = scmp.ne.s32.totalorder %s50, %s52
      %p59 = scmp.eq.s32.totalorder %s21, 1
      %p60 = por %p58, %p59
      %p61 = scmp.ne.s32.totalorder %s52, %s53
      %p62 = scmp.eq.s32.totalorder %s21, 0
      %p63 = por %p61, %p62
      %p64 = scmp.ne.s32.totalorder %s52, %s53
      %p65 = scmp.eq.s32.totalorder %s22, 1
      %p66 = por %p64, %p65
      %p68 = scmp.ne.s32.totalorder %s53, %s67
      %p69 = scmp.eq.s32.totalorder %s22, 0
      %p70 = por %p68, %p69
      %s72 = sadd.s32 %s71, 1
      %p75 = scmp.eq.s32.totalorder %s16, 1
      %p76 = scmp.ne.s32.totalorder %s71, %s73
      %p77 = scmp.eq.s32.totalorder %s16, 0
      %p78 = por %p76, %p77
      %p79 = scmp.ne.s32.totalorder %s71, %s73
      %p80 = scmp.eq.s32.totalorder %s21, 1
      %p81 = por %p79, %p80
      %p82 = scmp.ne.s32.totalorder %s73, %s74
      %p83 = scmp.eq.s32.totalorder %s21, 0
      %p84 = por %p82, %p83
      %p85 = scmp.ne.s32.totalorder %s73, %s74
      %p86 = scmp.eq.s32.totalorder %s22, 1
      %p87 = por %p85, %p86
      %p89 = scmp.ne.s32.totalorder %s74, %s88
      %p90 = scmp.eq.s32.totalorder %s22, 0
      %p91 = por %p89, %p90
      %s93 = sadd.s32 %s92, 1
      %p96 = scmp.eq.s32.totalorder %s16, 1
      %p97 = scmp.ne.s32.totalorder %s92, %s94
      %p98 = scmp.eq.s32.totalorder %s16, 0
      %p99 = por %p97, %p98
      %p100 = scmp.ne.s32.totalorder %s92, %s94
      %p101 = scmp.eq.s32.totalorder %s21, 1
      %p102 = por %p100, %p101
      %p103 = scmp.ne.s32.totalorder %s94, %s95
      %p104 = scmp.eq.s32.totalorder %s21, 0
      %p105 = por %p103, %p104
      %p106 = scmp.ne.s32.totalorder %s94, %s95
      %p107 = scmp.eq.s32.totalorder %s22, 1
      %p108 = por %p106, %p107
      %p110 = scmp.ne.s32.totalorder %s95, %s109
      %p111 = scmp.eq.s32.totalorder %s22, 0
      %p112 = por %p110, %p111
      %s114 = sadd.s32 %s113, 1
      %p117 = scmp.eq.s32.totalorder %s16, 1
      %p118 = scmp.ne.s32.totalorder %s113, %s115
      %p119 = scmp.eq.s32.totalorder %s16, 0
      %p120 = por %p118, %p119
      %p121 = scmp.ne.s32.totalorder %s113, %s115
      %p122 = scmp.eq.s32.totalorder %s21, 1
      %p123 = por %p121, %p122
      %p124 = scmp.ne.s32.totalorder %s115, %s116
      %p125 = scmp.eq.s32.totalorder %s21, 0
      %p126 = por %p124, %p125
      %p127 = scmp.ne.s32.totalorder %s115, %s116
      %p128 = scmp.eq.s32.totalorder %s22, 1
      %p129 = por %p127, %p128
      %p131 = scmp.ne.s32.totalorder %s116, %s130
      %p132 = scmp.eq.s32.totalorder %s22, 0
      %p133 = por %p131, %p132
      %s135 = sadd.s32 %s134, 1
      %p138 = scmp.eq.s32.totalorder %s16, 1
      %p139 = scmp.ne.s32.totalorder %s134, %s136
      %p140 = scmp.eq.s32.totalorder %s16, 0
      %p141 = por %p139, %p140
      %p142 = scmp.ne.s32.totalorder %s134, %s136
      %p143 = scmp.eq.s32.totalorder %s21, 1
      %p144 = por %p142, %p143
      %p145 = scmp.ne.s32.totalorder %s136, %s137
      %p146 = scmp.eq.s32.totalorder %s21, 0
      %p147 = por %p145, %p146
      %p148 = scmp.ne.s32.totalorder %s136, %s137
      %p149 = scmp.eq.s32.totalorder %s22, 1
      %p150 = por %p148, %p149
      %p152 = scmp.ne.s32.totalorder %s137, %s151
      %p153 = scmp.eq.s32.totalorder %s22, 0
      %p154 = por %p152, %p153
      %s155 = ssub.s32 %s16, %s23
      %p156 = scmp.eq.s32.totalorder %s155, 0
      %s158 = sadd.s32 %s157, 1
      %s159 = scalar_select %p156, %s157, %s158
      %p162 = pneg %p156
      %p163 = scmp.eq.s32.totalorder %s16, 1
      %p164 = por %p162, %p163
      %p165 = scmp.ne.s32.totalorder %s157, %s160
      %p166 = scmp.eq.s32.totalorder %s16, 0
      %p167 = por %p165, %p166
      %p168 = scmp.ne.s32.totalorder %s157, %s160
      %p169 = scmp.eq.s32.totalorder %s21, 1
      %p170 = por %p168, %p169
      %p171 = scmp.ne.s32.totalorder %s160, %s161
      %p172 = scmp.eq.s32.totalorder %s21, 0
      %p173 = por %p171, %p172
      %p174 = scmp.ne.s32.totalorder %s160, %s161
      %p175 = scmp.eq.s32.totalorder %s22, 1
      %p176 = por %p174, %p175
      %p178 = scmp.ne.s32.totalorder %s161, %s177
      %p179 = scmp.eq.s32.totalorder %s22, 0
      %p180 = por %p178, %p179
      %p181 = scmp.le.s32.totalorder 1, %s16
      %p182 = scmp.lt.s32.totalorder %s16, 3
      %p183 = pnand %p181, %p182
      %p184 = pneg %p183
      // Predicated region
      $region9: #{audio_sequential.1} parent=5 // pred_check
        _
      $region10: #{audio_sequential.1} parent=5 // pred_check_branch
        %186 = sbr.rel (%p183) target = $region12
      $region11: #{audio_sequential.1} parent=5 // pred_region
        %s187 = ssub.s32 %s16, 1
        // Predicated region
        $region13: #{audio_sequential.1} parent=11 // pred_check
          %p188 = pneg %p63
        $region14: #{audio_sequential.1} parent=11 // pred_check_branch
          %190 = sbr.rel (%p188) target = $region16
        $region15: #{audio_sequential.1} parent=11 // pred_region
          _
        $region16: #{audio_sequential.1} parent=11 // pred_fallthru
          _
        // Predicated region
        $region17: #{audio_sequential.1} parent=11 // pred_check
          %p191 = pneg %p84
        $region18: #{audio_sequential.1} parent=11 // pred_check_branch
          %193 = sbr.rel (%p191) target = $region20
        $region19: #{audio_sequential.1} parent=11 // pred_region
          _
        $region20: #{audio_sequential.1} parent=11 // pred_fallthru
          _
        // Predicated region
        $region21: #{audio_sequential.1} parent=11 // pred_check
          %p194 = pneg %p105
        $region22: #{audio_sequential.1} parent=11 // pred_check_branch
          %196 = sbr.rel (%p194) target = $region24
        $region23: #{audio_sequential.1} parent=11 // pred_region
          _
        $region24: #{audio_sequential.1} parent=11 // pred_fallthru
          _
        // Predicated region
        $region25: #{audio_sequential.1} parent=11 // pred_check
          %p197 = pneg %p126
        $region26: #{audio_sequential.1} parent=11 // pred_check_branch
          %199 = sbr.rel (%p197) target = $region28
        $region27: #{audio_sequential.1} parent=11 // pred_region
          _
        $region28: #{audio_sequential.1} parent=11 // pred_fallthru
          _
        // Predicated region
        $region29: #{audio_sequential.1} parent=11 // pred_check
          %p200 = pneg %p147
        $region30: #{audio_sequential.1} parent=11 // pred_check_branch
          %202 = sbr.rel (%p200) target = $region32
        $region31: #{audio_sequential.1} parent=11 // pred_region
          %s204 = ssub.s32 64, 64
          %205 = vsyncadd [#allocation4], %s204
          %s207 = sshll.u32 %s5, 4
          %s208 = int_to_ptr.vmem [resolvable:$true] %s207
          %210 = dma.vmem_to_smem %s208, 64, [#allocation2], [#allocation4]
        $region32: #{audio_sequential.1} parent=11 // pred_fallthru
          _
      $region12: #{audio_sequential.1} parent=5 // pred_fallthru
        _
      %p211 = scmp.lt.s32.totalorder %s16, 2
      // Predicated region
      $region33: #{audio_sequential.1} parent=5 // pred_check
        %p212 = pneg %p211
      $region34: #{audio_sequential.1} parent=5 // pred_check_branch
        %214 = sbr.rel (%p212) target = $region36
      $region35: #{audio_sequential.1} parent=5 // pred_region
        // Predicated region
        $region37: #{audio_sequential.1} parent=35 // pred_check
          %p215 = pneg %p36
        $region38: #{audio_sequential.1} parent=35 // pred_check_branch
          %217 = sbr.rel (%p215) target = $region40
        $region39: #{audio_sequential.1} parent=35 // pred_region
          %p218 = scmp.lt.s32.totalorder %s16, 1
          %s219 = scalar_select %p218, %s16, 1
          %s220 = smul.addr %s219, 2
          %s221 = smul.addr %s220, 8
          %s222 = scalar_lea.vmem %s0, %s221
        $region40: #{audio_sequential.1} parent=35 // pred_fallthru
          _
      $region36: #{audio_sequential.1} parent=5 // pred_fallthru
        _
      %p223 = scmp.le.s32.totalorder 1, %s16
      %p224 = scmp.lt.s32.totalorder %s16, 3
      %p225 = pnand %p223, %p224
      %p226 = pneg %p225
      // Predicated region
      $region41: #{audio_sequential.1} parent=5 // pred_check
        _
      $region42: #{audio_sequential.1} parent=5 // pred_check_branch
        %228 = sbr.rel (%p225) target = $region44
      $region43: #{audio_sequential.1} parent=5 // pred_region
        %s229 = ssub.s32 %s16, 1
        // Predicated region
        $region45: #{audio_sequential.1} parent=43 // pred_check
          %p230 = pneg %p147
        $region46: #{audio_sequential.1} parent=43 // pred_check_branch
          %232 = sbr.rel (%p230) target = $region48
        $region47: #{audio_sequential.1} parent=43 // pred_region
          %233 = dma.done [#allocation4], 64
        $region48: #{audio_sequential.1} parent=43 // pred_fallthru
          _
        %234 = sfence
        %p235 = scmp.lt.s32.totalorder %s21, 1
        %s236 = scalar_select %p235, %s21, 1
        %s237 = smul.addr %s236, 2
        %s238 = smul.addr %s237, 8
        %s239 = scalar_lea.vmem %s0, %s238
        %p240 = pneg %p42
        %p241 = pneg %p39
        %p242 = pneg %p63
        %p243 = pneg %p60
        %p244 = pneg %p84
        %p245 = pneg %p81
        %p246 = pneg %p105
        %p247 = pneg %p102
        %p248 = pneg %p126
        %p249 = pneg %p123
        %p250 = pneg %p147
        %p251 = pneg %p144
        %p252 = pneg %p173
        %p253 = pneg %p170
        %s254 = sand.u32 %s160, 1
        %s255 = scalar_lea.sflag [#allocation3], %s254
        %s256 = sand.u32 %s160, 1
        %s257 = smul.addr %s256, 16
        %s258 = scalar_lea.vmem [#allocation5], %s257
        %p259 = scmp.lt.s32.totalorder %s21, 1
        %s260 = scalar_select %p259, %s21, 1
        %s261 = smul.addr %s260, 2
        %s262 = smul.addr %s261, 8
        %s263 = scalar_lea.vmem %s0, %s262
        %v264 = vld [vmem:[%s263] sm:$0xff]
        %v265 = vld [vmem:[%s263 + $0x8] sm:$0xff]
        %v266 = vld [vmem:[%s1] sm:$0xff]
        %v267 = vld [vmem:[%s1 + $0x8] sm:$0xff]
        %v268 = vld [vmem:[%s1 + $0x10] sm:$0xff]
        %v269 = vld [vmem:[%s1 + $0x18] sm:$0xff]
        %v270 = vld [vmem:[%s3] sm:$0xff]
        %v271 = vld [vmem:[%s3 + $0x8] sm:$0xff]
        %v272 = vld [vmem:[%s2] sm:$0xff]
        %v273 = vld [vmem:[%s2 + $0x8] sm:$0xff]
        %v274 = vld [vmem:[%s2 + $0x10] sm:$0xff]
        %v275 = vld [vmem:[%s2 + $0x18] sm:$0xff]
        %v276 = vld [vmem:[%s4] sm:$0xff]
        %v277 = vld [vmem:[%s4 + $0x8] sm:$0xff]
        %s278 = sld [smem:[#allocation2]]
        %s279 = sld [smem:[#allocation2 + $0x1]]
        %281 = vset.pattern.permute.xlu0 0
        %282 = vperm.xlu0 %281, %v272
        %v283 = vpop.permute.xlu0 %282
        %286 = vset.pattern.permute.xlu0 0
        %287 = vperm.xlu0 %286, %v273
        %v288 = vpop.permute.xlu0 %287
        %291 = vset.pattern.permute.xlu0 0
        %292 = vperm.xlu0 %291, %v274
        %v293 = vpop.permute.xlu0 %292
        %296 = vset.pattern.permute.xlu0 0
        %297 = vperm.xlu0 %296, %v275
        %v298 = vpop.permute.xlu0 %297
        %vm300 = vcmask 130048
        %v302 = vsel %vm300, %v266, 0
        %v305 = vsel %vm300, %v267, 0
        %v308 = vsel %vm300, %v268, 0
        %v311 = vsel %vm300, %v269, 0
        %313 = vmatprep.subr.mxu0 0.0
        %v314 = vand.u32 %v264, 4294901760
        %315 = vmatpush1.msra.mxu0 %v314
        %316 = vmatprep.subr.mxu0 0.0
        %v317 = vand.u32 %v265, 4294901760
        %318 = vmatpush1.msra.mxu0 %v317
        %319 = vmatprep.subr.mxu0 0.0
        %320 = vmatpush1.msra.mxu0 0.0
        %321 = vmatprep.subr.mxu0 0.0
        %322 = vmatpush1.msra.mxu0 0.0
        %323 = vmatprep.subr.mxu0 0.0
        %324 = vmatpush1.msra.mxu0 0.0
        %325 = vmatprep.subr.mxu0 0.0
        %326 = vmatpush1.msra.mxu0 0.0
        %327 = vmatprep.subr.mxu0 0.0
        %328 = vmatpush1.msra.mxu0 0.0
        %329 = vmatprep.subr.mxu0 0.0
        %330 = vmatpush1.msra.mxu0 0.0
        %331 = vmatprep.subr.mxu0 0.0
        %332 = vmatpush1.msra.mxu0 0.0
        %333 = vmatprep.subr.mxu0 0.0
        %334 = vmatpush1.msra.mxu0 0.0
        %335 = vmatprep.subr.mxu0 0.0
        %336 = vmatpush1.msra.mxu0 0.0
        %337 = vmatprep.subr.mxu0 0.0
        %338 = vmatpush1.msra.mxu0 0.0
        %339 = vmatprep.subr.mxu0 0.0
        %340 = vmatpush1.msra.mxu0 0.0
        %341 = vmatprep.subr.mxu0 0.0
        %342 = vmatpush1.msra.mxu0 0.0
        %343 = vmatprep.subr.mxu0 0.0
        %344 = vmatpush1.msra.mxu0 0.0
        %345 = vmatprep.subr.mxu0 0.0
        %346 = vmatpush1.msra.mxu0 0.0
        %347 = vmatprep.subr.mxu0 0.0
        %348 = vmatpush1.msra.mxu0 0.0
        %349 = vmatprep.subr.mxu0 0.0
        %350 = vmatpush1.msra.mxu0 0.0
        %351 = vmatprep.subr.mxu0 0.0
        %352 = vmatpush1.msra.mxu0 0.0
        %353 = vmatprep.subr.mxu0 0.0
        %354 = vmatpush1.msra.mxu0 0.0
        %355 = vmatprep.subr.mxu0 0.0
        %356 = vmatpush1.msra.mxu0 0.0
        %357 = vmatprep.subr.mxu0 0.0
        %358 = vmatpush1.msra.mxu0 0.0
        %359 = vmatprep.subr.mxu0 0.0
        %360 = vmatpush1.msra.mxu0 0.0
        %361 = vmatprep.subr.mxu0 0.0
        %362 = vmatpush1.msra.mxu0 0.0
        %363 = vmatprep.subr.mxu0 0.0
        %364 = vmatpush1.msra.mxu0 0.0
        %365 = vmatprep.subr.mxu0 0.0
        %366 = vmatpush1.msra.mxu0 0.0
        %367 = vmatprep.subr.mxu0 0.0
        %368 = vmatpush1.msra.mxu0 0.0
        %369 = vmatprep.subr.mxu0 0.0
        %370 = vmatpush1.msra.mxu0 0.0
        %371 = vmatprep.subr.mxu0 0.0
        %372 = vmatpush1.msra.mxu0 0.0
        %373 = vmatprep.subr.mxu0 0.0
        %374 = vmatpush1.msra.mxu0 0.0
        %375 = vmatprep.subr.mxu0 0.0
        %376 = vmatpush1.msra.mxu0 0.0
        %377 = vmatprep.subr.mxu0 0.0
        %378 = vmatpush1.msra.mxu0 0.0
        %379 = vmatprep.mubr.f32.mxu0 0.0
        %v380 = vand.u32 %v302, 4294901760
        %v381 = vsub.f32 %v302, %v380
        %v382 = vand.u32 %v381, 4294901760
        %v383 = vsub.f32 %v381, %v382
        %v384 = vand.u32 %v383, 4294901760
        %385 = vmatmul.mubr.f32.gmra.mrb[0].mxu0 %v384
        %v386 = vpop.f32.mrb[0].mxu0
        %v387 = vadd.f32 %v283, %v386
        %v388 = vpop.f32.mrb[0].mxu0
        %389 = vmatprep.mubr.f32.mxu0 0.0
        %v390 = vand.u32 %v305, 4294901760
        %v391 = vsub.f32 %v305, %v390
        %v392 = vand.u32 %v391, 4294901760
        %v393 = vsub.f32 %v391, %v392
        %v394 = vand.u32 %v393, 4294901760
        %395 = vmatmul.mubr.f32.gmra.mrb[0].mxu0 %v394
        %v396 = vpop.f32.mrb[0].mxu0
        %v397 = vadd.f32 %v288, %v396
        %v398 = vpop.f32.mrb[0].mxu0
        %399 = vmatprep.mubr.f32.mxu0 0.0
        %v400 = vand.u32 %v308, 4294901760
        %v401 = vsub.f32 %v308, %v400
        %v402 = vand.u32 %v401, 4294901760
        %v403 = vsub.f32 %v401, %v402
        %v404 = vand.u32 %v403, 4294901760
        %405 = vmatmul.mubr.f32.gmra.mrb[0].mxu0 %v404
        %v406 = vpop.f32.mrb[0].mxu0
        %v407 = vadd.f32 %v293, %v406
        %v408 = vpop.f32.mrb[0].mxu0
        %409 = vmatprep.mubr.f32.mxu0 0.0
        %v410 = vand.u32 %v311, 4294901760
        %v411 = vsub.f32 %v311, %v410
        %v412 = vand.u32 %v411, 4294901760
        %v413 = vsub.f32 %v411, %v412
        %v414 = vand.u32 %v413, 4294901760
        %415 = vmatmul.mubr.f32.gmra.mrb[0].mxu0 %v414
        %v416 = vpop.f32.mrb[0].mxu0
        %v417 = vadd.f32 %v298, %v416
        %v418 = vpop.f32.mrb[0].mxu0
        %419 = vdwg.mxu0
        %420 = vmatprep.subr.mxu0 0.0
        %v421 = vand.u32 %v264, 4294901760
        %v422 = vsub.f32 %v264, %v421
        %v423 = vand.u32 %v422, 4294901760
        %v424 = vsub.f32 %v422, %v423
        %v425 = vand.u32 %v424, 4294901760
        %426 = vmatpush1.msra.mxu0 %v425
        %427 = vmatprep.subr.mxu0 0.0
        %v428 = vand.u32 %v265, 4294901760
        %v429 = vsub.f32 %v265, %v428
        %v430 = vand.u32 %v429, 4294901760
        %v431 = vsub.f32 %v429, %v430
        %v432 = vand.u32 %v431, 4294901760
        %433 = vmatpush1.msra.mxu0 %v432
        %434 = vmatprep.subr.mxu0 0.0
        %435 = vmatpush1.msra.mxu0 0.0
        %436 = vmatprep.subr.mxu0 0.0
        %437 = vmatpush1.msra.mxu0 0.0
        %438 = vmatprep.subr.mxu0 0.0
        %439 = vmatpush1.msra.mxu0 0.0
        %440 = vmatprep.subr.mxu0 0.0
        %441 = vmatpush1.msra.mxu0 0.0
        %442 = vmatprep.subr.mxu0 0.0
        %443 = vmatpush1.msra.mxu0 0.0
        %444 = vmatprep.subr.mxu0 0.0
        %445 = vmatpush1.msra.mxu0 0.0
        %446 = vmatprep.subr.mxu0 0.0
        %447 = vmatpush1.msra.mxu0 0.0
        %448 = vmatprep.subr.mxu0 0.0
        %449 = vmatpush1.msra.mxu0 0.0
        %450 = vmatprep.subr.mxu0 0.0
        %451 = vmatpush1.msra.mxu0 0.0
        %452 = vmatprep.subr.mxu0 0.0
        %453 = vmatpush1.msra.mxu0 0.0
        %454 = vmatprep.subr.mxu0 0.0
        %455 = vmatpush1.msra.mxu0 0.0
        %456 = vmatprep.subr.mxu0 0.0
        %457 = vmatpush1.msra.mxu0 0.0
        %458 = vmatprep.subr.mxu0 0.0
        %459 = vmatpush1.msra.mxu0 0.0
        %460 = vmatprep.subr.mxu0 0.0
        %461 = vmatpush1.msra.mxu0 0.0
        %462 = vmatprep.subr.mxu0 0.0
        %463 = vmatpush1.msra.mxu0 0.0
        %464 = vmatprep.subr.mxu0 0.0
        %465 = vmatpush1.msra.mxu0 0.0
        %466 = vmatprep.subr.mxu0 0.0
        %467 = vmatpush1.msra.mxu0 0.0
        %468 = vmatprep.subr.mxu0 0.0
        %469 = vmatpush1.msra.mxu0 0.0
        %470 = vmatprep.subr.mxu0 0.0
        %471 = vmatpush1.msra.mxu0 0.0
        %472 = vmatprep.subr.mxu0 0.0
        %473 = vmatpush1.msra.mxu0 0.0
        %474 = vmatprep.subr.mxu0 0.0
        %475 = vmatpush1.msra.mxu0 0.0
        %476 = vmatprep.subr.mxu0 0.0
        %477 = vmatpush1.msra.mxu0 0.0
        %478 = vmatprep.subr.mxu0 0.0
        %479 = vmatpush1.msra.mxu0 0.0
        %480 = vmatprep.subr.mxu0 0.0
        %481 = vmatpush1.msra.mxu0 0.0
        %482 = vmatprep.subr.mxu0 0.0
        %483 = vmatpush1.msra.mxu0 0.0
        %484 = vmatprep.subr.mxu0 0.0
        %485 = vmatpush1.msra.mxu0 0.0
        %486 = vmatprep.subr.mxu0 0.0
        %487 = vmatpush1.msra.mxu0 0.0
        %488 = vmatprep.subr.mxu0 0.0
        %489 = vmatpush1.msra.mxu0 0.0
        %490 = vmatprep.subr.mxu0 0.0
        %491 = vmatpush1.msra.mxu0 0.0
        %492 = vmatprep.subr.mxu0 0.0
        %493 = vmatpush1.msra.mxu0 0.0
        %494 = vmatprep.mubr.f32.mxu0 0.0
        %v495 = vand.u32 %v302, 4294901760
        %496 = vmatmul.mubr.f32.gmra.mrb[0].mxu0 %v495
        %v497 = vpop.f32.mrb[0].mxu0
        %v498 = vadd.f32 %v387, %v497
        %v499 = vpop.f32.mrb[0].mxu0
        %500 = vmatprep.mubr.f32.mxu0 0.0
        %v501 = vand.u32 %v305, 4294901760
        %502 = vmatmul.mubr.f32.gmra.mrb[0].mxu0 %v501
        %v503 = vpop.f32.mrb[0].mxu0
        %v504 = vadd.f32 %v397, %v503
        %v505 = vpop.f32.mrb[0].mxu0
        %506 = vmatprep.mubr.f32.mxu0 0.0
        %v507 = vand.u32 %v308, 4294901760
        %508 = vmatmul.mubr.f32.gmra.mrb[0].mxu0 %v507
        %v509 = vpop.f32.mrb[0].mxu0
        %v510 = vadd.f32 %v407, %v509
        %v511 = vpop.f32.mrb[0].mxu0
        %512 = vmatprep.mubr.f32.mxu0 0.0
        %v513 = vand.u32 %v311, 4294901760
        %514 = vmatmul.mubr.f32.gmra.mrb[0].mxu0 %v513
        %v515 = vpop.f32.mrb[0].mxu0
        %v516 = vadd.f32 %v417, %v515
        %v517 = vpop.f32.mrb[0].mxu0
        %518 = vdwg.mxu0
        %519 = vmatprep.subr.mxu0 0.0
        %v520 = vand.u32 %v264, 4294901760
        %v521 = vsub.f32 %v264, %v520
        %522 = vmatpush1.msra.mxu0 %v521
        %523 = vmatprep.subr.mxu0 0.0
        %v524 = vand.u32 %v265, 4294901760
        %v525 = vsub.f32 %v265, %v524
        %526 = vmatpush1.msra.mxu0 %v525
        %527 = vmatprep.subr.mxu0 0.0
        %528 = vmatpush1.msra.mxu0 0.0
        %529 = vmatprep.subr.mxu0 0.0
        %530 = vmatpush1.msra.mxu0 0.0
        %531 = vmatprep.subr.mxu0 0.0
        %532 = vmatpush1.msra.mxu0 0.0
        %533 = vmatprep.subr.mxu0 0.0
        %534 = vmatpush1.msra.mxu0 0.0
        %535 = vmatprep.subr.mxu0 0.0
        %536 = vmatpush1.msra.mxu0 0.0
        %537 = vmatprep.subr.mxu0 0.0
        %538 = vmatpush1.msra.mxu0 0.0
        %539 = vmatprep.subr.mxu0 0.0
        %540 = vmatpush1.msra.mxu0 0.0
        %541 = vmatprep.subr.mxu0 0.0
        %542 = vmatpush1.msra.mxu0 0.0
        %543 = vmatprep.subr.mxu0 0.0
        %544 = vmatpush1.msra.mxu0 0.0
        %545 = vmatprep.subr.mxu0 0.0
        %546 = vmatpush1.msra.mxu0 0.0
        %547 = vmatprep.subr.mxu0 0.0
        %548 = vmatpush1.msra.mxu0 0.0
        %549 = vmatprep.subr.mxu0 0.0
        %550 = vmatpush1.msra.mxu0 0.0
        %551 = vmatprep.subr.mxu0 0.0
        %552 = vmatpush1.msra.mxu0 0.0
        %553 = vmatprep.subr.mxu0 0.0
        %554 = vmatpush1.msra.mxu0 0.0
        %555 = vmatprep.subr.mxu0 0.0
        %556 = vmatpush1.msra.mxu0 0.0
        %557 = vmatprep.subr.mxu0 0.0
        %558 = vmatpush1.msra.mxu0 0.0
        %559 = vmatprep.subr.mxu0 0.0
        %560 = vmatpush1.msra.mxu0 0.0
        %561 = vmatprep.subr.mxu0 0.0
        %562 = vmatpush1.msra.mxu0 0.0
        %563 = vmatprep.subr.mxu0 0.0
        %564 = vmatpush1.msra.mxu0 0.0
        %565 = vmatprep.subr.mxu0 0.0
        %566 = vmatpush1.msra.mxu0 0.0
        %567 = vmatprep.subr.mxu0 0.0
        %568 = vmatpush1.msra.mxu0 0.0
        %569 = vmatprep.subr.mxu0 0.0
        %570 = vmatpush1.msra.mxu0 0.0
        %571 = vmatprep.subr.mxu0 0.0
        %572 = vmatpush1.msra.mxu0 0.0
        %573 = vmatprep.subr.mxu0 0.0
        %574 = vmatpush1.msra.mxu0 0.0
        %575 = vmatprep.subr.mxu0 0.0
        %576 = vmatpush1.msra.mxu0 0.0
        %577 = vmatprep.subr.mxu0 0.0
        %578 = vmatpush1.msra.mxu0 0.0
        %579 = vmatprep.subr.mxu0 0.0
        %580 = vmatpush1.msra.mxu0 0.0
        %581 = vmatprep.subr.mxu0 0.0
        %582 = vmatpush1.msra.mxu0 0.0
        %583 = vmatprep.subr.mxu0 0.0
        %584 = vmatpush1.msra.mxu0 0.0
        %585 = vmatprep.subr.mxu0 0.0
        %586 = vmatpush1.msra.mxu0 0.0
        %587 = vmatprep.mubr.f32.mxu0 0.0
        %v588 = vand.u32 %v302, 4294901760
        %v589 = vsub.f32 %v302, %v588
        %590 = vmatmul.mubr.f32.gmra.mrb[0].mxu0 %v589
        %v591 = vpop.f32.mrb[0].mxu0
        %v592 = vadd.f32 %v498, %v591
        %v593 = vpop.f32.mrb[0].mxu0
        %594 = vmatprep.mubr.f32.mxu0 0.0
        %v595 = vand.u32 %v305, 4294901760
        %v596 = vsub.f32 %v305, %v595
        %597 = vmatmul.mubr.f32.gmra.mrb[0].mxu0 %v596
        %v598 = vpop.f32.mrb[0].mxu0
        %v599 = vadd.f32 %v504, %v598
        %v600 = vpop.f32.mrb[0].mxu0
        %601 = vmatprep.mubr.f32.mxu0 0.0
        %v602 = vand.u32 %v308, 4294901760
        %v603 = vsub.f32 %v308, %v602
        %604 = vmatmul.mubr.f32.gmra.mrb[0].mxu0 %v603
        %v605 = vpop.f32.mrb[0].mxu0
        %v606 = vadd.f32 %v510, %v605
        %v607 = vpop.f32.mrb[0].mxu0
        %608 = vmatprep.mubr.f32.mxu0 0.0
        %v609 = vand.u32 %v311, 4294901760
        %v610 = vsub.f32 %v311, %v609
        %611 = vmatmul.mubr.f32.gmra.mrb[0].mxu0 %v610
        %v612 = vpop.f32.mrb[0].mxu0
        %v613 = vadd.f32 %v516, %v612
        %v614 = vpop.f32.mrb[0].mxu0
        %615 = vdwg.mxu0
        %616 = vmatprep.subr.mxu0 0.0
        %v617 = vand.u32 %v264, 4294901760
        %618 = vmatpush1.msra.mxu0 %v617
        %619 = vmatprep.subr.mxu0 0.0
        %v620 = vand.u32 %v265, 4294901760
        %621 = vmatpush1.msra.mxu0 %v620
        %622 = vmatprep.subr.mxu0 0.0
        %623 = vmatpush1.msra.mxu0 0.0
        %624 = vmatprep.subr.mxu0 0.0
        %625 = vmatpush1.msra.mxu0 0.0
        %626 = vmatprep.subr.mxu0 0.0
        %627 = vmatpush1.msra.mxu0 0.0
        %628 = vmatprep.subr.mxu0 0.0
        %629 = vmatpush1.msra.mxu0 0.0
        %630 = vmatprep.subr.mxu0 0.0
        %631 = vmatpush1.msra.mxu0 0.0
        %632 = vmatprep.subr.mxu0 0.0
        %633 = vmatpush1.msra.mxu0 0.0
        %634 = vmatprep.subr.mxu0 0.0
        %635 = vmatpush1.msra.mxu0 0.0
        %636 = vmatprep.subr.mxu0 0.0
        %637 = vmatpush1.msra.mxu0 0.0
        %638 = vmatprep.subr.mxu0 0.0
        %639 = vmatpush1.msra.mxu0 0.0
        %640 = vmatprep.subr.mxu0 0.0
        %641 = vmatpush1.msra.mxu0 0.0
        %642 = vmatprep.subr.mxu0 0.0
        %643 = vmatpush1.msra.mxu0 0.0
        %644 = vmatprep.subr.mxu0 0.0
        %645 = vmatpush1.msra.mxu0 0.0
        %646 = vmatprep.subr.mxu0 0.0
        %647 = vmatpush1.msra.mxu0 0.0
        %648 = vmatprep.subr.mxu0 0.0
        %649 = vmatpush1.msra.mxu0 0.0
        %650 = vmatprep.subr.mxu0 0.0
        %651 = vmatpush1.msra.mxu0 0.0
        %652 = vmatprep.subr.mxu0 0.0
        %653 = vmatpush1.msra.mxu0 0.0
        %654 = vmatprep.subr.mxu0 0.0
        %655 = vmatpush1.msra.mxu0 0.0
        %656 = vmatprep.subr.mxu0 0.0
        %657 = vmatpush1.msra.mxu0 0.0
        %658 = vmatprep.subr.mxu0 0.0
        %659 = vmatpush1.msra.mxu0 0.0
        %660 = vmatprep.subr.mxu0 0.0
        %661 = vmatpush1.msra.mxu0 0.0
        %662 = vmatprep.subr.mxu0 0.0
        %663 = vmatpush1.msra.mxu0 0.0
        %664 = vmatprep.subr.mxu0 0.0
        %665 = vmatpush1.msra.mxu0 0.0
        %666 = vmatprep.subr.mxu0 0.0
        %667 = vmatpush1.msra.mxu0 0.0
        %668 = vmatprep.subr.mxu0 0.0
        %669 = vmatpush1.msra.mxu0 0.0
        %670 = vmatprep.subr.mxu0 0.0
        %671 = vmatpush1.msra.mxu0 0.0
        %672 = vmatprep.subr.mxu0 0.0
        %673 = vmatpush1.msra.mxu0 0.0
        %674 = vmatprep.subr.mxu0 0.0
        %675 = vmatpush1.msra.mxu0 0.0
        %676 = vmatprep.subr.mxu0 0.0
        %677 = vmatpush1.msra.mxu0 0.0
        %678 = vmatprep.subr.mxu0 0.0
        %679 = vmatpush1.msra.mxu0 0.0
        %680 = vmatprep.subr.mxu0 0.0
        %681 = vmatpush1.msra.mxu0 0.0
        %682 = vmatprep.mubr.f32.mxu0 0.0
        %v683 = vand.u32 %v302, 4294901760
        %v684 = vsub.f32 %v302, %v683
        %v685 = vand.u32 %v684, 4294901760
        %686 = vmatmul.mubr.f32.gmra.mrb[0].mxu0 %v685
        %v687 = vpop.f32.mrb[0].mxu0
        %v688 = vadd.f32 %v592, %v687
        %v689 = vpop.f32.mrb[0].mxu0
        %690 = vmatprep.mubr.f32.mxu0 0.0
        %v691 = vand.u32 %v305, 4294901760
        %v692 = vsub.f32 %v305, %v691
        %v693 = vand.u32 %v692, 4294901760
        %694 = vmatmul.mubr.f32.gmra.mrb[0].mxu0 %v693
        %v695 = vpop.f32.mrb[0].mxu0
        %v696 = vadd.f32 %v599, %v695
        %v697 = vpop.f32.mrb[0].mxu0
        %698 = vmatprep.mubr.f32.mxu0 0.0
        %v699 = vand.u32 %v308, 4294901760
        %v700 = vsub.f32 %v308, %v699
        %v701 = vand.u32 %v700, 4294901760
        %702 = vmatmul.mubr.f32.gmra.mrb[0].mxu0 %v701
        %v703 = vpop.f32.mrb[0].mxu0
        %v704 = vadd.f32 %v606, %v703
        %v705 = vpop.f32.mrb[0].mxu0
        %706 = vmatprep.mubr.f32.mxu0 0.0
        %v707 = vand.u32 %v311, 4294901760
        %v708 = vsub.f32 %v311, %v707
        %v709 = vand.u32 %v708, 4294901760
        %710 = vmatmul.mubr.f32.gmra.mrb[0].mxu0 %v709
        %v711 = vpop.f32.mrb[0].mxu0
        %v712 = vadd.f32 %v613, %v711
        %v713 = vpop.f32.mrb[0].mxu0
        %714 = vdwg.mxu0
        %715 = vmatprep.subr.mxu0 0.0
        %v716 = vand.u32 %v264, 4294901760
        %v717 = vsub.f32 %v264, %v716
        %v718 = vand.u32 %v717, 4294901760
        %719 = vmatpush1.msra.mxu0 %v718
        %720 = vmatprep.subr.mxu0 0.0
        %v721 = vand.u32 %v265, 4294901760
        %v722 = vsub.f32 %v265, %v721
        %v723 = vand.u32 %v722, 4294901760
        %724 = vmatpush1.msra.mxu0 %v723
        %725 = vmatprep.subr.mxu0 0.0
        %726 = vmatpush1.msra.mxu0 0.0
        %727 = vmatprep.subr.mxu0 0.0
        %728 = vmatpush1.msra.mxu0 0.0
        %729 = vmatprep.subr.mxu0 0.0
        %730 = vmatpush1.msra.mxu0 0.0
        %731 = vmatprep.subr.mxu0 0.0
        %732 = vmatpush1.msra.mxu0 0.0
        %733 = vmatprep.subr.mxu0 0.0
        %734 = vmatpush1.msra.mxu0 0.0
        %735 = vmatprep.subr.mxu0 0.0
        %736 = vmatpush1.msra.mxu0 0.0
        %737 = vmatprep.subr.mxu0 0.0
        %738 = vmatpush1.msra.mxu0 0.0
        %739 = vmatprep.subr.mxu0 0.0
        %740 = vmatpush1.msra.mxu0 0.0
        %741 = vmatprep.subr.mxu0 0.0
        %742 = vmatpush1.msra.mxu0 0.0
        %743 = vmatprep.subr.mxu0 0.0
        %744 = vmatpush1.msra.mxu0 0.0
        %745 = vmatprep.subr.mxu0 0.0
        %746 = vmatpush1.msra.mxu0 0.0
        %747 = vmatprep.subr.mxu0 0.0
        %748 = vmatpush1.msra.mxu0 0.0
        %749 = vmatprep.subr.mxu0 0.0
        %750 = vmatpush1.msra.mxu0 0.0
        %751 = vmatprep.subr.mxu0 0.0
        %752 = vmatpush1.msra.mxu0 0.0
        %753 = vmatprep.subr.mxu0 0.0
        %754 = vmatpush1.msra.mxu0 0.0
        %755 = vmatprep.subr.mxu0 0.0
        %756 = vmatpush1.msra.mxu0 0.0
        %757 = vmatprep.subr.mxu0 0.0
        %758 = vmatpush1.msra.mxu0 0.0
        %759 = vmatprep.subr.mxu0 0.0
        %760 = vmatpush1.msra.mxu0 0.0
        %761 = vmatprep.subr.mxu0 0.0
        %762 = vmatpush1.msra.mxu0 0.0
        %763 = vmatprep.subr.mxu0 0.0
        %764 = vmatpush1.msra.mxu0 0.0
        %765 = vmatprep.subr.mxu0 0.0
        %766 = vmatpush1.msra.mxu0 0.0
        %767 = vmatprep.subr.mxu0 0.0
        %768 = vmatpush1.msra.mxu0 0.0
        %769 = vmatprep.subr.mxu0 0.0
        %770 = vmatpush1.msra.mxu0 0.0
        %771 = vmatprep.subr.mxu0 0.0
        %772 = vmatpush1.msra.mxu0 0.0
        %773 = vmatprep.subr.mxu0 0.0
        %774 = vmatpush1.msra.mxu0 0.0
        %775 = vmatprep.subr.mxu0 0.0
        %776 = vmatpush1.msra.mxu0 0.0
        %777 = vmatprep.subr.mxu0 0.0
        %778 = vmatpush1.msra.mxu0 0.0
        %779 = vmatprep.subr.mxu0 0.0
        %780 = vmatpush1.msra.mxu0 0.0
        %781 = vmatprep.subr.mxu0 0.0
        %782 = vmatpush1.msra.mxu0 0.0
        %783 = vmatprep.subr.mxu0 0.0
        %784 = vmatpush1.msra.mxu0 0.0
        %785 = vmatprep.mubr.f32.mxu0 0.0
        %v786 = vand.u32 %v302, 4294901760
        %787 = vmatmul.mubr.f32.gmra.mrb[0].mxu0 %v786
        %v788 = vpop.f32.mrb[0].mxu0
        %v789 = vadd.f32 %v688, %v788
        %v790 = vpop.f32.mrb[0].mxu0
        %791 = vmatprep.mubr.f32.mxu0 0.0
        %v792 = vand.u32 %v305, 4294901760
        %793 = vmatmul.mubr.f32.gmra.mrb[0].mxu0 %v792
        %v794 = vpop.f32.mrb[0].mxu0
        %v795 = vadd.f32 %v696, %v794
        %v796 = vpop.f32.mrb[0].mxu0
        %797 = vmatprep.mubr.f32.mxu0 0.0
        %v798 = vand.u32 %v308, 4294901760
        %799 = vmatmul.mubr.f32.gmra.mrb[0].mxu0 %v798
        %v800 = vpop.f32.mrb[0].mxu0
        %v801 = vadd.f32 %v704, %v800
        %v802 = vpop.f32.mrb[0].mxu0
        %803 = vmatprep.mubr.f32.mxu0 0.0
        %v804 = vand.u32 %v311, 4294901760
        %805 = vmatmul.mubr.f32.gmra.mrb[0].mxu0 %v804
        %v806 = vpop.f32.mrb[0].mxu0
        %v807 = vadd.f32 %v712, %v806
        %v808 = vpop.f32.mrb[0].mxu0
        %809 = vdwg.mxu0
        %810 = vmatprep.subr.mxu0 0.0
        %v811 = vand.u32 %v264, 4294901760
        %812 = vmatpush1.msra.mxu0 %v811
        %813 = vmatprep.subr.mxu0 0.0
        %v814 = vand.u32 %v265, 4294901760
        %815 = vmatpush1.msra.mxu0 %v814
        %816 = vmatprep.subr.mxu0 0.0
        %817 = vmatpush1.msra.mxu0 0.0
        %818 = vmatprep.subr.mxu0 0.0
        %819 = vmatpush1.msra.mxu0 0.0
        %820 = vmatprep.subr.mxu0 0.0
        %821 = vmatpush1.msra.mxu0 0.0
        %822 = vmatprep.subr.mxu0 0.0
        %823 = vmatpush1.msra.mxu0 0.0
        %824 = vmatprep.subr.mxu0 0.0
        %825 = vmatpush1.msra.mxu0 0.0
        %826 = vmatprep.subr.mxu0 0.0
        %827 = vmatpush1.msra.mxu0 0.0
        %828 = vmatprep.subr.mxu0 0.0
        %829 = vmatpush1.msra.mxu0 0.0
        %830 = vmatprep.subr.mxu0 0.0
        %831 = vmatpush1.msra.mxu0 0.0
        %832 = vmatprep.subr.mxu0 0.0
        %833 = vmatpush1.msra.mxu0 0.0
        %834 = vmatprep.subr.mxu0 0.0
        %835 = vmatpush1.msra.mxu0 0.0
        %836 = vmatprep.subr.mxu0 0.0
        %837 = vmatpush1.msra.mxu0 0.0
        %838 = vmatprep.subr.mxu0 0.0
        %839 = vmatpush1.msra.mxu0 0.0
        %840 = vmatprep.subr.mxu0 0.0
        %841 = vmatpush1.msra.mxu0 0.0
        %842 = vmatprep.subr.mxu0 0.0
        %843 = vmatpush1.msra.mxu0 0.0
        %844 = vmatprep.subr.mxu0 0.0
        %845 = vmatpush1.msra.mxu0 0.0
        %846 = vmatprep.subr.mxu0 0.0
        %847 = vmatpush1.msra.mxu0 0.0
        %848 = vmatprep.subr.mxu0 0.0
        %849 = vmatpush1.msra.mxu0 0.0
        %850 = vmatprep.subr.mxu0 0.0
        %851 = vmatpush1.msra.mxu0 0.0
        %852 = vmatprep.subr.mxu0 0.0
        %853 = vmatpush1.msra.mxu0 0.0
        %854 = vmatprep.subr.mxu0 0.0
        %855 = vmatpush1.msra.mxu0 0.0
        %856 = vmatprep.subr.mxu0 0.0
        %857 = vmatpush1.msra.mxu0 0.0
        %858 = vmatprep.subr.mxu0 0.0
        %859 = vmatpush1.msra.mxu0 0.0
        %860 = vmatprep.subr.mxu0 0.0
        %861 = vmatpush1.msra.mxu0 0.0
        %862 = vmatprep.subr.mxu0 0.0
        %863 = vmatpush1.msra.mxu0 0.0
        %864 = vmatprep.subr.mxu0 0.0
        %865 = vmatpush1.msra.mxu0 0.0
        %866 = vmatprep.subr.mxu0 0.0
        %867 = vmatpush1.msra.mxu0 0.0
        %868 = vmatprep.subr.mxu0 0.0
        %869 = vmatpush1.msra.mxu0 0.0
        %870 = vmatprep.subr.mxu0 0.0
        %871 = vmatpush1.msra.mxu0 0.0
        %872 = vmatprep.subr.mxu0 0.0
        %873 = vmatpush1.msra.mxu0 0.0
        %874 = vmatprep.subr.mxu0 0.0
        %875 = vmatpush1.msra.mxu0 0.0
        %876 = vmatprep.mubr.f32.mxu0 0.0
        %v877 = vand.u32 %v302, 4294901760
        %878 = vmatmul.mubr.f32.gmra.mrb[0].mxu0 %v877
        %v879 = vpop.f32.mrb[0].mxu0
        %v880 = vadd.f32 %v789, %v879
        %v881 = vpop.f32.mrb[0].mxu0
        %882 = vmatprep.mubr.f32.mxu0 0.0
        %v883 = vand.u32 %v305, 4294901760
        %884 = vmatmul.mubr.f32.gmra.mrb[0].mxu0 %v883
        %v885 = vpop.f32.mrb[0].mxu0
        %v886 = vadd.f32 %v795, %v885
        %v887 = vpop.f32.mrb[0].mxu0
        %888 = vmatprep.mubr.f32.mxu0 0.0
        %v889 = vand.u32 %v308, 4294901760
        %890 = vmatmul.mubr.f32.gmra.mrb[0].mxu0 %v889
        %v891 = vpop.f32.mrb[0].mxu0
        %v892 = vadd.f32 %v801, %v891
        %v893 = vpop.f32.mrb[0].mxu0
        %894 = vmatprep.mubr.f32.mxu0 0.0
        %v895 = vand.u32 %v311, 4294901760
        %896 = vmatmul.mubr.f32.gmra.mrb[0].mxu0 %v895
        %v897 = vpop.f32.mrb[0].mxu0
        %v898 = vadd.f32 %v807, %v897
        %v899 = vpop.f32.mrb[0].mxu0
        %900 = vdwg.mxu0
        %vm901 = vcmp.gt.f32.partialorder %v880, 0.0
        %vm902 = vcmp.gt.f32.partialorder %v886, 0.0
        %vm903 = vcmp.gt.f32.partialorder %v892, 0.0
        %vm904 = vcmp.gt.f32.partialorder %v898, 0.0
        %v905 = vstv %s278
        %v906 = vmul.f32 %v905, %v880
        %v907 = vmul.f32 %v905, %v886
        %v908 = vmul.f32 %v905, %v892
        %v909 = vmul.f32 %v905, %v898
        %v910 = vsel %vm901, %v880, %v906
        %v911 = vsel %vm902, %v886, %v907
        %v912 = vsel %vm903, %v892, %v908
        %v913 = vsel %vm904, %v898, %v909
        %914 = vadd.xlane.f32.xlu0 %v910
        %v915 = vpop.xlane.xlu0 %914
        %916 = vadd.xlane.f32.xlu0 %v911
        %v917 = vpop.xlane.xlu0 %916
        %918 = vadd.xlane.f32.xlu0 %v912
        %v919 = vpop.xlane.xlu0 %918
        %920 = vadd.xlane.f32.xlu0 %v913
        %v921 = vpop.xlane.xlu0 %920
        %v922 = vmul.f32 %v910, %v910
        %v923 = vmul.f32 %v911, %v911
        %v924 = vmul.f32 %v912, %v912
        %v925 = vmul.f32 %v913, %v913
        %926 = vadd.xlane.f32.xlu0 %v922
        %v927 = vpop.xlane.xlu0 %926
        %928 = vadd.xlane.f32.xlu0 %v923
        %v929 = vpop.xlane.xlu0 %928
        %930 = vadd.xlane.f32.xlu0 %v924
        %v931 = vpop.xlane.xlu0 %930
        %932 = vadd.xlane.f32.xlu0 %v925
        %v933 = vpop.xlane.xlu0 %932
        %v934 = vadd.f32 %v915, %v917
        %v935 = vadd.f32 %v934, %v919
        %v936 = vadd.f32 %v935, %v921
        %v937 = vrot.slane %v936, 4
        %v938 = vadd.f32 %v936, %v937
        %v939 = vrot.slane %v938, 2
        %v940 = vadd.f32 %v938, %v939
        %v941 = vrot.slane %v940, 1
        %v942 = vadd.f32 %v940, %v941
        %v943 = vmul.f32 %v942, 0.00024414063
        %v944 = vadd.f32 %v927, %v929
        %v945 = vadd.f32 %v944, %v931
        %v946 = vadd.f32 %v945, %v933
        %v947 = vrot.slane %v946, 4
        %v948 = vadd.f32 %v946, %v947
        %v949 = vrot.slane %v948, 2
        %v950 = vadd.f32 %v948, %v949
        %v951 = vrot.slane %v950, 1
        %v952 = vadd.f32 %v950, %v951
        %v953 = vmul.f32 %v952, 0.00024414063
        %v954 = vmul.f32 %v943, %v943
        %v955 = vsub.f32 %v953, %v954
        %v956 = vsub.f32 %v910, %v943
        %v957 = vsub.f32 %v911, %v943
        %v958 = vsub.f32 %v912, %v943
        %v959 = vsub.f32 %v913, %v943
        %v960 = vadd.f32 %v955, 1e-05
        %v961 = vrsqrt.pop %v960
        %v962 = vmul.f32 %v956, %v961
        %v963 = vmul.f32 %v957, %v961
        %v964 = vmul.f32 %v958, %v961
        %v965 = vmul.f32 %v959, %v961
        %966 = vset.pattern.permute.xlu0 1
        %967 = vperm.xlu0 %966, %v272
        %v968 = vpop.permute.xlu0 %967
        %970 = vset.pattern.permute.xlu0 1
        %971 = vperm.xlu0 %970, %v273
        %v972 = vpop.permute.xlu0 %971
        %974 = vset.pattern.permute.xlu0 1
        %975 = vperm.xlu0 %974, %v274
        %v976 = vpop.permute.xlu0 %975
        %978 = vset.pattern.permute.xlu0 1
        %979 = vperm.xlu0 %978, %v275
        %v980 = vpop.permute.xlu0 %979
        %v982 = vmul.f32 %v968, %v962
        %v983 = vmul.f32 %v972, %v963
        %v984 = vmul.f32 %v976, %v964
        %v985 = vmul.f32 %v980, %v965
        %986 = vset.pattern.permute.xlu0 2
        %987 = vperm.xlu0 %986, %v272
        %v988 = vpop.permute.xlu0 %987
        %990 = vset.pattern.permute.xlu0 2
        %991 = vperm.xlu0 %990, %v273
        %v992 = vpop.permute.xlu0 %991
        %994 = vset.pattern.permute.xlu0 2
        %995 = vperm.xlu0 %994, %v274
        %v996 = vpop.permute.xlu0 %995
        %998 = vset.pattern.permute.xlu0 2
        %999 = vperm.xlu0 %998, %v275
        %v1000 = vpop.permute.xlu0 %999
        %v1002 = vadd.f32 %v982, %v988
        %v1003 = vadd.f32 %v983, %v992
        %v1004 = vadd.f32 %v984, %v996
        %v1005 = vadd.f32 %v985, %v1000
        %1010 = vrot.lane.b32.xlu0 %v1002, 1
        %v1011 = vpop.permute.xlu0 %1010
        %1012 = vrot.lane.b32.xlu0 %v1003, 1
        %v1013 = vpop.permute.xlu0 %1012
        %1014 = vrot.lane.b32.xlu0 %v1004, 1
        %v1015 = vpop.permute.xlu0 %1014
        %1016 = vrot.lane.b32.xlu0 %v1005, 1
        %v1017 = vpop.permute.xlu0 %1016
        %vm1022 = vcmask 7168
        %v1023 = vsel %vm1022, 0.0, %v1011
        %v1024 = vsel %vm1022, 0.0, %v1013
        %v1025 = vsel %vm1022, 0.0, %v1015
        %v1026 = vsel %vm1022, 0.0, %v1017
        %1027 = vset.pattern.permute.xlu0 6
        %1028 = vperm.xlu0 %1027, %v272
        %v1029 = vpop.permute.xlu0 %1028
        %1031 = vset.pattern.permute.xlu0 6
        %1032 = vperm.xlu0 %1031, %v273
        %v1033 = vpop.permute.xlu0 %1032
        %1035 = vset.pattern.permute.xlu0 6
        %1036 = vperm.xlu0 %1035, %v274
        %v1037 = vpop.permute.xlu0 %1036
        %1039 = vset.pattern.permute.xlu0 6
        %1040 = vperm.xlu0 %1039, %v275
        %v1041 = vpop.permute.xlu0 %1040
        %v1043 = vmul.f32 %v1029, %v1023
        %v1044 = vmul.f32 %v1033, %v1024
        %v1045 = vmul.f32 %v1037, %v1025
        %v1046 = vmul.f32 %v1041, %v1026
        %v1047 = vadd.f32 %v1043, 0.0
        %v1048 = vadd.f32 %v1044, 0.0
        %v1049 = vadd.f32 %v1045, 0.0
        %v1050 = vadd.f32 %v1046, 0.0
        %1051 = vset.pattern.permute.xlu0 7
        %1052 = vperm.xlu0 %1051, %v272
        %v1053 = vpop.permute.xlu0 %1052
        %1055 = vset.pattern.permute.xlu0 7
        %1056 = vperm.xlu0 %1055, %v273
        %v1057 = vpop.permute.xlu0 %1056
        %1059 = vset.pattern.permute.xlu0 7
        %1060 = vperm.xlu0 %1059, %v274
        %v1061 = vpop.permute.xlu0 %1060
        %1063 = vset.pattern.permute.xlu0 7
        %1064 = vperm.xlu0 %1063, %v275
        %v1065 = vpop.permute.xlu0 %1064
        %v1067 = vmul.f32 %v1053, %v1002
        %v1068 = vmul.f32 %v1057, %v1003
        %v1069 = vmul.f32 %v1061, %v1004
        %v1070 = vmul.f32 %v1065, %v1005
        %v1071 = vadd.f32 %v1047, %v1067
        %v1072 = vadd.f32 %v1048, %v1068
        %v1073 = vadd.f32 %v1049, %v1069
        %v1074 = vadd.f32 %v1050, %v1070
        %1075 = vrot.lane.b32.xlu0 %v1002, 127
        %v1076 = vpop.permute.xlu0 %1075
        %1077 = vrot.lane.b32.xlu0 %v1003, 127
        %v1078 = vpop.permute.xlu0 %1077
        %1079 = vrot.lane.b32.xlu0 %v1004, 127
        %v1080 = vpop.permute.xlu0 %1079
        %1081 = vrot.lane.b32.xlu0 %v1005, 127
        %v1082 = vpop.permute.xlu0 %1081
        %vm1087 = vcmask 1039360
        %v1088 = vsel %vm1087, %v1076, 0.0
        %v1089 = vsel %vm1087, %v1078, 0.0
        %v1090 = vsel %vm1087, %v1080, 0.0
        %v1091 = vsel %vm1087, %v1082, 0.0
        %1092 = vset.pattern.permute.xlu0 8
        %1093 = vperm.xlu0 %1092, %v272
        %v1094 = vpop.permute.xlu0 %1093
        %1096 = vset.pattern.permute.xlu0 8
        %1097 = vperm.xlu0 %1096, %v273
        %v1098 = vpop.permute.xlu0 %1097
        %1100 = vset.pattern.permute.xlu0 8
        %1101 = vperm.xlu0 %1100, %v274
        %v1102 = vpop.permute.xlu0 %1101
        %1104 = vset.pattern.permute.xlu0 8
        %1105 = vperm.xlu0 %1104, %v275
        %v1106 = vpop.permute.xlu0 %1105
        %v1108 = vmul.f32 %v1094, %v1088
        %v1109 = vmul.f32 %v1098, %v1089
        %v1110 = vmul.f32 %v1102, %v1090
        %v1111 = vmul.f32 %v1106, %v1091
        %v1112 = vadd.f32 %v1071, %v1108
        %v1113 = vadd.f32 %v1072, %v1109
        %v1114 = vadd.f32 %v1073, %v1110
        %v1115 = vadd.f32 %v1074, %v1111
        %1116 = vset.pattern.permute.xlu0 3
        %1117 = vperm.xlu0 %1116, %v272
        %v1118 = vpop.permute.xlu0 %1117
        %1120 = vset.pattern.permute.xlu0 3
        %1121 = vperm.xlu0 %1120, %v273
        %v1122 = vpop.permute.xlu0 %1121
        %1124 = vset.pattern.permute.xlu0 3
        %1125 = vperm.xlu0 %1124, %v274
        %v1126 = vpop.permute.xlu0 %1125
        %1128 = vset.pattern.permute.xlu0 3
        %1129 = vperm.xlu0 %1128, %v275
        %v1130 = vpop.permute.xlu0 %1129
        %v1132 = vadd.f32 %v1112, %v1118
        %v1133 = vadd.f32 %v1113, %v1122
        %v1134 = vadd.f32 %v1114, %v1126
        %v1135 = vadd.f32 %v1115, %v1130
        %1136 = vadd.xlane.f32.xlu0 %v1132
        %v1137 = vpop.xlane.xlu0 %1136
        %1138 = vadd.xlane.f32.xlu0 %v1133
        %v1139 = vpop.xlane.xlu0 %1138
        %1140 = vadd.xlane.f32.xlu0 %v1134
        %v1141 = vpop.xlane.xlu0 %1140
        %1142 = vadd.xlane.f32.xlu0 %v1135
        %v1143 = vpop.xlane.xlu0 %1142
        %v1144 = vmul.f32 %v1132, %v1132
        %v1145 = vmul.f32 %v1133, %v1133
        %v1146 = vmul.f32 %v1134, %v1134
        %v1147 = vmul.f32 %v1135, %v1135
        %1148 = vadd.xlane.f32.xlu0 %v1144
        %v1149 = vpop.xlane.xlu0 %1148
        %1150 = vadd.xlane.f32.xlu0 %v1145
        %v1151 = vpop.xlane.xlu0 %1150
        %1152 = vadd.xlane.f32.xlu0 %v1146
        %v1153 = vpop.xlane.xlu0 %1152
        %1154 = vadd.xlane.f32.xlu0 %v1147
        %v1155 = vpop.xlane.xlu0 %1154
        %v1156 = vadd.f32 %v1137, %v1139
        %v1157 = vadd.f32 %v1156, %v1141
        %v1158 = vadd.f32 %v1157, %v1143
        %v1159 = vrot.slane %v1158, 4
        %v1160 = vadd.f32 %v1158, %v1159
        %v1161 = vrot.slane %v1160, 2
        %v1162 = vadd.f32 %v1160, %v1161
        %v1163 = vrot.slane %v1162, 1
        %v1164 = vadd.f32 %v1162, %v1163
        %v1165 = vmul.f32 %v1164, 0.00024414063
        %v1166 = vadd.f32 %v1149, %v1151
        %v1167 = vadd.f32 %v1166, %v1153
        %v1168 = vadd.f32 %v1167, %v1155
        %v1169 = vrot.slane %v1168, 4
        %v1170 = vadd.f32 %v1168, %v1169
        %v1171 = vrot.slane %v1170, 2
        %v1172 = vadd.f32 %v1170, %v1171
        %v1173 = vrot.slane %v1172, 1
        %v1174 = vadd.f32 %v1172, %v1173
        %v1175 = vmul.f32 %v1174, 0.00024414063
        %v1176 = vmul.f32 %v1165, %v1165
        %v1177 = vsub.f32 %v1175, %v1176
        %v1178 = vsub.f32 %v1132, %v1165
        %v1179 = vsub.f32 %v1133, %v1165
        %v1180 = vsub.f32 %v1134, %v1165
        %v1181 = vsub.f32 %v1135, %v1165
        %v1182 = vadd.f32 %v1177, 1e-05
        %v1183 = vrsqrt.pop %v1182
        %v1184 = vmul.f32 %v1178, %v1183
        %v1185 = vmul.f32 %v1179, %v1183
        %v1186 = vmul.f32 %v1180, %v1183
        %v1187 = vmul.f32 %v1181, %v1183
        %1188 = vset.pattern.permute.xlu0 4
        %1189 = vperm.xlu0 %1188, %v272
        %v1190 = vpop.permute.xlu0 %1189
        %1192 = vset.pattern.permute.xlu0 4
        %1193 = vperm.xlu0 %1192, %v273
        %v1194 = vpop.permute.xlu0 %1193
        %1196 = vset.pattern.permute.xlu0 4
        %1197 = vperm.xlu0 %1196, %v274
        %v1198 = vpop.permute.xlu0 %1197
        %1200 = vset.pattern.permute.xlu0 4
        %1201 = vperm.xlu0 %1200, %v275
        %v1202 = vpop.permute.xlu0 %1201
        %v1204 = vmul.f32 %v1190, %v1184
        %v1205 = vmul.f32 %v1194, %v1185
        %v1206 = vmul.f32 %v1198, %v1186
        %v1207 = vmul.f32 %v1202, %v1187
        %1208 = vset.pattern.permute.xlu0 5
        %1209 = vperm.xlu0 %1208, %v272
        %v1210 = vpop.permute.xlu0 %1209
        %1212 = vset.pattern.permute.xlu0 5
        %1213 = vperm.xlu0 %1212, %v273
        %v1214 = vpop.permute.xlu0 %1213
        %1216 = vset.pattern.permute.xlu0 5
        %1217 = vperm.xlu0 %1216, %v274
        %v1218 = vpop.permute.xlu0 %1217
        %1220 = vset.pattern.permute.xlu0 5
        %1221 = vperm.xlu0 %1220, %v275
        %v1222 = vpop.permute.xlu0 %1221
        %v1224 = vadd.f32 %v1204, %v1210
        %v1225 = vadd.f32 %v1205, %v1214
        %v1226 = vadd.f32 %v1206, %v1218
        %v1227 = vadd.f32 %v1207, %v1222
        %vm1228 = vcmp.gt.f32.partialorder %v1224, 0.0
        %vm1229 = vcmp.gt.f32.partialorder %v1225, 0.0
        %vm1230 = vcmp.gt.f32.partialorder %v1226, 0.0
        %vm1231 = vcmp.gt.f32.partialorder %v1227, 0.0
        %v1232 = vstv %s279
        %v1233 = vmul.f32 %v1232, %v1224
        %v1234 = vmul.f32 %v1232, %v1225
        %v1235 = vmul.f32 %v1232, %v1226
        %v1236 = vmul.f32 %v1232, %v1227
        %v1237 = vsel %vm1228, %v1224, %v1233
        %v1238 = vsel %vm1229, %v1225, %v1234
        %v1239 = vsel %vm1230, %v1226, %v1235
        %v1240 = vsel %vm1231, %v1227, %v1236
        %1242 = vset.pattern.permute.xlu0 0
        %1243 = vperm.xlu0 %1242, %v276
        %v1244 = vpop.permute.xlu0 %1243
        %1247 = vset.pattern.permute.xlu0 0
        %1248 = vperm.xlu0 %1247, %v277
        %v1249 = vpop.permute.xlu0 %1248
        %vm1251 = vcmask 261120
        %v1253 = vsel %vm1251, %v270, 0
        %v1256 = vsel %vm1251, %v271, 0
        %1258 = vmatprep.subr.mxu0 0.0
        %v1259 = vand.u32 %v1237, 4294901760
        %1260 = vmatpush1.msra.mxu0 %v1259
        %1261 = vmatprep.subr.mxu0 0.0
        %v1262 = vand.u32 %v1238, 4294901760
        %1263 = vmatpush1.msra.mxu0 %v1262
        %1264 = vmatprep.subr.mxu0 0.0
        %v1265 = vand.u32 %v1239, 4294901760
        %1266 = vmatpush1.msra.mxu0 %v1265
        %1267 = vmatprep.subr.mxu0 0.0
        %v1268 = vand.u32 %v1240, 4294901760
        %1269 = vmatpush1.msra.mxu0 %v1268
        %1270 = vmatprep.subr.mxu0 0.0
        %1271 = vmatpush1.msra.mxu0 0.0
        %1272 = vmatprep.subr.mxu0 0.0
        %1273 = vmatpush1.msra.mxu0 0.0
        %1274 = vmatprep.subr.mxu0 0.0
        %1275 = vmatpush1.msra.mxu0 0.0
        %1276 = vmatprep.subr.mxu0 0.0
        %1277 = vmatpush1.msra.mxu0 0.0
        %1278 = vmatprep.subr.mxu0 0.0
        %1279 = vmatpush1.msra.mxu0 0.0
        %1280 = vmatprep.subr.mxu0 0.0
        %1281 = vmatpush1.msra.mxu0 0.0
        %1282 = vmatprep.subr.mxu0 0.0
        %1283 = vmatpush1.msra.mxu0 0.0
        %1284 = vmatprep.subr.mxu0 0.0
        %1285 = vmatpush1.msra.mxu0 0.0
        %1286 = vmatprep.subr.mxu0 0.0
        %1287 = vmatpush1.msra.mxu0 0.0
        %1288 = vmatprep.subr.mxu0 0.0
        %1289 = vmatpush1.msra.mxu0 0.0
        %1290 = vmatprep.subr.mxu0 0.0
        %1291 = vmatpush1.msra.mxu0 0.0
        %1292 = vmatprep.subr.mxu0 0.0
        %1293 = vmatpush1.msra.mxu0 0.0
        %1294 = vmatprep.subr.mxu0 0.0
        %1295 = vmatpush1.msra.mxu0 0.0
        %1296 = vmatprep.subr.mxu0 0.0
        %1297 = vmatpush1.msra.mxu0 0.0
        %1298 = vmatprep.subr.mxu0 0.0
        %1299 = vmatpush1.msra.mxu0 0.0
        %1300 = vmatprep.subr.mxu0 0.0
        %1301 = vmatpush1.msra.mxu0 0.0
        %1302 = vmatprep.subr.mxu0 0.0
        %1303 = vmatpush1.msra.mxu0 0.0
        %1304 = vmatprep.subr.mxu0 0.0
        %1305 = vmatpush1.msra.mxu0 0.0
        %1306 = vmatprep.subr.mxu0 0.0
        %1307 = vmatpush1.msra.mxu0 0.0
        %1308 = vmatprep.subr.mxu0 0.0
        %1309 = vmatpush1.msra.mxu0 0.0
        %1310 = vmatprep.subr.mxu0 0.0
        %1311 = vmatpush1.msra.mxu0 0.0
        %1312 = vmatprep.subr.mxu0 0.0
        %1313 = vmatpush1.msra.mxu0 0.0
        %1314 = vmatprep.subr.mxu0 0.0
        %1315 = vmatpush1.msra.mxu0 0.0
        %1316 = vmatprep.subr.mxu0 0.0
        %1317 = vmatpush1.msra.mxu0 0.0
        %1318 = vmatprep.subr.mxu0 0.0
        %1319 = vmatpush1.msra.mxu0 0.0
        %1320 = vmatprep.subr.mxu0 0.0
        %1321 = vmatpush1.msra.mxu0 0.0
        %1322 = vmatprep.subr.mxu0 0.0
        %1323 = vmatpush1.msra.mxu0 0.0
        %1324 = vmatprep.subr.mxu0 0.0
        %1325 = vmatpush1.msra.mxu0 0.0
        %1326 = vmatprep.mubr.f32.mxu0 0.0
        %v1327 = vand.u32 %v1253, 4294901760
        %v1328 = vsub.f32 %v1253, %v1327
        %v1329 = vand.u32 %v1328, 4294901760
        %v1330 = vsub.f32 %v1328, %v1329
        %v1331 = vand.u32 %v1330, 4294901760
        %1332 = vmatmul.mubr.f32.gmra.mrb[0].mxu0 %v1331
        %v1333 = vpop.f32.mrb[0].mxu0
        %v1334 = vadd.f32 %v1244, %v1333
        %v1335 = vpop.f32.mrb[0].mxu0
        %1336 = vmatprep.mubr.f32.mxu0 0.0
        %v1337 = vand.u32 %v1256, 4294901760
        %v1338 = vsub.f32 %v1256, %v1337
        %v1339 = vand.u32 %v1338, 4294901760
        %v1340 = vsub.f32 %v1338, %v1339
        %v1341 = vand.u32 %v1340, 4294901760
        %1342 = vmatmul.mubr.f32.gmra.mrb[0].mxu0 %v1341
        %v1343 = vpop.f32.mrb[0].mxu0
        %v1344 = vadd.f32 %v1249, %v1343
        %v1345 = vpop.f32.mrb[0].mxu0
        %1346 = vdwg.mxu0
        %1347 = vmatprep.subr.mxu0 0.0
        %v1348 = vand.u32 %v1237, 4294901760
        %v1349 = vsub.f32 %v1237, %v1348
        %v1350 = vand.u32 %v1349, 4294901760
        %v1351 = vsub.f32 %v1349, %v1350
        %v1352 = vand.u32 %v1351, 4294901760
        %1353 = vmatpush1.msra.mxu0 %v1352
        %1354 = vmatprep.subr.mxu0 0.0
        %v1355 = vand.u32 %v1238, 4294901760
        %v1356 = vsub.f32 %v1238, %v1355
        %v1357 = vand.u32 %v1356, 4294901760
        %v1358 = vsub.f32 %v1356, %v1357
        %v1359 = vand.u32 %v1358, 4294901760
        %1360 = vmatpush1.msra.mxu0 %v1359
        %1361 = vmatprep.subr.mxu0 0.0
        %v1362 = vand.u32 %v1239, 4294901760
        %v1363 = vsub.f32 %v1239, %v1362
        %v1364 = vand.u32 %v1363, 4294901760
        %v1365 = vsub.f32 %v1363, %v1364
        %v1366 = vand.u32 %v1365, 4294901760
        %1367 = vmatpush1.msra.mxu0 %v1366
        %1368 = vmatprep.subr.mxu0 0.0
        %v1369 = vand.u32 %v1240, 4294901760
        %v1370 = vsub.f32 %v1240, %v1369
        %v1371 = vand.u32 %v1370, 4294901760
        %v1372 = vsub.f32 %v1370, %v1371
        %v1373 = vand.u32 %v1372, 4294901760
        %1374 = vmatpush1.msra.mxu0 %v1373
        %1375 = vmatprep.subr.mxu0 0.0
        %1376 = vmatpush1.msra.mxu0 0.0
        %1377 = vmatprep.subr.mxu0 0.0
        %1378 = vmatpush1.msra.mxu0 0.0
        %1379 = vmatprep.subr.mxu0 0.0
        %1380 = vmatpush1.msra.mxu0 0.0
        %1381 = vmatprep.subr.mxu0 0.0
        %1382 = vmatpush1.msra.mxu0 0.0
        %1383 = vmatprep.subr.mxu0 0.0
        %1384 = vmatpush1.msra.mxu0 0.0
        %1385 = vmatprep.subr.mxu0 0.0
        %1386 = vmatpush1.msra.mxu0 0.0
        %1387 = vmatprep.subr.mxu0 0.0
        %1388 = vmatpush1.msra.mxu0 0.0
        %1389 = vmatprep.subr.mxu0 0.0
        %1390 = vmatpush1.msra.mxu0 0.0
        %1391 = vmatprep.subr.mxu0 0.0
        %1392 = vmatpush1.msra.mxu0 0.0
        %1393 = vmatprep.subr.mxu0 0.0
        %1394 = vmatpush1.msra.mxu0 0.0
        %1395 = vmatprep.subr.mxu0 0.0
        %1396 = vmatpush1.msra.mxu0 0.0
        %1397 = vmatprep.subr.mxu0 0.0
        %1398 = vmatpush1.msra.mxu0 0.0
        %1399 = vmatprep.subr.mxu0 0.0
        %1400 = vmatpush1.msra.mxu0 0.0
        %1401 = vmatprep.subr.mxu0 0.0
        %1402 = vmatpush1.msra.mxu0 0.0
        %1403 = vmatprep.subr.mxu0 0.0
        %1404 = vmatpush1.msra.mxu0 0.0
        %1405 = vmatprep.subr.mxu0 0.0
        %1406 = vmatpush1.msra.mxu0 0.0
        %1407 = vmatprep.subr.mxu0 0.0
        %1408 = vmatpush1.msra.mxu0 0.0
        %1409 = vmatprep.subr.mxu0 0.0
        %1410 = vmatpush1.msra.mxu0 0.0
        %1411 = vmatprep.subr.mxu0 0.0
        %1412 = vmatpush1.msra.mxu0 0.0
        %1413 = vmatprep.subr.mxu0 0.0
        %1414 = vmatpush1.msra.mxu0 0.0
        %1415 = vmatprep.subr.mxu0 0.0
        %1416 = vmatpush1.msra.mxu0 0.0
        %1417 = vmatprep.subr.mxu0 0.0
        %1418 = vmatpush1.msra.mxu0 0.0
        %1419 = vmatprep.subr.mxu0 0.0
        %1420 = vmatpush1.msra.mxu0 0.0
        %1421 = vmatprep.subr.mxu0 0.0
        %1422 = vmatpush1.msra.mxu0 0.0
        %1423 = vmatprep.subr.mxu0 0.0
        %1424 = vmatpush1.msra.mxu0 0.0
        %1425 = vmatprep.subr.mxu0 0.0
        %1426 = vmatpush1.msra.mxu0 0.0
        %1427 = vmatprep.subr.mxu0 0.0
        %1428 = vmatpush1.msra.mxu0 0.0
        %1429 = vmatprep.subr.mxu0 0.0
        %1430 = vmatpush1.msra.mxu0 0.0
        %1431 = vmatprep.mubr.f32.mxu0 0.0
        %v1432 = vand.u32 %v1253, 4294901760
        %1433 = vmatmul.mubr.f32.gmra.mrb[0].mxu0 %v1432
        %v1434 = vpop.f32.mrb[0].mxu0
        %v1435 = vadd.f32 %v1334, %v1434
        %v1436 = vpop.f32.mrb[0].mxu0
        %1437 = vmatprep.mubr.f32.mxu0 0.0
        %v1438 = vand.u32 %v1256, 4294901760
        %1439 = vmatmul.mubr.f32.gmra.mrb[0].mxu0 %v1438
        %v1440 = vpop.f32.mrb[0].mxu0
        %v1441 = vadd.f32 %v1344, %v1440
        %v1442 = vpop.f32.mrb[0].mxu0
        %1443 = vdwg.mxu0
        %1444 = vmatprep.subr.mxu0 0.0
        %v1445 = vand.u32 %v1237, 4294901760
        %v1446 = vsub.f32 %v1237, %v1445
        %1447 = vmatpush1.msra.mxu0 %v1446
        %1448 = vmatprep.subr.mxu0 0.0
        %v1449 = vand.u32 %v1238, 4294901760
        %v1450 = vsub.f32 %v1238, %v1449
        %1451 = vmatpush1.msra.mxu0 %v1450
        %1452 = vmatprep.subr.mxu0 0.0
        %v1453 = vand.u32 %v1239, 4294901760
        %v1454 = vsub.f32 %v1239, %v1453
        %1455 = vmatpush1.msra.mxu0 %v1454
        %1456 = vmatprep.subr.mxu0 0.0
        %v1457 = vand.u32 %v1240, 4294901760
        %v1458 = vsub.f32 %v1240, %v1457
        %1459 = vmatpush1.msra.mxu0 %v1458
        %1460 = vmatprep.subr.mxu0 0.0
        %1461 = vmatpush1.msra.mxu0 0.0
        %1462 = vmatprep.subr.mxu0 0.0
        %1463 = vmatpush1.msra.mxu0 0.0
        %1464 = vmatprep.subr.mxu0 0.0
        %1465 = vmatpush1.msra.mxu0 0.0
        %1466 = vmatprep.subr.mxu0 0.0
        %1467 = vmatpush1.msra.mxu0 0.0
        %1468 = vmatprep.subr.mxu0 0.0
        %1469 = vmatpush1.msra.mxu0 0.0
        %1470 = vmatprep.subr.mxu0 0.0
        %1471 = vmatpush1.msra.mxu0 0.0
        %1472 = vmatprep.subr.mxu0 0.0
        %1473 = vmatpush1.msra.mxu0 0.0
        %1474 = vmatprep.subr.mxu0 0.0
        %1475 = vmatpush1.msra.mxu0 0.0
        %1476 = vmatprep.subr.mxu0 0.0
        %1477 = vmatpush1.msra.mxu0 0.0
        %1478 = vmatprep.subr.mxu0 0.0
        %1479 = vmatpush1.msra.mxu0 0.0
        %1480 = vmatprep.subr.mxu0 0.0
        %1481 = vmatpush1.msra.mxu0 0.0
        %1482 = vmatprep.subr.mxu0 0.0
        %1483 = vmatpush1.msra.mxu0 0.0
        %1484 = vmatprep.subr.mxu0 0.0
        %1485 = vmatpush1.msra.mxu0 0.0
        %1486 = vmatprep.subr.mxu0 0.0
        %1487 = vmatpush1.msra.mxu0 0.0
        %1488 = vmatprep.subr.mxu0 0.0
        %1489 = vmatpush1.msra.mxu0 0.0
        %1490 = vmatprep.subr.mxu0 0.0
        %1491 = vmatpush1.msra.mxu0 0.0
        %1492 = vmatprep.subr.mxu0 0.0
        %1493 = vmatpush1.msra.mxu0 0.0
        %1494 = vmatprep.subr.mxu0 0.0
        %1495 = vmatpush1.msra.mxu0 0.0
        %1496 = vmatprep.subr.mxu0 0.0
        %1497 = vmatpush1.msra.mxu0 0.0
        %1498 = vmatprep.subr.mxu0 0.0
        %1499 = vmatpush1.msra.mxu0 0.0
        %1500 = vmatprep.subr.mxu0 0.0
        %1501 = vmatpush1.msra.mxu0 0.0
        %1502 = vmatprep.subr.mxu0 0.0
        %1503 = vmatpush1.msra.mxu0 0.0
        %1504 = vmatprep.subr.mxu0 0.0
        %1505 = vmatpush1.msra.mxu0 0.0
        %1506 = vmatprep.subr.mxu0 0.0
        %1507 = vmatpush1.msra.mxu0 0.0
        %1508 = vmatprep.subr.mxu0 0.0
        %1509 = vmatpush1.msra.mxu0 0.0
        %1510 = vmatprep.subr.mxu0 0.0
        %1511 = vmatpush1.msra.mxu0 0.0
        %1512 = vmatprep.subr.mxu0 0.0
        %1513 = vmatpush1.msra.mxu0 0.0
        %1514 = vmatprep.subr.mxu0 0.0
        %1515 = vmatpush1.msra.mxu0 0.0
        %1516 = vmatprep.mubr.f32.mxu0 0.0
        %v1517 = vand.u32 %v1253, 4294901760
        %v1518 = vsub.f32 %v1253, %v1517
        %1519 = vmatmul.mubr.f32.gmra.mrb[0].mxu0 %v1518
        %v1520 = vpop.f32.mrb[0].mxu0
        %v1521 = vadd.f32 %v1435, %v1520
        %v1522 = vpop.f32.mrb[0].mxu0
        %1523 = vmatprep.mubr.f32.mxu0 0.0
        %v1524 = vand.u32 %v1256, 4294901760
        %v1525 = vsub.f32 %v1256, %v1524
        %1526 = vmatmul.mubr.f32.gmra.mrb[0].mxu0 %v1525
        %v1527 = vpop.f32.mrb[0].mxu0
        %v1528 = vadd.f32 %v1441, %v1527
        %v1529 = vpop.f32.mrb[0].mxu0
        %1530 = vdwg.mxu0
        %1531 = vmatprep.subr.mxu0 0.0
        %v1532 = vand.u32 %v1237, 4294901760
        %1533 = vmatpush1.msra.mxu0 %v1532
        %1534 = vmatprep.subr.mxu0 0.0
        %v1535 = vand.u32 %v1238, 4294901760
        %1536 = vmatpush1.msra.mxu0 %v1535
        %1537 = vmatprep.subr.mxu0 0.0
        %v1538 = vand.u32 %v1239, 4294901760
        %1539 = vmatpush1.msra.mxu0 %v1538
        %1540 = vmatprep.subr.mxu0 0.0
        %v1541 = vand.u32 %v1240, 4294901760
        %1542 = vmatpush1.msra.mxu0 %v1541
        %1543 = vmatprep.subr.mxu0 0.0
        %1544 = vmatpush1.msra.mxu0 0.0
        %1545 = vmatprep.subr.mxu0 0.0
        %1546 = vmatpush1.msra.mxu0 0.0
        %1547 = vmatprep.subr.mxu0 0.0
        %1548 = vmatpush1.msra.mxu0 0.0
        %1549 = vmatprep.subr.mxu0 0.0
        %1550 = vmatpush1.msra.mxu0 0.0
        %1551 = vmatprep.subr.mxu0 0.0
        %1552 = vmatpush1.msra.mxu0 0.0
        %1553 = vmatprep.subr.mxu0 0.0
        %1554 = vmatpush1.msra.mxu0 0.0
        %1555 = vmatprep.subr.mxu0 0.0
        %1556 = vmatpush1.msra.mxu0 0.0
        %1557 = vmatprep.subr.mxu0 0.0
        %1558 = vmatpush1.msra.mxu0 0.0
        %1559 = vmatprep.subr.mxu0 0.0
        %1560 = vmatpush1.msra.mxu0 0.0
        %1561 = vmatprep.subr.mxu0 0.0
        %1562 = vmatpush1.msra.mxu0 0.0
        %1563 = vmatprep.subr.mxu0 0.0
        %1564 = vmatpush1.msra.mxu0 0.0
        %1565 = vmatprep.subr.mxu0 0.0
        %1566 = vmatpush1.msra.mxu0 0.0
        %1567 = vmatprep.subr.mxu0 0.0
        %1568 = vmatpush1.msra.mxu0 0.0
        %1569 = vmatprep.subr.mxu0 0.0
        %1570 = vmatpush1.msra.mxu0 0.0
        %1571 = vmatprep.subr.mxu0 0.0
        %1572 = vmatpush1.msra.mxu0 0.0
        %1573 = vmatprep.subr.mxu0 0.0
        %1574 = vmatpush1.msra.mxu0 0.0
        %1575 = vmatprep.subr.mxu0 0.0
        %1576 = vmatpush1.msra.mxu0 0.0
        %1577 = vmatprep.subr.mxu0 0.0
        %1578 = vmatpush1.msra.mxu0 0.0
        %1579 = vmatprep.subr.mxu0 0.0
        %1580 = vmatpush1.msra.mxu0 0.0
        %1581 = vmatprep.subr.mxu0 0.0
        %1582 = vmatpush1.msra.mxu0 0.0
        %1583 = vmatprep.subr.mxu0 0.0
        %1584 = vmatpush1.msra.mxu0 0.0
        %1585 = vmatprep.subr.mxu0 0.0
        %1586 = vmatpush1.msra.mxu0 0.0
        %1587 = vmatprep.subr.mxu0 0.0
        %1588 = vmatpush1.msra.mxu0 0.0
        %1589 = vmatprep.subr.mxu0 0.0
        %1590 = vmatpush1.msra.mxu0 0.0
        %1591 = vmatprep.subr.mxu0 0.0
        %1592 = vmatpush1.msra.mxu0 0.0
        %1593 = vmatprep.subr.mxu0 0.0
        %1594 = vmatpush1.msra.mxu0 0.0
        %1595 = vmatprep.subr.mxu0 0.0
        %1596 = vmatpush1.msra.mxu0 0.0
        %1597 = vmatprep.subr.mxu0 0.0
        %1598 = vmatpush1.msra.mxu0 0.0
        %1599 = vmatprep.mubr.f32.mxu0 0.0
        %v1600 = vand.u32 %v1253, 4294901760
        %v1601 = vsub.f32 %v1253, %v1600
        %v1602 = vand.u32 %v1601, 4294901760
        %1603 = vmatmul.mubr.f32.gmra.mrb[0].mxu0 %v1602
        %v1604 = vpop.f32.mrb[0].mxu0
        %v1605 = vadd.f32 %v1521, %v1604
        %v1606 = vpop.f32.mrb[0].mxu0
        %1607 = vmatprep.mubr.f32.mxu0 0.0
        %v1608 = vand.u32 %v1256, 4294901760
        %v1609 = vsub.f32 %v1256, %v1608
        %v1610 = vand.u32 %v1609, 4294901760
        %1611 = vmatmul.mubr.f32.gmra.mrb[0].mxu0 %v1610
        %v1612 = vpop.f32.mrb[0].mxu0
        %v1613 = vadd.f32 %v1528, %v1612
        %v1614 = vpop.f32.mrb[0].mxu0
        %1615 = vdwg.mxu0
        %1616 = vmatprep.subr.mxu0 0.0
        %v1617 = vand.u32 %v1237, 4294901760
        %v1618 = vsub.f32 %v1237, %v1617
        %v1619 = vand.u32 %v1618, 4294901760
        %1620 = vmatpush1.msra.mxu0 %v1619
        %1621 = vmatprep.subr.mxu0 0.0
        %v1622 = vand.u32 %v1238, 4294901760
        %v1623 = vsub.f32 %v1238, %v1622
        %v1624 = vand.u32 %v1623, 4294901760
        %1625 = vmatpush1.msra.mxu0 %v1624
        %1626 = vmatprep.subr.mxu0 0.0
        %v1627 = vand.u32 %v1239, 4294901760
        %v1628 = vsub.f32 %v1239, %v1627
        %v1629 = vand.u32 %v1628, 4294901760
        %1630 = vmatpush1.msra.mxu0 %v1629
        %1631 = vmatprep.subr.mxu0 0.0
        %v1632 = vand.u32 %v1240, 4294901760
        %v1633 = vsub.f32 %v1240, %v1632
        %v1634 = vand.u32 %v1633, 4294901760
        %1635 = vmatpush1.msra.mxu0 %v1634
        %1636 = vmatprep.subr.mxu0 0.0
        %1637 = vmatpush1.msra.mxu0 0.0
        %1638 = vmatprep.subr.mxu0 0.0
        %1639 = vmatpush1.msra.mxu0 0.0
        %1640 = vmatprep.subr.mxu0 0.0
        %1641 = vmatpush1.msra.mxu0 0.0
        %1642 = vmatprep.subr.mxu0 0.0
        %1643 = vmatpush1.msra.mxu0 0.0
        %1644 = vmatprep.subr.mxu0 0.0
        %1645 = vmatpush1.msra.mxu0 0.0
        %1646 = vmatprep.subr.mxu0 0.0
        %1647 = vmatpush1.msra.mxu0 0.0
        %1648 = vmatprep.subr.mxu0 0.0
        %1649 = vmatpush1.msra.mxu0 0.0
        %1650 = vmatprep.subr.mxu0 0.0
        %1651 = vmatpush1.msra.mxu0 0.0
        %1652 = vmatprep.subr.mxu0 0.0
        %1653 = vmatpush1.msra.mxu0 0.0
        %1654 = vmatprep.subr.mxu0 0.0
        %1655 = vmatpush1.msra.mxu0 0.0
        %1656 = vmatprep.subr.mxu0 0.0
        %1657 = vmatpush1.msra.mxu0 0.0
        %1658 = vmatprep.subr.mxu0 0.0
        %1659 = vmatpush1.msra.mxu0 0.0
        %1660 = vmatprep.subr.mxu0 0.0
        %1661 = vmatpush1.msra.mxu0 0.0
        %1662 = vmatprep.subr.mxu0 0.0
        %1663 = vmatpush1.msra.mxu0 0.0
        %1664 = vmatprep.subr.mxu0 0.0
        %1665 = vmatpush1.msra.mxu0 0.0
        %1666 = vmatprep.subr.mxu0 0.0
        %1667 = vmatpush1.msra.mxu0 0.0
        %1668 = vmatprep.subr.mxu0 0.0
        %1669 = vmatpush1.msra.mxu0 0.0
        %1670 = vmatprep.subr.mxu0 0.0
        %1671 = vmatpush1.msra.mxu0 0.0
        %1672 = vmatprep.subr.mxu0 0.0
        %1673 = vmatpush1.msra.mxu0 0.0
        %1674 = vmatprep.subr.mxu0 0.0
        %1675 = vmatpush1.msra.mxu0 0.0
        %1676 = vmatprep.subr.mxu0 0.0
        %1677 = vmatpush1.msra.mxu0 0.0
        %1678 = vmatprep.subr.mxu0 0.0
        %1679 = vmatpush1.msra.mxu0 0.0
        %1680 = vmatprep.subr.mxu0 0.0
        %1681 = vmatpush1.msra.mxu0 0.0
        %1682 = vmatprep.subr.mxu0 0.0
        %1683 = vmatpush1.msra.mxu0 0.0
        %1684 = vmatprep.subr.mxu0 0.0
        %1685 = vmatpush1.msra.mxu0 0.0
        %1686 = vmatprep.subr.mxu0 0.0
        %1687 = vmatpush1.msra.mxu0 0.0
        %1688 = vmatprep.subr.mxu0 0.0
        %1689 = vmatpush1.msra.mxu0 0.0
        %1690 = vmatprep.subr.mxu0 0.0
        %1691 = vmatpush1.msra.mxu0 0.0
        %1692 = vmatprep.mubr.f32.mxu0 0.0
        %v1693 = vand.u32 %v1253, 4294901760
        %1694 = vmatmul.mubr.f32.gmra.mrb[0].mxu0 %v1693
        %v1695 = vpop.f32.mrb[0].mxu0
        %v1696 = vadd.f32 %v1605, %v1695
        %v1697 = vpop.f32.mrb[0].mxu0
        %1698 = vmatprep.mubr.f32.mxu0 0.0
        %v1699 = vand.u32 %v1256, 4294901760
        %1700 = vmatmul.mubr.f32.gmra.mrb[0].mxu0 %v1699
        %v1701 = vpop.f32.mrb[0].mxu0
        %v1702 = vadd.f32 %v1613, %v1701
        %v1703 = vpop.f32.mrb[0].mxu0
        %1704 = vdwg.mxu0
        %1705 = vmatprep.subr.mxu0 0.0
        %v1706 = vand.u32 %v1237, 4294901760
        %1707 = vmatpush1.msra.mxu0 %v1706
        %1708 = vmatprep.subr.mxu0 0.0
        %v1709 = vand.u32 %v1238, 4294901760
        %1710 = vmatpush1.msra.mxu0 %v1709
        %1711 = vmatprep.subr.mxu0 0.0
        %v1712 = vand.u32 %v1239, 4294901760
        %1713 = vmatpush1.msra.mxu0 %v1712
        %1714 = vmatprep.subr.mxu0 0.0
        %v1715 = vand.u32 %v1240, 4294901760
        %1716 = vmatpush1.msra.mxu0 %v1715
        %1717 = vmatprep.subr.mxu0 0.0
        %1718 = vmatpush1.msra.mxu0 0.0
        %1719 = vmatprep.subr.mxu0 0.0
        %1720 = vmatpush1.msra.mxu0 0.0
        %1721 = vmatprep.subr.mxu0 0.0
        %1722 = vmatpush1.msra.mxu0 0.0
        %1723 = vmatprep.subr.mxu0 0.0
        %1724 = vmatpush1.msra.mxu0 0.0
        %1725 = vmatprep.subr.mxu0 0.0
        %1726 = vmatpush1.msra.mxu0 0.0
        %1727 = vmatprep.subr.mxu0 0.0
        %1728 = vmatpush1.msra.mxu0 0.0
        %1729 = vmatprep.subr.mxu0 0.0
        %1730 = vmatpush1.msra.mxu0 0.0
        %1731 = vmatprep.subr.mxu0 0.0
        %1732 = vmatpush1.msra.mxu0 0.0
        %1733 = vmatprep.subr.mxu0 0.0
        %1734 = vmatpush1.msra.mxu0 0.0
        %1735 = vmatprep.subr.mxu0 0.0
        %1736 = vmatpush1.msra.mxu0 0.0
        %1737 = vmatprep.subr.mxu0 0.0
        %1738 = vmatpush1.msra.mxu0 0.0
        %1739 = vmatprep.subr.mxu0 0.0
        %1740 = vmatpush1.msra.mxu0 0.0
        %1741 = vmatprep.subr.mxu0 0.0
        %1742 = vmatpush1.msra.mxu0 0.0
        %1743 = vmatprep.subr.mxu0 0.0
        %1744 = vmatpush1.msra.mxu0 0.0
        %1745 = vmatprep.subr.mxu0 0.0
        %1746 = vmatpush1.msra.mxu0 0.0
        %1747 = vmatprep.subr.mxu0 0.0
        %1748 = vmatpush1.msra.mxu0 0.0
        %1749 = vmatprep.subr.mxu0 0.0
        %1750 = vmatpush1.msra.mxu0 0.0
        %1751 = vmatprep.subr.mxu0 0.0
        %1752 = vmatpush1.msra.mxu0 0.0
        %1753 = vmatprep.subr.mxu0 0.0
        %1754 = vmatpush1.msra.mxu0 0.0
        %1755 = vmatprep.subr.mxu0 0.0
        %1756 = vmatpush1.msra.mxu0 0.0
        %1757 = vmatprep.subr.mxu0 0.0
        %1758 = vmatpush1.msra.mxu0 0.0
        %1759 = vmatprep.subr.mxu0 0.0
        %1760 = vmatpush1.msra.mxu0 0.0
        %1761 = vmatprep.subr.mxu0 0.0
        %1762 = vmatpush1.msra.mxu0 0.0
        %1763 = vmatprep.subr.mxu0 0.0
        %1764 = vmatpush1.msra.mxu0 0.0
        %1765 = vmatprep.subr.mxu0 0.0
        %1766 = vmatpush1.msra.mxu0 0.0
        %1767 = vmatprep.subr.mxu0 0.0
        %1768 = vmatpush1.msra.mxu0 0.0
        %1769 = vmatprep.subr.mxu0 0.0
        %1770 = vmatpush1.msra.mxu0 0.0
        %1771 = vmatprep.subr.mxu0 0.0
        %1772 = vmatpush1.msra.mxu0 0.0
        %1773 = vmatprep.mubr.f32.mxu0 0.0
        %v1774 = vand.u32 %v1253, 4294901760
        %1775 = vmatmul.mubr.f32.gmra.mrb[0].mxu0 %v1774
        %v1776 = vpop.f32.mrb[0].mxu0
        %v1777 = vadd.f32 %v1696, %v1776
        %v1778 = vpop.f32.mrb[0].mxu0
        %1779 = vmatprep.mubr.f32.mxu0 0.0
        %v1780 = vand.u32 %v1256, 4294901760
        %1781 = vmatmul.mubr.f32.gmra.mrb[0].mxu0 %v1780
        %v1782 = vpop.f32.mrb[0].mxu0
        %v1783 = vadd.f32 %v1702, %v1782
        %v1784 = vpop.f32.mrb[0].mxu0
        %1785 = vdwg.mxu0
        %v1786 = vadd.f32 %v1777, %v264
        %v1787 = vadd.f32 %v1783, %v265
        %s1788 = scalar_lea.vmem %s1, 32
        %v1789 = vld [vmem:[%s1788] sm:$0xff]
        %v1790 = vld [vmem:[%s1788 + $0x8] sm:$0xff]
        %v1791 = vld [vmem:[%s1788 + $0x10] sm:$0xff]
        %v1792 = vld [vmem:[%s1788 + $0x18] sm:$0xff]
        %s1793 = scalar_lea.vmem %s3, 16
        %v1794 = vld [vmem:[%s1793] sm:$0xff]
        %v1795 = vld [vmem:[%s1793 + $0x8] sm:$0xff]
        %s1796 = scalar_lea.vmem %s2, 32
        %v1797 = vld [vmem:[%s1796] sm:$0xff]
        %v1798 = vld [vmem:[%s1796 + $0x8] sm:$0xff]
        %v1799 = vld [vmem:[%s1796 + $0x10] sm:$0xff]
        %v1800 = vld [vmem:[%s1796 + $0x18] sm:$0xff]
        %s1801 = scalar_lea.vmem %s4, 16
        %v1802 = vld [vmem:[%s1801] sm:$0xff]
        %v1803 = vld [vmem:[%s1801 + $0x8] sm:$0xff]
        %s1804 = sld [smem:[#allocation2 + $0x80]]
        %s1805 = sld [smem:[#allocation2 + $0x81]]
        %1807 = vset.pattern.permute.xlu0 0
        %1808 = vperm.xlu0 %1807, %v1797
        %v1809 = vpop.permute.xlu0 %1808
        %1812 = vset.pattern.permute.xlu0 0
        %1813 = vperm.xlu0 %1812, %v1798
        %v1814 = vpop.permute.xlu0 %1813
        %1817 = vset.pattern.permute.xlu0 0
        %1818 = vperm.xlu0 %1817, %v1799
        %v1819 = vpop.permute.xlu0 %1818
        %1822 = vset.pattern.permute.xlu0 0
        %1823 = vperm.xlu0 %1822, %v1800
        %v1824 = vpop.permute.xlu0 %1823
        %v1827 = vsel %vm300, %v1789, 0
        %v1830 = vsel %vm300, %v1790, 0
        %v1833 = vsel %vm300, %v1791, 0
        %v1836 = vsel %vm300, %v1792, 0
        %1838 = vmatprep.subr.mxu0 0.0
        %v1839 = vand.u32 %v1786, 4294901760
        %1840 = vmatpush1.msra.mxu0 %v1839
        %1841 = vmatprep.subr.mxu0 0.0
        %v1842 = vand.u32 %v1787, 4294901760
        %1843 = vmatpush1.msra.mxu0 %v1842
        %1844 = vmatprep.subr.mxu0 0.0
        %1845 = vmatpush1.msra.mxu0 0.0
        %1846 = vmatprep.subr.mxu0 0.0
        %1847 = vmatpush1.msra.mxu0 0.0
        %1848 = vmatprep.subr.mxu0 0.0
        %1849 = vmatpush1.msra.mxu0 0.0
        %1850 = vmatprep.subr.mxu0 0.0
        %1851 = vmatpush1.msra.mxu0 0.0
        %1852 = vmatprep.subr.mxu0 0.0
        %1853 = vmatpush1.msra.mxu0 0.0
        %1854 = vmatprep.subr.mxu0 0.0
        %1855 = vmatpush1.msra.mxu0 0.0
        %1856 = vmatprep.subr.mxu0 0.0
        %1857 = vmatpush1.msra.mxu0 0.0
        %1858 = vmatprep.subr.mxu0 0.0
        %1859 = vmatpush1.msra.mxu0 0.0
        %1860 = vmatprep.subr.mxu0 0.0
        %1861 = vmatpush1.msra.mxu0 0.0
        %1862 = vmatprep.subr.mxu0 0.0
        %1863 = vmatpush1.msra.mxu0 0.0
        %1864 = vmatprep.subr.mxu0 0.0
        %1865 = vmatpush1.msra.mxu0 0.0
        %1866 = vmatprep.subr.mxu0 0.0
        %1867 = vmatpush1.msra.mxu0 0.0
        %1868 = vmatprep.subr.mxu0 0.0
        %1869 = vmatpush1.msra.mxu0 0.0
        %1870 = vmatprep.subr.mxu0 0.0
        %1871 = vmatpush1.msra.mxu0 0.0
        %1872 = vmatprep.subr.mxu0 0.0
        %1873 = vmatpush1.msra.mxu0 0.0
        %1874 = vmatprep.subr.mxu0 0.0
        %1875 = vmatpush1.msra.mxu0 0.0
        %1876 = vmatprep.subr.mxu0 0.0
        %1877 = vmatpush1.msra.mxu0 0.0
        %1878 = vmatprep.subr.mxu0 0.0
        %1879 = vmatpush1.msra.mxu0 0.0
        %1880 = vmatprep.subr.mxu0 0.0
        %1881 = vmatpush1.msra.mxu0 0.0
        %1882 = vmatprep.subr.mxu0 0.0
        %1883 = vmatpush1.msra.mxu0 0.0
        %1884 = vmatprep.subr.mxu0 0.0
        %1885 = vmatpush1.msra.mxu0 0.0
        %1886 = vmatprep.subr.mxu0 0.0
        %1887 = vmatpush1.msra.mxu0 0.0
        %1888 = vmatprep.subr.mxu0 0.0
        %1889 = vmatpush1.msra.mxu0 0.0
        %1890 = vmatprep.subr.mxu0 0.0
        %1891 = vmatpush1.msra.mxu0 0.0
        %1892 = vmatprep.subr.mxu0 0.0
        %1893 = vmatpush1.msra.mxu0 0.0
        %1894 = vmatprep.subr.mxu0 0.0
        %1895 = vmatpush1.msra.mxu0 0.0
        %1896 = vmatprep.subr.mxu0 0.0
        %1897 = vmatpush1.msra.mxu0 0.0
        %1898 = vmatprep.subr.mxu0 0.0
        %1899 = vmatpush1.msra.mxu0 0.0
        %1900 = vmatprep.subr.mxu0 0.0
        %1901 = vmatpush1.msra.mxu0 0.0
        %1902 = vmatprep.subr.mxu0 0.0
        %1903 = vmatpush1.msra.mxu0 0.0
        %1904 = vmatprep.mubr.f32.mxu0 0.0
        %v1905 = vand.u32 %v1827, 4294901760
        %v1906 = vsub.f32 %v1827, %v1905
        %v1907 = vand.u32 %v1906, 4294901760
        %v1908 = vsub.f32 %v1906, %v1907
        %v1909 = vand.u32 %v1908, 4294901760
        %1910 = vmatmul.mubr.f32.gmra.mrb[0].mxu0 %v1909
        %v1911 = vpop.f32.mrb[0].mxu0
        %v1912 = vadd.f32 %v1809, %v1911
        %v1913 = vpop.f32.mrb[0].mxu0
        %1914 = vmatprep.mubr.f32.mxu0 0.0
        %v1915 = vand.u32 %v1830, 4294901760
        %v1916 = vsub.f32 %v1830, %v1915
        %v1917 = vand.u32 %v1916, 4294901760
        %v1918 = vsub.f32 %v1916, %v1917
        %v1919 = vand.u32 %v1918, 4294901760
        %1920 = vmatmul.mubr.f32.gmra.mrb[0].mxu0 %v1919
        %v1921 = vpop.f32.mrb[0].mxu0
        %v1922 = vadd.f32 %v1814, %v1921
        %v1923 = vpop.f32.mrb[0].mxu0
        %1924 = vmatprep.mubr.f32.mxu0 0.0
        %v1925 = vand.u32 %v1833, 4294901760
        %v1926 = vsub.f32 %v1833, %v1925
        %v1927 = vand.u32 %v1926, 4294901760
        %v1928 = vsub.f32 %v1926, %v1927
        %v1929 = vand.u32 %v1928, 4294901760
        %1930 = vmatmul.mubr.f32.gmra.mrb[0].mxu0 %v1929
        %v1931 = vpop.f32.mrb[0].mxu0
        %v1932 = vadd.f32 %v1819, %v1931
        %v1933 = vpop.f32.mrb[0].mxu0
        %1934 = vmatprep.mubr.f32.mxu0 0.0
        %v1935 = vand.u32 %v1836, 4294901760
        %v1936 = vsub.f32 %v1836, %v1935
        %v1937 = vand.u32 %v1936, 4294901760
        %v1938 = vsub.f32 %v1936, %v1937
        %v1939 = vand.u32 %v1938, 4294901760
        %1940 = vmatmul.mubr.f32.gmra.mrb[0].mxu0 %v1939
        %v1941 = vpop.f32.mrb[0].mxu0
        %v1942 = vadd.f32 %v1824, %v1941
        %v1943 = vpop.f32.mrb[0].mxu0
        %1944 = vdwg.mxu0
        %1945 = vmatprep.subr.mxu0 0.0
        %v1946 = vand.u32 %v1786, 4294901760
        %v1947 = vsub.f32 %v1786, %v1946
        %v1948 = vand.u32 %v1947, 4294901760
        %v1949 = vsub.f32 %v1947, %v1948
        %v1950 = vand.u32 %v1949, 4294901760
        %1951 = vmatpush1.msra.mxu0 %v1950
        %1952 = vmatprep.subr.mxu0 0.0
        %v1953 = vand.u32 %v1787, 4294901760
        %v1954 = vsub.f32 %v1787, %v1953
        %v1955 = vand.u32 %v1954, 4294901760
        %v1956 = vsub.f32 %v1954, %v1955
        %v1957 = vand.u32 %v1956, 4294901760
        %1958 = vmatpush1.msra.mxu0 %v1957
        %1959 = vmatprep.subr.mxu0 0.0
        %1960 = vmatpush1.msra.mxu0 0.0
        %1961 = vmatprep.subr.mxu0 0.0
        %1962 = vmatpush1.msra.mxu0 0.0
        %1963 = vmatprep.subr.mxu0 0.0
        %1964 = vmatpush1.msra.mxu0 0.0
        %1965 = vmatprep.subr.mxu0 0.0
        %1966 = vmatpush1.msra.mxu0 0.0
        %1967 = vmatprep.subr.mxu0 0.0
        %1968 = vmatpush1.msra.mxu0 0.0
        %1969 = vmatprep.subr.mxu0 0.0
        %1970 = vmatpush1.msra.mxu0 0.0
        %1971 = vmatprep.subr.mxu0 0.0
        %1972 = vmatpush1.msra.mxu0 0.0
        %1973 = vmatprep.subr.mxu0 0.0
        %1974 = vmatpush1.msra.mxu0 0.0
        %1975 = vmatprep.subr.mxu0 0.0
        %1976 = vmatpush1.msra.mxu0 0.0
        %1977 = vmatprep.subr.mxu0 0.0
        %1978 = vmatpush1.msra.mxu0 0.0
        %1979 = vmatprep.subr.mxu0 0.0
        %1980 = vmatpush1.msra.mxu0 0.0
        %1981 = vmatprep.subr.mxu0 0.0
        %1982 = vmatpush1.msra.mxu0 0.0
        %1983 = vmatprep.subr.mxu0 0.0
        %1984 = vmatpush1.msra.mxu0 0.0
        %1985 = vmatprep.subr.mxu0 0.0
        %1986 = vmatpush1.msra.mxu0 0.0
        %1987 = vmatprep.subr.mxu0 0.0
        %1988 = vmatpush1.msra.mxu0 0.0
        %1989 = vmatprep.subr.mxu0 0.0
        %1990 = vmatpush1.msra.mxu0 0.0
        %1991 = vmatprep.subr.mxu0 0.0
        %1992 = vmatpush1.msra.mxu0 0.0
        %1993 = vmatprep.subr.mxu0 0.0
        %1994 = vmatpush1.msra.mxu0 0.0
        %1995 = vmatprep.subr.mxu0 0.0
        %1996 = vmatpush1.msra.mxu0 0.0
        %1997 = vmatprep.subr.mxu0 0.0
        %1998 = vmatpush1.msra.mxu0 0.0
        %1999 = vmatprep.subr.mxu0 0.0
        %2000 = vmatpush1.msra.mxu0 0.0
        %2001 = vmatprep.subr.mxu0 0.0
        %2002 = vmatpush1.msra.mxu0 0.0
        %2003 = vmatprep.subr.mxu0 0.0
        %2004 = vmatpush1.msra.mxu0 0.0
        %2005 = vmatprep.subr.mxu0 0.0
        %2006 = vmatpush1.msra.mxu0 0.0
        %2007 = vmatprep.subr.mxu0 0.0
        %2008 = vmatpush1.msra.mxu0 0.0
        %2009 = vmatprep.subr.mxu0 0.0
        %2010 = vmatpush1.msra.mxu0 0.0
        %2011 = vmatprep.subr.mxu0 0.0
        %2012 = vmatpush1.msra.mxu0 0.0
        %2013 = vmatprep.subr.mxu0 0.0
        %2014 = vmatpush1.msra.mxu0 0.0
        %2015 = vmatprep.subr.mxu0 0.0
        %2016 = vmatpush1.msra.mxu0 0.0
        %2017 = vmatprep.subr.mxu0 0.0
        %2018 = vmatpush1.msra.mxu0 0.0
        %2019 = vmatprep.mubr.f32.mxu0 0.0
        %v2020 = vand.u32 %v1827, 4294901760
        %2021 = vmatmul.mubr.f32.gmra.mrb[0].mxu0 %v2020
        %v2022 = vpop.f32.mrb[0].mxu0
        %v2023 = vadd.f32 %v1912, %v2022
        %v2024 = vpop.f32.mrb[0].mxu0
        %2025 = vmatprep.mubr.f32.mxu0 0.0
        %v2026 = vand.u32 %v1830, 4294901760
        %2027 = vmatmul.mubr.f32.gmra.mrb[0].mxu0 %v2026
        %v2028 = vpop.f32.mrb[0].mxu0
        %v2029 = vadd.f32 %v1922, %v2028
        %v2030 = vpop.f32.mrb[0].mxu0
        %2031 = vmatprep.mubr.f32.mxu0 0.0
        %v2032 = vand.u32 %v1833, 4294901760
        %2033 = vmatmul.mubr.f32.gmra.mrb[0].mxu0 %v2032
        %v2034 = vpop.f32.mrb[0].mxu0
        %v2035 = vadd.f32 %v1932, %v2034
        %v2036 = vpop.f32.mrb[0].mxu0
        %2037 = vmatprep.mubr.f32.mxu0 0.0
        %v2038 = vand.u32 %v1836, 4294901760
        %2039 = vmatmul.mubr.f32.gmra.mrb[0].mxu0 %v2038
        %v2040 = vpop.f32.mrb[0].mxu0
        %v2041 = vadd.f32 %v1942, %v2040
        %v2042 = vpop.f32.mrb[0].mxu0
        %2043 = vdwg.mxu0
        %2044 = vmatprep.subr.mxu0 0.0
        %v2045 = vand.u32 %v1786, 4294901760
        %v2046 = vsub.f32 %v1786, %v2045
        %2047 = vmatpush1.msra.mxu0 %v2046
        %2048 = vmatprep.subr.mxu0 0.0
        %v2049 = vand.u32 %v1787, 4294901760
        %v2050 = vsub.f32 %v1787, %v2049
        %2051 = vmatpush1.msra.mxu0 %v2050
        %2052 = vmatprep.subr.mxu0 0.0
        %2053 = vmatpush1.msra.mxu0 0.0
        %2054 = vmatprep.subr.mxu0 0.0
        %2055 = vmatpush1.msra.mxu0 0.0
        %2056 = vmatprep.subr.mxu0 0.0
        %2057 = vmatpush1.msra.mxu0 0.0
        %2058 = vmatprep.subr.mxu0 0.0
        %2059 = vmatpush1.msra.mxu0 0.0
        %2060 = vmatprep.subr.mxu0 0.0
        %2061 = vmatpush1.msra.mxu0 0.0
        %2062 = vmatprep.subr.mxu0 0.0
        %2063 = vmatpush1.msra.mxu0 0.0
        %2064 = vmatprep.subr.mxu0 0.0
        %2065 = vmatpush1.msra.mxu0 0.0
        %2066 = vmatprep.subr.mxu0 0.0
        %2067 = vmatpush1.msra.mxu0 0.0
        %2068 = vmatprep.subr.mxu0 0.0
        %2069 = vmatpush1.msra.mxu0 0.0
        %2070 = vmatprep.subr.mxu0 0.0
        %2071 = vmatpush1.msra.mxu0 0.0
        %2072 = vmatprep.subr.mxu0 0.0
        %2073 = vmatpush1.msra.mxu0 0.0
        %2074 = vmatprep.subr.mxu0 0.0
        %2075 = vmatpush1.msra.mxu0 0.0
        %2076 = vmatprep.subr.mxu0 0.0
        %2077 = vmatpush1.msra.mxu0 0.0
        %2078 = vmatprep.subr.mxu0 0.0
        %2079 = vmatpush1.msra.mxu0 0.0
        %2080 = vmatprep.subr.mxu0 0.0
        %2081 = vmatpush1.msra.mxu0 0.0
        %2082 = vmatprep.subr.mxu0 0.0
        %2083 = vmatpush1.msra.mxu0 0.0
        %2084 = vmatprep.subr.mxu0 0.0
        %2085 = vmatpush1.msra.mxu0 0.0
        %2086 = vmatprep.subr.mxu0 0.0
        %2087 = vmatpush1.msra.mxu0 0.0
        %2088 = vmatprep.subr.mxu0 0.0
        %2089 = vmatpush1.msra.mxu0 0.0
        %2090 = vmatprep.subr.mxu0 0.0
        %2091 = vmatpush1.msra.mxu0 0.0
        %2092 = vmatprep.subr.mxu0 0.0
        %2093 = vmatpush1.msra.mxu0 0.0
        %2094 = vmatprep.subr.mxu0 0.0
        %2095 = vmatpush1.msra.mxu0 0.0
        %2096 = vmatprep.subr.mxu0 0.0
        %2097 = vmatpush1.msra.mxu0 0.0
        %2098 = vmatprep.subr.mxu0 0.0
        %2099 = vmatpush1.msra.mxu0 0.0
        %2100 = vmatprep.subr.mxu0 0.0
        %2101 = vmatpush1.msra.mxu0 0.0
        %2102 = vmatprep.subr.mxu0 0.0
        %2103 = vmatpush1.msra.mxu0 0.0
        %2104 = vmatprep.subr.mxu0 0.0
        %2105 = vmatpush1.msra.mxu0 0.0
        %2106 = vmatprep.subr.mxu0 0.0
        %2107 = vmatpush1.msra.mxu0 0.0
        %2108 = vmatprep.subr.mxu0 0.0
        %2109 = vmatpush1.msra.mxu0 0.0
        %2110 = vmatprep.subr.mxu0 0.0
        %2111 = vmatpush1.msra.mxu0 0.0
        %2112 = vmatprep.mubr.f32.mxu0 0.0
        %v2113 = vand.u32 %v1827, 4294901760
        %v2114 = vsub.f32 %v1827, %v2113
        %2115 = vmatmul.mubr.f32.gmra.mrb[0].mxu0 %v2114
        %v2116 = vpop.f32.mrb[0].mxu0
        %v2117 = vadd.f32 %v2023, %v2116
        %v2118 = vpop.f32.mrb[0].mxu0
        %2119 = vmatprep.mubr.f32.mxu0 0.0
        %v2120 = vand.u32 %v1830, 4294901760
        %v2121 = vsub.f32 %v1830, %v2120
        %2122 = vmatmul.mubr.f32.gmra.mrb[0].mxu0 %v2121
        %v2123 = vpop.f32.mrb[0].mxu0
        %v2124 = vadd.f32 %v2029, %v2123
        %v2125 = vpop.f32.mrb[0].mxu0
        %2126 = vmatprep.mubr.f32.mxu0 0.0
        %v2127 = vand.u32 %v1833, 4294901760
        %v2128 = vsub.f32 %v1833, %v2127
        %2129 = vmatmul.mubr.f32.gmra.mrb[0].mxu0 %v2128
        %v2130 = vpop.f32.mrb[0].mxu0
        %v2131 = vadd.f32 %v2035, %v2130
        %v2132 = vpop.f32.mrb[0].mxu0
        %2133 = vmatprep.mubr.f32.mxu0 0.0
        %v2134 = vand.u32 %v1836, 4294901760
        %v2135 = vsub.f32 %v1836, %v2134
        %2136 = vmatmul.mubr.f32.gmra.mrb[0].mxu0 %v2135
        %v2137 = vpop.f32.mrb[0].mxu0
        %v2138 = vadd.f32 %v2041, %v2137
        %v2139 = vpop.f32.mrb[0].mxu0
        %2140 = vdwg.mxu0
        %2141 = vmatprep.subr.mxu0 0.0
        %v2142 = vand.u32 %v1786, 4294901760
        %2143 = vmatpush1.msra.mxu0 %v2142
        %2144 = vmatprep.subr.mxu0 0.0
        %v2145 = vand.u32 %v1787, 4294901760
        %2146 = vmatpush1.msra.mxu0 %v2145
        %2147 = vmatprep.subr.mxu0 0.0
        %2148 = vmatpush1.msra.mxu0 0.0
        %2149 = vmatprep.subr.mxu0 0.0
        %2150 = vmatpush1.msra.mxu0 0.0
        %2151 = vmatprep.subr.mxu0 0.0
        %2152 = vmatpush1.msra.mxu0 0.0
        %2153 = vmatprep.subr.mxu0 0.0
        %2154 = vmatpush1.msra.mxu0 0.0
        %2155 = vmatprep.subr.mxu0 0.0
        %2156 = vmatpush1.msra.mxu0 0.0
        %2157 = vmatprep.subr.mxu0 0.0
        %2158 = vmatpush1.msra.mxu0 0.0
        %2159 = vmatprep.subr.mxu0 0.0
        %2160 = vmatpush1.msra.mxu0 0.0
        %2161 = vmatprep.subr.mxu0 0.0
        %2162 = vmatpush1.msra.mxu0 0.0
        %2163 = vmatprep.subr.mxu0 0.0
        %2164 = vmatpush1.msra.mxu0 0.0
        %2165 = vmatprep.subr.mxu0 0.0
        %2166 = vmatpush1.msra.mxu0 0.0
        %2167 = vmatprep.subr.mxu0 0.0
        %2168 = vmatpush1.msra.mxu0 0.0
        %2169 = vmatprep.subr.mxu0 0.0
        %2170 = vmatpush1.msra.mxu0 0.0
        %2171 = vmatprep.subr.mxu0 0.0
        %2172 = vmatpush1.msra.mxu0 0.0
        %2173 = vmatprep.subr.mxu0 0.0
        %2174 = vmatpush1.msra.mxu0 0.0
        %2175 = vmatprep.subr.mxu0 0.0
        %2176 = vmatpush1.msra.mxu0 0.0
        %2177 = vmatprep.subr.mxu0 0.0
        %2178 = vmatpush1.msra.mxu0 0.0
        %2179 = vmatprep.subr.mxu0 0.0
        %2180 = vmatpush1.msra.mxu0 0.0
        %2181 = vmatprep.subr.mxu0 0.0
        %2182 = vmatpush1.msra.mxu0 0.0
        %2183 = vmatprep.subr.mxu0 0.0
        %2184 = vmatpush1.msra.mxu0 0.0
        %2185 = vmatprep.subr.mxu0 0.0
        %2186 = vmatpush1.msra.mxu0 0.0
        %2187 = vmatprep.subr.mxu0 0.0
        %2188 = vmatpush1.msra.mxu0 0.0
        %2189 = vmatprep.subr.mxu0 0.0
        %2190 = vmatpush1.msra.mxu0 0.0
        %2191 = vmatprep.subr.mxu0 0.0
        %2192 = vmatpush1.msra.mxu0 0.0
        %2193 = vmatprep.subr.mxu0 0.0
        %2194 = vmatpush1.msra.mxu0 0.0
        %2195 = vmatprep.subr.mxu0 0.0
        %2196 = vmatpush1.msra.mxu0 0.0
        %2197 = vmatprep.subr.mxu0 0.0
        %2198 = vmatpush1.msra.mxu0 0.0
        %2199 = vmatprep.subr.mxu0 0.0
        %2200 = vmatpush1.msra.mxu0 0.0
        %2201 = vmatprep.subr.mxu0 0.0
        %2202 = vmatpush1.msra.mxu0 0.0
        %2203 = vmatprep.subr.mxu0 0.0
        %2204 = vmatpush1.msra.mxu0 0.0
        %2205 = vmatprep.subr.mxu0 0.0
        %2206 = vmatpush1.msra.mxu0 0.0
        %2207 = vmatprep.mubr.f32.mxu0 0.0
        %v2208 = vand.u32 %v1827, 4294901760
        %v2209 = vsub.f32 %v1827, %v2208
        %v2210 = vand.u32 %v2209, 4294901760
        %2211 = vmatmul.mubr.f32.gmra.mrb[0].mxu0 %v2210
        %v2212 = vpop.f32.mrb[0].mxu0
        %v2213 = vadd.f32 %v2117, %v2212
        %v2214 = vpop.f32.mrb[0].mxu0
        %2215 = vmatprep.mubr.f32.mxu0 0.0
        %v2216 = vand.u32 %v1830, 4294901760
        %v2217 = vsub.f32 %v1830, %v2216
        %v2218 = vand.u32 %v2217, 4294901760
        %2219 = vmatmul.mubr.f32.gmra.mrb[0].mxu0 %v2218
        %v2220 = vpop.f32.mrb[0].mxu0
        %v2221 = vadd.f32 %v2124, %v2220
        %v2222 = vpop.f32.mrb[0].mxu0
        %2223 = vmatprep.mubr.f32.mxu0 0.0
        %v2224 = vand.u32 %v1833, 4294901760
        %v2225 = vsub.f32 %v1833, %v2224
        %v2226 = vand.u32 %v2225, 4294901760
        %2227 = vmatmul.mubr.f32.gmra.mrb[0].mxu0 %v2226
        %v2228 = vpop.f32.mrb[0].mxu0
        %v2229 = vadd.f32 %v2131, %v2228
        %v2230 = vpop.f32.mrb[0].mxu0
        %2231 = vmatprep.mubr.f32.mxu0 0.0
        %v2232 = vand.u32 %v1836, 4294901760
        %v2233 = vsub.f32 %v1836, %v2232
        %v2234 = vand.u32 %v2233, 4294901760
        %2235 = vmatmul.mubr.f32.gmra.mrb[0].mxu0 %v2234
        %v2236 = vpop.f32.mrb[0].mxu0
        %v2237 = vadd.f32 %v2138, %v2236
        %v2238 = vpop.f32.mrb[0].mxu0
        %2239 = vdwg.mxu0
        %2240 = vmatprep.subr.mxu0 0.0
        %v2241 = vand.u32 %v1786, 4294901760
        %v2242 = vsub.f32 %v1786, %v2241
        %v2243 = vand.u32 %v2242, 4294901760
        %2244 = vmatpush1.msra.mxu0 %v2243
        %2245 = vmatprep.subr.mxu0 0.0
        %v2246 = vand.u32 %v1787, 4294901760
        %v2247 = vsub.f32 %v1787, %v2246
        %v2248 = vand.u32 %v2247, 4294901760
        %2249 = vmatpush1.msra.mxu0 %v2248
        %2250 = vmatprep.subr.mxu0 0.0
        %2251 = vmatpush1.msra.mxu0 0.0
        %2252 = vmatprep.subr.mxu0 0.0
        %2253 = vmatpush1.msra.mxu0 0.0
        %2254 = vmatprep.subr.mxu0 0.0
        %2255 = vmatpush1.msra.mxu0 0.0
        %2256 = vmatprep.subr.mxu0 0.0
        %2257 = vmatpush1.msra.mxu0 0.0
        %2258 = vmatprep.subr.mxu0 0.0
        %2259 = vmatpush1.msra.mxu0 0.0
        %2260 = vmatprep.subr.mxu0 0.0
        %2261 = vmatpush1.msra.mxu0 0.0
        %2262 = vmatprep.subr.mxu0 0.0
        %2263 = vmatpush1.msra.mxu0 0.0
        %2264 = vmatprep.subr.mxu0 0.0
        %2265 = vmatpush1.msra.mxu0 0.0
        %2266 = vmatprep.subr.mxu0 0.0
        %2267 = vmatpush1.msra.mxu0 0.0
        %2268 = vmatprep.subr.mxu0 0.0
        %2269 = vmatpush1.msra.mxu0 0.0
        %2270 = vmatprep.subr.mxu0 0.0
        %2271 = vmatpush1.msra.mxu0 0.0
        %2272 = vmatprep.subr.mxu0 0.0
        %2273 = vmatpush1.msra.mxu0 0.0
        %2274 = vmatprep.subr.mxu0 0.0
        %2275 = vmatpush1.msra.mxu0 0.0
        %2276 = vmatprep.subr.mxu0 0.0
        %2277 = vmatpush1.msra.mxu0 0.0
        %2278 = vmatprep.subr.mxu0 0.0
        %2279 = vmatpush1.msra.mxu0 0.0
        %2280 = vmatprep.subr.mxu0 0.0
        %2281 = vmatpush1.msra.mxu0 0.0
        %2282 = vmatprep.subr.mxu0 0.0
        %2283 = vmatpush1.msra.mxu0 0.0
        %2284 = vmatprep.subr.mxu0 0.0
        %2285 = vmatpush1.msra.mxu0 0.0
        %2286 = vmatprep.subr.mxu0 0.0
        %2287 = vmatpush1.msra.mxu0 0.0
        %2288 = vmatprep.subr.mxu0 0.0
        %2289 = vmatpush1.msra.mxu0 0.0
        %2290 = vmatprep.subr.mxu0 0.0
        %2291 = vmatpush1.msra.mxu0 0.0
        %2292 = vmatprep.subr.mxu0 0.0
        %2293 = vmatpush1.msra.mxu0 0.0
        %2294 = vmatprep.subr.mxu0 0.0
        %2295 = vmatpush1.msra.mxu0 0.0
        %2296 = vmatprep.subr.mxu0 0.0
        %2297 = vmatpush1.msra.mxu0 0.0
        %2298 = vmatprep.subr.mxu0 0.0
        %2299 = vmatpush1.msra.mxu0 0.0
        %2300 = vmatprep.subr.mxu0 0.0
        %2301 = vmatpush1.msra.mxu0 0.0
        %2302 = vmatprep.subr.mxu0 0.0
        %2303 = vmatpush1.msra.mxu0 0.0
        %2304 = vmatprep.subr.mxu0 0.0
        %2305 = vmatpush1.msra.mxu0 0.0
        %2306 = vmatprep.subr.mxu0 0.0
        %2307 = vmatpush1.msra.mxu0 0.0
        %2308 = vmatprep.subr.mxu0 0.0
        %2309 = vmatpush1.msra.mxu0 0.0
        %2310 = vmatprep.mubr.f32.mxu0 0.0
        %v2311 = vand.u32 %v1827, 4294901760
        %2312 = vmatmul.mubr.f32.gmra.mrb[0].mxu0 %v2311
        %v2313 = vpop.f32.mrb[0].mxu0
        %v2314 = vadd.f32 %v2213, %v2313
        %v2315 = vpop.f32.mrb[0].mxu0
        %2316 = vmatprep.mubr.f32.mxu0 0.0
        %v2317 = vand.u32 %v1830, 4294901760
        %2318 = vmatmul.mubr.f32.gmra.mrb[0].mxu0 %v2317
        %v2319 = vpop.f32.mrb[0].mxu0
        %v2320 = vadd.f32 %v2221, %v2319
        %v2321 = vpop.f32.mrb[0].mxu0
        %2322 = vmatprep.mubr.f32.mxu0 0.0
        %v2323 = vand.u32 %v1833, 4294901760
        %2324 = vmatmul.mubr.f32.gmra.mrb[0].mxu0 %v2323
        %v2325 = vpop.f32.mrb[0].mxu0
        %v2326 = vadd.f32 %v2229, %v2325
        %v2327 = vpop.f32.mrb[0].mxu0
        %2328 = vmatprep.mubr.f32.mxu0 0.0
        %v2329 = vand.u32 %v1836, 4294901760
        %2330 = vmatmul.mubr.f32.gmra.mrb[0].mxu0 %v2329
        %v2331 = vpop.f32.mrb[0].mxu0
        %v2332 = vadd.f32 %v2237, %v2331
        %v2333 = vpop.f32.mrb[0].mxu0
        %2334 = vdwg.mxu0
        %2335 = vmatprep.subr.mxu0 0.0
        %v2336 = vand.u32 %v1786, 4294901760
        %2337 = vmatpush1.msra.mxu0 %v2336
        %2338 = vmatprep.subr.mxu0 0.0
        %v2339 = vand.u32 %v1787, 4294901760
        %2340 = vmatpush1.msra.mxu0 %v2339
        %2341 = vmatprep.subr.mxu0 0.0
        %2342 = vmatpush1.msra.mxu0 0.0
        %2343 = vmatprep.subr.mxu0 0.0
        %2344 = vmatpush1.msra.mxu0 0.0
        %2345 = vmatprep.subr.mxu0 0.0
        %2346 = vmatpush1.msra.mxu0 0.0
        %2347 = vmatprep.subr.mxu0 0.0
        %2348 = vmatpush1.msra.mxu0 0.0
        %2349 = vmatprep.subr.mxu0 0.0
        %2350 = vmatpush1.msra.mxu0 0.0
        %2351 = vmatprep.subr.mxu0 0.0
        %2352 = vmatpush1.msra.mxu0 0.0
        %2353 = vmatprep.subr.mxu0 0.0
        %2354 = vmatpush1.msra.mxu0 0.0
        %2355 = vmatprep.subr.mxu0 0.0
        %2356 = vmatpush1.msra.mxu0 0.0
        %2357 = vmatprep.subr.mxu0 0.0
        %2358 = vmatpush1.msra.mxu0 0.0
        %2359 = vmatprep.subr.mxu0 0.0
        %2360 = vmatpush1.msra.mxu0 0.0
        %2361 = vmatprep.subr.mxu0 0.0
        %2362 = vmatpush1.msra.mxu0 0.0
        %2363 = vmatprep.subr.mxu0 0.0
        %2364 = vmatpush1.msra.mxu0 0.0
        %2365 = vmatprep.subr.mxu0 0.0
        %2366 = vmatpush1.msra.mxu0 0.0
        %2367 = vmatprep.subr.mxu0 0.0
        %2368 = vmatpush1.msra.mxu0 0.0
        %2369 = vmatprep.subr.mxu0 0.0
        %2370 = vmatpush1.msra.mxu0 0.0
        %2371 = vmatprep.subr.mxu0 0.0
        %2372 = vmatpush1.msra.mxu0 0.0
        %2373 = vmatprep.subr.mxu0 0.0
        %2374 = vmatpush1.msra.mxu0 0.0
        %2375 = vmatprep.subr.mxu0 0.0
        %2376 = vmatpush1.msra.mxu0 0.0
        %2377 = vmatprep.subr.mxu0 0.0
        %2378 = vmatpush1.msra.mxu0 0.0
        %2379 = vmatprep.subr.mxu0 0.0
        %2380 = vmatpush1.msra.mxu0 0.0
        %2381 = vmatprep.subr.mxu0 0.0
        %2382 = vmatpush1.msra.mxu0 0.0
        %2383 = vmatprep.subr.mxu0 0.0
        %2384 = vmatpush1.msra.mxu0 0.0
        %2385 = vmatprep.subr.mxu0 0.0
        %2386 = vmatpush1.msra.mxu0 0.0
        %2387 = vmatprep.subr.mxu0 0.0
        %2388 = vmatpush1.msra.mxu0 0.0
        %2389 = vmatprep.subr.mxu0 0.0
        %2390 = vmatpush1.msra.mxu0 0.0
        %2391 = vmatprep.subr.mxu0 0.0
        %2392 = vmatpush1.msra.mxu0 0.0
        %2393 = vmatprep.subr.mxu0 0.0
        %2394 = vmatpush1.msra.mxu0 0.0
        %2395 = vmatprep.subr.mxu0 0.0
        %2396 = vmatpush1.msra.mxu0 0.0
        %2397 = vmatprep.subr.mxu0 0.0
        %2398 = vmatpush1.msra.mxu0 0.0
        %2399 = vmatprep.subr.mxu0 0.0
        %2400 = vmatpush1.msra.mxu0 0.0
        %2401 = vmatprep.mubr.f32.mxu0 0.0
        %v2402 = vand.u32 %v1827, 4294901760
        %2403 = vmatmul.mubr.f32.gmra.mrb[0].mxu0 %v2402
        %v2404 = vpop.f32.mrb[0].mxu0
        %v2405 = vadd.f32 %v2314, %v2404
        %v2406 = vpop.f32.mrb[0].mxu0
        %2407 = vmatprep.mubr.f32.mxu0 0.0
        %v2408 = vand.u32 %v1830, 4294901760
        %2409 = vmatmul.mubr.f32.gmra.mrb[0].mxu0 %v2408
        %v2410 = vpop.f32.mrb[0].mxu0
        %v2411 = vadd.f32 %v2320, %v2410
        %v2412 = vpop.f32.mrb[0].mxu0
        %2413 = vmatprep.mubr.f32.mxu0 0.0
        %v2414 = vand.u32 %v1833, 4294901760
        %2415 = vmatmul.mubr.f32.gmra.mrb[0].mxu0 %v2414
        %v2416 = vpop.f32.mrb[0].mxu0
        %v2417 = vadd.f32 %v2326, %v2416
        %v2418 = vpop.f32.mrb[0].mxu0
        %2419 = vmatprep.mubr.f32.mxu0 0.0
        %v2420 = vand.u32 %v1836, 4294901760
        %2421 = vmatmul.mubr.f32.gmra.mrb[0].mxu0 %v2420
        %v2422 = vpop.f32.mrb[0].mxu0
        %v2423 = vadd.f32 %v2332, %v2422
        %v2424 = vpop.f32.mrb[0].mxu0
        %2425 = vdwg.mxu0
        %vm2426 = vcmp.gt.f32.partialorder %v2405, 0.0
        %vm2427 = vcmp.gt.f32.partialorder %v2411, 0.0
        %vm2428 = vcmp.gt.f32.partialorder %v2417, 0.0
        %vm2429 = vcmp.gt.f32.partialorder %v2423, 0.0
        %v2430 = vstv %s1804
        %v2431 = vmul.f32 %v2430, %v2405
        %v2432 = vmul.f32 %v2430, %v2411
        %v2433 = vmul.f32 %v2430, %v2417
        %v2434 = vmul.f32 %v2430, %v2423
        %v2435 = vsel %vm2426, %v2405, %v2431
        %v2436 = vsel %vm2427, %v2411, %v2432
        %v2437 = vsel %vm2428, %v2417, %v2433
        %v2438 = vsel %vm2429, %v2423, %v2434
        %2439 = vadd.xlane.f32.xlu0 %v2435
        %v2440 = vpop.xlane.xlu0 %2439
        %2441 = vadd.xlane.f32.xlu0 %v2436
        %v2442 = vpop.xlane.xlu0 %2441
        %2443 = vadd.xlane.f32.xlu0 %v2437
        %v2444 = vpop.xlane.xlu0 %2443
        %2445 = vadd.xlane.f32.xlu0 %v2438
        %v2446 = vpop.xlane.xlu0 %2445
        %v2447 = vmul.f32 %v2435, %v2435
        %v2448 = vmul.f32 %v2436, %v2436
        %v2449 = vmul.f32 %v2437, %v2437
        %v2450 = vmul.f32 %v2438, %v2438
        %2451 = vadd.xlane.f32.xlu0 %v2447
        %v2452 = vpop.xlane.xlu0 %2451
        %2453 = vadd.xlane.f32.xlu0 %v2448
        %v2454 = vpop.xlane.xlu0 %2453
        %2455 = vadd.xlane.f32.xlu0 %v2449
        %v2456 = vpop.xlane.xlu0 %2455
        %2457 = vadd.xlane.f32.xlu0 %v2450
        %v2458 = vpop.xlane.xlu0 %2457
        %v2459 = vadd.f32 %v2440, %v2442
        %v2460 = vadd.f32 %v2459, %v2444
        %v2461 = vadd.f32 %v2460, %v2446
        %v2462 = vrot.slane %v2461, 4
        %v2463 = vadd.f32 %v2461, %v2462
        %v2464 = vrot.slane %v2463, 2
        %v2465 = vadd.f32 %v2463, %v2464
        %v2466 = vrot.slane %v2465, 1
        %v2467 = vadd.f32 %v2465, %v2466
        %v2468 = vmul.f32 %v2467, 0.00024414063
        %v2469 = vadd.f32 %v2452, %v2454
        %v2470 = vadd.f32 %v2469, %v2456
        %v2471 = vadd.f32 %v2470, %v2458
        %v2472 = vrot.slane %v2471, 4
        %v2473 = vadd.f32 %v2471, %v2472
        %v2474 = vrot.slane %v2473, 2
        %v2475 = vadd.f32 %v2473, %v2474
        %v2476 = vrot.slane %v2475, 1
        %v2477 = vadd.f32 %v2475, %v2476
        %v2478 = vmul.f32 %v2477, 0.00024414063
        %v2479 = vmul.f32 %v2468, %v2468
        %v2480 = vsub.f32 %v2478, %v2479
        %v2481 = vsub.f32 %v2435, %v2468
        %v2482 = vsub.f32 %v2436, %v2468
        %v2483 = vsub.f32 %v2437, %v2468
        %v2484 = vsub.f32 %v2438, %v2468
        %v2485 = vadd.f32 %v2480, 1e-05
        %v2486 = vrsqrt.pop %v2485
        %v2487 = vmul.f32 %v2481, %v2486
        %v2488 = vmul.f32 %v2482, %v2486
        %v2489 = vmul.f32 %v2483, %v2486
        %v2490 = vmul.f32 %v2484, %v2486
        %2491 = vset.pattern.permute.xlu0 1
        %2492 = vperm.xlu0 %2491, %v1797
        %v2493 = vpop.permute.xlu0 %2492
        %2495 = vset.pattern.permute.xlu0 1
        %2496 = vperm.xlu0 %2495, %v1798
        %v2497 = vpop.permute.xlu0 %2496
        %2499 = vset.pattern.permute.xlu0 1
        %2500 = vperm.xlu0 %2499, %v1799
        %v2501 = vpop.permute.xlu0 %2500
        %2503 = vset.pattern.permute.xlu0 1
        %2504 = vperm.xlu0 %2503, %v1800
        %v2505 = vpop.permute.xlu0 %2504
        %v2507 = vmul.f32 %v2493, %v2487
        %v2508 = vmul.f32 %v2497, %v2488
        %v2509 = vmul.f32 %v2501, %v2489
        %v2510 = vmul.f32 %v2505, %v2490
        %2511 = vset.pattern.permute.xlu0 2
        %2512 = vperm.xlu0 %2511, %v1797
        %v2513 = vpop.permute.xlu0 %2512
        %2515 = vset.pattern.permute.xlu0 2
        %2516 = vperm.xlu0 %2515, %v1798
        %v2517 = vpop.permute.xlu0 %2516
        %2519 = vset.pattern.permute.xlu0 2
        %2520 = vperm.xlu0 %2519, %v1799
        %v2521 = vpop.permute.xlu0 %2520
        %2523 = vset.pattern.permute.xlu0 2
        %2524 = vperm.xlu0 %2523, %v1800
        %v2525 = vpop.permute.xlu0 %2524
        %v2527 = vadd.f32 %v2507, %v2513
        %v2528 = vadd.f32 %v2508, %v2517
        %v2529 = vadd.f32 %v2509, %v2521
        %v2530 = vadd.f32 %v2510, %v2525
        %2535 = vrot.lane.b32.xlu0 %v2527, 2
        %v2536 = vpop.permute.xlu0 %2535
        %2537 = vrot.lane.b32.xlu0 %v2528, 2
        %v2538 = vpop.permute.xlu0 %2537
        %2539 = vrot.lane.b32.xlu0 %v2529, 2
        %v2540 = vpop.permute.xlu0 %2539
        %2541 = vrot.lane.b32.xlu0 %v2530, 2
        %v2542 = vpop.permute.xlu0 %2541
        %vm2547 = vcmask 15360
        %v2548 = vsel %vm2547, 0.0, %v2536
        %v2549 = vsel %vm2547, 0.0, %v2538
        %v2550 = vsel %vm2547, 0.0, %v2540
        %v2551 = vsel %vm2547, 0.0, %v2542
        %2552 = vset.pattern.permute.xlu0 6
        %2553 = vperm.xlu0 %2552, %v1797
        %v2554 = vpop.permute.xlu0 %2553
        %2556 = vset.pattern.permute.xlu0 6
        %2557 = vperm.xlu0 %2556, %v1798
        %v2558 = vpop.permute.xlu0 %2557
        %2560 = vset.pattern.permute.xlu0 6
        %2561 = vperm.xlu0 %2560, %v1799
        %v2562 = vpop.permute.xlu0 %2561
        %2564 = vset.pattern.permute.xlu0 6
        %2565 = vperm.xlu0 %2564, %v1800
        %v2566 = vpop.permute.xlu0 %2565
        %v2568 = vmul.f32 %v2554, %v2548
        %v2569 = vmul.f32 %v2558, %v2549
        %v2570 = vmul.f32 %v2562, %v2550
        %v2571 = vmul.f32 %v2566, %v2551
        %v2572 = vadd.f32 %v2568, 0.0
        %v2573 = vadd.f32 %v2569, 0.0
        %v2574 = vadd.f32 %v2570, 0.0
        %v2575 = vadd.f32 %v2571, 0.0
        %2576 = vset.pattern.permute.xlu0 7
        %2577 = vperm.xlu0 %2576, %v1797
        %v2578 = vpop.permute.xlu0 %2577
        %2580 = vset.pattern.permute.xlu0 7
        %2581 = vperm.xlu0 %2580, %v1798
        %v2582 = vpop.permute.xlu0 %2581
        %2584 = vset.pattern.permute.xlu0 7
        %2585 = vperm.xlu0 %2584, %v1799
        %v2586 = vpop.permute.xlu0 %2585
        %2588 = vset.pattern.permute.xlu0 7
        %2589 = vperm.xlu0 %2588, %v1800
        %v2590 = vpop.permute.xlu0 %2589
        %v2592 = vmul.f32 %v2578, %v2527
        %v2593 = vmul.f32 %v2582, %v2528
        %v2594 = vmul.f32 %v2586, %v2529
        %v2595 = vmul.f32 %v2590, %v2530
        %v2596 = vadd.f32 %v2572, %v2592
        %v2597 = vadd.f32 %v2573, %v2593
        %v2598 = vadd.f32 %v2574, %v2594
        %v2599 = vadd.f32 %v2575, %v2595
        %2600 = vrot.lane.b32.xlu0 %v2527, 126
        %v2601 = vpop.permute.xlu0 %2600
        %2602 = vrot.lane.b32.xlu0 %v2528, 126
        %v2603 = vpop.permute.xlu0 %2602
        %2604 = vrot.lane.b32.xlu0 %v2529, 126
        %v2605 = vpop.permute.xlu0 %2604
        %2606 = vrot.lane.b32.xlu0 %v2530, 126
        %v2607 = vpop.permute.xlu0 %2606
        %vm2612 = vcmask 1031168
        %v2613 = vsel %vm2612, %v2601, 0.0
        %v2614 = vsel %vm2612, %v2603, 0.0
        %v2615 = vsel %vm2612, %v2605, 0.0
        %v2616 = vsel %vm2612, %v2607, 0.0
        %2617 = vset.pattern.permute.xlu0 8
        %2618 = vperm.xlu0 %2617, %v1797
        %v2619 = vpop.permute.xlu0 %2618
        %2621 = vset.pattern.permute.xlu0 8
        %2622 = vperm.xlu0 %2621, %v1798
        %v2623 = vpop.permute.xlu0 %2622
        %2625 = vset.pattern.permute.xlu0 8
        %2626 = vperm.xlu0 %2625, %v1799
        %v2627 = vpop.permute.xlu0 %2626
        %2629 = vset.pattern.permute.xlu0 8
        %2630 = vperm.xlu0 %2629, %v1800
        %v2631 = vpop.permute.xlu0 %2630
        %v2633 = vmul.f32 %v2619, %v2613
        %v2634 = vmul.f32 %v2623, %v2614
        %v2635 = vmul.f32 %v2627, %v2615
        %v2636 = vmul.f32 %v2631, %v2616
        %v2637 = vadd.f32 %v2596, %v2633
        %v2638 = vadd.f32 %v2597, %v2634
        %v2639 = vadd.f32 %v2598, %v2635
        %v2640 = vadd.f32 %v2599, %v2636
        %2641 = vset.pattern.permute.xlu0 3
        %2642 = vperm.xlu0 %2641, %v1797
        %v2643 = vpop.permute.xlu0 %2642
        %2645 = vset.pattern.permute.xlu0 3
        %2646 = vperm.xlu0 %2645, %v1798
        %v2647 = vpop.permute.xlu0 %2646
        %2649 = vset.pattern.permute.xlu0 3
        %2650 = vperm.xlu0 %2649, %v1799
        %v2651 = vpop.permute.xlu0 %2650
        %2653 = vset.pattern.permute.xlu0 3
        %2654 = vperm.xlu0 %2653, %v1800
        %v2655 = vpop.permute.xlu0 %2654
        %v2657 = vadd.f32 %v2637, %v2643
        %v2658 = vadd.f32 %v2638, %v2647
        %v2659 = vadd.f32 %v2639, %v2651
        %v2660 = vadd.f32 %v2640, %v2655
        %2661 = vadd.xlane.f32.xlu0 %v2657
        %v2662 = vpop.xlane.xlu0 %2661
        %2663 = vadd.xlane.f32.xlu0 %v2658
        %v2664 = vpop.xlane.xlu0 %2663
        %2665 = vadd.xlane.f32.xlu0 %v2659
        %v2666 = vpop.xlane.xlu0 %2665
        %2667 = vadd.xlane.f32.xlu0 %v2660
        %v2668 = vpop.xlane.xlu0 %2667
        %v2669 = vmul.f32 %v2657, %v2657
        %v2670 = vmul.f32 %v2658, %v2658
        %v2671 = vmul.f32 %v2659, %v2659
        %v2672 = vmul.f32 %v2660, %v2660
        %2673 = vadd.xlane.f32.xlu0 %v2669
        %v2674 = vpop.xlane.xlu0 %2673
        %2675 = vadd.xlane.f32.xlu0 %v2670
        %v2676 = vpop.xlane.xlu0 %2675
        %2677 = vadd.xlane.f32.xlu0 %v2671
        %v2678 = vpop.xlane.xlu0 %2677
        %2679 = vadd.xlane.f32.xlu0 %v2672
        %v2680 = vpop.xlane.xlu0 %2679
        %v2681 = vadd.f32 %v2662, %v2664
        %v2682 = vadd.f32 %v2681, %v2666
        %v2683 = vadd.f32 %v2682, %v2668
        %v2684 = vrot.slane %v2683, 4
        %v2685 = vadd.f32 %v2683, %v2684
        %v2686 = vrot.slane %v2685, 2
        %v2687 = vadd.f32 %v2685, %v2686
        %v2688 = vrot.slane %v2687, 1
        %v2689 = vadd.f32 %v2687, %v2688
        %v2690 = vmul.f32 %v2689, 0.00024414063
        %v2691 = vadd.f32 %v2674, %v2676
        %v2692 = vadd.f32 %v2691, %v2678
        %v2693 = vadd.f32 %v2692, %v2680
        %v2694 = vrot.slane %v2693, 4
        %v2695 = vadd.f32 %v2693, %v2694
        %v2696 = vrot.slane %v2695, 2
        %v2697 = vadd.f32 %v2695, %v2696
        %v2698 = vrot.slane %v2697, 1
        %v2699 = vadd.f32 %v2697, %v2698
        %v2700 = vmul.f32 %v2699, 0.00024414063
        %v2701 = vmul.f32 %v2690, %v2690
        %v2702 = vsub.f32 %v2700, %v2701
        %v2703 = vsub.f32 %v2657, %v2690
        %v2704 = vsub.f32 %v2658, %v2690
        %v2705 = vsub.f32 %v2659, %v2690
        %v2706 = vsub.f32 %v2660, %v2690
        %v2707 = vadd.f32 %v2702, 1e-05
        %v2708 = vrsqrt.pop %v2707
        %v2709 = vmul.f32 %v2703, %v2708
        %v2710 = vmul.f32 %v2704, %v2708
        %v2711 = vmul.f32 %v2705, %v2708
        %v2712 = vmul.f32 %v2706, %v2708
        %2713 = vset.pattern.permute.xlu0 4
        %2714 = vperm.xlu0 %2713, %v1797
        %v2715 = vpop.permute.xlu0 %2714
        %2717 = vset.pattern.permute.xlu0 4
        %2718 = vperm.xlu0 %2717, %v1798
        %v2719 = vpop.permute.xlu0 %2718
        %2721 = vset.pattern.permute.xlu0 4
        %2722 = vperm.xlu0 %2721, %v1799
        %v2723 = vpop.permute.xlu0 %2722
        %2725 = vset.pattern.permute.xlu0 4
        %2726 = vperm.xlu0 %2725, %v1800
        %v2727 = vpop.permute.xlu0 %2726
        %v2729 = vmul.f32 %v2715, %v2709
        %v2730 = vmul.f32 %v2719, %v2710
        %v2731 = vmul.f32 %v2723, %v2711
        %v2732 = vmul.f32 %v2727, %v2712
        %2733 = vset.pattern.permute.xlu0 5
        %2734 = vperm.xlu0 %2733, %v1797
        %v2735 = vpop.permute.xlu0 %2734
        %2737 = vset.pattern.permute.xlu0 5
        %2738 = vperm.xlu0 %2737, %v1798
        %v2739 = vpop.permute.xlu0 %2738
        %2741 = vset.pattern.permute.xlu0 5
        %2742 = vperm.xlu0 %2741, %v1799
        %v2743 = vpop.permute.xlu0 %2742
        %2745 = vset.pattern.permute.xlu0 5
        %2746 = vperm.xlu0 %2745, %v1800
        %v2747 = vpop.permute.xlu0 %2746
        %v2749 = vadd.f32 %v2729, %v2735
        %v2750 = vadd.f32 %v2730, %v2739
        %v2751 = vadd.f32 %v2731, %v2743
        %v2752 = vadd.f32 %v2732, %v2747
        %vm2753 = vcmp.gt.f32.partialorder %v2749, 0.0
        %vm2754 = vcmp.gt.f32.partialorder %v2750, 0.0
        %vm2755 = vcmp.gt.f32.partialorder %v2751, 0.0
        %vm2756 = vcmp.gt.f32.partialorder %v2752, 0.0
        %v2757 = vstv %s1805
        %v2758 = vmul.f32 %v2757, %v2749
        %v2759 = vmul.f32 %v2757, %v2750
        %v2760 = vmul.f32 %v2757, %v2751
        %v2761 = vmul.f32 %v2757, %v2752
        %v2762 = vsel %vm2753, %v2749, %v2758
        %v2763 = vsel %vm2754, %v2750, %v2759
        %v2764 = vsel %vm2755, %v2751, %v2760
        %v2765 = vsel %vm2756, %v2752, %v2761
        %2767 = vset.pattern.permute.xlu0 0
        %2768 = vperm.xlu0 %2767, %v1802
        %v2769 = vpop.permute.xlu0 %2768
        %2772 = vset.pattern.permute.xlu0 0
        %2773 = vperm.xlu0 %2772, %v1803
        %v2774 = vpop.permute.xlu0 %2773
        %v2777 = vsel %vm1251, %v1794, 0
        %v2780 = vsel %vm1251, %v1795, 0
        %2782 = vmatprep.subr.mxu0 0.0
        %v2783 = vand.u32 %v2762, 4294901760
        %2784 = vmatpush1.msra.mxu0 %v2783
        %2785 = vmatprep.subr.mxu0 0.0
        %v2786 = vand.u32 %v2763, 4294901760
        %2787 = vmatpush1.msra.mxu0 %v2786
        %2788 = vmatprep.subr.mxu0 0.0
        %v2789 = vand.u32 %v2764, 4294901760
        %2790 = vmatpush1.msra.mxu0 %v2789
        %2791 = vmatprep.subr.mxu0 0.0
        %v2792 = vand.u32 %v2765, 4294901760
        %2793 = vmatpush1.msra.mxu0 %v2792
        %2794 = vmatprep.subr.mxu0 0.0
        %2795 = vmatpush1.msra.mxu0 0.0
        %2796 = vmatprep.subr.mxu0 0.0
        %2797 = vmatpush1.msra.mxu0 0.0
        %2798 = vmatprep.subr.mxu0 0.0
        %2799 = vmatpush1.msra.mxu0 0.0
        %2800 = vmatprep.subr.mxu0 0.0
        %2801 = vmatpush1.msra.mxu0 0.0
        %2802 = vmatprep.subr.mxu0 0.0
        %2803 = vmatpush1.msra.mxu0 0.0
        %2804 = vmatprep.subr.mxu0 0.0
        %2805 = vmatpush1.msra.mxu0 0.0
        %2806 = vmatprep.subr.mxu0 0.0
        %2807 = vmatpush1.msra.mxu0 0.0
        %2808 = vmatprep.subr.mxu0 0.0
        %2809 = vmatpush1.msra.mxu0 0.0
        %2810 = vmatprep.subr.mxu0 0.0
        %2811 = vmatpush1.msra.mxu0 0.0
        %2812 = vmatprep.subr.mxu0 0.0
        %2813 = vmatpush1.msra.mxu0 0.0
        %2814 = vmatprep.subr.mxu0 0.0
        %2815 = vmatpush1.msra.mxu0 0.0
        %2816 = vmatprep.subr.mxu0 0.0
        %2817 = vmatpush1.msra.mxu0 0.0
        %2818 = vmatprep.subr.mxu0 0.0
        %2819 = vmatpush1.msra.mxu0 0.0
        %2820 = vmatprep.subr.mxu0 0.0
        %2821 = vmatpush1.msra.mxu0 0.0
        %2822 = vmatprep.subr.mxu0 0.0
        %2823 = vmatpush1.msra.mxu0 0.0
        %2824 = vmatprep.subr.mxu0 0.0
        %2825 = vmatpush1.msra.mxu0 0.0
        %2826 = vmatprep.subr.mxu0 0.0
        %2827 = vmatpush1.msra.mxu0 0.0
        %2828 = vmatprep.subr.mxu0 0.0
        %2829 = vmatpush1.msra.mxu0 0.0
        %2830 = vmatprep.subr.mxu0 0.0
        %2831 = vmatpush1.msra.mxu0 0.0
        %2832 = vmatprep.subr.mxu0 0.0
        %2833 = vmatpush1.msra.mxu0 0.0
        %2834 = vmatprep.subr.mxu0 0.0
        %2835 = vmatpush1.msra.mxu0 0.0
        %2836 = vmatprep.subr.mxu0 0.0
        %2837 = vmatpush1.msra.mxu0 0.0
        %2838 = vmatprep.subr.mxu0 0.0
        %2839 = vmatpush1.msra.mxu0 0.0
        %2840 = vmatprep.subr.mxu0 0.0
        %2841 = vmatpush1.msra.mxu0 0.0
        %2842 = vmatprep.subr.mxu0 0.0
        %2843 = vmatpush1.msra.mxu0 0.0
        %2844 = vmatprep.subr.mxu0 0.0
        %2845 = vmatpush1.msra.mxu0 0.0
        %2846 = vmatprep.subr.mxu0 0.0
        %2847 = vmatpush1.msra.mxu0 0.0
        %2848 = vmatprep.subr.mxu0 0.0
        %2849 = vmatpush1.msra.mxu0 0.0
        %2850 = vmatprep.mubr.f32.mxu0 0.0
        %v2851 = vand.u32 %v2777, 4294901760
        %v2852 = vsub.f32 %v2777, %v2851
        %v2853 = vand.u32 %v2852, 4294901760
        %v2854 = vsub.f32 %v2852, %v2853
        %v2855 = vand.u32 %v2854, 4294901760
        %2856 = vmatmul.mubr.f32.gmra.mrb[0].mxu0 %v2855
        %v2857 = vpop.f32.mrb[0].mxu0
        %v2858 = vadd.f32 %v2769, %v2857
        %v2859 = vpop.f32.mrb[0].mxu0
        %2860 = vmatprep.mubr.f32.mxu0 0.0
        %v2861 = vand.u32 %v2780, 4294901760
        %v2862 = vsub.f32 %v2780, %v2861
        %v2863 = vand.u32 %v2862, 4294901760
        %v2864 = vsub.f32 %v2862, %v2863
        %v2865 = vand.u32 %v2864, 4294901760
        %2866 = vmatmul.mubr.f32.gmra.mrb[0].mxu0 %v2865
        %v2867 = vpop.f32.mrb[0].mxu0
        %v2868 = vadd.f32 %v2774, %v2867
        %v2869 = vpop.f32.mrb[0].mxu0
        %2870 = vdwg.mxu0
        %2871 = vmatprep.subr.mxu0 0.0
        %v2872 = vand.u32 %v2762, 4294901760
        %v2873 = vsub.f32 %v2762, %v2872
        %v2874 = vand.u32 %v2873, 4294901760
        %v2875 = vsub.f32 %v2873, %v2874
        %v2876 = vand.u32 %v2875, 4294901760
        %2877 = vmatpush1.msra.mxu0 %v2876
        %2878 = vmatprep.subr.mxu0 0.0
        %v2879 = vand.u32 %v2763, 4294901760
        %v2880 = vsub.f32 %v2763, %v2879
        %v2881 = vand.u32 %v2880, 4294901760
        %v2882 = vsub.f32 %v2880, %v2881
        %v2883 = vand.u32 %v2882, 4294901760
        %2884 = vmatpush1.msra.mxu0 %v2883
        %2885 = vmatprep.subr.mxu0 0.0
        %v2886 = vand.u32 %v2764, 4294901760
        %v2887 = vsub.f32 %v2764, %v2886
        %v2888 = vand.u32 %v2887, 4294901760
        %v2889 = vsub.f32 %v2887, %v2888
        %v2890 = vand.u32 %v2889, 4294901760
        %2891 = vmatpush1.msra.mxu0 %v2890
        %2892 = vmatprep.subr.mxu0 0.0
        %v2893 = vand.u32 %v2765, 4294901760
        %v2894 = vsub.f32 %v2765, %v2893
        %v2895 = vand.u32 %v2894, 4294901760
        %v2896 = vsub.f32 %v2894, %v2895
        %v2897 = vand.u32 %v2896, 4294901760
        %2898 = vmatpush1.msra.mxu0 %v2897
        %2899 = vmatprep.subr.mxu0 0.0
        %2900 = vmatpush1.msra.mxu0 0.0
        %2901 = vmatprep.subr.mxu0 0.0
        %2902 = vmatpush1.msra.mxu0 0.0
        %2903 = vmatprep.subr.mxu0 0.0
        %2904 = vmatpush1.msra.mxu0 0.0
        %2905 = vmatprep.subr.mxu0 0.0
        %2906 = vmatpush1.msra.mxu0 0.0
        %2907 = vmatprep.subr.mxu0 0.0
        %2908 = vmatpush1.msra.mxu0 0.0
        %2909 = vmatprep.subr.mxu0 0.0
        %2910 = vmatpush1.msra.mxu0 0.0
        %2911 = vmatprep.subr.mxu0 0.0
        %2912 = vmatpush1.msra.mxu0 0.0
        %2913 = vmatprep.subr.mxu0 0.0
        %2914 = vmatpush1.msra.mxu0 0.0
        %2915 = vmatprep.subr.mxu0 0.0
        %2916 = vmatpush1.msra.mxu0 0.0
        %2917 = vmatprep.subr.mxu0 0.0
        %2918 = vmatpush1.msra.mxu0 0.0
        %2919 = vmatprep.subr.mxu0 0.0
        %2920 = vmatpush1.msra.mxu0 0.0
        %2921 = vmatprep.subr.mxu0 0.0
        %2922 = vmatpush1.msra.mxu0 0.0
        %2923 = vmatprep.subr.mxu0 0.0
        %2924 = vmatpush1.msra.mxu0 0.0
        %2925 = vmatprep.subr.mxu0 0.0
        %2926 = vmatpush1.msra.mxu0 0.0
        %2927 = vmatprep.subr.mxu0 0.0
        %2928 = vmatpush1.msra.mxu0 0.0
        %2929 = vmatprep.subr.mxu0 0.0
        %2930 = vmatpush1.msra.mxu0 0.0
        %2931 = vmatprep.subr.mxu0 0.0
        %2932 = vmatpush1.msra.mxu0 0.0
        %2933 = vmatprep.subr.mxu0 0.0
        %2934 = vmatpush1.msra.mxu0 0.0
        %2935 = vmatprep.subr.mxu0 0.0
        %2936 = vmatpush1.msra.mxu0 0.0
        %2937 = vmatprep.subr.mxu0 0.0
        %2938 = vmatpush1.msra.mxu0 0.0
        %2939 = vmatprep.subr.mxu0 0.0
        %2940 = vmatpush1.msra.mxu0 0.0
        %2941 = vmatprep.subr.mxu0 0.0
        %2942 = vmatpush1.msra.mxu0 0.0
        %2943 = vmatprep.subr.mxu0 0.0
        %2944 = vmatpush1.msra.mxu0 0.0
        %2945 = vmatprep.subr.mxu0 0.0
        %2946 = vmatpush1.msra.mxu0 0.0
        %2947 = vmatprep.subr.mxu0 0.0
        %2948 = vmatpush1.msra.mxu0 0.0
        %2949 = vmatprep.subr.mxu0 0.0
        %2950 = vmatpush1.msra.mxu0 0.0
        %2951 = vmatprep.subr.mxu0 0.0
        %2952 = vmatpush1.msra.mxu0 0.0
        %2953 = vmatprep.subr.mxu0 0.0
        %2954 = vmatpush1.msra.mxu0 0.0
        %2955 = vmatprep.mubr.f32.mxu0 0.0
        %v2956 = vand.u32 %v2777, 4294901760
        %2957 = vmatmul.mubr.f32.gmra.mrb[0].mxu0 %v2956
        %v2958 = vpop.f32.mrb[0].mxu0
        %v2959 = vadd.f32 %v2858, %v2958
        %v2960 = vpop.f32.mrb[0].mxu0
        %2961 = vmatprep.mubr.f32.mxu0 0.0
        %v2962 = vand.u32 %v2780, 4294901760
        %2963 = vmatmul.mubr.f32.gmra.mrb[0].mxu0 %v2962
        %v2964 = vpop.f32.mrb[0].mxu0
        %v2965 = vadd.f32 %v2868, %v2964
        %v2966 = vpop.f32.mrb[0].mxu0
        %2967 = vdwg.mxu0
        %2968 = vmatprep.subr.mxu0 0.0
        %v2969 = vand.u32 %v2762, 4294901760
        %v2970 = vsub.f32 %v2762, %v2969
        %2971 = vmatpush1.msra.mxu0 %v2970
        %2972 = vmatprep.subr.mxu0 0.0
        %v2973 = vand.u32 %v2763, 4294901760
        %v2974 = vsub.f32 %v2763, %v2973
        %2975 = vmatpush1.msra.mxu0 %v2974
        %2976 = vmatprep.subr.mxu0 0.0
        %v2977 = vand.u32 %v2764, 4294901760
        %v2978 = vsub.f32 %v2764, %v2977
        %2979 = vmatpush1.msra.mxu0 %v2978
        %2980 = vmatprep.subr.mxu0 0.0
        %v2981 = vand.u32 %v2765, 4294901760
        %v2982 = vsub.f32 %v2765, %v2981
        %2983 = vmatpush1.msra.mxu0 %v2982
        %2984 = vmatprep.subr.mxu0 0.0
        %2985 = vmatpush1.msra.mxu0 0.0
        %2986 = vmatprep.subr.mxu0 0.0
        %2987 = vmatpush1.msra.mxu0 0.0
        %2988 = vmatprep.subr.mxu0 0.0
        %2989 = vmatpush1.msra.mxu0 0.0
        %2990 = vmatprep.subr.mxu0 0.0
        %2991 = vmatpush1.msra.mxu0 0.0
        %2992 = vmatprep.subr.mxu0 0.0
        %2993 = vmatpush1.msra.mxu0 0.0
        %2994 = vmatprep.subr.mxu0 0.0
        %2995 = vmatpush1.msra.mxu0 0.0
        %2996 = vmatprep.subr.mxu0 0.0
        %2997 = vmatpush1.msra.mxu0 0.0
        %2998 = vmatprep.subr.mxu0 0.0
        %2999 = vmatpush1.msra.mxu0 0.0
        %3000 = vmatprep.subr.mxu0 0.0
        %3001 = vmatpush1.msra.mxu0 0.0
        %3002 = vmatprep.subr.mxu0 0.0
        %3003 = vmatpush1.msra.mxu0 0.0
        %3004 = vmatprep.subr.mxu0 0.0
        %3005 = vmatpush1.msra.mxu0 0.0
        %3006 = vmatprep.subr.mxu0 0.0
        %3007 = vmatpush1.msra.mxu0 0.0
        %3008 = vmatprep.subr.mxu0 0.0
        %3009 = vmatpush1.msra.mxu0 0.0
        %3010 = vmatprep.subr.mxu0 0.0
        %3011 = vmatpush1.msra.mxu0 0.0
        %3012 = vmatprep.subr.mxu0 0.0
        %3013 = vmatpush1.msra.mxu0 0.0
        %3014 = vmatprep.subr.mxu0 0.0
        %3015 = vmatpush1.msra.mxu0 0.0
        %3016 = vmatprep.subr.mxu0 0.0
        %3017 = vmatpush1.msra.mxu0 0.0
        %3018 = vmatprep.subr.mxu0 0.0
        %3019 = vmatpush1.msra.mxu0 0.0
        %3020 = vmatprep.subr.mxu0 0.0
        %3021 = vmatpush1.msra.mxu0 0.0
        %3022 = vmatprep.subr.mxu0 0.0
        %3023 = vmatpush1.msra.mxu0 0.0
        %3024 = vmatprep.subr.mxu0 0.0
        %3025 = vmatpush1.msra.mxu0 0.0
        %3026 = vmatprep.subr.mxu0 0.0
        %3027 = vmatpush1.msra.mxu0 0.0
        %3028 = vmatprep.subr.mxu0 0.0
        %3029 = vmatpush1.msra.mxu0 0.0
        %3030 = vmatprep.subr.mxu0 0.0
        %3031 = vmatpush1.msra.mxu0 0.0
        %3032 = vmatprep.subr.mxu0 0.0
        %3033 = vmatpush1.msra.mxu0 0.0
        %3034 = vmatprep.subr.mxu0 0.0
        %3035 = vmatpush1.msra.mxu0 0.0
        %3036 = vmatprep.subr.mxu0 0.0
        %3037 = vmatpush1.msra.mxu0 0.0
        %3038 = vmatprep.subr.mxu0 0.0
        %3039 = vmatpush1.msra.mxu0 0.0
        %3040 = vmatprep.mubr.f32.mxu0 0.0
        %v3041 = vand.u32 %v2777, 4294901760
        %v3042 = vsub.f32 %v2777, %v3041
        %3043 = vmatmul.mubr.f32.gmra.mrb[0].mxu0 %v3042
        %v3044 = vpop.f32.mrb[0].mxu0
        %v3045 = vadd.f32 %v2959, %v3044
        %v3046 = vpop.f32.mrb[0].mxu0
        %3047 = vmatprep.mubr.f32.mxu0 0.0
        %v3048 = vand.u32 %v2780, 4294901760
        %v3049 = vsub.f32 %v2780, %v3048
        %3050 = vmatmul.mubr.f32.gmra.mrb[0].mxu0 %v3049
        %v3051 = vpop.f32.mrb[0].mxu0
        %v3052 = vadd.f32 %v2965, %v3051
        %v3053 = vpop.f32.mrb[0].mxu0
        %3054 = vdwg.mxu0
        %3055 = vmatprep.subr.mxu0 0.0
        %v3056 = vand.u32 %v2762, 4294901760
        %3057 = vmatpush1.msra.mxu0 %v3056
        %3058 = vmatprep.subr.mxu0 0.0
        %v3059 = vand.u32 %v2763, 4294901760
        %3060 = vmatpush1.msra.mxu0 %v3059
        %3061 = vmatprep.subr.mxu0 0.0
        %v3062 = vand.u32 %v2764, 4294901760
        %3063 = vmatpush1.msra.mxu0 %v3062
        %3064 = vmatprep.subr.mxu0 0.0
        %v3065 = vand.u32 %v2765, 4294901760
        %3066 = vmatpush1.msra.mxu0 %v3065
        %3067 = vmatprep.subr.mxu0 0.0
        %3068 = vmatpush1.msra.mxu0 0.0
        %3069 = vmatprep.subr.mxu0 0.0
        %3070 = vmatpush1.msra.mxu0 0.0
        %3071 = vmatprep.subr.mxu0 0.0
        %3072 = vmatpush1.msra.mxu0 0.0
        %3073 = vmatprep.subr.mxu0 0.0
        %3074 = vmatpush1.msra.mxu0 0.0
        %3075 = vmatprep.subr.mxu0 0.0
        %3076 = vmatpush1.msra.mxu0 0.0
        %3077 = vmatprep.subr.mxu0 0.0
        %3078 = vmatpush1.msra.mxu0 0.0
        %3079 = vmatprep.subr.mxu0 0.0
        %3080 = vmatpush1.msra.mxu0 0.0
        %3081 = vmatprep.subr.mxu0 0.0
        %3082 = vmatpush1.msra.mxu0 0.0
        %3083 = vmatprep.subr.mxu0 0.0
        %3084 = vmatpush1.msra.mxu0 0.0
        %3085 = vmatprep.subr.mxu0 0.0
        %3086 = vmatpush1.msra.mxu0 0.0
        %3087 = vmatprep.subr.mxu0 0.0
        %3088 = vmatpush1.msra.mxu0 0.0
        %3089 = vmatprep.subr.mxu0 0.0
        %3090 = vmatpush1.msra.mxu0 0.0
        %3091 = vmatprep.subr.mxu0 0.0
        %3092 = vmatpush1.msra.mxu0 0.0
        %3093 = vmatprep.subr.mxu0 0.0
        %3094 = vmatpush1.msra.mxu0 0.0
        %3095 = vmatprep.subr.mxu0 0.0
        %3096 = vmatpush1.msra.mxu0 0.0
        %3097 = vmatprep.subr.mxu0 0.0
        %3098 = vmatpush1.msra.mxu0 0.0
        %3099 = vmatprep.subr.mxu0 0.0
        %3100 = vmatpush1.msra.mxu0 0.0
        %3101 = vmatprep.subr.mxu0 0.0
        %3102 = vmatpush1.msra.mxu0 0.0
        %3103 = vmatprep.subr.mxu0 0.0
        %3104 = vmatpush1.msra.mxu0 0.0
        %3105 = vmatprep.subr.mxu0 0.0
        %3106 = vmatpush1.msra.mxu0 0.0
        %3107 = vmatprep.subr.mxu0 0.0
        %3108 = vmatpush1.msra.mxu0 0.0
        %3109 = vmatprep.subr.mxu0 0.0
        %3110 = vmatpush1.msra.mxu0 0.0
        %3111 = vmatprep.subr.mxu0 0.0
        %3112 = vmatpush1.msra.mxu0 0.0
        %3113 = vmatprep.subr.mxu0 0.0
        %3114 = vmatpush1.msra.mxu0 0.0
        %3115 = vmatprep.subr.mxu0 0.0
        %3116 = vmatpush1.msra.mxu0 0.0
        %3117 = vmatprep.subr.mxu0 0.0
        %3118 = vmatpush1.msra.mxu0 0.0
        %3119 = vmatprep.subr.mxu0 0.0
        %3120 = vmatpush1.msra.mxu0 0.0
        %3121 = vmatprep.subr.mxu0 0.0
        %3122 = vmatpush1.msra.mxu0 0.0
        %3123 = vmatprep.mubr.f32.mxu0 0.0
        %v3124 = vand.u32 %v2777, 4294901760
        %v3125 = vsub.f32 %v2777, %v3124
        %v3126 = vand.u32 %v3125, 4294901760
        %3127 = vmatmul.mubr.f32.gmra.mrb[0].mxu0 %v3126
        %v3128 = vpop.f32.mrb[0].mxu0
        %v3129 = vadd.f32 %v3045, %v3128
        %v3130 = vpop.f32.mrb[0].mxu0
        %3131 = vmatprep.mubr.f32.mxu0 0.0
        %v3132 = vand.u32 %v2780, 4294901760
        %v3133 = vsub.f32 %v2780, %v3132
        %v3134 = vand.u32 %v3133, 4294901760
        %3135 = vmatmul.mubr.f32.gmra.mrb[0].mxu0 %v3134
        %v3136 = vpop.f32.mrb[0].mxu0
        %v3137 = vadd.f32 %v3052, %v3136
        %v3138 = vpop.f32.mrb[0].mxu0
        %3139 = vdwg.mxu0
        %3140 = vmatprep.subr.mxu0 0.0
        %v3141 = vand.u32 %v2762, 4294901760
        %v3142 = vsub.f32 %v2762, %v3141
        %v3143 = vand.u32 %v3142, 4294901760
        %3144 = vmatpush1.msra.mxu0 %v3143
        %3145 = vmatprep.subr.mxu0 0.0
        %v3146 = vand.u32 %v2763, 4294901760
        %v3147 = vsub.f32 %v2763, %v3146
        %v3148 = vand.u32 %v3147, 4294901760
        %3149 = vmatpush1.msra.mxu0 %v3148
        %3150 = vmatprep.subr.mxu0 0.0
        %v3151 = vand.u32 %v2764, 4294901760
        %v3152 = vsub.f32 %v2764, %v3151
        %v3153 = vand.u32 %v3152, 4294901760
        %3154 = vmatpush1.msra.mxu0 %v3153
        %3155 = vmatprep.subr.mxu0 0.0
        %v3156 = vand.u32 %v2765, 4294901760
        %v3157 = vsub.f32 %v2765, %v3156
        %v3158 = vand.u32 %v3157, 4294901760
        %3159 = vmatpush1.msra.mxu0 %v3158
        %3160 = vmatprep.subr.mxu0 0.0
        %3161 = vmatpush1.msra.mxu0 0.0
        %3162 = vmatprep.subr.mxu0 0.0
        %3163 = vmatpush1.msra.mxu0 0.0
        %3164 = vmatprep.subr.mxu0 0.0
        %3165 = vmatpush1.msra.mxu0 0.0
        %3166 = vmatprep.subr.mxu0 0.0
        %3167 = vmatpush1.msra.mxu0 0.0
        %3168 = vmatprep.subr.mxu0 0.0
        %3169 = vmatpush1.msra.mxu0 0.0
        %3170 = vmatprep.subr.mxu0 0.0
        %3171 = vmatpush1.msra.mxu0 0.0
        %3172 = vmatprep.subr.mxu0 0.0
        %3173 = vmatpush1.msra.mxu0 0.0
        %3174 = vmatprep.subr.mxu0 0.0
        %3175 = vmatpush1.msra.mxu0 0.0
        %3176 = vmatprep.subr.mxu0 0.0
        %3177 = vmatpush1.msra.mxu0 0.0
        %3178 = vmatprep.subr.mxu0 0.0
        %3179 = vmatpush1.msra.mxu0 0.0
        %3180 = vmatprep.subr.mxu0 0.0
        %3181 = vmatpush1.msra.mxu0 0.0
        %3182 = vmatprep.subr.mxu0 0.0
        %3183 = vmatpush1.msra.mxu0 0.0
        %3184 = vmatprep.subr.mxu0 0.0
        %3185 = vmatpush1.msra.mxu0 0.0
        %3186 = vmatprep.subr.mxu0 0.0
        %3187 = vmatpush1.msra.mxu0 0.0
        %3188 = vmatprep.subr.mxu0 0.0
        %3189 = vmatpush1.msra.mxu0 0.0
        %3190 = vmatprep.subr.mxu0 0.0
        %3191 = vmatpush1.msra.mxu0 0.0
        %3192 = vmatprep.subr.mxu0 0.0
        %3193 = vmatpush1.msra.mxu0 0.0
        %3194 = vmatprep.subr.mxu0 0.0
        %3195 = vmatpush1.msra.mxu0 0.0
        %3196 = vmatprep.subr.mxu0 0.0
        %3197 = vmatpush1.msra.mxu0 0.0
        %3198 = vmatprep.subr.mxu0 0.0
        %3199 = vmatpush1.msra.mxu0 0.0
        %3200 = vmatprep.subr.mxu0 0.0
        %3201 = vmatpush1.msra.mxu0 0.0
        %3202 = vmatprep.subr.mxu0 0.0
        %3203 = vmatpush1.msra.mxu0 0.0
        %3204 = vmatprep.subr.mxu0 0.0
        %3205 = vmatpush1.msra.mxu0 0.0
        %3206 = vmatprep.subr.mxu0 0.0
        %3207 = vmatpush1.msra.mxu0 0.0
        %3208 = vmatprep.subr.mxu0 0.0
        %3209 = vmatpush1.msra.mxu0 0.0
        %3210 = vmatprep.subr.mxu0 0.0
        %3211 = vmatpush1.msra.mxu0 0.0
        %3212 = vmatprep.subr.mxu0 0.0
        %3213 = vmatpush1.msra.mxu0 0.0
        %3214 = vmatprep.subr.mxu0 0.0
        %3215 = vmatpush1.msra.mxu0 0.0
        %3216 = vmatprep.mubr.f32.mxu0 0.0
        %v3217 = vand.u32 %v2777, 4294901760
        %3218 = vmatmul.mubr.f32.gmra.mrb[0].mxu0 %v3217
        %v3219 = vpop.f32.mrb[0].mxu0
        %v3220 = vadd.f32 %v3129, %v3219
        %v3221 = vpop.f32.mrb[0].mxu0
        %3222 = vmatprep.mubr.f32.mxu0 0.0
        %v3223 = vand.u32 %v2780, 4294901760
        %3224 = vmatmul.mubr.f32.gmra.mrb[0].mxu0 %v3223
        %v3225 = vpop.f32.mrb[0].mxu0
        %v3226 = vadd.f32 %v3137, %v3225
        %v3227 = vpop.f32.mrb[0].mxu0
        %3228 = vdwg.mxu0
        %3229 = vmatprep.subr.mxu0 0.0
        %v3230 = vand.u32 %v2762, 4294901760
        %3231 = vmatpush1.msra.mxu0 %v3230
        %3232 = vmatprep.subr.mxu0 0.0
        %v3233 = vand.u32 %v2763, 4294901760
        %3234 = vmatpush1.msra.mxu0 %v3233
        %3235 = vmatprep.subr.mxu0 0.0
        %v3236 = vand.u32 %v2764, 4294901760
        %3237 = vmatpush1.msra.mxu0 %v3236
        %3238 = vmatprep.subr.mxu0 0.0
        %v3239 = vand.u32 %v2765, 4294901760
        %3240 = vmatpush1.msra.mxu0 %v3239
        %3241 = vmatprep.subr.mxu0 0.0
        %3242 = vmatpush1.msra.mxu0 0.0
        %3243 = vmatprep.subr.mxu0 0.0
        %3244 = vmatpush1.msra.mxu0 0.0
        %3245 = vmatprep.subr.mxu0 0.0
        %3246 = vmatpush1.msra.mxu0 0.0
        %3247 = vmatprep.subr.mxu0 0.0
        %3248 = vmatpush1.msra.mxu0 0.0
        %3249 = vmatprep.subr.mxu0 0.0
        %3250 = vmatpush1.msra.mxu0 0.0
        %3251 = vmatprep.subr.mxu0 0.0
        %3252 = vmatpush1.msra.mxu0 0.0
        %3253 = vmatprep.subr.mxu0 0.0
        %3254 = vmatpush1.msra.mxu0 0.0
        %3255 = vmatprep.subr.mxu0 0.0
        %3256 = vmatpush1.msra.mxu0 0.0
        %3257 = vmatprep.subr.mxu0 0.0
        %3258 = vmatpush1.msra.mxu0 0.0
        %3259 = vmatprep.subr.mxu0 0.0
        %3260 = vmatpush1.msra.mxu0 0.0
        %3261 = vmatprep.subr.mxu0 0.0
        %3262 = vmatpush1.msra.mxu0 0.0
        %3263 = vmatprep.subr.mxu0 0.0
        %3264 = vmatpush1.msra.mxu0 0.0
        %3265 = vmatprep.subr.mxu0 0.0
        %3266 = vmatpush1.msra.mxu0 0.0
        %3267 = vmatprep.subr.mxu0 0.0
        %3268 = vmatpush1.msra.mxu0 0.0
        %3269 = vmatprep.subr.mxu0 0.0
        %3270 = vmatpush1.msra.mxu0 0.0
        %3271 = vmatprep.subr.mxu0 0.0
        %3272 = vmatpush1.msra.mxu0 0.0
        %3273 = vmatprep.subr.mxu0 0.0
        %3274 = vmatpush1.msra.mxu0 0.0
        %3275 = vmatprep.subr.mxu0 0.0
        %3276 = vmatpush1.msra.mxu0 0.0
        %3277 = vmatprep.subr.mxu0 0.0
        %3278 = vmatpush1.msra.mxu0 0.0
        %3279 = vmatprep.subr.mxu0 0.0
        %3280 = vmatpush1.msra.mxu0 0.0
        %3281 = vmatprep.subr.mxu0 0.0
        %3282 = vmatpush1.msra.mxu0 0.0
        %3283 = vmatprep.subr.mxu0 0.0
        %3284 = vmatpush1.msra.mxu0 0.0
        %3285 = vmatprep.subr.mxu0 0.0
        %3286 = vmatpush1.msra.mxu0 0.0
        %3287 = vmatprep.subr.mxu0 0.0
        %3288 = vmatpush1.msra.mxu0 0.0
        %3289 = vmatprep.subr.mxu0 0.0
        %3290 = vmatpush1.msra.mxu0 0.0
        %3291 = vmatprep.subr.mxu0 0.0
        %3292 = vmatpush1.msra.mxu0 0.0
        %3293 = vmatprep.subr.mxu0 0.0
        %3294 = vmatpush1.msra.mxu0 0.0
        %3295 = vmatprep.subr.mxu0 0.0
        %3296 = vmatpush1.msra.mxu0 0.0
        %3297 = vmatprep.mubr.f32.mxu0 0.0
        %v3298 = vand.u32 %v2777, 4294901760
        %3299 = vmatmul.mubr.f32.gmra.mrb[0].mxu0 %v3298
        %v3300 = vpop.f32.mrb[0].mxu0
        %v3301 = vadd.f32 %v3220, %v3300
        %v3302 = vpop.f32.mrb[0].mxu0
        %3303 = vmatprep.mubr.f32.mxu0 0.0
        %v3304 = vand.u32 %v2780, 4294901760
        %3305 = vmatmul.mubr.f32.gmra.mrb[0].mxu0 %v3304
        %v3306 = vpop.f32.mrb[0].mxu0
        %v3307 = vadd.f32 %v3226, %v3306
        %v3308 = vpop.f32.mrb[0].mxu0
        %3309 = vdwg.mxu0
        %v3310 = vadd.f32 %v3301, %v1786
        %v3311 = vadd.f32 %v3307, %v1787
        %s3312 = scalar_lea.vmem %s1, 64
        %v3313 = vld [vmem:[%s3312] sm:$0xff]
        %v3314 = vld [vmem:[%s3312 + $0x8] sm:$0xff]
        %v3315 = vld [vmem:[%s3312 + $0x10] sm:$0xff]
        %v3316 = vld [vmem:[%s3312 + $0x18] sm:$0xff]
        %s3317 = scalar_lea.vmem %s3, 32
        %v3318 = vld [vmem:[%s3317] sm:$0xff]
        %v3319 = vld [vmem:[%s3317 + $0x8] sm:$0xff]
        %s3320 = scalar_lea.vmem %s2, 64
        %v3321 = vld [vmem:[%s3320] sm:$0xff]
        %v3322 = vld [vmem:[%s3320 + $0x8] sm:$0xff]
        %v3323 = vld [vmem:[%s3320 + $0x10] sm:$0xff]
        %v3324 = vld [vmem:[%s3320 + $0x18] sm:$0xff]
        %s3325 = scalar_lea.vmem %s4, 32
        %v3326 = vld [vmem:[%s3325] sm:$0xff]
        %v3327 = vld [vmem:[%s3325 + $0x8] sm:$0xff]
        %s3328 = sld [smem:[#allocation2 + $0x100]]
        %s3329 = sld [smem:[#allocation2 + $0x101]]
        %3331 = vset.pattern.permute.xlu0 0
        %3332 = vperm.xlu0 %3331, %v3321
        %v3333 = vpop.permute.xlu0 %3332
        %3336 = vset.pattern.permute.xlu0 0
        %3337 = vperm.xlu0 %3336, %v3322
        %v3338 = vpop.permute.xlu0 %3337
        %3341 = vset.pattern.permute.xlu0 0
        %3342 = vperm.xlu0 %3341, %v3323
        %v3343 = vpop.permute.xlu0 %3342
        %3346 = vset.pattern.permute.xlu0 0
        %3347 = vperm.xlu0 %3346, %v3324
        %v3348 = vpop.permute.xlu0 %3347
        %v3351 = vsel %vm300, %v3313, 0
        %v3354 = vsel %vm300, %v3314, 0
        %v3357 = vsel %vm300, %v3315, 0
        %v3360 = vsel %vm300, %v3316, 0
        %3362 = vmatprep.subr.mxu0 0.0
        %v3363 = vand.u32 %v3310, 4294901760
        %3364 = vmatpush1.msra.mxu0 %v3363
        %3365 = vmatprep.subr.mxu0 0.0
        %v3366 = vand.u32 %v3311, 4294901760
        %3367 = vmatpush1.msra.mxu0 %v3366
        %3368 = vmatprep.subr.mxu0 0.0
        %3369 = vmatpush1.msra.mxu0 0.0
        %3370 = vmatprep.subr.mxu0 0.0
        %3371 = vmatpush1.msra.mxu0 0.0
        %3372 = vmatprep.subr.mxu0 0.0
        %3373 = vmatpush1.msra.mxu0 0.0
        %3374 = vmatprep.subr.mxu0 0.0
        %3375 = vmatpush1.msra.mxu0 0.0
        %3376 = vmatprep.subr.mxu0 0.0
        %3377 = vmatpush1.msra.mxu0 0.0
        %3378 = vmatprep.subr.mxu0 0.0
        %3379 = vmatpush1.msra.mxu0 0.0
        %3380 = vmatprep.subr.mxu0 0.0
        %3381 = vmatpush1.msra.mxu0 0.0
        %3382 = vmatprep.subr.mxu0 0.0
        %3383 = vmatpush1.msra.mxu0 0.0
        %3384 = vmatprep.subr.mxu0 0.0
        %3385 = vmatpush1.msra.mxu0 0.0
        %3386 = vmatprep.subr.mxu0 0.0
        %3387 = vmatpush1.msra.mxu0 0.0
        %3388 = vmatprep.subr.mxu0 0.0
        %3389 = vmatpush1.msra.mxu0 0.0
        %3390 = vmatprep.subr.mxu0 0.0
        %3391 = vmatpush1.msra.mxu0 0.0
        %3392 = vmatprep.subr.mxu0 0.0
        %3393 = vmatpush1.msra.mxu0 0.0
        %3394 = vmatprep.subr.mxu0 0.0
        %3395 = vmatpush1.msra.mxu0 0.0
        %3396 = vmatprep.subr.mxu0 0.0
        %3397 = vmatpush1.msra.mxu0 0.0
        %3398 = vmatprep.subr.mxu0 0.0
        %3399 = vmatpush1.msra.mxu0 0.0
        %3400 = vmatprep.subr.mxu0 0.0
        %3401 = vmatpush1.msra.mxu0 0.0
        %3402 = vmatprep.subr.mxu0 0.0
        %3403 = vmatpush1.msra.mxu0 0.0
        %3404 = vmatprep.subr.mxu0 0.0
        %3405 = vmatpush1.msra.mxu0 0.0
        %3406 = vmatprep.subr.mxu0 0.0
        %3407 = vmatpush1.msra.mxu0 0.0
        %3408 = vmatprep.subr.mxu0 0.0
        %3409 = vmatpush1.msra.mxu0 0.0
        %3410 = vmatprep.subr.mxu0 0.0
        %3411 = vmatpush1.msra.mxu0 0.0
        %3412 = vmatprep.subr.mxu0 0.0
        %3413 = vmatpush1.msra.mxu0 0.0
        %3414 = vmatprep.subr.mxu0 0.0
        %3415 = vmatpush1.msra.mxu0 0.0
        %3416 = vmatprep.subr.mxu0 0.0
        %3417 = vmatpush1.msra.mxu0 0.0
        %3418 = vmatprep.subr.mxu0 0.0
        %3419 = vmatpush1.msra.mxu0 0.0
        %3420 = vmatprep.subr.mxu0 0.0
        %3421 = vmatpush1.msra.mxu0 0.0
        %3422 = vmatprep.subr.mxu0 0.0
        %3423 = vmatpush1.msra.mxu0 0.0
        %3424 = vmatprep.subr.mxu0 0.0
        %3425 = vmatpush1.msra.mxu0 0.0
        %3426 = vmatprep.subr.mxu0 0.0
        %3427 = vmatpush1.msra.mxu0 0.0
        %3428 = vmatprep.mubr.f32.mxu0 0.0
        %v3429 = vand.u32 %v3351, 4294901760
        %v3430 = vsub.f32 %v3351, %v3429
        %v3431 = vand.u32 %v3430, 4294901760
        %v3432 = vsub.f32 %v3430, %v3431
        %v3433 = vand.u32 %v3432, 4294901760
        %3434 = vmatmul.mubr.f32.gmra.mrb[0].mxu0 %v3433
        %v3435 = vpop.f32.mrb[0].mxu0
        %v3436 = vadd.f32 %v3333, %v3435
        %v3437 = vpop.f32.mrb[0].mxu0
        %3438 = vmatprep.mubr.f32.mxu0 0.0
        %v3439 = vand.u32 %v3354, 4294901760
        %v3440 = vsub.f32 %v3354, %v3439
        %v3441 = vand.u32 %v3440, 4294901760
        %v3442 = vsub.f32 %v3440, %v3441
        %v3443 = vand.u32 %v3442, 4294901760
        %3444 = vmatmul.mubr.f32.gmra.mrb[0].mxu0 %v3443
        %v3445 = vpop.f32.mrb[0].mxu0
        %v3446 = vadd.f32 %v3338, %v3445
        %v3447 = vpop.f32.mrb[0].mxu0
        %3448 = vmatprep.mubr.f32.mxu0 0.0
        %v3449 = vand.u32 %v3357, 4294901760
        %v3450 = vsub.f32 %v3357, %v3449
        %v3451 = vand.u32 %v3450, 4294901760
        %v3452 = vsub.f32 %v3450, %v3451
        %v3453 = vand.u32 %v3452, 4294901760
        %3454 = vmatmul.mubr.f32.gmra.mrb[0].mxu0 %v3453
        %v3455 = vpop.f32.mrb[0].mxu0
        %v3456 = vadd.f32 %v3343, %v3455
        %v3457 = vpop.f32.mrb[0].mxu0
        %3458 = vmatprep.mubr.f32.mxu0 0.0
        %v3459 = vand.u32 %v3360, 4294901760
        %v3460 = vsub.f32 %v3360, %v3459
        %v3461 = vand.u32 %v3460, 4294901760
        %v3462 = vsub.f32 %v3460, %v3461
        %v3463 = vand.u32 %v3462, 4294901760
        %3464 = vmatmul.mubr.f32.gmra.mrb[0].mxu0 %v3463
        %v3465 = vpop.f32.mrb[0].mxu0
        %v3466 = vadd.f32 %v3348, %v3465
        %v3467 = vpop.f32.mrb[0].mxu0
        %3468 = vdwg.mxu0
        %3469 = vmatprep.subr.mxu0 0.0
        %v3470 = vand.u32 %v3310, 4294901760
        %v3471 = vsub.f32 %v3310, %v3470
        %v3472 = vand.u32 %v3471, 4294901760
        %v3473 = vsub.f32 %v3471, %v3472
        %v3474 = vand.u32 %v3473, 4294901760
        %3475 = vmatpush1.msra.mxu0 %v3474
        %3476 = vmatprep.subr.mxu0 0.0
        %v3477 = vand.u32 %v3311, 4294901760
        %v3478 = vsub.f32 %v3311, %v3477
        %v3479 = vand.u32 %v3478, 4294901760
        %v3480 = vsub.f32 %v3478, %v3479
        %v3481 = vand.u32 %v3480, 4294901760
        %3482 = vmatpush1.msra.mxu0 %v3481
        %3483 = vmatprep.subr.mxu0 0.0
        %3484 = vmatpush1.msra.mxu0 0.0
        %3485 = vmatprep.subr.mxu0 0.0
        %3486 = vmatpush1.msra.mxu0 0.0
        %3487 = vmatprep.subr.mxu0 0.0
        %3488 = vmatpush1.msra.mxu0 0.0
        %3489 = vmatprep.subr.mxu0 0.0
        %3490 = vmatpush1.msra.mxu0 0.0
        %3491 = vmatprep.subr.mxu0 0.0
        %3492 = vmatpush1.msra.mxu0 0.0
        %3493 = vmatprep.subr.mxu0 0.0
        %3494 = vmatpush1.msra.mxu0 0.0
        %3495 = vmatprep.subr.mxu0 0.0
        %3496 = vmatpush1.msra.mxu0 0.0
        %3497 = vmatprep.subr.mxu0 0.0
        %3498 = vmatpush1.msra.mxu0 0.0
        %3499 = vmatprep.subr.mxu0 0.0
        %3500 = vmatpush1.msra.mxu0 0.0
        %3501 = vmatprep.subr.mxu0 0.0
        %3502 = vmatpush1.msra.mxu0 0.0
        %3503 = vmatprep.subr.mxu0 0.0
        %3504 = vmatpush1.msra.mxu0 0.0
        %3505 = vmatprep.subr.mxu0 0.0
        %3506 = vmatpush1.msra.mxu0 0.0
        %3507 = vmatprep.subr.mxu0 0.0
        %3508 = vmatpush1.msra.mxu0 0.0
        %3509 = vmatprep.subr.mxu0 0.0
        %3510 = vmatpush1.msra.mxu0 0.0
        %3511 = vmatprep.subr.mxu0 0.0
        %3512 = vmatpush1.msra.mxu0 0.0
        %3513 = vmatprep.subr.mxu0 0.0
        %3514 = vmatpush1.msra.mxu0 0.0
        %3515 = vmatprep.subr.mxu0 0.0
        %3516 = vmatpush1.msra.mxu0 0.0
        %3517 = vmatprep.subr.mxu0 0.0
        %3518 = vmatpush1.msra.mxu0 0.0
        %3519 = vmatprep.subr.mxu0 0.0
        %3520 = vmatpush1.msra.mxu0 0.0
        %3521 = vmatprep.subr.mxu0 0.0
        %3522 = vmatpush1.msra.mxu0 0.0
        %3523 = vmatprep.subr.mxu0 0.0
        %3524 = vmatpush1.msra.mxu0 0.0
        %3525 = vmatprep.subr.mxu0 0.0
        %3526 = vmatpush1.msra.mxu0 0.0
        %3527 = vmatprep.subr.mxu0 0.0
        %3528 = vmatpush1.msra.mxu0 0.0
        %3529 = vmatprep.subr.mxu0 0.0
        %3530 = vmatpush1.msra.mxu0 0.0
        %3531 = vmatprep.subr.mxu0 0.0
        %3532 = vmatpush1.msra.mxu0 0.0
        %3533 = vmatprep.subr.mxu0 0.0
        %3534 = vmatpush1.msra.mxu0 0.0
        %3535 = vmatprep.subr.mxu0 0.0
        %3536 = vmatpush1.msra.mxu0 0.0
        %3537 = vmatprep.subr.mxu0 0.0
        %3538 = vmatpush1.msra.mxu0 0.0
        %3539 = vmatprep.subr.mxu0 0.0
        %3540 = vmatpush1.msra.mxu0 0.0
        %3541 = vmatprep.subr.mxu0 0.0
        %3542 = vmatpush1.msra.mxu0 0.0
        %3543 = vmatprep.mubr.f32.mxu0 0.0
        %v3544 = vand.u32 %v3351, 4294901760
        %3545 = vmatmul.mubr.f32.gmra.mrb[0].mxu0 %v3544
        %v3546 = vpop.f32.mrb[0].mxu0
        %v3547 = vadd.f32 %v3436, %v3546
        %v3548 = vpop.f32.mrb[0].mxu0
        %3549 = vmatprep.mubr.f32.mxu0 0.0
        %v3550 = vand.u32 %v3354, 4294901760
        %3551 = vmatmul.mubr.f32.gmra.mrb[0].mxu0 %v3550
        %v3552 = vpop.f32.mrb[0].mxu0
        %v3553 = vadd.f32 %v3446, %v3552
        %v3554 = vpop.f32.mrb[0].mxu0
        %3555 = vmatprep.mubr.f32.mxu0 0.0
        %v3556 = vand.u32 %v3357, 4294901760
        %3557 = vmatmul.mubr.f32.gmra.mrb[0].mxu0 %v3556
        %v3558 = vpop.f32.mrb[0].mxu0
        %v3559 = vadd.f32 %v3456, %v3558
        %v3560 = vpop.f32.mrb[0].mxu0
        %3561 = vmatprep.mubr.f32.mxu0 0.0
        %v3562 = vand.u32 %v3360, 4294901760
        %3563 = vmatmul.mubr.f32.gmra.mrb[0].mxu0 %v3562
        %v3564 = vpop.f32.mrb[0].mxu0
        %v3565 = vadd.f32 %v3466, %v3564
        %v3566 = vpop.f32.mrb[0].mxu0
        %3567 = vdwg.mxu0
        %3568 = vmatprep.subr.mxu0 0.0
        %v3569 = vand.u32 %v3310, 4294901760
        %v3570 = vsub.f32 %v3310, %v3569
        %3571 = vmatpush1.msra.mxu0 %v3570
        %3572 = vmatprep.subr.mxu0 0.0
        %v3573 = vand.u32 %v3311, 4294901760
        %v3574 = vsub.f32 %v3311, %v3573
        %3575 = vmatpush1.msra.mxu0 %v3574
        %3576 = vmatprep.subr.mxu0 0.0
        %3577 = vmatpush1.msra.mxu0 0.0
        %3578 = vmatprep.subr.mxu0 0.0
        %3579 = vmatpush1.msra.mxu0 0.0
        %3580 = vmatprep.subr.mxu0 0.0
        %3581 = vmatpush1.msra.mxu0 0.0
        %3582 = vmatprep.subr.mxu0 0.0
        %3583 = vmatpush1.msra.mxu0 0.0
        %3584 = vmatprep.subr.mxu0 0.0
        %3585 = vmatpush1.msra.mxu0 0.0
        %3586 = vmatprep.subr.mxu0 0.0
        %3587 = vmatpush1.msra.mxu0 0.0
        %3588 = vmatprep.subr.mxu0 0.0
        %3589 = vmatpush1.msra.mxu0 0.0
        %3590 = vmatprep.subr.mxu0 0.0
        %3591 = vmatpush1.msra.mxu0 0.0
        %3592 = vmatprep.subr.mxu0 0.0
        %3593 = vmatpush1.msra.mxu0 0.0
        %3594 = vmatprep.subr.mxu0 0.0
        %3595 = vmatpush1.msra.mxu0 0.0
        %3596 = vmatprep.subr.mxu0 0.0
        %3597 = vmatpush1.msra.mxu0 0.0
        %3598 = vmatprep.subr.mxu0 0.0
        %3599 = vmatpush1.msra.mxu0 0.0
        %3600 = vmatprep.subr.mxu0 0.0
        %3601 = vmatpush1.msra.mxu0 0.0
        %3602 = vmatprep.subr.mxu0 0.0
        %3603 = vmatpush1.msra.mxu0 0.0
        %3604 = vmatprep.subr.mxu0 0.0
        %3605 = vmatpush1.msra.mxu0 0.0
        %3606 = vmatprep.subr.mxu0 0.0
        %3607 = vmatpush1.msra.mxu0 0.0
        %3608 = vmatprep.subr.mxu0 0.0
        %3609 = vmatpush1.msra.mxu0 0.0
        %3610 = vmatprep.subr.mxu0 0.0
        %3611 = vmatpush1.msra.mxu0 0.0
        %3612 = vmatprep.subr.mxu0 0.0
        %3613 = vmatpush1.msra.mxu0 0.0
        %3614 = vmatprep.subr.mxu0 0.0
        %3615 = vmatpush1.msra.mxu0 0.0
        %3616 = vmatprep.subr.mxu0 0.0
        %3617 = vmatpush1.msra.mxu0 0.0
        %3618 = vmatprep.subr.mxu0 0.0
        %3619 = vmatpush1.msra.mxu0 0.0
        %3620 = vmatprep.subr.mxu0 0.0
        %3621 = vmatpush1.msra.mxu0 0.0
        %3622 = vmatprep.subr.mxu0 0.0
        %3623 = vmatpush1.msra.mxu0 0.0
        %3624 = vmatprep.subr.mxu0 0.0
        %3625 = vmatpush1.msra.mxu0 0.0
        %3626 = vmatprep.subr.mxu0 0.0
        %3627 = vmatpush1.msra.mxu0 0.0
        %3628 = vmatprep.subr.mxu0 0.0
        %3629 = vmatpush1.msra.mxu0 0.0
        %3630 = vmatprep.subr.mxu0 0.0
        %3631 = vmatpush1.msra.mxu0 0.0
        %3632 = vmatprep.subr.mxu0 0.0
        %3633 = vmatpush1.msra.mxu0 0.0
        %3634 = vmatprep.subr.mxu0 0.0
        %3635 = vmatpush1.msra.mxu0 0.0
        %3636 = vmatprep.mubr.f32.mxu0 0.0
        %v3637 = vand.u32 %v3351, 4294901760
        %v3638 = vsub.f32 %v3351, %v3637
        %3639 = vmatmul.mubr.f32.gmra.mrb[0].mxu0 %v3638
        %v3640 = vpop.f32.mrb[0].mxu0
        %v3641 = vadd.f32 %v3547, %v3640
        %v3642 = vpop.f32.mrb[0].mxu0
        %3643 = vmatprep.mubr.f32.mxu0 0.0
        %v3644 = vand.u32 %v3354, 4294901760
        %v3645 = vsub.f32 %v3354, %v3644
        %3646 = vmatmul.mubr.f32.gmra.mrb[0].mxu0 %v3645
        %v3647 = vpop.f32.mrb[0].mxu0
        %v3648 = vadd.f32 %v3553, %v3647
        %v3649 = vpop.f32.mrb[0].mxu0
        %3650 = vmatprep.mubr.f32.mxu0 0.0
        %v3651 = vand.u32 %v3357, 4294901760
        %v3652 = vsub.f32 %v3357, %v3651
        %3653 = vmatmul.mubr.f32.gmra.mrb[0].mxu0 %v3652
        %v3654 = vpop.f32.mrb[0].mxu0
        %v3655 = vadd.f32 %v3559, %v3654
        %v3656 = vpop.f32.mrb[0].mxu0
        %3657 = vmatprep.mubr.f32.mxu0 0.0
        %v3658 = vand.u32 %v3360, 4294901760
        %v3659 = vsub.f32 %v3360, %v3658
        %3660 = vmatmul.mubr.f32.gmra.mrb[0].mxu0 %v3659
        %v3661 = vpop.f32.mrb[0].mxu0
        %v3662 = vadd.f32 %v3565, %v3661
        %v3663 = vpop.f32.mrb[0].mxu0
        %3664 = vdwg.mxu0
        %3665 = vmatprep.subr.mxu0 0.0
        %v3666 = vand.u32 %v3310, 4294901760
        %3667 = vmatpush1.msra.mxu0 %v3666
        %3668 = vmatprep.subr.mxu0 0.0
        %v3669 = vand.u32 %v3311, 4294901760
        %3670 = vmatpush1.msra.mxu0 %v3669
        %3671 = vmatprep.subr.mxu0 0.0
        %3672 = vmatpush1.msra.mxu0 0.0
        %3673 = vmatprep.subr.mxu0 0.0
        %3674 = vmatpush1.msra.mxu0 0.0
        %3675 = vmatprep.subr.mxu0 0.0
        %3676 = vmatpush1.msra.mxu0 0.0
        %3677 = vmatprep.subr.mxu0 0.0
        %3678 = vmatpush1.msra.mxu0 0.0
        %3679 = vmatprep.subr.mxu0 0.0
        %3680 = vmatpush1.msra.mxu0 0.0
        %3681 = vmatprep.subr.mxu0 0.0
        %3682 = vmatpush1.msra.mxu0 0.0
        %3683 = vmatprep.subr.mxu0 0.0
        %3684 = vmatpush1.msra.mxu0 0.0
        %3685 = vmatprep.subr.mxu0 0.0
        %3686 = vmatpush1.msra.mxu0 0.0
        %3687 = vmatprep.subr.mxu0 0.0
        %3688 = vmatpush1.msra.mxu0 0.0
        %3689 = vmatprep.subr.mxu0 0.0
        %3690 = vmatpush1.msra.mxu0 0.0
        %3691 = vmatprep.subr.mxu0 0.0
        %3692 = vmatpush1.msra.mxu0 0.0
        %3693 = vmatprep.subr.mxu0 0.0
        %3694 = vmatpush1.msra.mxu0 0.0
        %3695 = vmatprep.subr.mxu0 0.0
        %3696 = vmatpush1.msra.mxu0 0.0
        %3697 = vmatprep.subr.mxu0 0.0
        %3698 = vmatpush1.msra.mxu0 0.0
        %3699 = vmatprep.subr.mxu0 0.0
        %3700 = vmatpush1.msra.mxu0 0.0
        %3701 = vmatprep.subr.mxu0 0.0
        %3702 = vmatpush1.msra.mxu0 0.0
        %3703 = vmatprep.subr.mxu0 0.0
        %3704 = vmatpush1.msra.mxu0 0.0
        %3705 = vmatprep.subr.mxu0 0.0
        %3706 = vmatpush1.msra.mxu0 0.0
        %3707 = vmatprep.subr.mxu0 0.0
        %3708 = vmatpush1.msra.mxu0 0.0
        %3709 = vmatprep.subr.mxu0 0.0
        %3710 = vmatpush1.msra.mxu0 0.0
        %3711 = vmatprep.subr.mxu0 0.0
        %3712 = vmatpush1.msra.mxu0 0.0
        %3713 = vmatprep.subr.mxu0 0.0
        %3714 = vmatpush1.msra.mxu0 0.0
        %3715 = vmatprep.subr.mxu0 0.0
        %3716 = vmatpush1.msra.mxu0 0.0
        %3717 = vmatprep.subr.mxu0 0.0
        %3718 = vmatpush1.msra.mxu0 0.0
        %3719 = vmatprep.subr.mxu0 0.0
        %3720 = vmatpush1.msra.mxu0 0.0
        %3721 = vmatprep.subr.mxu0 0.0
        %3722 = vmatpush1.msra.mxu0 0.0
        %3723 = vmatprep.subr.mxu0 0.0
        %3724 = vmatpush1.msra.mxu0 0.0
        %3725 = vmatprep.subr.mxu0 0.0
        %3726 = vmatpush1.msra.mxu0 0.0
        %3727 = vmatprep.subr.mxu0 0.0
        %3728 = vmatpush1.msra.mxu0 0.0
        %3729 = vmatprep.subr.mxu0 0.0
        %3730 = vmatpush1.msra.mxu0 0.0
        %3731 = vmatprep.mubr.f32.mxu0 0.0
        %v3732 = vand.u32 %v3351, 4294901760
        %v3733 = vsub.f32 %v3351, %v3732
        %v3734 = vand.u32 %v3733, 4294901760
        %3735 = vmatmul.mubr.f32.gmra.mrb[0].mxu0 %v3734
        %v3736 = vpop.f32.mrb[0].mxu0
        %v3737 = vadd.f32 %v3641, %v3736
        %v3738 = vpop.f32.mrb[0].mxu0
        %3739 = vmatprep.mubr.f32.mxu0 0.0
        %v3740 = vand.u32 %v3354, 4294901760
        %v3741 = vsub.f32 %v3354, %v3740
        %v3742 = vand.u32 %v3741, 4294901760
        %3743 = vmatmul.mubr.f32.gmra.mrb[0].mxu0 %v3742
        %v3744 = vpop.f32.mrb[0].mxu0
        %v3745 = vadd.f32 %v3648, %v3744
        %v3746 = vpop.f32.mrb[0].mxu0
        %3747 = vmatprep.mubr.f32.mxu0 0.0
        %v3748 = vand.u32 %v3357, 4294901760
        %v3749 = vsub.f32 %v3357, %v3748
        %v3750 = vand.u32 %v3749, 4294901760
        %3751 = vmatmul.mubr.f32.gmra.mrb[0].mxu0 %v3750
        %v3752 = vpop.f32.mrb[0].mxu0
        %v3753 = vadd.f32 %v3655, %v3752
        %v3754 = vpop.f32.mrb[0].mxu0
        %3755 = vmatprep.mubr.f32.mxu0 0.0
        %v3756 = vand.u32 %v3360, 4294901760
        %v3757 = vsub.f32 %v3360, %v3756
        %v3758 = vand.u32 %v3757, 4294901760
        %3759 = vmatmul.mubr.f32.gmra.mrb[0].mxu0 %v3758
        %v3760 = vpop.f32.mrb[0].mxu0
        %v3761 = vadd.f32 %v3662, %v3760
        %v3762 = vpop.f32.mrb[0].mxu0
        %3763 = vdwg.mxu0
        %3764 = vmatprep.subr.mxu0 0.0
        %v3765 = vand.u32 %v3310, 4294901760
        %v3766 = vsub.f32 %v3310, %v3765
        %v3767 = vand.u32 %v3766, 4294901760
        %3768 = vmatpush1.msra.mxu0 %v3767
        %3769 = vmatprep.subr.mxu0 0.0
        %v3770 = vand.u32 %v3311, 4294901760
        %v3771 = vsub.f32 %v3311, %v3770
        %v3772 = vand.u32 %v3771, 4294901760
        %3773 = vmatpush1.msra.mxu0 %v3772
        %3774 = vmatprep.subr.mxu0 0.0
        %3775 = vmatpush1.msra.mxu0 0.0
        %3776 = vmatprep.subr.mxu0 0.0
        %3777 = vmatpush1.msra.mxu0 0.0
        %3778 = vmatprep.subr.mxu0 0.0
        %3779 = vmatpush1.msra.mxu0 0.0
        %3780 = vmatprep.subr.mxu0 0.0
        %3781 = vmatpush1.msra.mxu0 0.0
        %3782 = vmatprep.subr.mxu0 0.0
        %3783 = vmatpush1.msra.mxu0 0.0
        %3784 = vmatprep.subr.mxu0 0.0
        %3785 = vmatpush1.msra.mxu0 0.0
        %3786 = vmatprep.subr.mxu0 0.0
        %3787 = vmatpush1.msra.mxu0 0.0
        %3788 = vmatprep.subr.mxu0 0.0
        %3789 = vmatpush1.msra.mxu0 0.0
        %3790 = vmatprep.subr.mxu0 0.0
        %3791 = vmatpush1.msra.mxu0 0.0
        %3792 = vmatprep.subr.mxu0 0.0
        %3793 = vmatpush1.msra.mxu0 0.0
        %3794 = vmatprep.subr.mxu0 0.0
        %3795 = vmatpush1.msra.mxu0 0.0
        %3796 = vmatprep.subr.mxu0 0.0
        %3797 = vmatpush1.msra.mxu0 0.0
        %3798 = vmatprep.subr.mxu0 0.0
        %3799 = vmatpush1.msra.mxu0 0.0
        %3800 = vmatprep.subr.mxu0 0.0
        %3801 = vmatpush1.msra.mxu0 0.0
        %3802 = vmatprep.subr.mxu0 0.0
        %3803 = vmatpush1.msra.mxu0 0.0
        %3804 = vmatprep.subr.mxu0 0.0
        %3805 = vmatpush1.msra.mxu0 0.0
        %3806 = vmatprep.subr.mxu0 0.0
        %3807 = vmatpush1.msra.mxu0 0.0
        %3808 = vmatprep.subr.mxu0 0.0
        %3809 = vmatpush1.msra.mxu0 0.0
        %3810 = vmatprep.subr.mxu0 0.0
        %3811 = vmatpush1.msra.mxu0 0.0
        %3812 = vmatprep.subr.mxu0 0.0
        %3813 = vmatpush1.msra.mxu0 0.0
        %3814 = vmatprep.subr.mxu0 0.0
        %3815 = vmatpush1.msra.mxu0 0.0
        %3816 = vmatprep.subr.mxu0 0.0
        %3817 = vmatpush1.msra.mxu0 0.0
        %3818 = vmatprep.subr.mxu0 0.0
        %3819 = vmatpush1.msra.mxu0 0.0
        %3820 = vmatprep.subr.mxu0 0.0
        %3821 = vmatpush1.msra.mxu0 0.0
        %3822 = vmatprep.subr.mxu0 0.0
        %3823 = vmatpush1.msra.mxu0 0.0
        %3824 = vmatprep.subr.mxu0 0.0
        %3825 = vmatpush1.msra.mxu0 0.0
        %3826 = vmatprep.subr.mxu0 0.0
        %3827 = vmatpush1.msra.mxu0 0.0
        %3828 = vmatprep.subr.mxu0 0.0
        %3829 = vmatpush1.msra.mxu0 0.0
        %3830 = vmatprep.subr.mxu0 0.0
        %3831 = vmatpush1.msra.mxu0 0.0
        %3832 = vmatprep.subr.mxu0 0.0
        %3833 = vmatpush1.msra.mxu0 0.0
        %3834 = vmatprep.mubr.f32.mxu0 0.0
        %v3835 = vand.u32 %v3351, 4294901760
        %3836 = vmatmul.mubr.f32.gmra.mrb[0].mxu0 %v3835
        %v3837 = vpop.f32.mrb[0].mxu0
        %v3838 = vadd.f32 %v3737, %v3837
        %v3839 = vpop.f32.mrb[0].mxu0
        %3840 = vmatprep.mubr.f32.mxu0 0.0
        %v3841 = vand.u32 %v3354, 4294901760
        %3842 = vmatmul.mubr.f32.gmra.mrb[0].mxu0 %v3841
        %v3843 = vpop.f32.mrb[0].mxu0
        %v3844 = vadd.f32 %v3745, %v3843
        %v3845 = vpop.f32.mrb[0].mxu0
        %3846 = vmatprep.mubr.f32.mxu0 0.0
        %v3847 = vand.u32 %v3357, 4294901760
        %3848 = vmatmul.mubr.f32.gmra.mrb[0].mxu0 %v3847
        %v3849 = vpop.f32.mrb[0].mxu0
        %v3850 = vadd.f32 %v3753, %v3849
        %v3851 = vpop.f32.mrb[0].mxu0
        %3852 = vmatprep.mubr.f32.mxu0 0.0
        %v3853 = vand.u32 %v3360, 4294901760
        %3854 = vmatmul.mubr.f32.gmra.mrb[0].mxu0 %v3853
        %v3855 = vpop.f32.mrb[0].mxu0
        %v3856 = vadd.f32 %v3761, %v3855
        %v3857 = vpop.f32.mrb[0].mxu0
        %3858 = vdwg.mxu0
        %3859 = vmatprep.subr.mxu0 0.0
        %v3860 = vand.u32 %v3310, 4294901760
        %3861 = vmatpush1.msra.mxu0 %v3860
        %3862 = vmatprep.subr.mxu0 0.0
        %v3863 = vand.u32 %v3311, 4294901760
        %3864 = vmatpush1.msra.mxu0 %v3863
        %3865 = vmatprep.subr.mxu0 0.0
        %3866 = vmatpush1.msra.mxu0 0.0
        %3867 = vmatprep.subr.mxu0 0.0
        %3868 = vmatpush1.msra.mxu0 0.0
        %3869 = vmatprep.subr.mxu0 0.0
        %3870 = vmatpush1.msra.mxu0 0.0
        %3871 = vmatprep.subr.mxu0 0.0
        %3872 = vmatpush1.msra.mxu0 0.0
        %3873 = vmatprep.subr.mxu0 0.0
        %3874 = vmatpush1.msra.mxu0 0.0
        %3875 = vmatprep.subr.mxu0 0.0
        %3876 = vmatpush1.msra.mxu0 0.0
        %3877 = vmatprep.subr.mxu0 0.0
        %3878 = vmatpush1.msra.mxu0 0.0
        %3879 = vmatprep.subr.mxu0 0.0
        %3880 = vmatpush1.msra.mxu0 0.0
        %3881 = vmatprep.subr.mxu0 0.0
        %3882 = vmatpush1.msra.mxu0 0.0
        %3883 = vmatprep.subr.mxu0 0.0
        %3884 = vmatpush1.msra.mxu0 0.0
        %3885 = vmatprep.subr.mxu0 0.0
        %3886 = vmatpush1.msra.mxu0 0.0
        %3887 = vmatprep.subr.mxu0 0.0
        %3888 = vmatpush1.msra.mxu0 0.0
        %3889 = vmatprep.subr.mxu0 0.0
        %3890 = vmatpush1.msra.mxu0 0.0
        %3891 = vmatprep.subr.mxu0 0.0
        %3892 = vmatpush1.msra.mxu0 0.0
        %3893 = vmatprep.subr.mxu0 0.0
        %3894 = vmatpush1.msra.mxu0 0.0
        %3895 = vmatprep.subr.mxu0 0.0
        %3896 = vmatpush1.msra.mxu0 0.0
        %3897 = vmatprep.subr.mxu0 0.0
        %3898 = vmatpush1.msra.mxu0 0.0
        %3899 = vmatprep.subr.mxu0 0.0
        %3900 = vmatpush1.msra.mxu0 0.0
        %3901 = vmatprep.subr.mxu0 0.0
        %3902 = vmatpush1.msra.mxu0 0.0
        %3903 = vmatprep.subr.mxu0 0.0
        %3904 = vmatpush1.msra.mxu0 0.0
        %3905 = vmatprep.subr.mxu0 0.0
        %3906 = vmatpush1.msra.mxu0 0.0
        %3907 = vmatprep.subr.mxu0 0.0
        %3908 = vmatpush1.msra.mxu0 0.0
        %3909 = vmatprep.subr.mxu0 0.0
        %3910 = vmatpush1.msra.mxu0 0.0
        %3911 = vmatprep.subr.mxu0 0.0
        %3912 = vmatpush1.msra.mxu0 0.0
        %3913 = vmatprep.subr.mxu0 0.0
        %3914 = vmatpush1.msra.mxu0 0.0
        %3915 = vmatprep.subr.mxu0 0.0
        %3916 = vmatpush1.msra.mxu0 0.0
        %3917 = vmatprep.subr.mxu0 0.0
        %3918 = vmatpush1.msra.mxu0 0.0
        %3919 = vmatprep.subr.mxu0 0.0
        %3920 = vmatpush1.msra.mxu0 0.0
        %3921 = vmatprep.subr.mxu0 0.0
        %3922 = vmatpush1.msra.mxu0 0.0
        %3923 = vmatprep.subr.mxu0 0.0
        %3924 = vmatpush1.msra.mxu0 0.0
        %3925 = vmatprep.mubr.f32.mxu0 0.0
        %v3926 = vand.u32 %v3351, 4294901760
        %3927 = vmatmul.mubr.f32.gmra.mrb[0].mxu0 %v3926
        %v3928 = vpop.f32.mrb[0].mxu0
        %v3929 = vadd.f32 %v3838, %v3928
        %v3930 = vpop.f32.mrb[0].mxu0
        %3931 = vmatprep.mubr.f32.mxu0 0.0
        %v3932 = vand.u32 %v3354, 4294901760
        %3933 = vmatmul.mubr.f32.gmra.mrb[0].mxu0 %v3932
        %v3934 = vpop.f32.mrb[0].mxu0
        %v3935 = vadd.f32 %v3844, %v3934
        %v3936 = vpop.f32.mrb[0].mxu0
        %3937 = vmatprep.mubr.f32.mxu0 0.0
        %v3938 = vand.u32 %v3357, 4294901760
        %3939 = vmatmul.mubr.f32.gmra.mrb[0].mxu0 %v3938
        %v3940 = vpop.f32.mrb[0].mxu0
        %v3941 = vadd.f32 %v3850, %v3940
        %v3942 = vpop.f32.mrb[0].mxu0
        %3943 = vmatprep.mubr.f32.mxu0 0.0
        %v3944 = vand.u32 %v3360, 4294901760
        %3945 = vmatmul.mubr.f32.gmra.mrb[0].mxu0 %v3944
        %v3946 = vpop.f32.mrb[0].mxu0
        %v3947 = vadd.f32 %v3856, %v3946
        %v3948 = vpop.f32.mrb[0].mxu0
        %3949 = vdwg.mxu0
        %vm3950 = vcmp.gt.f32.partialorder %v3929, 0.0
        %vm3951 = vcmp.gt.f32.partialorder %v3935, 0.0
        %vm3952 = vcmp.gt.f32.partialorder %v3941, 0.0
        %vm3953 = vcmp.gt.f32.partialorder %v3947, 0.0
        %v3954 = vstv %s3328
        %v3955 = vmul.f32 %v3954, %v3929
        %v3956 = vmul.f32 %v3954, %v3935
        %v3957 = vmul.f32 %v3954, %v3941
        %v3958 = vmul.f32 %v3954, %v3947
        %v3959 = vsel %vm3950, %v3929, %v3955
        %v3960 = vsel %vm3951, %v3935, %v3956
        %v3961 = vsel %vm3952, %v3941, %v3957
        %v3962 = vsel %vm3953, %v3947, %v3958
        %3963 = vadd.xlane.f32.xlu0 %v3959
        %v3964 = vpop.xlane.xlu0 %3963
        %3965 = vadd.xlane.f32.xlu0 %v3960
        %v3966 = vpop.xlane.xlu0 %3965
        %3967 = vadd.xlane.f32.xlu0 %v3961
        %v3968 = vpop.xlane.xlu0 %3967
        %3969 = vadd.xlane.f32.xlu0 %v3962
        %v3970 = vpop.xlane.xlu0 %3969
        %v3971 = vmul.f32 %v3959, %v3959
        %v3972 = vmul.f32 %v3960, %v3960
        %v3973 = vmul.f32 %v3961, %v3961
        %v3974 = vmul.f32 %v3962, %v3962
        %3975 = vadd.xlane.f32.xlu0 %v3971
        %v3976 = vpop.xlane.xlu0 %3975
        %3977 = vadd.xlane.f32.xlu0 %v3972
        %v3978 = vpop.xlane.xlu0 %3977
        %3979 = vadd.xlane.f32.xlu0 %v3973
        %v3980 = vpop.xlane.xlu0 %3979
        %3981 = vadd.xlane.f32.xlu0 %v3974
        %v3982 = vpop.xlane.xlu0 %3981
        %v3983 = vadd.f32 %v3964, %v3966
        %v3984 = vadd.f32 %v3983, %v3968
        %v3985 = vadd.f32 %v3984, %v3970
        %v3986 = vrot.slane %v3985, 4
        %v3987 = vadd.f32 %v3985, %v3986
        %v3988 = vrot.slane %v3987, 2
        %v3989 = vadd.f32 %v3987, %v3988
        %v3990 = vrot.slane %v3989, 1
        %v3991 = vadd.f32 %v3989, %v3990
        %v3992 = vmul.f32 %v3991, 0.00024414063
        %v3993 = vadd.f32 %v3976, %v3978
        %v3994 = vadd.f32 %v3993, %v3980
        %v3995 = vadd.f32 %v3994, %v3982
        %v3996 = vrot.slane %v3995, 4
        %v3997 = vadd.f32 %v3995, %v3996
        %v3998 = vrot.slane %v3997, 2
        %v3999 = vadd.f32 %v3997, %v3998
        %v4000 = vrot.slane %v3999, 1
        %v4001 = vadd.f32 %v3999, %v4000
        %v4002 = vmul.f32 %v4001, 0.00024414063
        %v4003 = vmul.f32 %v3992, %v3992
        %v4004 = vsub.f32 %v4002, %v4003
        %v4005 = vsub.f32 %v3959, %v3992
        %v4006 = vsub.f32 %v3960, %v3992
        %v4007 = vsub.f32 %v3961, %v3992
        %v4008 = vsub.f32 %v3962, %v3992
        %v4009 = vadd.f32 %v4004, 1e-05
        %v4010 = vrsqrt.pop %v4009
        %v4011 = vmul.f32 %v4005, %v4010
        %v4012 = vmul.f32 %v4006, %v4010
        %v4013 = vmul.f32 %v4007, %v4010
        %v4014 = vmul.f32 %v4008, %v4010
        %4015 = vset.pattern.permute.xlu0 1
        %4016 = vperm.xlu0 %4015, %v3321
        %v4017 = vpop.permute.xlu0 %4016
        %4019 = vset.pattern.permute.xlu0 1
        %4020 = vperm.xlu0 %4019, %v3322
        %v4021 = vpop.permute.xlu0 %4020
        %4023 = vset.pattern.permute.xlu0 1
        %4024 = vperm.xlu0 %4023, %v3323
        %v4025 = vpop.permute.xlu0 %4024
        %4027 = vset.pattern.permute.xlu0 1
        %4028 = vperm.xlu0 %4027, %v3324
        %v4029 = vpop.permute.xlu0 %4028
        %v4031 = vmul.f32 %v4017, %v4011
        %v4032 = vmul.f32 %v4021, %v4012
        %v4033 = vmul.f32 %v4025, %v4013
        %v4034 = vmul.f32 %v4029, %v4014
        %4035 = vset.pattern.permute.xlu0 2
        %4036 = vperm.xlu0 %4035, %v3321
        %v4037 = vpop.permute.xlu0 %4036
        %4039 = vset.pattern.permute.xlu0 2
        %4040 = vperm.xlu0 %4039, %v3322
        %v4041 = vpop.permute.xlu0 %4040
        %4043 = vset.pattern.permute.xlu0 2
        %4044 = vperm.xlu0 %4043, %v3323
        %v4045 = vpop.permute.xlu0 %4044
        %4047 = vset.pattern.permute.xlu0 2
        %4048 = vperm.xlu0 %4047, %v3324
        %v4049 = vpop.permute.xlu0 %4048
        %v4051 = vadd.f32 %v4031, %v4037
        %v4052 = vadd.f32 %v4032, %v4041
        %v4053 = vadd.f32 %v4033, %v4045
        %v4054 = vadd.f32 %v4034, %v4049
        %4059 = vrot.lane.b32.xlu0 %v4051, 1
        %v4060 = vpop.permute.xlu0 %4059
        %4061 = vrot.lane.b32.xlu0 %v4052, 1
        %v4062 = vpop.permute.xlu0 %4061
        %4063 = vrot.lane.b32.xlu0 %v4053, 1
        %v4064 = vpop.permute.xlu0 %4063
        %4065 = vrot.lane.b32.xlu0 %v4054, 1
        %v4066 = vpop.permute.xlu0 %4065
        %v4071 = vsel %vm1022, 0.0, %v4060
        %v4072 = vsel %vm1022, 0.0, %v4062
        %v4073 = vsel %vm1022, 0.0, %v4064
        %v4074 = vsel %vm1022, 0.0, %v4066
        %4075 = vset.pattern.permute.xlu0 6
        %4076 = vperm.xlu0 %4075, %v3321
        %v4077 = vpop.permute.xlu0 %4076
        %4079 = vset.pattern.permute.xlu0 6
        %4080 = vperm.xlu0 %4079, %v3322
        %v4081 = vpop.permute.xlu0 %4080
        %4083 = vset.pattern.permute.xlu0 6
        %4084 = vperm.xlu0 %4083, %v3323
        %v4085 = vpop.permute.xlu0 %4084
        %4087 = vset.pattern.permute.xlu0 6
        %4088 = vperm.xlu0 %4087, %v3324
        %v4089 = vpop.permute.xlu0 %4088
        %v4091 = vmul.f32 %v4077, %v4071
        %v4092 = vmul.f32 %v4081, %v4072
        %v4093 = vmul.f32 %v4085, %v4073
        %v4094 = vmul.f32 %v4089, %v4074
        %v4095 = vadd.f32 %v4091, 0.0
        %v4096 = vadd.f32 %v4092, 0.0
        %v4097 = vadd.f32 %v4093, 0.0
        %v4098 = vadd.f32 %v4094, 0.0
        %4099 = vset.pattern.permute.xlu0 7
        %4100 = vperm.xlu0 %4099, %v3321
        %v4101 = vpop.permute.xlu0 %4100
        %4103 = vset.pattern.permute.xlu0 7
        %4104 = vperm.xlu0 %4103, %v3322
        %v4105 = vpop.permute.xlu0 %4104
        %4107 = vset.pattern.permute.xlu0 7
        %4108 = vperm.xlu0 %4107, %v3323
        %v4109 = vpop.permute.xlu0 %4108
        %4111 = vset.pattern.permute.xlu0 7
        %4112 = vperm.xlu0 %4111, %v3324
        %v4113 = vpop.permute.xlu0 %4112
        %v4115 = vmul.f32 %v4101, %v4051
        %v4116 = vmul.f32 %v4105, %v4052
        %v4117 = vmul.f32 %v4109, %v4053
        %v4118 = vmul.f32 %v4113, %v4054
        %v4119 = vadd.f32 %v4095, %v4115
        %v4120 = vadd.f32 %v4096, %v4116
        %v4121 = vadd.f32 %v4097, %v4117
        %v4122 = vadd.f32 %v4098, %v4118
        %4123 = vrot.lane.b32.xlu0 %v4051, 127
        %v4124 = vpop.permute.xlu0 %4123
        %4125 = vrot.lane.b32.xlu0 %v4052, 127
        %v4126 = vpop.permute.xlu0 %4125
        %4127 = vrot.lane.b32.xlu0 %v4053, 127
        %v4128 = vpop.permute.xlu0 %4127
        %4129 = vrot.lane.b32.xlu0 %v4054, 127
        %v4130 = vpop.permute.xlu0 %4129
        %v4135 = vsel %vm1087, %v4124, 0.0
        %v4136 = vsel %vm1087, %v4126, 0.0
        %v4137 = vsel %vm1087, %v4128, 0.0
        %v4138 = vsel %vm1087, %v4130, 0.0
        %4139 = vset.pattern.permute.xlu0 8
        %4140 = vperm.xlu0 %4139, %v3321
        %v4141 = vpop.permute.xlu0 %4140
        %4143 = vset.pattern.permute.xlu0 8
        %4144 = vperm.xlu0 %4143, %v3322
        %v4145 = vpop.permute.xlu0 %4144
        %4147 = vset.pattern.permute.xlu0 8
        %4148 = vperm.xlu0 %4147, %v3323
        %v4149 = vpop.permute.xlu0 %4148
        %4151 = vset.pattern.permute.xlu0 8
        %4152 = vperm.xlu0 %4151, %v3324
        %v4153 = vpop.permute.xlu0 %4152
        %v4155 = vmul.f32 %v4141, %v4135
        %v4156 = vmul.f32 %v4145, %v4136
        %v4157 = vmul.f32 %v4149, %v4137
        %v4158 = vmul.f32 %v4153, %v4138
        %v4159 = vadd.f32 %v4119, %v4155
        %v4160 = vadd.f32 %v4120, %v4156
        %v4161 = vadd.f32 %v4121, %v4157
        %v4162 = vadd.f32 %v4122, %v4158
        %4163 = vset.pattern.permute.xlu0 3
        %4164 = vperm.xlu0 %4163, %v3321
        %v4165 = vpop.permute.xlu0 %4164
        %4167 = vset.pattern.permute.xlu0 3
        %4168 = vperm.xlu0 %4167, %v3322
        %v4169 = vpop.permute.xlu0 %4168
        %4171 = vset.pattern.permute.xlu0 3
        %4172 = vperm.xlu0 %4171, %v3323
        %v4173 = vpop.permute.xlu0 %4172
        %4175 = vset.pattern.permute.xlu0 3
        %4176 = vperm.xlu0 %4175, %v3324
        %v4177 = vpop.permute.xlu0 %4176
        %v4179 = vadd.f32 %v4159, %v4165
        %v4180 = vadd.f32 %v4160, %v4169
        %v4181 = vadd.f32 %v4161, %v4173
        %v4182 = vadd.f32 %v4162, %v4177
        %4183 = vadd.xlane.f32.xlu0 %v4179
        %v4184 = vpop.xlane.xlu0 %4183
        %4185 = vadd.xlane.f32.xlu0 %v4180
        %v4186 = vpop.xlane.xlu0 %4185
        %4187 = vadd.xlane.f32.xlu0 %v4181
        %v4188 = vpop.xlane.xlu0 %4187
        %4189 = vadd.xlane.f32.xlu0 %v4182
        %v4190 = vpop.xlane.xlu0 %4189
        %v4191 = vmul.f32 %v4179, %v4179
        %v4192 = vmul.f32 %v4180, %v4180
        %v4193 = vmul.f32 %v4181, %v4181
        %v4194 = vmul.f32 %v4182, %v4182
        %4195 = vadd.xlane.f32.xlu0 %v4191
        %v4196 = vpop.xlane.xlu0 %4195
        %4197 = vadd.xlane.f32.xlu0 %v4192
        %v4198 = vpop.xlane.xlu0 %4197
        %4199 = vadd.xlane.f32.xlu0 %v4193
        %v4200 = vpop.xlane.xlu0 %4199
        %4201 = vadd.xlane.f32.xlu0 %v4194
        %v4202 = vpop.xlane.xlu0 %4201
        %v4203 = vadd.f32 %v4184, %v4186
        %v4204 = vadd.f32 %v4203, %v4188
        %v4205 = vadd.f32 %v4204, %v4190
        %v4206 = vrot.slane %v4205, 4
        %v4207 = vadd.f32 %v4205, %v4206
        %v4208 = vrot.slane %v4207, 2
        %v4209 = vadd.f32 %v4207, %v4208
        %v4210 = vrot.slane %v4209, 1
        %v4211 = vadd.f32 %v4209, %v4210
        %v4212 = vmul.f32 %v4211, 0.00024414063
        %v4213 = vadd.f32 %v4196, %v4198
        %v4214 = vadd.f32 %v4213, %v4200
        %v4215 = vadd.f32 %v4214, %v4202
        %v4216 = vrot.slane %v4215, 4
        %v4217 = vadd.f32 %v4215, %v4216
        %v4218 = vrot.slane %v4217, 2
        %v4219 = vadd.f32 %v4217, %v4218
        %v4220 = vrot.slane %v4219, 1
        %v4221 = vadd.f32 %v4219, %v4220
        %v4222 = vmul.f32 %v4221, 0.00024414063
        %v4223 = vmul.f32 %v4212, %v4212
        %v4224 = vsub.f32 %v4222, %v4223
        %v4225 = vsub.f32 %v4179, %v4212
        %v4226 = vsub.f32 %v4180, %v4212
        %v4227 = vsub.f32 %v4181, %v4212
        %v4228 = vsub.f32 %v4182, %v4212
        %v4229 = vadd.f32 %v4224, 1e-05
        %v4230 = vrsqrt.pop %v4229
        %v4231 = vmul.f32 %v4225, %v4230
        %v4232 = vmul.f32 %v4226, %v4230
        %v4233 = vmul.f32 %v4227, %v4230
        %v4234 = vmul.f32 %v4228, %v4230
        %4235 = vset.pattern.permute.xlu0 4
        %4236 = vperm.xlu0 %4235, %v3321
        %v4237 = vpop.permute.xlu0 %4236
        %4239 = vset.pattern.permute.xlu0 4
        %4240 = vperm.xlu0 %4239, %v3322
        %v4241 = vpop.permute.xlu0 %4240
        %4243 = vset.pattern.permute.xlu0 4
        %4244 = vperm.xlu0 %4243, %v3323
        %v4245 = vpop.permute.xlu0 %4244
        %4247 = vset.pattern.permute.xlu0 4
        %4248 = vperm.xlu0 %4247, %v3324
        %v4249 = vpop.permute.xlu0 %4248
        %v4251 = vmul.f32 %v4237, %v4231
        %v4252 = vmul.f32 %v4241, %v4232
        %v4253 = vmul.f32 %v4245, %v4233
        %v4254 = vmul.f32 %v4249, %v4234
        %4255 = vset.pattern.permute.xlu0 5
        %4256 = vperm.xlu0 %4255, %v3321
        %v4257 = vpop.permute.xlu0 %4256
        %4259 = vset.pattern.permute.xlu0 5
        %4260 = vperm.xlu0 %4259, %v3322
        %v4261 = vpop.permute.xlu0 %4260
        %4263 = vset.pattern.permute.xlu0 5
        %4264 = vperm.xlu0 %4263, %v3323
        %v4265 = vpop.permute.xlu0 %4264
        %4267 = vset.pattern.permute.xlu0 5
        %4268 = vperm.xlu0 %4267, %v3324
        %v4269 = vpop.permute.xlu0 %4268
        %v4271 = vadd.f32 %v4251, %v4257
        %v4272 = vadd.f32 %v4252, %v4261
        %v4273 = vadd.f32 %v4253, %v4265
        %v4274 = vadd.f32 %v4254, %v4269
        %vm4275 = vcmp.gt.f32.partialorder %v4271, 0.0
        %vm4276 = vcmp.gt.f32.partialorder %v4272, 0.0
        %vm4277 = vcmp.gt.f32.partialorder %v4273, 0.0
        %vm4278 = vcmp.gt.f32.partialorder %v4274, 0.0
        %v4279 = vstv %s3329
        %v4280 = vmul.f32 %v4279, %v4271
        %v4281 = vmul.f32 %v4279, %v4272
        %v4282 = vmul.f32 %v4279, %v4273
        %v4283 = vmul.f32 %v4279, %v4274
        %v4284 = vsel %vm4275, %v4271, %v4280
        %v4285 = vsel %vm4276, %v4272, %v4281
        %v4286 = vsel %vm4277, %v4273, %v4282
        %v4287 = vsel %vm4278, %v4274, %v4283
        %4289 = vset.pattern.permute.xlu0 0
        %4290 = vperm.xlu0 %4289, %v3326
        %v4291 = vpop.permute.xlu0 %4290
        %4294 = vset.pattern.permute.xlu0 0
        %4295 = vperm.xlu0 %4294, %v3327
        %v4296 = vpop.permute.xlu0 %4295
        %v4299 = vsel %vm1251, %v3318, 0
        %v4302 = vsel %vm1251, %v3319, 0
        %4304 = vmatprep.subr.mxu0 0.0
        %v4305 = vand.u32 %v4284, 4294901760
        %4306 = vmatpush1.msra.mxu0 %v4305
        %4307 = vmatprep.subr.mxu0 0.0
        %v4308 = vand.u32 %v4285, 4294901760
        %4309 = vmatpush1.msra.mxu0 %v4308
        %4310 = vmatprep.subr.mxu0 0.0
        %v4311 = vand.u32 %v4286, 4294901760
        %4312 = vmatpush1.msra.mxu0 %v4311
        %4313 = vmatprep.subr.mxu0 0.0
        %v4314 = vand.u32 %v4287, 4294901760
        %4315 = vmatpush1.msra.mxu0 %v4314
        %4316 = vmatprep.subr.mxu0 0.0
        %4317 = vmatpush1.msra.mxu0 0.0
        %4318 = vmatprep.subr.mxu0 0.0
        %4319 = vmatpush1.msra.mxu0 0.0
        %4320 = vmatprep.subr.mxu0 0.0
        %4321 = vmatpush1.msra.mxu0 0.0
        %4322 = vmatprep.subr.mxu0 0.0
        %4323 = vmatpush1.msra.mxu0 0.0
        %4324 = vmatprep.subr.mxu0 0.0
        %4325 = vmatpush1.msra.mxu0 0.0
        %4326 = vmatprep.subr.mxu0 0.0
        %4327 = vmatpush1.msra.mxu0 0.0
        %4328 = vmatprep.subr.mxu0 0.0
        %4329 = vmatpush1.msra.mxu0 0.0
        %4330 = vmatprep.subr.mxu0 0.0
        %4331 = vmatpush1.msra.mxu0 0.0
        %4332 = vmatprep.subr.mxu0 0.0
        %4333 = vmatpush1.msra.mxu0 0.0
        %4334 = vmatprep.subr.mxu0 0.0
        %4335 = vmatpush1.msra.mxu0 0.0
        %4336 = vmatprep.subr.mxu0 0.0
        %4337 = vmatpush1.msra.mxu0 0.0
        %4338 = vmatprep.subr.mxu0 0.0
        %4339 = vmatpush1.msra.mxu0 0.0
        %4340 = vmatprep.subr.mxu0 0.0
        %4341 = vmatpush1.msra.mxu0 0.0
        %4342 = vmatprep.subr.mxu0 0.0
        %4343 = vmatpush1.msra.mxu0 0.0
        %4344 = vmatprep.subr.mxu0 0.0
        %4345 = vmatpush1.msra.mxu0 0.0
        %4346 = vmatprep.subr.mxu0 0.0
        %4347 = vmatpush1.msra.mxu0 0.0
        %4348 = vmatprep.subr.mxu0 0.0
        %4349 = vmatpush1.msra.mxu0 0.0
        %4350 = vmatprep.subr.mxu0 0.0
        %4351 = vmatpush1.msra.mxu0 0.0
        %4352 = vmatprep.subr.mxu0 0.0
        %4353 = vmatpush1.msra.mxu0 0.0
        %4354 = vmatprep.subr.mxu0 0.0
        %4355 = vmatpush1.msra.mxu0 0.0
        %4356 = vmatprep.subr.mxu0 0.0
        %4357 = vmatpush1.msra.mxu0 0.0
        %4358 = vmatprep.subr.mxu0 0.0
        %4359 = vmatpush1.msra.mxu0 0.0
        %4360 = vmatprep.subr.mxu0 0.0
        %4361 = vmatpush1.msra.mxu0 0.0
        %4362 = vmatprep.subr.mxu0 0.0
        %4363 = vmatpush1.msra.mxu0 0.0
        %4364 = vmatprep.subr.mxu0 0.0
        %4365 = vmatpush1.msra.mxu0 0.0
        %4366 = vmatprep.subr.mxu0 0.0
        %4367 = vmatpush1.msra.mxu0 0.0
        %4368 = vmatprep.subr.mxu0 0.0
        %4369 = vmatpush1.msra.mxu0 0.0
        %4370 = vmatprep.subr.mxu0 0.0
        %4371 = vmatpush1.msra.mxu0 0.0
        %4372 = vmatprep.mubr.f32.mxu0 0.0
        %v4373 = vand.u32 %v4299, 4294901760
        %v4374 = vsub.f32 %v4299, %v4373
        %v4375 = vand.u32 %v4374, 4294901760
        %v4376 = vsub.f32 %v4374, %v4375
        %v4377 = vand.u32 %v4376, 4294901760
        %4378 = vmatmul.mubr.f32.gmra.mrb[0].mxu0 %v4377
        %v4379 = vpop.f32.mrb[0].mxu0
        %v4380 = vadd.f32 %v4291, %v4379
        %v4381 = vpop.f32.mrb[0].mxu0
        %4382 = vmatprep.mubr.f32.mxu0 0.0
        %v4383 = vand.u32 %v4302, 4294901760
        %v4384 = vsub.f32 %v4302, %v4383
        %v4385 = vand.u32 %v4384, 4294901760
        %v4386 = vsub.f32 %v4384, %v4385
        %v4387 = vand.u32 %v4386, 4294901760
        %4388 = vmatmul.mubr.f32.gmra.mrb[0].mxu0 %v4387
        %v4389 = vpop.f32.mrb[0].mxu0
        %v4390 = vadd.f32 %v4296, %v4389
        %v4391 = vpop.f32.mrb[0].mxu0
        %4392 = vdwg.mxu0
        %4393 = vmatprep.subr.mxu0 0.0
        %v4394 = vand.u32 %v4284, 4294901760
        %v4395 = vsub.f32 %v4284, %v4394
        %v4396 = vand.u32 %v4395, 4294901760
        %v4397 = vsub.f32 %v4395, %v4396
        %v4398 = vand.u32 %v4397, 4294901760
        %4399 = vmatpush1.msra.mxu0 %v4398
        %4400 = vmatprep.subr.mxu0 0.0
        %v4401 = vand.u32 %v4285, 4294901760
        %v4402 = vsub.f32 %v4285, %v4401
        %v4403 = vand.u32 %v4402, 4294901760
        %v4404 = vsub.f32 %v4402, %v4403
        %v4405 = vand.u32 %v4404, 4294901760
        %4406 = vmatpush1.msra.mxu0 %v4405
        %4407 = vmatprep.subr.mxu0 0.0
        %v4408 = vand.u32 %v4286, 4294901760
        %v4409 = vsub.f32 %v4286, %v4408
        %v4410 = vand.u32 %v4409, 4294901760
        %v4411 = vsub.f32 %v4409, %v4410
        %v4412 = vand.u32 %v4411, 4294901760
        %4413 = vmatpush1.msra.mxu0 %v4412
        %4414 = vmatprep.subr.mxu0 0.0
        %v4415 = vand.u32 %v4287, 4294901760
        %v4416 = vsub.f32 %v4287, %v4415
        %v4417 = vand.u32 %v4416, 4294901760
        %v4418 = vsub.f32 %v4416, %v4417
        %v4419 = vand.u32 %v4418, 4294901760
        %4420 = vmatpush1.msra.mxu0 %v4419
        %4421 = vmatprep.subr.mxu0 0.0
        %4422 = vmatpush1.msra.mxu0 0.0
        %4423 = vmatprep.subr.mxu0 0.0
        %4424 = vmatpush1.msra.mxu0 0.0
        %4425 = vmatprep.subr.mxu0 0.0
        %4426 = vmatpush1.msra.mxu0 0.0
        %4427 = vmatprep.subr.mxu0 0.0
        %4428 = vmatpush1.msra.mxu0 0.0
        %4429 = vmatprep.subr.mxu0 0.0
        %4430 = vmatpush1.msra.mxu0 0.0
        %4431 = vmatprep.subr.mxu0 0.0
        %4432 = vmatpush1.msra.mxu0 0.0
        %4433 = vmatprep.subr.mxu0 0.0
        %4434 = vmatpush1.msra.mxu0 0.0
        %4435 = vmatprep.subr.mxu0 0.0
        %4436 = vmatpush1.msra.mxu0 0.0
        %4437 = vmatprep.subr.mxu0 0.0
        %4438 = vmatpush1.msra.mxu0 0.0
        %4439 = vmatprep.subr.mxu0 0.0
        %4440 = vmatpush1.msra.mxu0 0.0
        %4441 = vmatprep.subr.mxu0 0.0
        %4442 = vmatpush1.msra.mxu0 0.0
        %4443 = vmatprep.subr.mxu0 0.0
        %4444 = vmatpush1.msra.mxu0 0.0
        %4445 = vmatprep.subr.mxu0 0.0
        %4446 = vmatpush1.msra.mxu0 0.0
        %4447 = vmatprep.subr.mxu0 0.0
        %4448 = vmatpush1.msra.mxu0 0.0
        %4449 = vmatprep.subr.mxu0 0.0
        %4450 = vmatpush1.msra.mxu0 0.0
        %4451 = vmatprep.subr.mxu0 0.0
        %4452 = vmatpush1.msra.mxu0 0.0
        %4453 = vmatprep.subr.mxu0 0.0
        %4454 = vmatpush1.msra.mxu0 0.0
        %4455 = vmatprep.subr.mxu0 0.0
        %4456 = vmatpush1.msra.mxu0 0.0
        %4457 = vmatprep.subr.mxu0 0.0
        %4458 = vmatpush1.msra.mxu0 0.0
        %4459 = vmatprep.subr.mxu0 0.0
        %4460 = vmatpush1.msra.mxu0 0.0
        %4461 = vmatprep.subr.mxu0 0.0
        %4462 = vmatpush1.msra.mxu0 0.0
        %4463 = vmatprep.subr.mxu0 0.0
        %4464 = vmatpush1.msra.mxu0 0.0
        %4465 = vmatprep.subr.mxu0 0.0
        %4466 = vmatpush1.msra.mxu0 0.0
        %4467 = vmatprep.subr.mxu0 0.0
        %4468 = vmatpush1.msra.mxu0 0.0
        %4469 = vmatprep.subr.mxu0 0.0
        %4470 = vmatpush1.msra.mxu0 0.0
        %4471 = vmatprep.subr.mxu0 0.0
        %4472 = vmatpush1.msra.mxu0 0.0
        %4473 = vmatprep.subr.mxu0 0.0
        %4474 = vmatpush1.msra.mxu0 0.0
        %4475 = vmatprep.subr.mxu0 0.0
        %4476 = vmatpush1.msra.mxu0 0.0
        %4477 = vmatprep.mubr.f32.mxu0 0.0
        %v4478 = vand.u32 %v4299, 4294901760
        %4479 = vmatmul.mubr.f32.gmra.mrb[0].mxu0 %v4478
        %v4480 = vpop.f32.mrb[0].mxu0
        %v4481 = vadd.f32 %v4380, %v4480
        %v4482 = vpop.f32.mrb[0].mxu0
        %4483 = vmatprep.mubr.f32.mxu0 0.0
        %v4484 = vand.u32 %v4302, 4294901760
        %4485 = vmatmul.mubr.f32.gmra.mrb[0].mxu0 %v4484
        %v4486 = vpop.f32.mrb[0].mxu0
        %v4487 = vadd.f32 %v4390, %v4486
        %v4488 = vpop.f32.mrb[0].mxu0
        %4489 = vdwg.mxu0
        %4490 = vmatprep.subr.mxu0 0.0
        %v4491 = vand.u32 %v4284, 4294901760
        %v4492 = vsub.f32 %v4284, %v4491
        %4493 = vmatpush1.msra.mxu0 %v4492
        %4494 = vmatprep.subr.mxu0 0.0
        %v4495 = vand.u32 %v4285, 4294901760
        %v4496 = vsub.f32 %v4285, %v4495
        %4497 = vmatpush1.msra.mxu0 %v4496
        %4498 = vmatprep.subr.mxu0 0.0
        %v4499 = vand.u32 %v4286, 4294901760
        %v4500 = vsub.f32 %v4286, %v4499
        %4501 = vmatpush1.msra.mxu0 %v4500
        %4502 = vmatprep.subr.mxu0 0.0
        %v4503 = vand.u32 %v4287, 4294901760
        %v4504 = vsub.f32 %v4287, %v4503
        %4505 = vmatpush1.msra.mxu0 %v4504
        %4506 = vmatprep.subr.mxu0 0.0
        %4507 = vmatpush1.msra.mxu0 0.0
        %4508 = vmatprep.subr.mxu0 0.0
        %4509 = vmatpush1.msra.mxu0 0.0
        %4510 = vmatprep.subr.mxu0 0.0
        %4511 = vmatpush1.msra.mxu0 0.0
        %4512 = vmatprep.subr.mxu0 0.0
        %4513 = vmatpush1.msra.mxu0 0.0
        %4514 = vmatprep.subr.mxu0 0.0
        %4515 = vmatpush1.msra.mxu0 0.0
        %4516 = vmatprep.subr.mxu0 0.0
        %4517 = vmatpush1.msra.mxu0 0.0
        %4518 = vmatprep.subr.mxu0 0.0
        %4519 = vmatpush1.msra.mxu0 0.0
        %4520 = vmatprep.subr.mxu0 0.0
        %4521 = vmatpush1.msra.mxu0 0.0
        %4522 = vmatprep.subr.mxu0 0.0
        %4523 = vmatpush1.msra.mxu0 0.0
        %4524 = vmatprep.subr.mxu0 0.0
        %4525 = vmatpush1.msra.mxu0 0.0
        %4526 = vmatprep.subr.mxu0 0.0
        %4527 = vmatpush1.msra.mxu0 0.0
        %4528 = vmatprep.subr.mxu0 0.0
        %4529 = vmatpush1.msra.mxu0 0.0
        %4530 = vmatprep.subr.mxu0 0.0
        %4531 = vmatpush1.msra.mxu0 0.0
        %4532 = vmatprep.subr.mxu0 0.0
        %4533 = vmatpush1.msra.mxu0 0.0
        %4534 = vmatprep.subr.mxu0 0.0
        %4535 = vmatpush1.msra.mxu0 0.0
        %4536 = vmatprep.subr.mxu0 0.0
        %4537 = vmatpush1.msra.mxu0 0.0
        %4538 = vmatprep.subr.mxu0 0.0
        %4539 = vmatpush1.msra.mxu0 0.0
        %4540 = vmatprep.subr.mxu0 0.0
        %4541 = vmatpush1.msra.mxu0 0.0
        %4542 = vmatprep.subr.mxu0 0.0
        %4543 = vmatpush1.msra.mxu0 0.0
        %4544 = vmatprep.subr.mxu0 0.0
        %4545 = vmatpush1.msra.mxu0 0.0
        %4546 = vmatprep.subr.mxu0 0.0
        %4547 = vmatpush1.msra.mxu0 0.0
        %4548 = vmatprep.subr.mxu0 0.0
        %4549 = vmatpush1.msra.mxu0 0.0
        %4550 = vmatprep.subr.mxu0 0.0
        %4551 = vmatpush1.msra.mxu0 0.0
        %4552 = vmatprep.subr.mxu0 0.0
        %4553 = vmatpush1.msra.mxu0 0.0
        %4554 = vmatprep.subr.mxu0 0.0
        %4555 = vmatpush1.msra.mxu0 0.0
        %4556 = vmatprep.subr.mxu0 0.0
        %4557 = vmatpush1.msra.mxu0 0.0
        %4558 = vmatprep.subr.mxu0 0.0
        %4559 = vmatpush1.msra.mxu0 0.0
        %4560 = vmatprep.subr.mxu0 0.0
        %4561 = vmatpush1.msra.mxu0 0.0
        %4562 = vmatprep.mubr.f32.mxu0 0.0
        %v4563 = vand.u32 %v4299, 4294901760
        %v4564 = vsub.f32 %v4299, %v4563
        %4565 = vmatmul.mubr.f32.gmra.mrb[0].mxu0 %v4564
        %v4566 = vpop.f32.mrb[0].mxu0
        %v4567 = vadd.f32 %v4481, %v4566
        %v4568 = vpop.f32.mrb[0].mxu0
        %4569 = vmatprep.mubr.f32.mxu0 0.0
        %v4570 = vand.u32 %v4302, 4294901760
        %v4571 = vsub.f32 %v4302, %v4570
        %4572 = vmatmul.mubr.f32.gmra.mrb[0].mxu0 %v4571
        %v4573 = vpop.f32.mrb[0].mxu0
        %v4574 = vadd.f32 %v4487, %v4573
        %v4575 = vpop.f32.mrb[0].mxu0
        %4576 = vdwg.mxu0
        %4577 = vmatprep.subr.mxu0 0.0
        %v4578 = vand.u32 %v4284, 4294901760
        %4579 = vmatpush1.msra.mxu0 %v4578
        %4580 = vmatprep.subr.mxu0 0.0
        %v4581 = vand.u32 %v4285, 4294901760
        %4582 = vmatpush1.msra.mxu0 %v4581
        %4583 = vmatprep.subr.mxu0 0.0
        %v4584 = vand.u32 %v4286, 4294901760
        %4585 = vmatpush1.msra.mxu0 %v4584
        %4586 = vmatprep.subr.mxu0 0.0
        %v4587 = vand.u32 %v4287, 4294901760
        %4588 = vmatpush1.msra.mxu0 %v4587
        %4589 = vmatprep.subr.mxu0 0.0
        %4590 = vmatpush1.msra.mxu0 0.0
        %4591 = vmatprep.subr.mxu0 0.0
        %4592 = vmatpush1.msra.mxu0 0.0
        %4593 = vmatprep.subr.mxu0 0.0
        %4594 = vmatpush1.msra.mxu0 0.0
        %4595 = vmatprep.subr.mxu0 0.0
        %4596 = vmatpush1.msra.mxu0 0.0
        %4597 = vmatprep.subr.mxu0 0.0
        %4598 = vmatpush1.msra.mxu0 0.0
        %4599 = vmatprep.subr.mxu0 0.0
        %4600 = vmatpush1.msra.mxu0 0.0
        %4601 = vmatprep.subr.mxu0 0.0
        %4602 = vmatpush1.msra.mxu0 0.0
        %4603 = vmatprep.subr.mxu0 0.0
        %4604 = vmatpush1.msra.mxu0 0.0
        %4605 = vmatprep.subr.mxu0 0.0
        %4606 = vmatpush1.msra.mxu0 0.0
        %4607 = vmatprep.subr.mxu0 0.0
        %4608 = vmatpush1.msra.mxu0 0.0
        %4609 = vmatprep.subr.mxu0 0.0
        %4610 = vmatpush1.msra.mxu0 0.0
        %4611 = vmatprep.subr.mxu0 0.0
        %4612 = vmatpush1.msra.mxu0 0.0
        %4613 = vmatprep.subr.mxu0 0.0
        %4614 = vmatpush1.msra.mxu0 0.0
        %4615 = vmatprep.subr.mxu0 0.0
        %4616 = vmatpush1.msra.mxu0 0.0
        %4617 = vmatprep.subr.mxu0 0.0
        %4618 = vmatpush1.msra.mxu0 0.0
        %4619 = vmatprep.subr.mxu0 0.0
        %4620 = vmatpush1.msra.mxu0 0.0
        %4621 = vmatprep.subr.mxu0 0.0
        %4622 = vmatpush1.msra.mxu0 0.0
        %4623 = vmatprep.subr.mxu0 0.0
        %4624 = vmatpush1.msra.mxu0 0.0
        %4625 = vmatprep.subr.mxu0 0.0
        %4626 = vmatpush1.msra.mxu0 0.0
        %4627 = vmatprep.subr.mxu0 0.0
        %4628 = vmatpush1.msra.mxu0 0.0
        %4629 = vmatprep.subr.mxu0 0.0
        %4630 = vmatpush1.msra.mxu0 0.0
        %4631 = vmatprep.subr.mxu0 0.0
        %4632 = vmatpush1.msra.mxu0 0.0
        %4633 = vmatprep.subr.mxu0 0.0
        %4634 = vmatpush1.msra.mxu0 0.0
        %4635 = vmatprep.subr.mxu0 0.0
        %4636 = vmatpush1.msra.mxu0 0.0
        %4637 = vmatprep.subr.mxu0 0.0
        %4638 = vmatpush1.msra.mxu0 0.0
        %4639 = vmatprep.subr.mxu0 0.0
        %4640 = vmatpush1.msra.mxu0 0.0
        %4641 = vmatprep.subr.mxu0 0.0
        %4642 = vmatpush1.msra.mxu0 0.0
        %4643 = vmatprep.subr.mxu0 0.0
        %4644 = vmatpush1.msra.mxu0 0.0
        %4645 = vmatprep.mubr.f32.mxu0 0.0
        %v4646 = vand.u32 %v4299, 4294901760
        %v4647 = vsub.f32 %v4299, %v4646
        %v4648 = vand.u32 %v4647, 4294901760
        %4649 = vmatmul.mubr.f32.gmra.mrb[0].mxu0 %v4648
        %v4650 = vpop.f32.mrb[0].mxu0
        %v4651 = vadd.f32 %v4567, %v4650
        %v4652 = vpop.f32.mrb[0].mxu0
        %4653 = vmatprep.mubr.f32.mxu0 0.0
        %v4654 = vand.u32 %v4302, 4294901760
        %v4655 = vsub.f32 %v4302, %v4654
        %v4656 = vand.u32 %v4655, 4294901760
        %4657 = vmatmul.mubr.f32.gmra.mrb[0].mxu0 %v4656
        %v4658 = vpop.f32.mrb[0].mxu0
        %v4659 = vadd.f32 %v4574, %v4658
        %v4660 = vpop.f32.mrb[0].mxu0
        %4661 = vdwg.mxu0
        %4662 = vmatprep.subr.mxu0 0.0
        %v4663 = vand.u32 %v4284, 4294901760
        %v4664 = vsub.f32 %v4284, %v4663
        %v4665 = vand.u32 %v4664, 4294901760
        %4666 = vmatpush1.msra.mxu0 %v4665
        %4667 = vmatprep.subr.mxu0 0.0
        %v4668 = vand.u32 %v4285, 4294901760
        %v4669 = vsub.f32 %v4285, %v4668
        %v4670 = vand.u32 %v4669, 4294901760
        %4671 = vmatpush1.msra.mxu0 %v4670
        %4672 = vmatprep.subr.mxu0 0.0
        %v4673 = vand.u32 %v4286, 4294901760
        %v4674 = vsub.f32 %v4286, %v4673
        %v4675 = vand.u32 %v4674, 4294901760
        %4676 = vmatpush1.msra.mxu0 %v4675
        %4677 = vmatprep.subr.mxu0 0.0
        %v4678 = vand.u32 %v4287, 4294901760
        %v4679 = vsub.f32 %v4287, %v4678
        %v4680 = vand.u32 %v4679, 4294901760
        %4681 = vmatpush1.msra.mxu0 %v4680
        %4682 = vmatprep.subr.mxu0 0.0
        %4683 = vmatpush1.msra.mxu0 0.0
        %4684 = vmatprep.subr.mxu0 0.0
        %4685 = vmatpush1.msra.mxu0 0.0
        %4686 = vmatprep.subr.mxu0 0.0
        %4687 = vmatpush1.msra.mxu0 0.0
        %4688 = vmatprep.subr.mxu0 0.0
        %4689 = vmatpush1.msra.mxu0 0.0
        %4690 = vmatprep.subr.mxu0 0.0
        %4691 = vmatpush1.msra.mxu0 0.0
        %4692 = vmatprep.subr.mxu0 0.0
        %4693 = vmatpush1.msra.mxu0 0.0
        %4694 = vmatprep.subr.mxu0 0.0
        %4695 = vmatpush1.msra.mxu0 0.0
        %4696 = vmatprep.subr.mxu0 0.0
        %4697 = vmatpush1.msra.mxu0 0.0
        %4698 = vmatprep.subr.mxu0 0.0
        %4699 = vmatpush1.msra.mxu0 0.0
        %4700 = vmatprep.subr.mxu0 0.0
        %4701 = vmatpush1.msra.mxu0 0.0
        %4702 = vmatprep.subr.mxu0 0.0
        %4703 = vmatpush1.msra.mxu0 0.0
        %4704 = vmatprep.subr.mxu0 0.0
        %4705 = vmatpush1.msra.mxu0 0.0
        %4706 = vmatprep.subr.mxu0 0.0
        %4707 = vmatpush1.msra.mxu0 0.0
        %4708 = vmatprep.subr.mxu0 0.0
        %4709 = vmatpush1.msra.mxu0 0.0
        %4710 = vmatprep.subr.mxu0 0.0
        %4711 = vmatpush1.msra.mxu0 0.0
        %4712 = vmatprep.subr.mxu0 0.0
        %4713 = vmatpush1.msra.mxu0 0.0
        %4714 = vmatprep.subr.mxu0 0.0
        %4715 = vmatpush1.msra.mxu0 0.0
        %4716 = vmatprep.subr.mxu0 0.0
        %4717 = vmatpush1.msra.mxu0 0.0
        %4718 = vmatprep.subr.mxu0 0.0
        %4719 = vmatpush1.msra.mxu0 0.0
        %4720 = vmatprep.subr.mxu0 0.0
        %4721 = vmatpush1.msra.mxu0 0.0
        %4722 = vmatprep.subr.mxu0 0.0
        %4723 = vmatpush1.msra.mxu0 0.0
        %4724 = vmatprep.subr.mxu0 0.0
        %4725 = vmatpush1.msra.mxu0 0.0
        %4726 = vmatprep.subr.mxu0 0.0
        %4727 = vmatpush1.msra.mxu0 0.0
        %4728 = vmatprep.subr.mxu0 0.0
        %4729 = vmatpush1.msra.mxu0 0.0
        %4730 = vmatprep.subr.mxu0 0.0
        %4731 = vmatpush1.msra.mxu0 0.0
        %4732 = vmatprep.subr.mxu0 0.0
        %4733 = vmatpush1.msra.mxu0 0.0
        %4734 = vmatprep.subr.mxu0 0.0
        %4735 = vmatpush1.msra.mxu0 0.0
        %4736 = vmatprep.subr.mxu0 0.0
        %4737 = vmatpush1.msra.mxu0 0.0
        %4738 = vmatprep.mubr.f32.mxu0 0.0
        %v4739 = vand.u32 %v4299, 4294901760
        %4740 = vmatmul.mubr.f32.gmra.mrb[0].mxu0 %v4739
        %v4741 = vpop.f32.mrb[0].mxu0
        %v4742 = vadd.f32 %v4651, %v4741
        %v4743 = vpop.f32.mrb[0].mxu0
        %4744 = vmatprep.mubr.f32.mxu0 0.0
        %v4745 = vand.u32 %v4302, 4294901760
        %4746 = vmatmul.mubr.f32.gmra.mrb[0].mxu0 %v4745
        %v4747 = vpop.f32.mrb[0].mxu0
        %v4748 = vadd.f32 %v4659, %v4747
        %v4749 = vpop.f32.mrb[0].mxu0
        %4750 = vdwg.mxu0
        %4751 = vmatprep.subr.mxu0 0.0
        %v4752 = vand.u32 %v4284, 4294901760
        %4753 = vmatpush1.msra.mxu0 %v4752
        %4754 = vmatprep.subr.mxu0 0.0
        %v4755 = vand.u32 %v4285, 4294901760
        %4756 = vmatpush1.msra.mxu0 %v4755
        %4757 = vmatprep.subr.mxu0 0.0
        %v4758 = vand.u32 %v4286, 4294901760
        %4759 = vmatpush1.msra.mxu0 %v4758
        %4760 = vmatprep.subr.mxu0 0.0
        %v4761 = vand.u32 %v4287, 4294901760
        %4762 = vmatpush1.msra.mxu0 %v4761
        %4763 = vmatprep.subr.mxu0 0.0
        %4764 = vmatpush1.msra.mxu0 0.0
        %4765 = vmatprep.subr.mxu0 0.0
        %4766 = vmatpush1.msra.mxu0 0.0
        %4767 = vmatprep.subr.mxu0 0.0
        %4768 = vmatpush1.msra.mxu0 0.0
        %4769 = vmatprep.subr.mxu0 0.0
        %4770 = vmatpush1.msra.mxu0 0.0
        %4771 = vmatprep.subr.mxu0 0.0
        %4772 = vmatpush1.msra.mxu0 0.0
        %4773 = vmatprep.subr.mxu0 0.0
        %4774 = vmatpush1.msra.mxu0 0.0
        %4775 = vmatprep.subr.mxu0 0.0
        %4776 = vmatpush1.msra.mxu0 0.0
        %4777 = vmatprep.subr.mxu0 0.0
        %4778 = vmatpush1.msra.mxu0 0.0
        %4779 = vmatprep.subr.mxu0 0.0
        %4780 = vmatpush1.msra.mxu0 0.0
        %4781 = vmatprep.subr.mxu0 0.0
        %4782 = vmatpush1.msra.mxu0 0.0
        %4783 = vmatprep.subr.mxu0 0.0
        %4784 = vmatpush1.msra.mxu0 0.0
        %4785 = vmatprep.subr.mxu0 0.0
        %4786 = vmatpush1.msra.mxu0 0.0
        %4787 = vmatprep.subr.mxu0 0.0
        %4788 = vmatpush1.msra.mxu0 0.0
        %4789 = vmatprep.subr.mxu0 0.0
        %4790 = vmatpush1.msra.mxu0 0.0
        %4791 = vmatprep.subr.mxu0 0.0
        %4792 = vmatpush1.msra.mxu0 0.0
        %4793 = vmatprep.subr.mxu0 0.0
        %4794 = vmatpush1.msra.mxu0 0.0
        %4795 = vmatprep.subr.mxu0 0.0
        %4796 = vmatpush1.msra.mxu0 0.0
        %4797 = vmatprep.subr.mxu0 0.0
        %4798 = vmatpush1.msra.mxu0 0.0
        %4799 = vmatprep.subr.mxu0 0.0
        %4800 = vmatpush1.msra.mxu0 0.0
        %4801 = vmatprep.subr.mxu0 0.0
        %4802 = vmatpush1.msra.mxu0 0.0
        %4803 = vmatprep.subr.mxu0 0.0
        %4804 = vmatpush1.msra.mxu0 0.0
        %4805 = vmatprep.subr.mxu0 0.0
        %4806 = vmatpush1.msra.mxu0 0.0
        %4807 = vmatprep.subr.mxu0 0.0
        %4808 = vmatpush1.msra.mxu0 0.0
        %4809 = vmatprep.subr.mxu0 0.0
        %4810 = vmatpush1.msra.mxu0 0.0
        %4811 = vmatprep.subr.mxu0 0.0
        %4812 = vmatpush1.msra.mxu0 0.0
        %4813 = vmatprep.subr.mxu0 0.0
        %4814 = vmatpush1.msra.mxu0 0.0
        %4815 = vmatprep.subr.mxu0 0.0
        %4816 = vmatpush1.msra.mxu0 0.0
        %4817 = vmatprep.subr.mxu0 0.0
        %4818 = vmatpush1.msra.mxu0 0.0
        %4819 = vmatprep.mubr.f32.mxu0 0.0
        %v4820 = vand.u32 %v4299, 4294901760
        %4821 = vmatmul.mubr.f32.gmra.mrb[0].mxu0 %v4820
        %v4822 = vpop.f32.mrb[0].mxu0
        %v4823 = vadd.f32 %v4742, %v4822
        %v4824 = vpop.f32.mrb[0].mxu0
        %4825 = vmatprep.mubr.f32.mxu0 0.0
        %v4826 = vand.u32 %v4302, 4294901760
        %4827 = vmatmul.mubr.f32.gmra.mrb[0].mxu0 %v4826
        %v4828 = vpop.f32.mrb[0].mxu0
        %v4829 = vadd.f32 %v4748, %v4828
        %v4830 = vpop.f32.mrb[0].mxu0
        %4831 = vdwg.mxu0
        %v4832 = vadd.f32 %v4823, %v3310
        %v4833 = vadd.f32 %v4829, %v3311
        %s4834 = scalar_lea.vmem %s1, 96
        %v4835 = vld [vmem:[%s4834] sm:$0xff]
        %v4836 = vld [vmem:[%s4834 + $0x8] sm:$0xff]
        %v4837 = vld [vmem:[%s4834 + $0x10] sm:$0xff]
        %v4838 = vld [vmem:[%s4834 + $0x18] sm:$0xff]
        %s4839 = scalar_lea.vmem %s3, 48
        %v4840 = vld [vmem:[%s4839] sm:$0xff]
        %v4841 = vld [vmem:[%s4839 + $0x8] sm:$0xff]
        %s4842 = scalar_lea.vmem %s2, 96
        %v4843 = vld [vmem:[%s4842] sm:$0xff]
        %v4844 = vld [vmem:[%s4842 + $0x8] sm:$0xff]
        %v4845 = vld [vmem:[%s4842 + $0x10] sm:$0xff]
        %v4846 = vld [vmem:[%s4842 + $0x18] sm:$0xff]
        %s4847 = scalar_lea.vmem %s4, 48
        %v4848 = vld [vmem:[%s4847] sm:$0xff]
        %v4849 = vld [vmem:[%s4847 + $0x8] sm:$0xff]
        %s4850 = sld [smem:[#allocation2 + $0x180]]
        %s4851 = sld [smem:[#allocation2 + $0x181]]
        %4853 = vset.pattern.permute.xlu0 0
        %4854 = vperm.xlu0 %4853, %v4843
        %v4855 = vpop.permute.xlu0 %4854
        %4858 = vset.pattern.permute.xlu0 0
        %4859 = vperm.xlu0 %4858, %v4844
        %v4860 = vpop.permute.xlu0 %4859
        %4863 = vset.pattern.permute.xlu0 0
        %4864 = vperm.xlu0 %4863, %v4845
        %v4865 = vpop.permute.xlu0 %4864
        %4868 = vset.pattern.permute.xlu0 0
        %4869 = vperm.xlu0 %4868, %v4846
        %v4870 = vpop.permute.xlu0 %4869
        %v4873 = vsel %vm300, %v4835, 0
        %v4876 = vsel %vm300, %v4836, 0
        %v4879 = vsel %vm300, %v4837, 0
        %v4882 = vsel %vm300, %v4838, 0
        %4884 = vmatprep.subr.mxu0 0.0
        %v4885 = vand.u32 %v4832, 4294901760
        %4886 = vmatpush1.msra.mxu0 %v4885
        %4887 = vmatprep.subr.mxu0 0.0
        %v4888 = vand.u32 %v4833, 4294901760
        %4889 = vmatpush1.msra.mxu0 %v4888
        %4890 = vmatprep.subr.mxu0 0.0
        %4891 = vmatpush1.msra.mxu0 0.0
        %4892 = vmatprep.subr.mxu0 0.0
        %4893 = vmatpush1.msra.mxu0 0.0
        %4894 = vmatprep.subr.mxu0 0.0
        %4895 = vmatpush1.msra.mxu0 0.0
        %4896 = vmatprep.subr.mxu0 0.0
        %4897 = vmatpush1.msra.mxu0 0.0
        %4898 = vmatprep.subr.mxu0 0.0
        %4899 = vmatpush1.msra.mxu0 0.0
        %4900 = vmatprep.subr.mxu0 0.0
        %4901 = vmatpush1.msra.mxu0 0.0
        %4902 = vmatprep.subr.mxu0 0.0
        %4903 = vmatpush1.msra.mxu0 0.0
        %4904 = vmatprep.subr.mxu0 0.0
        %4905 = vmatpush1.msra.mxu0 0.0
        %4906 = vmatprep.subr.mxu0 0.0
        %4907 = vmatpush1.msra.mxu0 0.0
        %4908 = vmatprep.subr.mxu0 0.0
        %4909 = vmatpush1.msra.mxu0 0.0
        %4910 = vmatprep.subr.mxu0 0.0
        %4911 = vmatpush1.msra.mxu0 0.0
        %4912 = vmatprep.subr.mxu0 0.0
        %4913 = vmatpush1.msra.mxu0 0.0
        %4914 = vmatprep.subr.mxu0 0.0
        %4915 = vmatpush1.msra.mxu0 0.0
        %4916 = vmatprep.subr.mxu0 0.0
        %4917 = vmatpush1.msra.mxu0 0.0
        %4918 = vmatprep.subr.mxu0 0.0
        %4919 = vmatpush1.msra.mxu0 0.0
        %4920 = vmatprep.subr.mxu0 0.0
        %4921 = vmatpush1.msra.mxu0 0.0
        %4922 = vmatprep.subr.mxu0 0.0
        %4923 = vmatpush1.msra.mxu0 0.0
        %4924 = vmatprep.subr.mxu0 0.0
        %4925 = vmatpush1.msra.mxu0 0.0
        %4926 = vmatprep.subr.mxu0 0.0
        %4927 = vmatpush1.msra.mxu0 0.0
        %4928 = vmatprep.subr.mxu0 0.0
        %4929 = vmatpush1.msra.mxu0 0.0
        %4930 = vmatprep.subr.mxu0 0.0
        %4931 = vmatpush1.msra.mxu0 0.0
        %4932 = vmatprep.subr.mxu0 0.0
        %4933 = vmatpush1.msra.mxu0 0.0
        %4934 = vmatprep.subr.mxu0 0.0
        %4935 = vmatpush1.msra.mxu0 0.0
        %4936 = vmatprep.subr.mxu0 0.0
        %4937 = vmatpush1.msra.mxu0 0.0
        %4938 = vmatprep.subr.mxu0 0.0
        %4939 = vmatpush1.msra.mxu0 0.0
        %4940 = vmatprep.subr.mxu0 0.0
        %4941 = vmatpush1.msra.mxu0 0.0
        %4942 = vmatprep.subr.mxu0 0.0
        %4943 = vmatpush1.msra.mxu0 0.0
        %4944 = vmatprep.subr.mxu0 0.0
        %4945 = vmatpush1.msra.mxu0 0.0
        %4946 = vmatprep.subr.mxu0 0.0
        %4947 = vmatpush1.msra.mxu0 0.0
        %4948 = vmatprep.subr.mxu0 0.0
        %4949 = vmatpush1.msra.mxu0 0.0
        %4950 = vmatprep.mubr.f32.mxu0 0.0
        %v4951 = vand.u32 %v4873, 4294901760
        %v4952 = vsub.f32 %v4873, %v4951
        %v4953 = vand.u32 %v4952, 4294901760
        %v4954 = vsub.f32 %v4952, %v4953
        %v4955 = vand.u32 %v4954, 4294901760
        %4956 = vmatmul.mubr.f32.gmra.mrb[0].mxu0 %v4955
        %v4957 = vpop.f32.mrb[0].mxu0
        %v4958 = vadd.f32 %v4855, %v4957
        %v4959 = vpop.f32.mrb[0].mxu0
        %4960 = vmatprep.mubr.f32.mxu0 0.0
        %v4961 = vand.u32 %v4876, 4294901760
        %v4962 = vsub.f32 %v4876, %v4961
        %v4963 = vand.u32 %v4962, 4294901760
        %v4964 = vsub.f32 %v4962, %v4963
        %v4965 = vand.u32 %v4964, 4294901760
        %4966 = vmatmul.mubr.f32.gmra.mrb[0].mxu0 %v4965
        %v4967 = vpop.f32.mrb[0].mxu0
        %v4968 = vadd.f32 %v4860, %v4967
        %v4969 = vpop.f32.mrb[0].mxu0
        %4970 = vmatprep.mubr.f32.mxu0 0.0
        %v4971 = vand.u32 %v4879, 4294901760
        %v4972 = vsub.f32 %v4879, %v4971
        %v4973 = vand.u32 %v4972, 4294901760
        %v4974 = vsub.f32 %v4972, %v4973
        %v4975 = vand.u32 %v4974, 4294901760
        %4976 = vmatmul.mubr.f32.gmra.mrb[0].mxu0 %v4975
        %v4977 = vpop.f32.mrb[0].mxu0
        %v4978 = vadd.f32 %v4865, %v4977
        %v4979 = vpop.f32.mrb[0].mxu0
        %4980 = vmatprep.mubr.f32.mxu0 0.0
        %v4981 = vand.u32 %v4882, 4294901760
        %v4982 = vsub.f32 %v4882, %v4981
        %v4983 = vand.u32 %v4982, 4294901760
        %v4984 = vsub.f32 %v4982, %v4983
        %v4985 = vand.u32 %v4984, 4294901760
        %4986 = vmatmul.mubr.f32.gmra.mrb[0].mxu0 %v4985
        %v4987 = vpop.f32.mrb[0].mxu0
        %v4988 = vadd.f32 %v4870, %v4987
        %v4989 = vpop.f32.mrb[0].mxu0
        %4990 = vdwg.mxu0
        %4991 = vmatprep.subr.mxu0 0.0
        %v4992 = vand.u32 %v4832, 4294901760
        %v4993 = vsub.f32 %v4832, %v4992
        %v4994 = vand.u32 %v4993, 4294901760
        %v4995 = vsub.f32 %v4993, %v4994
        %v4996 = vand.u32 %v4995, 4294901760
        %4997 = vmatpush1.msra.mxu0 %v4996
        %4998 = vmatprep.subr.mxu0 0.0
        %v4999 = vand.u32 %v4833, 4294901760
        %v5000 = vsub.f32 %v4833, %v4999
        %v5001 = vand.u32 %v5000, 4294901760
        %v5002 = vsub.f32 %v5000, %v5001
        %v5003 = vand.u32 %v5002, 4294901760
        %5004 = vmatpush1.msra.mxu0 %v5003
        %5005 = vmatprep.subr.mxu0 0.0
        %5006 = vmatpush1.msra.mxu0 0.0
        %5007 = vmatprep.subr.mxu0 0.0
        %5008 = vmatpush1.msra.mxu0 0.0
        %5009 = vmatprep.subr.mxu0 0.0
        %5010 = vmatpush1.msra.mxu0 0.0
        %5011 = vmatprep.subr.mxu0 0.0
        %5012 = vmatpush1.msra.mxu0 0.0
        %5013 = vmatprep.subr.mxu0 0.0
        %5014 = vmatpush1.msra.mxu0 0.0
        %5015 = vmatprep.subr.mxu0 0.0
        %5016 = vmatpush1.msra.mxu0 0.0
        %5017 = vmatprep.subr.mxu0 0.0
        %5018 = vmatpush1.msra.mxu0 0.0
        %5019 = vmatprep.subr.mxu0 0.0
        %5020 = vmatpush1.msra.mxu0 0.0
        %5021 = vmatprep.subr.mxu0 0.0
        %5022 = vmatpush1.msra.mxu0 0.0
        %5023 = vmatprep.subr.mxu0 0.0
        %5024 = vmatpush1.msra.mxu0 0.0
        %5025 = vmatprep.subr.mxu0 0.0
        %5026 = vmatpush1.msra.mxu0 0.0
        %5027 = vmatprep.subr.mxu0 0.0
        %5028 = vmatpush1.msra.mxu0 0.0
        %5029 = vmatprep.subr.mxu0 0.0
        %5030 = vmatpush1.msra.mxu0 0.0
        %5031 = vmatprep.subr.mxu0 0.0
        %5032 = vmatpush1.msra.mxu0 0.0
        %5033 = vmatprep.subr.mxu0 0.0
        %5034 = vmatpush1.msra.mxu0 0.0
        %5035 = vmatprep.subr.mxu0 0.0
        %5036 = vmatpush1.msra.mxu0 0.0
        %5037 = vmatprep.subr.mxu0 0.0
        %5038 = vmatpush1.msra.mxu0 0.0
        %5039 = vmatprep.subr.mxu0 0.0
        %5040 = vmatpush1.msra.mxu0 0.0
        %5041 = vmatprep.subr.mxu0 0.0
        %5042 = vmatpush1.msra.mxu0 0.0
        %5043 = vmatprep.subr.mxu0 0.0
        %5044 = vmatpush1.msra.mxu0 0.0
        %5045 = vmatprep.subr.mxu0 0.0
        %5046 = vmatpush1.msra.mxu0 0.0
        %5047 = vmatprep.subr.mxu0 0.0
        %5048 = vmatpush1.msra.mxu0 0.0
        %5049 = vmatprep.subr.mxu0 0.0
        %5050 = vmatpush1.msra.mxu0 0.0
        %5051 = vmatprep.subr.mxu0 0.0
        %5052 = vmatpush1.msra.mxu0 0.0
        %5053 = vmatprep.subr.mxu0 0.0
        %5054 = vmatpush1.msra.mxu0 0.0
        %5055 = vmatprep.subr.mxu0 0.0
        %5056 = vmatpush1.msra.mxu0 0.0
        %5057 = vmatprep.subr.mxu0 0.0
        %5058 = vmatpush1.msra.mxu0 0.0
        %5059 = vmatprep.subr.mxu0 0.0
        %5060 = vmatpush1.msra.mxu0 0.0
        %5061 = vmatprep.subr.mxu0 0.0
        %5062 = vmatpush1.msra.mxu0 0.0
        %5063 = vmatprep.subr.mxu0 0.0
        %5064 = vmatpush1.msra.mxu0 0.0
        %5065 = vmatprep.mubr.f32.mxu0 0.0
        %v5066 = vand.u32 %v4873, 4294901760
        %5067 = vmatmul.mubr.f32.gmra.mrb[0].mxu0 %v5066
        %v5068 = vpop.f32.mrb[0].mxu0
        %v5069 = vadd.f32 %v4958, %v5068
        %v5070 = vpop.f32.mrb[0].mxu0
        %5071 = vmatprep.mubr.f32.mxu0 0.0
        %v5072 = vand.u32 %v4876, 4294901760
        %5073 = vmatmul.mubr.f32.gmra.mrb[0].mxu0 %v5072
        %v5074 = vpop.f32.mrb[0].mxu0
        %v5075 = vadd.f32 %v4968, %v5074
        %v5076 = vpop.f32.mrb[0].mxu0
        %5077 = vmatprep.mubr.f32.mxu0 0.0
        %v5078 = vand.u32 %v4879, 4294901760
        %5079 = vmatmul.mubr.f32.gmra.mrb[0].mxu0 %v5078
        %v5080 = vpop.f32.mrb[0].mxu0
        %v5081 = vadd.f32 %v4978, %v5080
        %v5082 = vpop.f32.mrb[0].mxu0
        %5083 = vmatprep.mubr.f32.mxu0 0.0
        %v5084 = vand.u32 %v4882, 4294901760
        %5085 = vmatmul.mubr.f32.gmra.mrb[0].mxu0 %v5084
        %v5086 = vpop.f32.mrb[0].mxu0
        %v5087 = vadd.f32 %v4988, %v5086
        %v5088 = vpop.f32.mrb[0].mxu0
        %5089 = vdwg.mxu0
        %5090 = vmatprep.subr.mxu0 0.0
        %v5091 = vand.u32 %v4832, 4294901760
        %v5092 = vsub.f32 %v4832, %v5091
        %5093 = vmatpush1.msra.mxu0 %v5092
        %5094 = vmatprep.subr.mxu0 0.0
        %v5095 = vand.u32 %v4833, 4294901760
        %v5096 = vsub.f32 %v4833, %v5095
        %5097 = vmatpush1.msra.mxu0 %v5096
        %5098 = vmatprep.subr.mxu0 0.0
        %5099 = vmatpush1.msra.mxu0 0.0
        %5100 = vmatprep.subr.mxu0 0.0
        %5101 = vmatpush1.msra.mxu0 0.0
        %5102 = vmatprep.subr.mxu0 0.0
        %5103 = vmatpush1.msra.mxu0 0.0
        %5104 = vmatprep.subr.mxu0 0.0
        %5105 = vmatpush1.msra.mxu0 0.0
        %5106 = vmatprep.subr.mxu0 0.0
        %5107 = vmatpush1.msra.mxu0 0.0
        %5108 = vmatprep.subr.mxu0 0.0
        %5109 = vmatpush1.msra.mxu0 0.0
        %5110 = vmatprep.subr.mxu0 0.0
        %5111 = vmatpush1.msra.mxu0 0.0
        %5112 = vmatprep.subr.mxu0 0.0
        %5113 = vmatpush1.msra.mxu0 0.0
        %5114 = vmatprep.subr.mxu0 0.0
        %5115 = vmatpush1.msra.mxu0 0.0
        %5116 = vmatprep.subr.mxu0 0.0
        %5117 = vmatpush1.msra.mxu0 0.0
        %5118 = vmatprep.subr.mxu0 0.0
        %5119 = vmatpush1.msra.mxu0 0.0
        %5120 = vmatprep.subr.mxu0 0.0
        %5121 = vmatpush1.msra.mxu0 0.0
        %5122 = vmatprep.subr.mxu0 0.0
        %5123 = vmatpush1.msra.mxu0 0.0
        %5124 = vmatprep.subr.mxu0 0.0
        %5125 = vmatpush1.msra.mxu0 0.0
        %5126 = vmatprep.subr.mxu0 0.0
        %5127 = vmatpush1.msra.mxu0 0.0
        %5128 = vmatprep.subr.mxu0 0.0
        %5129 = vmatpush1.msra.mxu0 0.0
        %5130 = vmatprep.subr.mxu0 0.0
        %5131 = vmatpush1.msra.mxu0 0.0
        %5132 = vmatprep.subr.mxu0 0.0
        %5133 = vmatpush1.msra.mxu0 0.0
        %5134 = vmatprep.subr.mxu0 0.0
        %5135 = vmatpush1.msra.mxu0 0.0
        %5136 = vmatprep.subr.mxu0 0.0
        %5137 = vmatpush1.msra.mxu0 0.0
        %5138 = vmatprep.subr.mxu0 0.0
        %5139 = vmatpush1.msra.mxu0 0.0
        %5140 = vmatprep.subr.mxu0 0.0
        %5141 = vmatpush1.msra.mxu0 0.0
        %5142 = vmatprep.subr.mxu0 0.0
        %5143 = vmatpush1.msra.mxu0 0.0
        %5144 = vmatprep.subr.mxu0 0.0
        %5145 = vmatpush1.msra.mxu0 0.0
        %5146 = vmatprep.subr.mxu0 0.0
        %5147 = vmatpush1.msra.mxu0 0.0
        %5148 = vmatprep.subr.mxu0 0.0
        %5149 = vmatpush1.msra.mxu0 0.0
        %5150 = vmatprep.subr.mxu0 0.0
        %5151 = vmatpush1.msra.mxu0 0.0
        %5152 = vmatprep.subr.mxu0 0.0
        %5153 = vmatpush1.msra.mxu0 0.0
        %5154 = vmatprep.subr.mxu0 0.0
        %5155 = vmatpush1.msra.mxu0 0.0
        %5156 = vmatprep.subr.mxu0 0.0
        %5157 = vmatpush1.msra.mxu0 0.0
        %5158 = vmatprep.mubr.f32.mxu0 0.0
        %v5159 = vand.u32 %v4873, 4294901760
        %v5160 = vsub.f32 %v4873, %v5159
        %5161 = vmatmul.mubr.f32.gmra.mrb[0].mxu0 %v5160
        %v5162 = vpop.f32.mrb[0].mxu0
        %v5163 = vadd.f32 %v5069, %v5162
        %v5164 = vpop.f32.mrb[0].mxu0
        %5165 = vmatprep.mubr.f32.mxu0 0.0
        %v5166 = vand.u32 %v4876, 4294901760
        %v5167 = vsub.f32 %v4876, %v5166
        %5168 = vmatmul.mubr.f32.gmra.mrb[0].mxu0 %v5167
        %v5169 = vpop.f32.mrb[0].mxu0
        %v5170 = vadd.f32 %v5075, %v5169
        %v5171 = vpop.f32.mrb[0].mxu0
        %5172 = vmatprep.mubr.f32.mxu0 0.0
        %v5173 = vand.u32 %v4879, 4294901760
        %v5174 = vsub.f32 %v4879, %v5173
        %5175 = vmatmul.mubr.f32.gmra.mrb[0].mxu0 %v5174
        %v5176 = vpop.f32.mrb[0].mxu0
        %v5177 = vadd.f32 %v5081, %v5176
        %v5178 = vpop.f32.mrb[0].mxu0
        %5179 = vmatprep.mubr.f32.mxu0 0.0
        %v5180 = vand.u32 %v4882, 4294901760
        %v5181 = vsub.f32 %v4882, %v5180
        %5182 = vmatmul.mubr.f32.gmra.mrb[0].mxu0 %v5181
        %v5183 = vpop.f32.mrb[0].mxu0
        %v5184 = vadd.f32 %v5087, %v5183
        %v5185 = vpop.f32.mrb[0].mxu0
        %5186 = vdwg.mxu0
        %5187 = vmatprep.subr.mxu0 0.0
        %v5188 = vand.u32 %v4832, 4294901760
        %5189 = vmatpush1.msra.mxu0 %v5188
        %5190 = vmatprep.subr.mxu0 0.0
        %v5191 = vand.u32 %v4833, 4294901760
        %5192 = vmatpush1.msra.mxu0 %v5191
        %5193 = vmatprep.subr.mxu0 0.0
        %5194 = vmatpush1.msra.mxu0 0.0
        %5195 = vmatprep.subr.mxu0 0.0
        %5196 = vmatpush1.msra.mxu0 0.0
        %5197 = vmatprep.subr.mxu0 0.0
        %5198 = vmatpush1.msra.mxu0 0.0
        %5199 = vmatprep.subr.mxu0 0.0
        %5200 = vmatpush1.msra.mxu0 0.0
        %5201 = vmatprep.subr.mxu0 0.0
        %5202 = vmatpush1.msra.mxu0 0.0
        %5203 = vmatprep.subr.mxu0 0.0
        %5204 = vmatpush1.msra.mxu0 0.0
        %5205 = vmatprep.subr.mxu0 0.0
        %5206 = vmatpush1.msra.mxu0 0.0
        %5207 = vmatprep.subr.mxu0 0.0
        %5208 = vmatpush1.msra.mxu0 0.0
        %5209 = vmatprep.subr.mxu0 0.0
        %5210 = vmatpush1.msra.mxu0 0.0
        %5211 = vmatprep.subr.mxu0 0.0
        %5212 = vmatpush1.msra.mxu0 0.0
        %5213 = vmatprep.subr.mxu0 0.0
        %5214 = vmatpush1.msra.mxu0 0.0
        %5215 = vmatprep.subr.mxu0 0.0
        %5216 = vmatpush1.msra.mxu0 0.0
        %5217 = vmatprep.subr.mxu0 0.0
        %5218 = vmatpush1.msra.mxu0 0.0
        %5219 = vmatprep.subr.mxu0 0.0
        %5220 = vmatpush1.msra.mxu0 0.0
        %5221 = vmatprep.subr.mxu0 0.0
        %5222 = vmatpush1.msra.mxu0 0.0
        %5223 = vmatprep.subr.mxu0 0.0
        %5224 = vmatpush1.msra.mxu0 0.0
        %5225 = vmatprep.subr.mxu0 0.0
        %5226 = vmatpush1.msra.mxu0 0.0
        %5227 = vmatprep.subr.mxu0 0.0
        %5228 = vmatpush1.msra.mxu0 0.0
        %5229 = vmatprep.subr.mxu0 0.0
        %5230 = vmatpush1.msra.mxu0 0.0
        %5231 = vmatprep.subr.mxu0 0.0
        %5232 = vmatpush1.msra.mxu0 0.0
        %5233 = vmatprep.subr.mxu0 0.0
        %5234 = vmatpush1.msra.mxu0 0.0
        %5235 = vmatprep.subr.mxu0 0.0
        %5236 = vmatpush1.msra.mxu0 0.0
        %5237 = vmatprep.subr.mxu0 0.0
        %5238 = vmatpush1.msra.mxu0 0.0
        %5239 = vmatprep.subr.mxu0 0.0
        %5240 = vmatpush1.msra.mxu0 0.0
        %5241 = vmatprep.subr.mxu0 0.0
        %5242 = vmatpush1.msra.mxu0 0.0
        %5243 = vmatprep.subr.mxu0 0.0
        %5244 = vmatpush1.msra.mxu0 0.0
        %5245 = vmatprep.subr.mxu0 0.0
        %5246 = vmatpush1.msra.mxu0 0.0
        %5247 = vmatprep.subr.mxu0 0.0
        %5248 = vmatpush1.msra.mxu0 0.0
        %5249 = vmatprep.subr.mxu0 0.0
        %5250 = vmatpush1.msra.mxu0 0.0
        %5251 = vmatprep.subr.mxu0 0.0
        %5252 = vmatpush1.msra.mxu0 0.0
        %5253 = vmatprep.mubr.f32.mxu0 0.0
        %v5254 = vand.u32 %v4873, 4294901760
        %v5255 = vsub.f32 %v4873, %v5254
        %v5256 = vand.u32 %v5255, 4294901760
        %5257 = vmatmul.mubr.f32.gmra.mrb[0].mxu0 %v5256
        %v5258 = vpop.f32.mrb[0].mxu0
        %v5259 = vadd.f32 %v5163, %v5258
        %v5260 = vpop.f32.mrb[0].mxu0
        %5261 = vmatprep.mubr.f32.mxu0 0.0
        %v5262 = vand.u32 %v4876, 4294901760
        %v5263 = vsub.f32 %v4876, %v5262
        %v5264 = vand.u32 %v5263, 4294901760
        %5265 = vmatmul.mubr.f32.gmra.mrb[0].mxu0 %v5264
        %v5266 = vpop.f32.mrb[0].mxu0
        %v5267 = vadd.f32 %v5170, %v5266
        %v5268 = vpop.f32.mrb[0].mxu0
        %5269 = vmatprep.mubr.f32.mxu0 0.0
        %v5270 = vand.u32 %v4879, 4294901760
        %v5271 = vsub.f32 %v4879, %v5270
        %v5272 = vand.u32 %v5271, 4294901760
        %5273 = vmatmul.mubr.f32.gmra.mrb[0].mxu0 %v5272
        %v5274 = vpop.f32.mrb[0].mxu0
        %v5275 = vadd.f32 %v5177, %v5274
        %v5276 = vpop.f32.mrb[0].mxu0
        %5277 = vmatprep.mubr.f32.mxu0 0.0
        %v5278 = vand.u32 %v4882, 4294901760
        %v5279 = vsub.f32 %v4882, %v5278
        %v5280 = vand.u32 %v5279, 4294901760
        %5281 = vmatmul.mubr.f32.gmra.mrb[0].mxu0 %v5280
        %v5282 = vpop.f32.mrb[0].mxu0
        %v5283 = vadd.f32 %v5184, %v5282
        %v5284 = vpop.f32.mrb[0].mxu0
        %5285 = vdwg.mxu0
        %5286 = vmatprep.subr.mxu0 0.0
        %v5287 = vand.u32 %v4832, 4294901760
        %v5288 = vsub.f32 %v4832, %v5287
        %v5289 = vand.u32 %v5288, 4294901760
        %5290 = vmatpush1.msra.mxu0 %v5289
        %5291 = vmatprep.subr.mxu0 0.0
        %v5292 = vand.u32 %v4833, 4294901760
        %v5293 = vsub.f32 %v4833, %v5292
        %v5294 = vand.u32 %v5293, 4294901760
        %5295 = vmatpush1.msra.mxu0 %v5294
        %5296 = vmatprep.subr.mxu0 0.0
        %5297 = vmatpush1.msra.mxu0 0.0
        %5298 = vmatprep.subr.mxu0 0.0
        %5299 = vmatpush1.msra.mxu0 0.0
        %5300 = vmatprep.subr.mxu0 0.0
        %5301 = vmatpush1.msra.mxu0 0.0
        %5302 = vmatprep.subr.mxu0 0.0
        %5303 = vmatpush1.msra.mxu0 0.0
        %5304 = vmatprep.subr.mxu0 0.0
        %5305 = vmatpush1.msra.mxu0 0.0
        %5306 = vmatprep.subr.mxu0 0.0
        %5307 = vmatpush1.msra.mxu0 0.0
        %5308 = vmatprep.subr.mxu0 0.0
        %5309 = vmatpush1.msra.mxu0 0.0
        %5310 = vmatprep.subr.mxu0 0.0
        %5311 = vmatpush1.msra.mxu0 0.0
        %5312 = vmatprep.subr.mxu0 0.0
        %5313 = vmatpush1.msra.mxu0 0.0
        %5314 = vmatprep.subr.mxu0 0.0
        %5315 = vmatpush1.msra.mxu0 0.0
        %5316 = vmatprep.subr.mxu0 0.0
        %5317 = vmatpush1.msra.mxu0 0.0
        %5318 = vmatprep.subr.mxu0 0.0
        %5319 = vmatpush1.msra.mxu0 0.0
        %5320 = vmatprep.subr.mxu0 0.0
        %5321 = vmatpush1.msra.mxu0 0.0
        %5322 = vmatprep.subr.mxu0 0.0
        %5323 = vmatpush1.msra.mxu0 0.0
        %5324 = vmatprep.subr.mxu0 0.0
        %5325 = vmatpush1.msra.mxu0 0.0
        %5326 = vmatprep.subr.mxu0 0.0
        %5327 = vmatpush1.msra.mxu0 0.0
        %5328 = vmatprep.subr.mxu0 0.0
        %5329 = vmatpush1.msra.mxu0 0.0
        %5330 = vmatprep.subr.mxu0 0.0
        %5331 = vmatpush1.msra.mxu0 0.0
        %5332 = vmatprep.subr.mxu0 0.0
        %5333 = vmatpush1.msra.mxu0 0.0
        %5334 = vmatprep.subr.mxu0 0.0
        %5335 = vmatpush1.msra.mxu0 0.0
        %5336 = vmatprep.subr.mxu0 0.0
        %5337 = vmatpush1.msra.mxu0 0.0
        %5338 = vmatprep.subr.mxu0 0.0
        %5339 = vmatpush1.msra.mxu0 0.0
        %5340 = vmatprep.subr.mxu0 0.0
        %5341 = vmatpush1.msra.mxu0 0.0
        %5342 = vmatprep.subr.mxu0 0.0
        %5343 = vmatpush1.msra.mxu0 0.0
        %5344 = vmatprep.subr.mxu0 0.0
        %5345 = vmatpush1.msra.mxu0 0.0
        %5346 = vmatprep.subr.mxu0 0.0
        %5347 = vmatpush1.msra.mxu0 0.0
        %5348 = vmatprep.subr.mxu0 0.0
        %5349 = vmatpush1.msra.mxu0 0.0
        %5350 = vmatprep.subr.mxu0 0.0
        %5351 = vmatpush1.msra.mxu0 0.0
        %5352 = vmatprep.subr.mxu0 0.0
        %5353 = vmatpush1.msra.mxu0 0.0
        %5354 = vmatprep.subr.mxu0 0.0
        %5355 = vmatpush1.msra.mxu0 0.0
        %5356 = vmatprep.mubr.f32.mxu0 0.0
        %v5357 = vand.u32 %v4873, 4294901760
        %5358 = vmatmul.mubr.f32.gmra.mrb[0].mxu0 %v5357
        %v5359 = vpop.f32.mrb[0].mxu0
        %v5360 = vadd.f32 %v5259, %v5359
        %v5361 = vpop.f32.mrb[0].mxu0
        %5362 = vmatprep.mubr.f32.mxu0 0.0
        %v5363 = vand.u32 %v4876, 4294901760
        %5364 = vmatmul.mubr.f32.gmra.mrb[0].mxu0 %v5363
        %v5365 = vpop.f32.mrb[0].mxu0
        %v5366 = vadd.f32 %v5267, %v5365
        %v5367 = vpop.f32.mrb[0].mxu0
        %5368 = vmatprep.mubr.f32.mxu0 0.0
        %v5369 = vand.u32 %v4879, 4294901760
        %5370 = vmatmul.mubr.f32.gmra.mrb[0].mxu0 %v5369
        %v5371 = vpop.f32.mrb[0].mxu0
        %v5372 = vadd.f32 %v5275, %v5371
        %v5373 = vpop.f32.mrb[0].mxu0
        %5374 = vmatprep.mubr.f32.mxu0 0.0
        %v5375 = vand.u32 %v4882, 4294901760
        %5376 = vmatmul.mubr.f32.gmra.mrb[0].mxu0 %v5375
        %v5377 = vpop.f32.mrb[0].mxu0
        %v5378 = vadd.f32 %v5283, %v5377
        %v5379 = vpop.f32.mrb[0].mxu0
        %5380 = vdwg.mxu0
        %5381 = vmatprep.subr.mxu0 0.0
        %v5382 = vand.u32 %v4832, 4294901760
        %5383 = vmatpush1.msra.mxu0 %v5382
        %5384 = vmatprep.subr.mxu0 0.0
        %v5385 = vand.u32 %v4833, 4294901760
        %5386 = vmatpush1.msra.mxu0 %v5385
        %5387 = vmatprep.subr.mxu0 0.0
        %5388 = vmatpush1.msra.mxu0 0.0
        %5389 = vmatprep.subr.mxu0 0.0
        %5390 = vmatpush1.msra.mxu0 0.0
        %5391 = vmatprep.subr.mxu0 0.0
        %5392 = vmatpush1.msra.mxu0 0.0
        %5393 = vmatprep.subr.mxu0 0.0
        %5394 = vmatpush1.msra.mxu0 0.0
        %5395 = vmatprep.subr.mxu0 0.0
        %5396 = vmatpush1.msra.mxu0 0.0
        %5397 = vmatprep.subr.mxu0 0.0
        %5398 = vmatpush1.msra.mxu0 0.0
        %5399 = vmatprep.subr.mxu0 0.0
        %5400 = vmatpush1.msra.mxu0 0.0
        %5401 = vmatprep.subr.mxu0 0.0
        %5402 = vmatpush1.msra.mxu0 0.0
        %5403 = vmatprep.subr.mxu0 0.0
        %5404 = vmatpush1.msra.mxu0 0.0
        %5405 = vmatprep.subr.mxu0 0.0
        %5406 = vmatpush1.msra.mxu0 0.0
        %5407 = vmatprep.subr.mxu0 0.0
        %5408 = vmatpush1.msra.mxu0 0.0
        %5409 = vmatprep.subr.mxu0 0.0
        %5410 = vmatpush1.msra.mxu0 0.0
        %5411 = vmatprep.subr.mxu0 0.0
        %5412 = vmatpush1.msra.mxu0 0.0
        %5413 = vmatprep.subr.mxu0 0.0
        %5414 = vmatpush1.msra.mxu0 0.0
        %5415 = vmatprep.subr.mxu0 0.0
        %5416 = vmatpush1.msra.mxu0 0.0
        %5417 = vmatprep.subr.mxu0 0.0
        %5418 = vmatpush1.msra.mxu0 0.0
        %5419 = vmatprep.subr.mxu0 0.0
        %5420 = vmatpush1.msra.mxu0 0.0
        %5421 = vmatprep.subr.mxu0 0.0
        %5422 = vmatpush1.msra.mxu0 0.0
        %5423 = vmatprep.subr.mxu0 0.0
        %5424 = vmatpush1.msra.mxu0 0.0
        %5425 = vmatprep.subr.mxu0 0.0
        %5426 = vmatpush1.msra.mxu0 0.0
        %5427 = vmatprep.subr.mxu0 0.0
        %5428 = vmatpush1.msra.mxu0 0.0
        %5429 = vmatprep.subr.mxu0 0.0
        %5430 = vmatpush1.msra.mxu0 0.0
        %5431 = vmatprep.subr.mxu0 0.0
        %5432 = vmatpush1.msra.mxu0 0.0
        %5433 = vmatprep.subr.mxu0 0.0
        %5434 = vmatpush1.msra.mxu0 0.0
        %5435 = vmatprep.subr.mxu0 0.0
        %5436 = vmatpush1.msra.mxu0 0.0
        %5437 = vmatprep.subr.mxu0 0.0
        %5438 = vmatpush1.msra.mxu0 0.0
        %5439 = vmatprep.subr.mxu0 0.0
        %5440 = vmatpush1.msra.mxu0 0.0
        %5441 = vmatprep.subr.mxu0 0.0
        %5442 = vmatpush1.msra.mxu0 0.0
        %5443 = vmatprep.subr.mxu0 0.0
        %5444 = vmatpush1.msra.mxu0 0.0
        %5445 = vmatprep.subr.mxu0 0.0
        %5446 = vmatpush1.msra.mxu0 0.0
        %5447 = vmatprep.mubr.f32.mxu0 0.0
        %v5448 = vand.u32 %v4873, 4294901760
        %5449 = vmatmul.mubr.f32.gmra.mrb[0].mxu0 %v5448
        %v5450 = vpop.f32.mrb[0].mxu0
        %v5451 = vadd.f32 %v5360, %v5450
        %v5452 = vpop.f32.mrb[0].mxu0
        %5453 = vmatprep.mubr.f32.mxu0 0.0
        %v5454 = vand.u32 %v4876, 4294901760
        %5455 = vmatmul.mubr.f32.gmra.mrb[0].mxu0 %v5454
        %v5456 = vpop.f32.mrb[0].mxu0
        %v5457 = vadd.f32 %v5366, %v5456
        %v5458 = vpop.f32.mrb[0].mxu0
        %5459 = vmatprep.mubr.f32.mxu0 0.0
        %v5460 = vand.u32 %v4879, 4294901760
        %5461 = vmatmul.mubr.f32.gmra.mrb[0].mxu0 %v5460
        %v5462 = vpop.f32.mrb[0].mxu0
        %v5463 = vadd.f32 %v5372, %v5462
        %v5464 = vpop.f32.mrb[0].mxu0
        %5465 = vmatprep.mubr.f32.mxu0 0.0
        %v5466 = vand.u32 %v4882, 4294901760
        %5467 = vmatmul.mubr.f32.gmra.mrb[0].mxu0 %v5466
        %v5468 = vpop.f32.mrb[0].mxu0
        %v5469 = vadd.f32 %v5378, %v5468
        %v5470 = vpop.f32.mrb[0].mxu0
        %5471 = vdwg.mxu0
        %vm5472 = vcmp.gt.f32.partialorder %v5451, 0.0
        %vm5473 = vcmp.gt.f32.partialorder %v5457, 0.0
        %vm5474 = vcmp.gt.f32.partialorder %v5463, 0.0
        %vm5475 = vcmp.gt.f32.partialorder %v5469, 0.0
        %v5476 = vstv %s4850
        %v5477 = vmul.f32 %v5476, %v5451
        %v5478 = vmul.f32 %v5476, %v5457
        %v5479 = vmul.f32 %v5476, %v5463
        %v5480 = vmul.f32 %v5476, %v5469
        %v5481 = vsel %vm5472, %v5451, %v5477
        %v5482 = vsel %vm5473, %v5457, %v5478
        %v5483 = vsel %vm5474, %v5463, %v5479
        %v5484 = vsel %vm5475, %v5469, %v5480
        %5485 = vadd.xlane.f32.xlu0 %v5481
        %v5486 = vpop.xlane.xlu0 %5485
        %5487 = vadd.xlane.f32.xlu0 %v5482
        %v5488 = vpop.xlane.xlu0 %5487
        %5489 = vadd.xlane.f32.xlu0 %v5483
        %v5490 = vpop.xlane.xlu0 %5489
        %5491 = vadd.xlane.f32.xlu0 %v5484
        %v5492 = vpop.xlane.xlu0 %5491
        %v5493 = vmul.f32 %v5481, %v5481
        %v5494 = vmul.f32 %v5482, %v5482
        %v5495 = vmul.f32 %v5483, %v5483
        %v5496 = vmul.f32 %v5484, %v5484
        %5497 = vadd.xlane.f32.xlu0 %v5493
        %v5498 = vpop.xlane.xlu0 %5497
        %5499 = vadd.xlane.f32.xlu0 %v5494
        %v5500 = vpop.xlane.xlu0 %5499
        %5501 = vadd.xlane.f32.xlu0 %v5495
        %v5502 = vpop.xlane.xlu0 %5501
        %5503 = vadd.xlane.f32.xlu0 %v5496
        %v5504 = vpop.xlane.xlu0 %5503
        %v5505 = vadd.f32 %v5486, %v5488
        %v5506 = vadd.f32 %v5505, %v5490
        %v5507 = vadd.f32 %v5506, %v5492
        %v5508 = vrot.slane %v5507, 4
        %v5509 = vadd.f32 %v5507, %v5508
        %v5510 = vrot.slane %v5509, 2
        %v5511 = vadd.f32 %v5509, %v5510
        %v5512 = vrot.slane %v5511, 1
        %v5513 = vadd.f32 %v5511, %v5512
        %v5514 = vmul.f32 %v5513, 0.00024414063
        %v5515 = vadd.f32 %v5498, %v5500
        %v5516 = vadd.f32 %v5515, %v5502
        %v5517 = vadd.f32 %v5516, %v5504
        %v5518 = vrot.slane %v5517, 4
        %v5519 = vadd.f32 %v5517, %v5518
        %v5520 = vrot.slane %v5519, 2
        %v5521 = vadd.f32 %v5519, %v5520
        %v5522 = vrot.slane %v5521, 1
        %v5523 = vadd.f32 %v5521, %v5522
        %v5524 = vmul.f32 %v5523, 0.00024414063
        %v5525 = vmul.f32 %v5514, %v5514
        %v5526 = vsub.f32 %v5524, %v5525
        %v5527 = vsub.f32 %v5481, %v5514
        %v5528 = vsub.f32 %v5482, %v5514
        %v5529 = vsub.f32 %v5483, %v5514
        %v5530 = vsub.f32 %v5484, %v5514
        %v5531 = vadd.f32 %v5526, 1e-05
        %v5532 = vrsqrt.pop %v5531
        %v5533 = vmul.f32 %v5527, %v5532
        %v5534 = vmul.f32 %v5528, %v5532
        %v5535 = vmul.f32 %v5529, %v5532
        %v5536 = vmul.f32 %v5530, %v5532
        %5537 = vset.pattern.permute.xlu0 1
        %5538 = vperm.xlu0 %5537, %v4843
        %v5539 = vpop.permute.xlu0 %5538
        %5541 = vset.pattern.permute.xlu0 1
        %5542 = vperm.xlu0 %5541, %v4844
        %v5543 = vpop.permute.xlu0 %5542
        %5545 = vset.pattern.permute.xlu0 1
        %5546 = vperm.xlu0 %5545, %v4845
        %v5547 = vpop.permute.xlu0 %5546
        %5549 = vset.pattern.permute.xlu0 1
        %5550 = vperm.xlu0 %5549, %v4846
        %v5551 = vpop.permute.xlu0 %5550
        %v5553 = vmul.f32 %v5539, %v5533
        %v5554 = vmul.f32 %v5543, %v5534
        %v5555 = vmul.f32 %v5547, %v5535
        %v5556 = vmul.f32 %v5551, %v5536
        %5557 = vset.pattern.permute.xlu0 2
        %5558 = vperm.xlu0 %5557, %v4843
        %v5559 = vpop.permute.xlu0 %5558
        %5561 = vset.pattern.permute.xlu0 2
        %5562 = vperm.xlu0 %5561, %v4844
        %v5563 = vpop.permute.xlu0 %5562
        %5565 = vset.pattern.permute.xlu0 2
        %5566 = vperm.xlu0 %5565, %v4845
        %v5567 = vpop.permute.xlu0 %5566
        %5569 = vset.pattern.permute.xlu0 2
        %5570 = vperm.xlu0 %5569, %v4846
        %v5571 = vpop.permute.xlu0 %5570
        %v5573 = vadd.f32 %v5553, %v5559
        %v5574 = vadd.f32 %v5554, %v5563
        %v5575 = vadd.f32 %v5555, %v5567
        %v5576 = vadd.f32 %v5556, %v5571
        %5581 = vrot.lane.b32.xlu0 %v5573, 2
        %v5582 = vpop.permute.xlu0 %5581
        %5583 = vrot.lane.b32.xlu0 %v5574, 2
        %v5584 = vpop.permute.xlu0 %5583
        %5585 = vrot.lane.b32.xlu0 %v5575, 2
        %v5586 = vpop.permute.xlu0 %5585
        %5587 = vrot.lane.b32.xlu0 %v5576, 2
        %v5588 = vpop.permute.xlu0 %5587
        %v5593 = vsel %vm2547, 0.0, %v5582
        %v5594 = vsel %vm2547, 0.0, %v5584
        %v5595 = vsel %vm2547, 0.0, %v5586
        %v5596 = vsel %vm2547, 0.0, %v5588
        %5597 = vset.pattern.permute.xlu0 6
        %5598 = vperm.xlu0 %5597, %v4843
        %v5599 = vpop.permute.xlu0 %5598
        %5601 = vset.pattern.permute.xlu0 6
        %5602 = vperm.xlu0 %5601, %v4844
        %v5603 = vpop.permute.xlu0 %5602
        %5605 = vset.pattern.permute.xlu0 6
        %5606 = vperm.xlu0 %5605, %v4845
        %v5607 = vpop.permute.xlu0 %5606
        %5609 = vset.pattern.permute.xlu0 6
        %5610 = vperm.xlu0 %5609, %v4846
        %v5611 = vpop.permute.xlu0 %5610
        %v5613 = vmul.f32 %v5599, %v5593
        %v5614 = vmul.f32 %v5603, %v5594
        %v5615 = vmul.f32 %v5607, %v5595
        %v5616 = vmul.f32 %v5611, %v5596
        %v5617 = vadd.f32 %v5613, 0.0
        %v5618 = vadd.f32 %v5614, 0.0
        %v5619 = vadd.f32 %v5615, 0.0
        %v5620 = vadd.f32 %v5616, 0.0
        %5621 = vset.pattern.permute.xlu0 7
        %5622 = vperm.xlu0 %5621, %v4843
        %v5623 = vpop.permute.xlu0 %5622
        %5625 = vset.pattern.permute.xlu0 7
        %5626 = vperm.xlu0 %5625, %v4844
        %v5627 = vpop.permute.xlu0 %5626
        %5629 = vset.pattern.permute.xlu0 7
        %5630 = vperm.xlu0 %5629, %v4845
        %v5631 = vpop.permute.xlu0 %5630
        %5633 = vset.pattern.permute.xlu0 7
        %5634 = vperm.xlu0 %5633, %v4846
        %v5635 = vpop.permute.xlu0 %5634
        %v5637 = vmul.f32 %v5623, %v5573
        %v5638 = vmul.f32 %v5627, %v5574
        %v5639 = vmul.f32 %v5631, %v5575
        %v5640 = vmul.f32 %v5635, %v5576
        %v5641 = vadd.f32 %v5617, %v5637
        %v5642 = vadd.f32 %v5618, %v5638
        %v5643 = vadd.f32 %v5619, %v5639
        %v5644 = vadd.f32 %v5620, %v5640
        %5645 = vrot.lane.b32.xlu0 %v5573, 126
        %v5646 = vpop.permute.xlu0 %5645
        %5647 = vrot.lane.b32.xlu0 %v5574, 126
        %v5648 = vpop.permute.xlu0 %5647
        %5649 = vrot.lane.b32.xlu0 %v5575, 126
        %v5650 = vpop.permute.xlu0 %5649
        %5651 = vrot.lane.b32.xlu0 %v5576, 126
        %v5652 = vpop.permute.xlu0 %5651
        %v5657 = vsel %vm2612, %v5646, 0.0
        %v5658 = vsel %vm2612, %v5648, 0.0
        %v5659 = vsel %vm2612, %v5650, 0.0
        %v5660 = vsel %vm2612, %v5652, 0.0
        %5661 = vset.pattern.permute.xlu0 8
        %5662 = vperm.xlu0 %5661, %v4843
        %v5663 = vpop.permute.xlu0 %5662
        %5665 = vset.pattern.permute.xlu0 8
        %5666 = vperm.xlu0 %5665, %v4844
        %v5667 = vpop.permute.xlu0 %5666
        %5669 = vset.pattern.permute.xlu0 8
        %5670 = vperm.xlu0 %5669, %v4845
        %v5671 = vpop.permute.xlu0 %5670
        %5673 = vset.pattern.permute.xlu0 8
        %5674 = vperm.xlu0 %5673, %v4846
        %v5675 = vpop.permute.xlu0 %5674
        %v5677 = vmul.f32 %v5663, %v5657
        %v5678 = vmul.f32 %v5667, %v5658
        %v5679 = vmul.f32 %v5671, %v5659
        %v5680 = vmul.f32 %v5675, %v5660
        %v5681 = vadd.f32 %v5641, %v5677
        %v5682 = vadd.f32 %v5642, %v5678
        %v5683 = vadd.f32 %v5643, %v5679
        %v5684 = vadd.f32 %v5644, %v5680
        %5685 = vset.pattern.permute.xlu0 3
        %5686 = vperm.xlu0 %5685, %v4843
        %v5687 = vpop.permute.xlu0 %5686
        %5689 = vset.pattern.permute.xlu0 3
        %5690 = vperm.xlu0 %5689, %v4844
        %v5691 = vpop.permute.xlu0 %5690
        %5693 = vset.pattern.permute.xlu0 3
        %5694 = vperm.xlu0 %5693, %v4845
        %v5695 = vpop.permute.xlu0 %5694
        %5697 = vset.pattern.permute.xlu0 3
        %5698 = vperm.xlu0 %5697, %v4846
        %v5699 = vpop.permute.xlu0 %5698
        %v5701 = vadd.f32 %v5681, %v5687
        %v5702 = vadd.f32 %v5682, %v5691
        %v5703 = vadd.f32 %v5683, %v5695
        %v5704 = vadd.f32 %v5684, %v5699
        %5705 = vadd.xlane.f32.xlu0 %v5701
        %v5706 = vpop.xlane.xlu0 %5705
        %5707 = vadd.xlane.f32.xlu0 %v5702
        %v5708 = vpop.xlane.xlu0 %5707
        %5709 = vadd.xlane.f32.xlu0 %v5703
        %v5710 = vpop.xlane.xlu0 %5709
        %5711 = vadd.xlane.f32.xlu0 %v5704
        %v5712 = vpop.xlane.xlu0 %5711
        %v5713 = vmul.f32 %v5701, %v5701
        %v5714 = vmul.f32 %v5702, %v5702
        %v5715 = vmul.f32 %v5703, %v5703
        %v5716 = vmul.f32 %v5704, %v5704
        %5717 = vadd.xlane.f32.xlu0 %v5713
        %v5718 = vpop.xlane.xlu0 %5717
        %5719 = vadd.xlane.f32.xlu0 %v5714
        %v5720 = vpop.xlane.xlu0 %5719
        %5721 = vadd.xlane.f32.xlu0 %v5715
        %v5722 = vpop.xlane.xlu0 %5721
        %5723 = vadd.xlane.f32.xlu0 %v5716
        %v5724 = vpop.xlane.xlu0 %5723
        %v5725 = vadd.f32 %v5706, %v5708
        %v5726 = vadd.f32 %v5725, %v5710
        %v5727 = vadd.f32 %v5726, %v5712
        %v5728 = vrot.slane %v5727, 4
        %v5729 = vadd.f32 %v5727, %v5728
        %v5730 = vrot.slane %v5729, 2
        %v5731 = vadd.f32 %v5729, %v5730
        %v5732 = vrot.slane %v5731, 1
        %v5733 = vadd.f32 %v5731, %v5732
        %v5734 = vmul.f32 %v5733, 0.00024414063
        %v5735 = vadd.f32 %v5718, %v5720
        %v5736 = vadd.f32 %v5735, %v5722
        %v5737 = vadd.f32 %v5736, %v5724
        %v5738 = vrot.slane %v5737, 4
        %v5739 = vadd.f32 %v5737, %v5738
        %v5740 = vrot.slane %v5739, 2
        %v5741 = vadd.f32 %v5739, %v5740
        %v5742 = vrot.slane %v5741, 1
        %v5743 = vadd.f32 %v5741, %v5742
        %v5744 = vmul.f32 %v5743, 0.00024414063
        %v5745 = vmul.f32 %v5734, %v5734
        %v5746 = vsub.f32 %v5744, %v5745
        %v5747 = vsub.f32 %v5701, %v5734
        %v5748 = vsub.f32 %v5702, %v5734
        %v5749 = vsub.f32 %v5703, %v5734
        %v5750 = vsub.f32 %v5704, %v5734
        %v5751 = vadd.f32 %v5746, 1e-05
        %v5752 = vrsqrt.pop %v5751
        %v5753 = vmul.f32 %v5747, %v5752
        %v5754 = vmul.f32 %v5748, %v5752
        %v5755 = vmul.f32 %v5749, %v5752
        %v5756 = vmul.f32 %v5750, %v5752
        %5757 = vset.pattern.permute.xlu0 4
        %5758 = vperm.xlu0 %5757, %v4843
        %v5759 = vpop.permute.xlu0 %5758
        %5761 = vset.pattern.permute.xlu0 4
        %5762 = vperm.xlu0 %5761, %v4844
        %v5763 = vpop.permute.xlu0 %5762
        %5765 = vset.pattern.permute.xlu0 4
        %5766 = vperm.xlu0 %5765, %v4845
        %v5767 = vpop.permute.xlu0 %5766
        %5769 = vset.pattern.permute.xlu0 4
        %5770 = vperm.xlu0 %5769, %v4846
        %v5771 = vpop.permute.xlu0 %5770
        %v5773 = vmul.f32 %v5759, %v5753
        %v5774 = vmul.f32 %v5763, %v5754
        %v5775 = vmul.f32 %v5767, %v5755
        %v5776 = vmul.f32 %v5771, %v5756
        %5777 = vset.pattern.permute.xlu0 5
        %5778 = vperm.xlu0 %5777, %v4843
        %v5779 = vpop.permute.xlu0 %5778
        %5781 = vset.pattern.permute.xlu0 5
        %5782 = vperm.xlu0 %5781, %v4844
        %v5783 = vpop.permute.xlu0 %5782
        %5785 = vset.pattern.permute.xlu0 5
        %5786 = vperm.xlu0 %5785, %v4845
        %v5787 = vpop.permute.xlu0 %5786
        %5789 = vset.pattern.permute.xlu0 5
        %5790 = vperm.xlu0 %5789, %v4846
        %v5791 = vpop.permute.xlu0 %5790
        %v5793 = vadd.f32 %v5773, %v5779
        %v5794 = vadd.f32 %v5774, %v5783
        %v5795 = vadd.f32 %v5775, %v5787
        %v5796 = vadd.f32 %v5776, %v5791
        %vm5797 = vcmp.gt.f32.partialorder %v5793, 0.0
        %vm5798 = vcmp.gt.f32.partialorder %v5794, 0.0
        %vm5799 = vcmp.gt.f32.partialorder %v5795, 0.0
        %vm5800 = vcmp.gt.f32.partialorder %v5796, 0.0
        %v5801 = vstv %s4851
        %v5802 = vmul.f32 %v5801, %v5793
        %v5803 = vmul.f32 %v5801, %v5794
        %v5804 = vmul.f32 %v5801, %v5795
        %v5805 = vmul.f32 %v5801, %v5796
        %v5806 = vsel %vm5797, %v5793, %v5802
        %v5807 = vsel %vm5798, %v5794, %v5803
        %v5808 = vsel %vm5799, %v5795, %v5804
        %v5809 = vsel %vm5800, %v5796, %v5805
        %5811 = vset.pattern.permute.xlu0 0
        %5812 = vperm.xlu0 %5811, %v4848
        %v5813 = vpop.permute.xlu0 %5812
        %5816 = vset.pattern.permute.xlu0 0
        %5817 = vperm.xlu0 %5816, %v4849
        %v5818 = vpop.permute.xlu0 %5817
        %v5821 = vsel %vm1251, %v4840, 0
        %v5824 = vsel %vm1251, %v4841, 0
        %5826 = vmatprep.subr.mxu0 0.0
        %v5827 = vand.u32 %v5806, 4294901760
        %5828 = vmatpush1.msra.mxu0 %v5827
        %5829 = vmatprep.subr.mxu0 0.0
        %v5830 = vand.u32 %v5807, 4294901760
        %5831 = vmatpush1.msra.mxu0 %v5830
        %5832 = vmatprep.subr.mxu0 0.0
        %v5833 = vand.u32 %v5808, 4294901760
        %5834 = vmatpush1.msra.mxu0 %v5833
        %5835 = vmatprep.subr.mxu0 0.0
        %v5836 = vand.u32 %v5809, 4294901760
        %5837 = vmatpush1.msra.mxu0 %v5836
        %5838 = vmatprep.subr.mxu0 0.0
        %5839 = vmatpush1.msra.mxu0 0.0
        %5840 = vmatprep.subr.mxu0 0.0
        %5841 = vmatpush1.msra.mxu0 0.0
        %5842 = vmatprep.subr.mxu0 0.0
        %5843 = vmatpush1.msra.mxu0 0.0
        %5844 = vmatprep.subr.mxu0 0.0
        %5845 = vmatpush1.msra.mxu0 0.0
        %5846 = vmatprep.subr.mxu0 0.0
        %5847 = vmatpush1.msra.mxu0 0.0
        %5848 = vmatprep.subr.mxu0 0.0
        %5849 = vmatpush1.msra.mxu0 0.0
        %5850 = vmatprep.subr.mxu0 0.0
        %5851 = vmatpush1.msra.mxu0 0.0
        %5852 = vmatprep.subr.mxu0 0.0
        %5853 = vmatpush1.msra.mxu0 0.0
        %5854 = vmatprep.subr.mxu0 0.0
        %5855 = vmatpush1.msra.mxu0 0.0
        %5856 = vmatprep.subr.mxu0 0.0
        %5857 = vmatpush1.msra.mxu0 0.0
        %5858 = vmatprep.subr.mxu0 0.0
        %5859 = vmatpush1.msra.mxu0 0.0
        %5860 = vmatprep.subr.mxu0 0.0
        %5861 = vmatpush1.msra.mxu0 0.0
        %5862 = vmatprep.subr.mxu0 0.0
        %5863 = vmatpush1.msra.mxu0 0.0
        %5864 = vmatprep.subr.mxu0 0.0
        %5865 = vmatpush1.msra.mxu0 0.0
        %5866 = vmatprep.subr.mxu0 0.0
        %5867 = vmatpush1.msra.mxu0 0.0
        %5868 = vmatprep.subr.mxu0 0.0
        %5869 = vmatpush1.msra.mxu0 0.0
        %5870 = vmatprep.subr.mxu0 0.0
        %5871 = vmatpush1.msra.mxu0 0.0
        %5872 = vmatprep.subr.mxu0 0.0
        %5873 = vmatpush1.msra.mxu0 0.0
        %5874 = vmatprep.subr.mxu0 0.0
        %5875 = vmatpush1.msra.mxu0 0.0
        %5876 = vmatprep.subr.mxu0 0.0
        %5877 = vmatpush1.msra.mxu0 0.0
        %5878 = vmatprep.subr.mxu0 0.0
        %5879 = vmatpush1.msra.mxu0 0.0
        %5880 = vmatprep.subr.mxu0 0.0
        %5881 = vmatpush1.msra.mxu0 0.0
        %5882 = vmatprep.subr.mxu0 0.0
        %5883 = vmatpush1.msra.mxu0 0.0
        %5884 = vmatprep.subr.mxu0 0.0
        %5885 = vmatpush1.msra.mxu0 0.0
        %5886 = vmatprep.subr.mxu0 0.0
        %5887 = vmatpush1.msra.mxu0 0.0
        %5888 = vmatprep.subr.mxu0 0.0
        %5889 = vmatpush1.msra.mxu0 0.0
        %5890 = vmatprep.subr.mxu0 0.0
        %5891 = vmatpush1.msra.mxu0 0.0
        %5892 = vmatprep.subr.mxu0 0.0
        %5893 = vmatpush1.msra.mxu0 0.0
        %5894 = vmatprep.mubr.f32.mxu0 0.0
        %v5895 = vand.u32 %v5821, 4294901760
        %v5896 = vsub.f32 %v5821, %v5895
        %v5897 = vand.u32 %v5896, 4294901760
        %v5898 = vsub.f32 %v5896, %v5897
        %v5899 = vand.u32 %v5898, 4294901760
        %5900 = vmatmul.mubr.f32.gmra.mrb[0].mxu0 %v5899
        %v5901 = vpop.f32.mrb[0].mxu0
        %v5902 = vadd.f32 %v5813, %v5901
        %v5903 = vpop.f32.mrb[0].mxu0
        %5904 = vmatprep.mubr.f32.mxu0 0.0
        %v5905 = vand.u32 %v5824, 4294901760
        %v5906 = vsub.f32 %v5824, %v5905
        %v5907 = vand.u32 %v5906, 4294901760
        %v5908 = vsub.f32 %v5906, %v5907
        %v5909 = vand.u32 %v5908, 4294901760
        %5910 = vmatmul.mubr.f32.gmra.mrb[0].mxu0 %v5909
        %v5911 = vpop.f32.mrb[0].mxu0
        %v5912 = vadd.f32 %v5818, %v5911
        %v5913 = vpop.f32.mrb[0].mxu0
        %5914 = vdwg.mxu0
        %5915 = vmatprep.subr.mxu0 0.0
        %v5916 = vand.u32 %v5806, 4294901760
        %v5917 = vsub.f32 %v5806, %v5916
        %v5918 = vand.u32 %v5917, 4294901760
        %v5919 = vsub.f32 %v5917, %v5918
        %v5920 = vand.u32 %v5919, 4294901760
        %5921 = vmatpush1.msra.mxu0 %v5920
        %5922 = vmatprep.subr.mxu0 0.0
        %v5923 = vand.u32 %v5807, 4294901760
        %v5924 = vsub.f32 %v5807, %v5923
        %v5925 = vand.u32 %v5924, 4294901760
        %v5926 = vsub.f32 %v5924, %v5925
        %v5927 = vand.u32 %v5926, 4294901760
        %5928 = vmatpush1.msra.mxu0 %v5927
        %5929 = vmatprep.subr.mxu0 0.0
        %v5930 = vand.u32 %v5808, 4294901760
        %v5931 = vsub.f32 %v5808, %v5930
        %v5932 = vand.u32 %v5931, 4294901760
        %v5933 = vsub.f32 %v5931, %v5932
        %v5934 = vand.u32 %v5933, 4294901760
        %5935 = vmatpush1.msra.mxu0 %v5934
        %5936 = vmatprep.subr.mxu0 0.0
        %v5937 = vand.u32 %v5809, 4294901760
        %v5938 = vsub.f32 %v5809, %v5937
        %v5939 = vand.u32 %v5938, 4294901760
        %v5940 = vsub.f32 %v5938, %v5939
        %v5941 = vand.u32 %v5940, 4294901760
        %5942 = vmatpush1.msra.mxu0 %v5941
        %5943 = vmatprep.subr.mxu0 0.0
        %5944 = vmatpush1.msra.mxu0 0.0
        %5945 = vmatprep.subr.mxu0 0.0
        %5946 = vmatpush1.msra.mxu0 0.0
        %5947 = vmatprep.subr.mxu0 0.0
        %5948 = vmatpush1.msra.mxu0 0.0
        %5949 = vmatprep.subr.mxu0 0.0
        %5950 = vmatpush1.msra.mxu0 0.0
        %5951 = vmatprep.subr.mxu0 0.0
        %5952 = vmatpush1.msra.mxu0 0.0
        %5953 = vmatprep.subr.mxu0 0.0
        %5954 = vmatpush1.msra.mxu0 0.0
        %5955 = vmatprep.subr.mxu0 0.0
        %5956 = vmatpush1.msra.mxu0 0.0
        %5957 = vmatprep.subr.mxu0 0.0
        %5958 = vmatpush1.msra.mxu0 0.0
        %5959 = vmatprep.subr.mxu0 0.0
        %5960 = vmatpush1.msra.mxu0 0.0
        %5961 = vmatprep.subr.mxu0 0.0
        %5962 = vmatpush1.msra.mxu0 0.0
        %5963 = vmatprep.subr.mxu0 0.0
        %5964 = vmatpush1.msra.mxu0 0.0
        %5965 = vmatprep.subr.mxu0 0.0
        %5966 = vmatpush1.msra.mxu0 0.0
        %5967 = vmatprep.subr.mxu0 0.0
        %5968 = vmatpush1.msra.mxu0 0.0
        %5969 = vmatprep.subr.mxu0 0.0
        %5970 = vmatpush1.msra.mxu0 0.0
        %5971 = vmatprep.subr.mxu0 0.0
        %5972 = vmatpush1.msra.mxu0 0.0
        %5973 = vmatprep.subr.mxu0 0.0
        %5974 = vmatpush1.msra.mxu0 0.0
        %5975 = vmatprep.subr.mxu0 0.0
        %5976 = vmatpush1.msra.mxu0 0.0
        %5977 = vmatprep.subr.mxu0 0.0
        %5978 = vmatpush1.msra.mxu0 0.0
        %5979 = vmatprep.subr.mxu0 0.0
        %5980 = vmatpush1.msra.mxu0 0.0
        %5981 = vmatprep.subr.mxu0 0.0
        %5982 = vmatpush1.msra.mxu0 0.0
        %5983 = vmatprep.subr.mxu0 0.0
        %5984 = vmatpush1.msra.mxu0 0.0
        %5985 = vmatprep.subr.mxu0 0.0
        %5986 = vmatpush1.msra.mxu0 0.0
        %5987 = vmatprep.subr.mxu0 0.0
        %5988 = vmatpush1.msra.mxu0 0.0
        %5989 = vmatprep.subr.mxu0 0.0
        %5990 = vmatpush1.msra.mxu0 0.0
        %5991 = vmatprep.subr.mxu0 0.0
        %5992 = vmatpush1.msra.mxu0 0.0
        %5993 = vmatprep.subr.mxu0 0.0
        %5994 = vmatpush1.msra.mxu0 0.0
        %5995 = vmatprep.subr.mxu0 0.0
        %5996 = vmatpush1.msra.mxu0 0.0
        %5997 = vmatprep.subr.mxu0 0.0
        %5998 = vmatpush1.msra.mxu0 0.0
        %5999 = vmatprep.mubr.f32.mxu0 0.0
        %v6000 = vand.u32 %v5821, 4294901760
        %6001 = vmatmul.mubr.f32.gmra.mrb[0].mxu0 %v6000
        %v6002 = vpop.f32.mrb[0].mxu0
        %v6003 = vadd.f32 %v5902, %v6002
        %v6004 = vpop.f32.mrb[0].mxu0
        %6005 = vmatprep.mubr.f32.mxu0 0.0
        %v6006 = vand.u32 %v5824, 4294901760
        %6007 = vmatmul.mubr.f32.gmra.mrb[0].mxu0 %v6006
        %v6008 = vpop.f32.mrb[0].mxu0
        %v6009 = vadd.f32 %v5912, %v6008
        %v6010 = vpop.f32.mrb[0].mxu0
        %6011 = vdwg.mxu0
        %6012 = vmatprep.subr.mxu0 0.0
        %v6013 = vand.u32 %v5806, 4294901760
        %v6014 = vsub.f32 %v5806, %v6013
        %6015 = vmatpush1.msra.mxu0 %v6014
        %6016 = vmatprep.subr.mxu0 0.0
        %v6017 = vand.u32 %v5807, 4294901760
        %v6018 = vsub.f32 %v5807, %v6017
        %6019 = vmatpush1.msra.mxu0 %v6018
        %6020 = vmatprep.subr.mxu0 0.0
        %v6021 = vand.u32 %v5808, 4294901760
        %v6022 = vsub.f32 %v5808, %v6021
        %6023 = vmatpush1.msra.mxu0 %v6022
        %6024 = vmatprep.subr.mxu0 0.0
        %v6025 = vand.u32 %v5809, 4294901760
        %v6026 = vsub.f32 %v5809, %v6025
        %6027 = vmatpush1.msra.mxu0 %v6026
        %6028 = vmatprep.subr.mxu0 0.0
        %6029 = vmatpush1.msra.mxu0 0.0
        %6030 = vmatprep.subr.mxu0 0.0
        %6031 = vmatpush1.msra.mxu0 0.0
        %6032 = vmatprep.subr.mxu0 0.0
        %6033 = vmatpush1.msra.mxu0 0.0
        %6034 = vmatprep.subr.mxu0 0.0
        %6035 = vmatpush1.msra.mxu0 0.0
        %6036 = vmatprep.subr.mxu0 0.0
        %6037 = vmatpush1.msra.mxu0 0.0
        %6038 = vmatprep.subr.mxu0 0.0
        %6039 = vmatpush1.msra.mxu0 0.0
        %6040 = vmatprep.subr.mxu0 0.0
        %6041 = vmatpush1.msra.mxu0 0.0
        %6042 = vmatprep.subr.mxu0 0.0
        %6043 = vmatpush1.msra.mxu0 0.0
        %6044 = vmatprep.subr.mxu0 0.0
        %6045 = vmatpush1.msra.mxu0 0.0
        %6046 = vmatprep.subr.mxu0 0.0
        %6047 = vmatpush1.msra.mxu0 0.0
        %6048 = vmatprep.subr.mxu0 0.0
        %6049 = vmatpush1.msra.mxu0 0.0
        %6050 = vmatprep.subr.mxu0 0.0
        %6051 = vmatpush1.msra.mxu0 0.0
        %6052 = vmatprep.subr.mxu0 0.0
        %6053 = vmatpush1.msra.mxu0 0.0
        %6054 = vmatprep.subr.mxu0 0.0
        %6055 = vmatpush1.msra.mxu0 0.0
        %6056 = vmatprep.subr.mxu0 0.0
        %6057 = vmatpush1.msra.mxu0 0.0
        %6058 = vmatprep.subr.mxu0 0.0
        %6059 = vmatpush1.msra.mxu0 0.0
        %6060 = vmatprep.subr.mxu0 0.0
        %6061 = vmatpush1.msra.mxu0 0.0
        %6062 = vmatprep.subr.mxu0 0.0
        %6063 = vmatpush1.msra.mxu0 0.0
        %6064 = vmatprep.subr.mxu0 0.0
        %6065 = vmatpush1.msra.mxu0 0.0
        %6066 = vmatprep.subr.mxu0 0.0
        %6067 = vmatpush1.msra.mxu0 0.0
        %6068 = vmatprep.subr.mxu0 0.0
        %6069 = vmatpush1.msra.mxu0 0.0
        %6070 = vmatprep.subr.mxu0 0.0
        %6071 = vmatpush1.msra.mxu0 0.0
        %6072 = vmatprep.subr.mxu0 0.0
        %6073 = vmatpush1.msra.mxu0 0.0
        %6074 = vmatprep.subr.mxu0 0.0
        %6075 = vmatpush1.msra.mxu0 0.0
        %6076 = vmatprep.subr.mxu0 0.0
        %6077 = vmatpush1.msra.mxu0 0.0
        %6078 = vmatprep.subr.mxu0 0.0
        %6079 = vmatpush1.msra.mxu0 0.0
        %6080 = vmatprep.subr.mxu0 0.0
        %6081 = vmatpush1.msra.mxu0 0.0
        %6082 = vmatprep.subr.mxu0 0.0
        %6083 = vmatpush1.msra.mxu0 0.0
        %6084 = vmatprep.mubr.f32.mxu0 0.0
        %v6085 = vand.u32 %v5821, 4294901760
        %v6086 = vsub.f32 %v5821, %v6085
        %6087 = vmatmul.mubr.f32.gmra.mrb[0].mxu0 %v6086
        %v6088 = vpop.f32.mrb[0].mxu0
        %v6089 = vadd.f32 %v6003, %v6088
        %v6090 = vpop.f32.mrb[0].mxu0
        %6091 = vmatprep.mubr.f32.mxu0 0.0
        %v6092 = vand.u32 %v5824, 4294901760
        %v6093 = vsub.f32 %v5824, %v6092
        %6094 = vmatmul.mubr.f32.gmra.mrb[0].mxu0 %v6093
        %v6095 = vpop.f32.mrb[0].mxu0
        %v6096 = vadd.f32 %v6009, %v6095
        %v6097 = vpop.f32.mrb[0].mxu0
        %6098 = vdwg.mxu0
        %6099 = vmatprep.subr.mxu0 0.0
        %v6100 = vand.u32 %v5806, 4294901760
        %6101 = vmatpush1.msra.mxu0 %v6100
        %6102 = vmatprep.subr.mxu0 0.0
        %v6103 = vand.u32 %v5807, 4294901760
        %6104 = vmatpush1.msra.mxu0 %v6103
        %6105 = vmatprep.subr.mxu0 0.0
        %v6106 = vand.u32 %v5808, 4294901760
        %6107 = vmatpush1.msra.mxu0 %v6106
        %6108 = vmatprep.subr.mxu0 0.0
        %v6109 = vand.u32 %v5809, 4294901760
        %6110 = vmatpush1.msra.mxu0 %v6109
        %6111 = vmatprep.subr.mxu0 0.0
        %6112 = vmatpush1.msra.mxu0 0.0
        %6113 = vmatprep.subr.mxu0 0.0
        %6114 = vmatpush1.msra.mxu0 0.0
        %6115 = vmatprep.subr.mxu0 0.0
        %6116 = vmatpush1.msra.mxu0 0.0
        %6117 = vmatprep.subr.mxu0 0.0
        %6118 = vmatpush1.msra.mxu0 0.0
        %6119 = vmatprep.subr.mxu0 0.0
        %6120 = vmatpush1.msra.mxu0 0.0
        %6121 = vmatprep.subr.mxu0 0.0
        %6122 = vmatpush1.msra.mxu0 0.0
        %6123 = vmatprep.subr.mxu0 0.0
        %6124 = vmatpush1.msra.mxu0 0.0
        %6125 = vmatprep.subr.mxu0 0.0
        %6126 = vmatpush1.msra.mxu0 0.0
        %6127 = vmatprep.subr.mxu0 0.0
        %6128 = vmatpush1.msra.mxu0 0.0
        %6129 = vmatprep.subr.mxu0 0.0
        %6130 = vmatpush1.msra.mxu0 0.0
        %6131 = vmatprep.subr.mxu0 0.0
        %6132 = vmatpush1.msra.mxu0 0.0
        %6133 = vmatprep.subr.mxu0 0.0
        %6134 = vmatpush1.msra.mxu0 0.0
        %6135 = vmatprep.subr.mxu0 0.0
        %6136 = vmatpush1.msra.mxu0 0.0
        %6137 = vmatprep.subr.mxu0 0.0
        %6138 = vmatpush1.msra.mxu0 0.0
        %6139 = vmatprep.subr.mxu0 0.0
        %6140 = vmatpush1.msra.mxu0 0.0
        %6141 = vmatprep.subr.mxu0 0.0
        %6142 = vmatpush1.msra.mxu0 0.0
        %6143 = vmatprep.subr.mxu0 0.0
        %6144 = vmatpush1.msra.mxu0 0.0
        %6145 = vmatprep.subr.mxu0 0.0
        %6146 = vmatpush1.msra.mxu0 0.0
        %6147 = vmatprep.subr.mxu0 0.0
        %6148 = vmatpush1.msra.mxu0 0.0
        %6149 = vmatprep.subr.mxu0 0.0
        %6150 = vmatpush1.msra.mxu0 0.0
        %6151 = vmatprep.subr.mxu0 0.0
        %6152 = vmatpush1.msra.mxu0 0.0
        %6153 = vmatprep.subr.mxu0 0.0
        %6154 = vmatpush1.msra.mxu0 0.0
        %6155 = vmatprep.subr.mxu0 0.0
        %6156 = vmatpush1.msra.mxu0 0.0
        %6157 = vmatprep.subr.mxu0 0.0
        %6158 = vmatpush1.msra.mxu0 0.0
        %6159 = vmatprep.subr.mxu0 0.0
        %6160 = vmatpush1.msra.mxu0 0.0
        %6161 = vmatprep.subr.mxu0 0.0
        %6162 = vmatpush1.msra.mxu0 0.0
        %6163 = vmatprep.subr.mxu0 0.0
        %6164 = vmatpush1.msra.mxu0 0.0
        %6165 = vmatprep.subr.mxu0 0.0
        %6166 = vmatpush1.msra.mxu0 0.0
        %6167 = vmatprep.mubr.f32.mxu0 0.0
        %v6168 = vand.u32 %v5821, 4294901760
        %v6169 = vsub.f32 %v5821, %v6168
        %v6170 = vand.u32 %v6169, 4294901760
        %6171 = vmatmul.mubr.f32.gmra.mrb[0].mxu0 %v6170
        %v6172 = vpop.f32.mrb[0].mxu0
        %v6173 = vadd.f32 %v6089, %v6172
        %v6174 = vpop.f32.mrb[0].mxu0
        %6175 = vmatprep.mubr.f32.mxu0 0.0
        %v6176 = vand.u32 %v5824, 4294901760
        %v6177 = vsub.f32 %v5824, %v6176
        %v6178 = vand.u32 %v6177, 4294901760
        %6179 = vmatmul.mubr.f32.gmra.mrb[0].mxu0 %v6178
        %v6180 = vpop.f32.mrb[0].mxu0
        %v6181 = vadd.f32 %v6096, %v6180
        %v6182 = vpop.f32.mrb[0].mxu0
        %6183 = vdwg.mxu0
        %6184 = vmatprep.subr.mxu0 0.0
        %v6185 = vand.u32 %v5806, 4294901760
        %v6186 = vsub.f32 %v5806, %v6185
        %v6187 = vand.u32 %v6186, 4294901760
        %6188 = vmatpush1.msra.mxu0 %v6187
        %6189 = vmatprep.subr.mxu0 0.0
        %v6190 = vand.u32 %v5807, 4294901760
        %v6191 = vsub.f32 %v5807, %v6190
        %v6192 = vand.u32 %v6191, 4294901760
        %6193 = vmatpush1.msra.mxu0 %v6192
        %6194 = vmatprep.subr.mxu0 0.0
        %v6195 = vand.u32 %v5808, 4294901760
        %v6196 = vsub.f32 %v5808, %v6195
        %v6197 = vand.u32 %v6196, 4294901760
        %6198 = vmatpush1.msra.mxu0 %v6197
        %6199 = vmatprep.subr.mxu0 0.0
        %v6200 = vand.u32 %v5809, 4294901760
        %v6201 = vsub.f32 %v5809, %v6200
        %v6202 = vand.u32 %v6201, 4294901760
        %6203 = vmatpush1.msra.mxu0 %v6202
        %6204 = vmatprep.subr.mxu0 0.0
        %6205 = vmatpush1.msra.mxu0 0.0
        %6206 = vmatprep.subr.mxu0 0.0
        %6207 = vmatpush1.msra.mxu0 0.0
        %6208 = vmatprep.subr.mxu0 0.0
        %6209 = vmatpush1.msra.mxu0 0.0
        %6210 = vmatprep.subr.mxu0 0.0
        %6211 = vmatpush1.msra.mxu0 0.0
        %6212 = vmatprep.subr.mxu0 0.0
        %6213 = vmatpush1.msra.mxu0 0.0
        %6214 = vmatprep.subr.mxu0 0.0
        %6215 = vmatpush1.msra.mxu0 0.0
        %6216 = vmatprep.subr.mxu0 0.0
        %6217 = vmatpush1.msra.mxu0 0.0
        %6218 = vmatprep.subr.mxu0 0.0
        %6219 = vmatpush1.msra.mxu0 0.0
        %6220 = vmatprep.subr.mxu0 0.0
        %6221 = vmatpush1.msra.mxu0 0.0
        %6222 = vmatprep.subr.mxu0 0.0
        %6223 = vmatpush1.msra.mxu0 0.0
        %6224 = vmatprep.subr.mxu0 0.0
        %6225 = vmatpush1.msra.mxu0 0.0
        %6226 = vmatprep.subr.mxu0 0.0
        %6227 = vmatpush1.msra.mxu0 0.0
        %6228 = vmatprep.subr.mxu0 0.0
        %6229 = vmatpush1.msra.mxu0 0.0
        %6230 = vmatprep.subr.mxu0 0.0
        %6231 = vmatpush1.msra.mxu0 0.0
        %6232 = vmatprep.subr.mxu0 0.0
        %6233 = vmatpush1.msra.mxu0 0.0
        %6234 = vmatprep.subr.mxu0 0.0
        %6235 = vmatpush1.msra.mxu0 0.0
        %6236 = vmatprep.subr.mxu0 0.0
        %6237 = vmatpush1.msra.mxu0 0.0
        %6238 = vmatprep.subr.mxu0 0.0
        %6239 = vmatpush1.msra.mxu0 0.0
        %6240 = vmatprep.subr.mxu0 0.0
        %6241 = vmatpush1.msra.mxu0 0.0
        %6242 = vmatprep.subr.mxu0 0.0
        %6243 = vmatpush1.msra.mxu0 0.0
        %6244 = vmatprep.subr.mxu0 0.0
        %6245 = vmatpush1.msra.mxu0 0.0
        %6246 = vmatprep.subr.mxu0 0.0
        %6247 = vmatpush1.msra.mxu0 0.0
        %6248 = vmatprep.subr.mxu0 0.0
        %6249 = vmatpush1.msra.mxu0 0.0
        %6250 = vmatprep.subr.mxu0 0.0
        %6251 = vmatpush1.msra.mxu0 0.0
        %6252 = vmatprep.subr.mxu0 0.0
        %6253 = vmatpush1.msra.mxu0 0.0
        %6254 = vmatprep.subr.mxu0 0.0
        %6255 = vmatpush1.msra.mxu0 0.0
        %6256 = vmatprep.subr.mxu0 0.0
        %6257 = vmatpush1.msra.mxu0 0.0
        %6258 = vmatprep.subr.mxu0 0.0
        %6259 = vmatpush1.msra.mxu0 0.0
        %6260 = vmatprep.mubr.f32.mxu0 0.0
        %v6261 = vand.u32 %v5821, 4294901760
        %6262 = vmatmul.mubr.f32.gmra.mrb[0].mxu0 %v6261
        %v6263 = vpop.f32.mrb[0].mxu0
        %v6264 = vadd.f32 %v6173, %v6263
        %v6265 = vpop.f32.mrb[0].mxu0
        %6266 = vmatprep.mubr.f32.mxu0 0.0
        %v6267 = vand.u32 %v5824, 4294901760
        %6268 = vmatmul.mubr.f32.gmra.mrb[0].mxu0 %v6267
        %v6269 = vpop.f32.mrb[0].mxu0
        %v6270 = vadd.f32 %v6181, %v6269
        %v6271 = vpop.f32.mrb[0].mxu0
        %6272 = vdwg.mxu0
        %6273 = vmatprep.subr.mxu0 0.0
        %v6274 = vand.u32 %v5806, 4294901760
        %6275 = vmatpush1.msra.mxu0 %v6274
        %6276 = vmatprep.subr.mxu0 0.0
        %v6277 = vand.u32 %v5807, 4294901760
        %6278 = vmatpush1.msra.mxu0 %v6277
        %6279 = vmatprep.subr.mxu0 0.0
        %v6280 = vand.u32 %v5808, 4294901760
        %6281 = vmatpush1.msra.mxu0 %v6280
        %6282 = vmatprep.subr.mxu0 0.0
        %v6283 = vand.u32 %v5809, 4294901760
        %6284 = vmatpush1.msra.mxu0 %v6283
        %6285 = vmatprep.subr.mxu0 0.0
        %6286 = vmatpush1.msra.mxu0 0.0
        %6287 = vmatprep.subr.mxu0 0.0
        %6288 = vmatpush1.msra.mxu0 0.0
        %6289 = vmatprep.subr.mxu0 0.0
        %6290 = vmatpush1.msra.mxu0 0.0
        %6291 = vmatprep.subr.mxu0 0.0
        %6292 = vmatpush1.msra.mxu0 0.0
        %6293 = vmatprep.subr.mxu0 0.0
        %6294 = vmatpush1.msra.mxu0 0.0
        %6295 = vmatprep.subr.mxu0 0.0
        %6296 = vmatpush1.msra.mxu0 0.0
        %6297 = vmatprep.subr.mxu0 0.0
        %6298 = vmatpush1.msra.mxu0 0.0
        %6299 = vmatprep.subr.mxu0 0.0
        %6300 = vmatpush1.msra.mxu0 0.0
        %6301 = vmatprep.subr.mxu0 0.0
        %6302 = vmatpush1.msra.mxu0 0.0
        %6303 = vmatprep.subr.mxu0 0.0
        %6304 = vmatpush1.msra.mxu0 0.0
        %6305 = vmatprep.subr.mxu0 0.0
        %6306 = vmatpush1.msra.mxu0 0.0
        %6307 = vmatprep.subr.mxu0 0.0
        %6308 = vmatpush1.msra.mxu0 0.0
        %6309 = vmatprep.subr.mxu0 0.0
        %6310 = vmatpush1.msra.mxu0 0.0
        %6311 = vmatprep.subr.mxu0 0.0
        %6312 = vmatpush1.msra.mxu0 0.0
        %6313 = vmatprep.subr.mxu0 0.0
        %6314 = vmatpush1.msra.mxu0 0.0
        %6315 = vmatprep.subr.mxu0 0.0
        %6316 = vmatpush1.msra.mxu0 0.0
        %6317 = vmatprep.subr.mxu0 0.0
        %6318 = vmatpush1.msra.mxu0 0.0
        %6319 = vmatprep.subr.mxu0 0.0
        %6320 = vmatpush1.msra.mxu0 0.0
        %6321 = vmatprep.subr.mxu0 0.0
        %6322 = vmatpush1.msra.mxu0 0.0
        %6323 = vmatprep.subr.mxu0 0.0
        %6324 = vmatpush1.msra.mxu0 0.0
        %6325 = vmatprep.subr.mxu0 0.0
        %6326 = vmatpush1.msra.mxu0 0.0
        %6327 = vmatprep.subr.mxu0 0.0
        %6328 = vmatpush1.msra.mxu0 0.0
        %6329 = vmatprep.subr.mxu0 0.0
        %6330 = vmatpush1.msra.mxu0 0.0
        %6331 = vmatprep.subr.mxu0 0.0
        %6332 = vmatpush1.msra.mxu0 0.0
        %6333 = vmatprep.subr.mxu0 0.0
        %6334 = vmatpush1.msra.mxu0 0.0
        %6335 = vmatprep.subr.mxu0 0.0
        %6336 = vmatpush1.msra.mxu0 0.0
        %6337 = vmatprep.subr.mxu0 0.0
        %6338 = vmatpush1.msra.mxu0 0.0
        %6339 = vmatprep.subr.mxu0 0.0
        %6340 = vmatpush1.msra.mxu0 0.0
        %6341 = vmatprep.mubr.f32.mxu0 0.0
        %v6342 = vand.u32 %v5821, 4294901760
        %6343 = vmatmul.mubr.f32.gmra.mrb[0].mxu0 %v6342
        %v6344 = vpop.f32.mrb[0].mxu0
        %v6345 = vadd.f32 %v6264, %v6344
        %v6346 = vpop.f32.mrb[0].mxu0
        %6347 = vmatprep.mubr.f32.mxu0 0.0
        %v6348 = vand.u32 %v5824, 4294901760
        %6349 = vmatmul.mubr.f32.gmra.mrb[0].mxu0 %v6348
        %v6350 = vpop.f32.mrb[0].mxu0
        %v6351 = vadd.f32 %v6270, %v6350
        %v6352 = vpop.f32.mrb[0].mxu0
        %6353 = vdwg.mxu0
        %v6354 = vadd.f32 %v6345, %v4832
        %v6355 = vadd.f32 %v6351, %v4833
        %6356 = vst [vmem:[%s258] sm:$0xff] %v6354
        %6357 = vst [vmem:[%s258 + $0x8] sm:$0xff] %v6355
        %s6358 = sand.u32 %s160, 1
        %s6359 = scalar_lea.sflag [#allocation3], %s6358
        %s6360 = sand.u32 %s160, 1
        %s6361 = smul.addr %s6360, 16
        %s6362 = scalar_lea.vmem [#allocation5], %s6361
        // Predicated region
        $region49: #{audio_sequential.1} parent=43 // pred_check
          %p6363 = pneg %p170
        $region50: #{audio_sequential.1} parent=43 // pred_check_branch
          %6365 = sbr.rel (%p6363) target = $region52
        $region51: #{audio_sequential.1} parent=43 // pred_region
          %s6367 = ssub.s32 256, 256
          %6368 = vsyncadd %s6359, %s6367
          %s6369 = smul.addr %s21, 2
          %s6370 = smul.addr %s6369, 128
          %s6371 = scalar_lea.hbm %s6, %s6370
          %s6372 = sshll.u32 %s6362, 4
          %s6373 = int_to_ptr.vmem [resolvable:$true] %s6372
          %6378 = dma.vmem_to_hbm [thread:$0]  %s6373, 256, %s6371, %s6359, 128, 128, 8
        $region52: #{audio_sequential.1} parent=43 // pred_fallthru
          _
      $region44: #{audio_sequential.1} parent=5 // pred_fallthru
        _
      %p6379 = scmp.le.s32.totalorder 2, %s16
      // Predicated region
      $region53: #{audio_sequential.1} parent=5 // pred_check
        %p6380 = pneg %p6379
      $region54: #{audio_sequential.1} parent=5 // pred_check_branch
        %6382 = sbr.rel (%p6380) target = $region56
      $region55: #{audio_sequential.1} parent=5 // pred_region
        %s6383 = ssub.s32 %s16, 2
        // Predicated region
        $region57: #{audio_sequential.1} parent=55 // pred_check
          %p6384 = pneg %p176
        $region58: #{audio_sequential.1} parent=55 // pred_check_branch
          %6386 = sbr.rel (%p6384) target = $region60
        $region59: #{audio_sequential.1} parent=55 // pred_region
          %s6387 = sand.u32 %s161, 1
          %s6388 = scalar_lea.sflag [#allocation3], %s6387
          %s6389 = sand.u32 %s161, 1
          %s6390 = smul.addr %s6389, 16
          %s6391 = scalar_lea.vmem [#allocation5], %s6390
          %6392 = dma.done %s6388, 256
        $region60: #{audio_sequential.1} parent=55 // pred_fallthru
          _
      $region56: #{audio_sequential.1} parent=5 // pred_fallthru
        _
    $region6: #{audio_sequential.1} parent=1 // loop_footer
      %s20 = sadd.s32 1, %s16
    $region7: #{audio_sequential.1} parent=1 // loop_footer_branch
      %15 = sbr.rel target = $region3
    $region8: #{audio_sequential.1} parent=1 // loop_exit
      _
    %6393 = vsyncpa [#allocation3], 1
    %s6394 = scalar_lea.sflag [#allocation3], 1
    %6395 = vsyncpa %s6394, 1
    %6396 = vsyncpa [#allocation4], 1
    %s6397 = scalar_lea.sflag [#allocation4], 1
    %6398 = vsyncpa %s6397, 1

</llo_original>
